<compile_context>
chip_gen: v5e
topology: v5e:2x2
jax: 0.10.0
libtpu: 0.0.40
codegen_flags: <defaults>
</compile_context>

<pallas_src>
import functools

import numpy as np
import jax
import jax.numpy as jnp
from jax.experimental import pallas as pl
from jax.experimental.pallas import tpu as pltpu


# --------------------------------------------------------------------------
# in-kernel helper (operates on values, not refs)
# --------------------------------------------------------------------------
def _layernorm_f32(x, g, b, eps=1e-5):
    mu = jnp.mean(x, axis=-1, keepdims=True)
    var = jnp.mean(jnp.square(x - mu), axis=-1, keepdims=True)
    return (x - mu) * jax.lax.rsqrt(var + eps) * g + b


# --------------------------------------------------------------------------
# Fused kernel: patch-embed + LN1 + depthwise KxK conv + residual
#               + LN2 + MLP + residual + LN3 + mean-pool + classifier head
# --------------------------------------------------------------------------
def _lkca_fused_kernel(p_ref, pw_ref, pb_ref, g1_ref, b1_ref, s_ref, dww_ref,
                       dwb_ref, g2_ref, b2_ref, w1_ref, mb1_ref, w2_ref,
                       mb2_ref, g3_ref, b3_ref, hw_ref, hb_ref, o_ref,
                       *, Bt, N, K):
    # ---- patch embedding: (Bt*N, KpPad) @ (KpPad, D); bf16 operands, f32 acc
    tok = jnp.dot(p_ref[...].astype(jnp.bfloat16), pw_ref[...],
                  preferred_element_type=jnp.float32) + pb_ref[...]

    # ---- LKCA "attention": LN1 + depthwise KxK conv over the token grid
    # (one MXU shift-matmul + one VPU FMA per tap) + residual
    xn = _layernorm_f32(tok, g1_ref[...], b1_ref[...])
    xn_bf = xn.astype(jnp.bfloat16)
    acc = jnp.zeros_like(tok)
    for t in range(K * K):                       # static unroll, K*K taps
        shifted = jnp.dot(s_ref[t], xn_bf, preferred_element_type=jnp.float32)
        acc = acc + shifted * dww_ref[t:t + 1, :]
    tok = tok + acc + dwb_ref[...]

    # ---- MLP block: LN2 + W1 -> gelu -> W2 + residual
    x2 = _layernorm_f32(tok, g2_ref[...], b2_ref[...])
    h = jnp.dot(x2.astype(jnp.bfloat16), w1_ref[...],
                preferred_element_type=jnp.float32) + mb1_ref[...]
    # TODO(synk): PyTorch nn.GELU defaults to exact erf; using the tanh
    # approximation (guaranteed Mosaic lowering) — tiny numeric mismatch.
    h = jax.nn.gelu(h, approximate=True)
    y = jnp.dot(h.astype(jnp.bfloat16), w2_ref[...],
                preferred_element_type=jnp.float32) + mb2_ref[...]
    tok = tok + y

    # ---- head: LN3 + per-image mean pool + classifier (one M=Bt matmul)
    x3 = _layernorm_f32(tok, g3_ref[...], b3_ref[...])
    pooled = jnp.mean(x3.reshape(Bt, N, x3.shape[-1]), axis=1)     # (Bt, D)
    logits = jnp.dot(pooled.astype(jnp.bfloat16), hw_ref[...],
                     preferred_element_type=jnp.float32) + hb_ref[...]
    o_ref[...] = logits.astype(o_ref.dtype)                        # (Bt, Cp)


# --------------------------------------------------------------------------
# Host-side static helpers
# --------------------------------------------------------------------------
def _conv_shift_matrices(nH, nW, K, Bt):
    """(K*K, Bt*N, Bt*N) 0/1 matrices: S[t] @ x gathers, for every output
    token, its (dy, dx) = divmod(t, K) neighbor with "same" zero padding,
    block-diagonal over the Bt images packed into one grid step."""
    N, pad = nH * nW, K // 2
    s = np.zeros((K * K, N, N), np.float32)
    for dy in range(K):
        for dx in range(K):
            for h in range(nH):
                for w in range(nW):
                    hh, ww = h + dy - pad, w + dx - pad
                    if 0 <= hh < nH and 0 <= ww < nW:
                        s[dy * K + dx, h * nW + w, hh * nW + ww] = 1.0
    eye = np.eye(Bt, dtype=np.float32)
    return np.stack([np.kron(eye, s[t]) for t in range(K * K)])


def _pick_bt(B, N, *, target_rows=128):
    """Batch elements per grid step: Bt*N is the MXU M dimension (want >= 128),
    keep >= 2 grid steps when possible (v7x has 2 TensorCores), and keep the
    (Bt, classes) output block sublane-aligned (Bt % 8 == 0 or Bt == B)."""
    divisors = [d for d in range(1, B + 1) if B % d == 0]
    legal = [d for d in divisors if d % 8 == 0 or d == B]
    def score(d):
        return (1 if B // d >= 2 else 0, min(d * N, target_rows), -d)
    return max(legal, key=score)


# --------------------------------------------------------------------------
# Parameters (deterministic synthetic init) and model
# --------------------------------------------------------------------------
def init_params(key, *, in_ch=3, patch=4, dim=128, k=5, mlp_ratio=2,
                num_classes=10, classes_pad=128, kp_pad=128):
    ks = jax.random.split(key, 5)
    hid = dim * mlp_ratio
    f32, bf16 = jnp.float32, jnp.bfloat16
    kp = patch * patch * in_ch
    # patch-embed weight: only the first kp rows are live (im2col cols are
    # zero-padded to kp_pad=128 in the wrapper for lane-dense MXU loads)
    patch_w = jnp.zeros((kp_pad, dim), f32).at[:kp].set(
        jax.random.normal(ks[0], (kp, dim), f32) * kp ** -0.5)
    head_w = jnp.zeros((dim, classes_pad), f32).at[:, :num_classes].set(
        jax.random.normal(ks[4], (dim, num_classes), f32) * dim ** -0.5)
    return {
        # matmul weights stored bf16 (MXU-native); biases/LN/conv taps in f32
        "patch_w": patch_w.astype(bf16),
        "patch_b": jnp.zeros((1, dim), f32),
        "ln1_g": jnp.ones((1, dim), f32), "ln1_b": jnp.zeros((1, dim), f32),
        # (K*K, D) layout with idx = dy*K + dx; real PyTorch (D,1,K,K)
        # depthwise checkpoints must be permuted to this layout.
        "dw_w": jax.random.normal(ks[1], (k * k, dim), f32) * (1.0 / (k * k)),
        "dw_b": jnp.zeros((1, dim), f32),
        "ln2_g": jnp.ones((1, dim), f32), "ln2_b": jnp.zeros((1, dim), f32),
        "mlp_w1": (jax.random.normal(ks[2], (dim, hid), f32) * dim ** -0.5).astype(bf16),
        "mlp_b1": jnp.zeros((1, hid), f32),
        "mlp_w2": (jax.random.normal(ks[3], (hid, dim), f32) * hid ** -0.5).astype(bf16),
        "mlp_b2": jnp.zeros((1, dim), f32),
        "ln3_g": jnp.ones((1, dim), f32), "ln3_b": jnp.zeros((1, dim), f32),
        "head_w": head_w.astype(bf16),
        "head_b": jnp.zeros((1, classes_pad), f32),
    }


def lkca_forward(params, x_nchw, *, patch=4, num_classes=10):
    # LKCA wrapper semantics: if the input has a single channel, repeat to 3.
    if x_nchw.shape[1] == 1:
        x_nchw = jnp.tile(x_nchw, (1, 3, 1, 1))
    B, Cin, H, W = x_nchw.shape
    nH, nW = H // patch, W // patch
    N = nH * nW
    Kp = patch * patch * Cin
    KpPad, D = params["patch_w"].shape
    hid = params["mlp_w1"].shape[1]
    Cp = params["head_w"].shape[1]
    K = int(round(params["dw_w"].shape[0] ** 0.5))

    Bt = _pick_bt(B, N)
    G = B // Bt
    BtN = Bt * N

    # TODO(synk): at real image sizes fold this NCHW->NHWC transpose + im2col
    # into the kernel's BlockSpec index_map; negligible at 16x16.
    x = jnp.transpose(x_nchw, (0, 2, 3, 1))                         # NHWC
    patches = x.reshape(B, nH, patch, nW, patch, Cin)
    patches = patches.transpose(0, 1, 3, 2, 4, 5).reshape(B * N, Kp)
    patches = jnp.pad(patches, ((0, 0), (0, KpPad - Kp)))           # lane-dense

    # 0/1 conv shift matrices: geometry constants, not model weights (bf16).
    # TODO(synk): (K*K, Bt*N, Bt*N) grows quadratically with Bt*N; for large
    # token grids switch to a padded-scratch / pltpu.roll shift formulation.
    s_bd = jnp.asarray(_conv_shift_matrices(nH, nW, K, Bt), jnp.bfloat16)

    def _rep(shape):   # replicated (weight) block: full array, constant index
        return pl.BlockSpec(shape, lambda i: (0,) * len(shape))

    cparams = pltpu.CompilerParams(
        dimension_semantics=("parallel",),        # batch chunks shard across TCs
        vmem_limit_bytes=32 * 1024 * 1024)        # safe on v5e/v6e and v7x(64MiB)

    logits_pad = pl.pallas_call(
        functools.partial(_lkca_fused_kernel, Bt=Bt, N=N, K=K),
        out_shape=jax.ShapeDtypeStruct((B, Cp), jnp.float32),
        grid=(G,),
        in_specs=[
            pl.BlockSpec((BtN, KpPad), lambda i: (i, 0)),           # patches
            _rep((KpPad, D)), _rep((1, D)),                         # patch embed
            _rep((1, D)), _rep((1, D)),                             # LN1
            _rep((K * K, BtN, BtN)), _rep((K * K, D)), _rep((1, D)),  # dw conv
            _rep((1, D)), _rep((1, D)),                             # LN2
            _rep((D, hid)), _rep((1, hid)), _rep((hid, D)), _rep((1, D)),  # MLP
            _rep((1, D)), _rep((1, D)),                             # LN3
            _rep((D, Cp)), _rep((1, Cp)),                           # head
        ],
        out_specs=pl.BlockSpec((Bt, Cp), lambda i: (i, 0)),
        compiler_params=cparams,
    )(patches, params["patch_w"], params["patch_b"],
      params["ln1_g"], params["ln1_b"],
      s_bd, params["dw_w"], params["dw_b"],
      params["ln2_g"], params["ln2_b"],
      params["mlp_w1"], params["mlp_b1"], params["mlp_w2"], params["mlp_b2"],
      params["ln3_g"], params["ln3_b"],
      params["head_w"], params["head_b"])

    return logits_pad[:, :num_classes]                              # (B, classes)


if __name__ == "__main__":
    key = jax.random.PRNGKey(0)
    pkey, xkey = jax.random.split(key)
    params = init_params(pkey)
    # grayscale input exercises the 1->3 channel repeat path of LKCA.forward;
    # B=16 -> Bt=8 per grid step (M=128 MXU rows) and 2 grid steps (v7x 2 TCs).
    x = jax.random.normal(xkey, (16, 1, 16, 16), jnp.float32)
    logits = jax.jit(functools.partial(lkca_forward, params))(x)
    jax.block_until_ready(logits)
    assert logits.shape == (16, 10)
    assert bool(jnp.all(jnp.isfinite(logits)))
    print("KERNEL_OK")
</pallas_src>

<mosaic_0001>
module attributes {stable_mosaic.version = 11 : i64} {
  func.func @_lkca_fused_kernel(%arg0: i32, %arg1: memref<128x128xf32, #tpu.memory_space<vmem>>, %arg2: memref<128x128xbf16, #tpu.memory_space<vmem>>, %arg3: memref<1x128xf32, #tpu.memory_space<vmem>>, %arg4: memref<1x128xf32, #tpu.memory_space<vmem>>, %arg5: memref<1x128xf32, #tpu.memory_space<vmem>>, %arg6: memref<25x128x128xbf16, #tpu.memory_space<vmem>>, %arg7: memref<25x128xf32, #tpu.memory_space<vmem>>, %arg8: memref<1x128xf32, #tpu.memory_space<vmem>>, %arg9: memref<1x128xf32, #tpu.memory_space<vmem>>, %arg10: memref<1x128xf32, #tpu.memory_space<vmem>>, %arg11: memref<128x256xbf16, #tpu.memory_space<vmem>>, %arg12: memref<1x256xf32, #tpu.memory_space<vmem>>, %arg13: memref<256x128xbf16, #tpu.memory_space<vmem>>, %arg14: memref<1x128xf32, #tpu.memory_space<vmem>>, %arg15: memref<1x128xf32, #tpu.memory_space<vmem>>, %arg16: memref<1x128xf32, #tpu.memory_space<vmem>>, %arg17: memref<128x128xbf16, #tpu.memory_space<vmem>>, %arg18: memref<1x128xf32, #tpu.memory_space<vmem>>, %arg19: memref<8x128xf32, #tpu.memory_space<vmem>>) attributes {dimension_semantics = [#tpu.dimension_semantics<parallel>], iteration_bounds = array<i64: 2>, scalar_prefetch = 0 : i64, scratch_operands = 0 : i64, tpu.core_type = #tpu.core_type<tc>, window_params = [{transform_indices = @transform_0, window_bounds = array<i64: 128, 128>}, {pipeline_mode = #tpu.pipeline_mode<synchronous>, transform_indices = @transform_1, window_bounds = array<i64: 128, 128>}, {pipeline_mode = #tpu.pipeline_mode<synchronous>, transform_indices = @transform_2, window_bounds = array<i64: 1, 128>}, {pipeline_mode = #tpu.pipeline_mode<synchronous>, transform_indices = @transform_3, window_bounds = array<i64: 1, 128>}, {pipeline_mode = #tpu.pipeline_mode<synchronous>, transform_indices = @transform_4, window_bounds = array<i64: 1, 128>}, {pipeline_mode = #tpu.pipeline_mode<synchronous>, transform_indices = @transform_5, window_bounds = array<i64: 25, 128, 128>}, {pipeline_mode = #tpu.pipeline_mode<synchronous>, transform_indices = @transform_6, window_bounds = array<i64: 25, 128>}, {pipeline_mode = #tpu.pipeline_mode<synchronous>, transform_indices = @transform_7, window_bounds = array<i64: 1, 128>}, {pipeline_mode = #tpu.pipeline_mode<synchronous>, transform_indices = @transform_8, window_bounds = array<i64: 1, 128>}, {pipeline_mode = #tpu.pipeline_mode<synchronous>, transform_indices = @transform_9, window_bounds = array<i64: 1, 128>}, {pipeline_mode = #tpu.pipeline_mode<synchronous>, transform_indices = @transform_10, window_bounds = array<i64: 128, 256>}, {pipeline_mode = #tpu.pipeline_mode<synchronous>, transform_indices = @transform_11, window_bounds = array<i64: 1, 256>}, {pipeline_mode = #tpu.pipeline_mode<synchronous>, transform_indices = @transform_12, window_bounds = array<i64: 256, 128>}, {pipeline_mode = #tpu.pipeline_mode<synchronous>, transform_indices = @transform_13, window_bounds = array<i64: 1, 128>}, {pipeline_mode = #tpu.pipeline_mode<synchronous>, transform_indices = @transform_14, window_bounds = array<i64: 1, 128>}, {pipeline_mode = #tpu.pipeline_mode<synchronous>, transform_indices = @transform_15, window_bounds = array<i64: 1, 128>}, {pipeline_mode = #tpu.pipeline_mode<synchronous>, transform_indices = @transform_16, window_bounds = array<i64: 128, 128>}, {pipeline_mode = #tpu.pipeline_mode<synchronous>, transform_indices = @transform_17, window_bounds = array<i64: 1, 128>}, {transform_indices = @transform_18, window_bounds = array<i64: 8, 128>}]} {
    %c0 = arith.constant 0 : index
    %c0_0 = arith.constant 0 : index
    %0 = vector.load %arg1[%c0, %c0_0] : memref<128x128xf32, #tpu.memory_space<vmem>>, vector<128x128xf32>
    %1 = arith.truncf %0 : vector<128x128xf32> to vector<128x128xbf16>
    %c0_1 = arith.constant 0 : index
    %c0_2 = arith.constant 0 : index
    %2 = vector.load %arg2[%c0_1, %c0_2] : memref<128x128xbf16, #tpu.memory_space<vmem>>, vector<128x128xbf16>
    %cst = arith.constant dense<0.000000e+00> : vector<128x128xf32>
    %3 = tpu.matmul %1, %2, %cst {dimension_numbers = #tpu.dot_dimension_numbers<[1], [0], [0], [1], [0, 0, 1, 1], [], []>} : vector<128x128xbf16>, vector<128x128xbf16>, vector<128x128xf32> -> vector<128x128xf32>
    %c0_3 = arith.constant 0 : index
    %c0_4 = arith.constant 0 : index
    %4 = vector.load %arg3[%c0_3, %c0_4] : memref<1x128xf32, #tpu.memory_space<vmem>>, vector<1x128xf32>
    %5 = vector.broadcast %4 : vector<1x128xf32> to vector<128x128xf32>
    %6 = arith.addf %3, %5 : vector<128x128xf32>
    %c0_5 = arith.constant 0 : index
    %c0_6 = arith.constant 0 : index
    %7 = vector.load %arg4[%c0_5, %c0_6] : memref<1x128xf32, #tpu.memory_space<vmem>>, vector<1x128xf32>
    %c0_7 = arith.constant 0 : index
    %c0_8 = arith.constant 0 : index
    %8 = vector.load %arg5[%c0_7, %c0_8] : memref<1x128xf32, #tpu.memory_space<vmem>>, vector<1x128xf32>
    %cst_9 = arith.constant dense<0.000000e+00> : vector<128xf32>
    %9 = vector.multi_reduction <add>, %6, %cst_9 [1] : vector<128x128xf32> to vector<128xf32>
    %10 = vector.shape_cast %9 : vector<128xf32> to vector<128x1xf32>
    %cst_10 = arith.constant 1.280000e+02 : f32
    %11 = vector.broadcast %cst_10 : f32 to vector<128x1xf32>
    %12 = arith.divf %10, %11 : vector<128x1xf32>
    %13 = vector.broadcast %12 : vector<128x1xf32> to vector<128x128xf32>
    %14 = arith.subf %6, %13 : vector<128x128xf32>
    %15 = arith.mulf %14, %14 : vector<128x128xf32>
    %cst_11 = arith.constant dense<0.000000e+00> : vector<128xf32>
    %16 = vector.multi_reduction <add>, %15, %cst_11 [1] : vector<128x128xf32> to vector<128xf32>
    %17 = vector.shape_cast %16 : vector<128xf32> to vector<128x1xf32>
    %cst_12 = arith.constant 1.280000e+02 : f32
    %18 = vector.broadcast %cst_12 : f32 to vector<128x1xf32>
    %19 = arith.divf %17, %18 : vector<128x1xf32>
    %20 = vector.broadcast %12 : vector<128x1xf32> to vector<128x128xf32>
    %21 = arith.subf %6, %20 : vector<128x128xf32>
    %cst_13 = arith.constant 9.99999974E-6 : f32
    %22 = vector.broadcast %cst_13 : f32 to vector<128x1xf32>
    %23 = arith.addf %19, %22 : vector<128x1xf32>
    %24 = math.rsqrt %23 : vector<128x1xf32>
    %25 = vector.broadcast %24 : vector<128x1xf32> to vector<128x128xf32>
    %26 = arith.mulf %21, %25 : vector<128x128xf32>
    %27 = vector.broadcast %7 : vector<1x128xf32> to vector<128x128xf32>
    %28 = arith.mulf %26, %27 : vector<128x128xf32>
    %29 = vector.broadcast %8 : vector<1x128xf32> to vector<128x128xf32>
    %30 = arith.addf %28, %29 : vector<128x128xf32>
    %31 = arith.truncf %30 : vector<128x128xf32> to vector<128x128xbf16>
    %cst_14 = arith.constant 0.000000e+00 : f32
    %32 = vector.broadcast %cst_14 : f32 to vector<128x128xf32>
    %c0_15 = arith.constant 0 : index
    %c0_16 = arith.constant 0 : index
    %c0_17 = arith.constant 0 : index
    %33 = vector.load %arg6[%c0_15, %c0_16, %c0_17] : memref<25x128x128xbf16, #tpu.memory_space<vmem>>, vector<1x128x128xbf16>
    %34 = vector.shape_cast %33 : vector<1x128x128xbf16> to vector<128x128xbf16>
    %cst_18 = arith.constant dense<0.000000e+00> : vector<128x128xf32>
    %35 = tpu.matmul %34, %31, %cst_18 {dimension_numbers = #tpu.dot_dimension_numbers<[1], [0], [0], [1], [0, 0, 1, 1], [], []>} : vector<128x128xbf16>, vector<128x128xbf16>, vector<128x128xf32> -> vector<128x128xf32>
    %c0_19 = arith.constant 0 : index
    %c0_20 = arith.constant 0 : index
    %36 = vector.load %arg7[%c0_19, %c0_20] : memref<25x128xf32, #tpu.memory_space<vmem>>, vector<1x128xf32>
    %37 = vector.broadcast %36 : vector<1x128xf32> to vector<128x128xf32>
    %38 = arith.mulf %35, %37 : vector<128x128xf32>
    %39 = arith.addf %32, %38 : vector<128x128xf32>
    %c1 = arith.constant 1 : index
    %c0_21 = arith.constant 0 : index
    %c0_22 = arith.constant 0 : index
    %40 = vector.load %arg6[%c1, %c0_21, %c0_22] : memref<25x128x128xbf16, #tpu.memory_space<vmem>>, vector<1x128x128xbf16>
    %41 = vector.shape_cast %40 : vector<1x128x128xbf16> to vector<128x128xbf16>
    %cst_23 = arith.constant dense<0.000000e+00> : vector<128x128xf32>
    %42 = tpu.matmul %41, %31, %cst_23 {dimension_numbers = #tpu.dot_dimension_numbers<[1], [0], [0], [1], [0, 0, 1, 1], [], []>} : vector<128x128xbf16>, vector<128x128xbf16>, vector<128x128xf32> -> vector<128x128xf32>
    %c1_24 = arith.constant 1 : index
    %c0_25 = arith.constant 0 : index
    %43 = vector.load %arg7[%c1_24, %c0_25] : memref<25x128xf32, #tpu.memory_space<vmem>>, vector<1x128xf32>
    %44 = vector.broadcast %43 : vector<1x128xf32> to vector<128x128xf32>
    %45 = arith.mulf %42, %44 : vector<128x128xf32>
    %46 = arith.addf %39, %45 : vector<128x128xf32>
    %c2 = arith.constant 2 : index
    %c0_26 = arith.constant 0 : index
    %c0_27 = arith.constant 0 : index
    %47 = vector.load %arg6[%c2, %c0_26, %c0_27] : memref<25x128x128xbf16, #tpu.memory_space<vmem>>, vector<1x128x128xbf16>
    %48 = vector.shape_cast %47 : vector<1x128x128xbf16> to vector<128x128xbf16>
    %cst_28 = arith.constant dense<0.000000e+00> : vector<128x128xf32>
    %49 = tpu.matmul %48, %31, %cst_28 {dimension_numbers = #tpu.dot_dimension_numbers<[1], [0], [0], [1], [0, 0, 1, 1], [], []>} : vector<128x128xbf16>, vector<128x128xbf16>, vector<128x128xf32> -> vector<128x128xf32>
    %c2_29 = arith.constant 2 : index
    %c0_30 = arith.constant 0 : index
    %50 = vector.load %arg7[%c2_29, %c0_30] : memref<25x128xf32, #tpu.memory_space<vmem>>, vector<1x128xf32>
    %51 = vector.broadcast %50 : vector<1x128xf32> to vector<128x128xf32>
    %52 = arith.mulf %49, %51 : vector<128x128xf32>
    %53 = arith.addf %46, %52 : vector<128x128xf32>
    %c3 = arith.constant 3 : index
    %c0_31 = arith.constant 0 : index
    %c0_32 = arith.constant 0 : index
    %54 = vector.load %arg6[%c3, %c0_31, %c0_32] : memref<25x128x128xbf16, #tpu.memory_space<vmem>>, vector<1x128x128xbf16>
    %55 = vector.shape_cast %54 : vector<1x128x128xbf16> to vector<128x128xbf16>
    %cst_33 = arith.constant dense<0.000000e+00> : vector<128x128xf32>
    %56 = tpu.matmul %55, %31, %cst_33 {dimension_numbers = #tpu.dot_dimension_numbers<[1], [0], [0], [1], [0, 0, 1, 1], [], []>} : vector<128x128xbf16>, vector<128x128xbf16>, vector<128x128xf32> -> vector<128x128xf32>
    %c3_34 = arith.constant 3 : index
    %c0_35 = arith.constant 0 : index
    %57 = vector.load %arg7[%c3_34, %c0_35] : memref<25x128xf32, #tpu.memory_space<vmem>>, vector<1x128xf32>
    %58 = vector.broadcast %57 : vector<1x128xf32> to vector<128x128xf32>
    %59 = arith.mulf %56, %58 : vector<128x128xf32>
    %60 = arith.addf %53, %59 : vector<128x128xf32>
    %c4 = arith.constant 4 : index
    %c0_36 = arith.constant 0 : index
    %c0_37 = arith.constant 0 : index
    %61 = vector.load %arg6[%c4, %c0_36, %c0_37] : memref<25x128x128xbf16, #tpu.memory_space<vmem>>, vector<1x128x128xbf16>
    %62 = vector.shape_cast %61 : vector<1x128x128xbf16> to vector<128x128xbf16>
    %cst_38 = arith.constant dense<0.000000e+00> : vector<128x128xf32>
    %63 = tpu.matmul %62, %31, %cst_38 {dimension_numbers = #tpu.dot_dimension_numbers<[1], [0], [0], [1], [0, 0, 1, 1], [], []>} : vector<128x128xbf16>, vector<128x128xbf16>, vector<128x128xf32> -> vector<128x128xf32>
    %c4_39 = arith.constant 4 : index
    %c0_40 = arith.constant 0 : index
    %64 = vector.load %arg7[%c4_39, %c0_40] : memref<25x128xf32, #tpu.memory_space<vmem>>, vector<1x128xf32>
    %65 = vector.broadcast %64 : vector<1x128xf32> to vector<128x128xf32>
    %66 = arith.mulf %63, %65 : vector<128x128xf32>
    %67 = arith.addf %60, %66 : vector<128x128xf32>
    %c5 = arith.constant 5 : index
    %c0_41 = arith.constant 0 : index
    %c0_42 = arith.constant 0 : index
    %68 = vector.load %arg6[%c5, %c0_41, %c0_42] : memref<25x128x128xbf16, #tpu.memory_space<vmem>>, vector<1x128x128xbf16>
    %69 = vector.shape_cast %68 : vector<1x128x128xbf16> to vector<128x128xbf16>
    %cst_43 = arith.constant dense<0.000000e+00> : vector<128x128xf32>
    %70 = tpu.matmul %69, %31, %cst_43 {dimension_numbers = #tpu.dot_dimension_numbers<[1], [0], [0], [1], [0, 0, 1, 1], [], []>} : vector<128x128xbf16>, vector<128x128xbf16>, vector<128x128xf32> -> vector<128x128xf32>
    %c5_44 = arith.constant 5 : index
    %c0_45 = arith.constant 0 : index
    %71 = vector.load %arg7[%c5_44, %c0_45] : memref<25x128xf32, #tpu.memory_space<vmem>>, vector<1x128xf32>
    %72 = vector.broadcast %71 : vector<1x128xf32> to vector<128x128xf32>
    %73 = arith.mulf %70, %72 : vector<128x128xf32>
    %74 = arith.addf %67, %73 : vector<128x128xf32>
    %c6 = arith.constant 6 : index
    %c0_46 = arith.constant 0 : index
    %c0_47 = arith.constant 0 : index
    %75 = vector.load %arg6[%c6, %c0_46, %c0_47] : memref<25x128x128xbf16, #tpu.memory_space<vmem>>, vector<1x128x128xbf16>
    %76 = vector.shape_cast %75 : vector<1x128x128xbf16> to vector<128x128xbf16>
    %cst_48 = arith.constant dense<0.000000e+00> : vector<128x128xf32>
    %77 = tpu.matmul %76, %31, %cst_48 {dimension_numbers = #tpu.dot_dimension_numbers<[1], [0], [0], [1], [0, 0, 1, 1], [], []>} : vector<128x128xbf16>, vector<128x128xbf16>, vector<128x128xf32> -> vector<128x128xf32>
    %c6_49 = arith.constant 6 : index
    %c0_50 = arith.constant 0 : index
    %78 = vector.load %arg7[%c6_49, %c0_50] : memref<25x128xf32, #tpu.memory_space<vmem>>, vector<1x128xf32>
    %79 = vector.broadcast %78 : vector<1x128xf32> to vector<128x128xf32>
    %80 = arith.mulf %77, %79 : vector<128x128xf32>
    %81 = arith.addf %74, %80 : vector<128x128xf32>
    %c7 = arith.constant 7 : index
    %c0_51 = arith.constant 0 : index
    %c0_52 = arith.constant 0 : index
    %82 = vector.load %arg6[%c7, %c0_51, %c0_52] : memref<25x128x128xbf16, #tpu.memory_space<vmem>>, vector<1x128x128xbf16>
    %83 = vector.shape_cast %82 : vector<1x128x128xbf16> to vector<128x128xbf16>
    %cst_53 = arith.constant dense<0.000000e+00> : vector<128x128xf32>
    %84 = tpu.matmul %83, %31, %cst_53 {dimension_numbers = #tpu.dot_dimension_numbers<[1], [0], [0], [1], [0, 0, 1, 1], [], []>} : vector<128x128xbf16>, vector<128x128xbf16>, vector<128x128xf32> -> vector<128x128xf32>
    %c7_54 = arith.constant 7 : index
    %c0_55 = arith.constant 0 : index
    %85 = vector.load %arg7[%c7_54, %c0_55] : memref<25x128xf32, #tpu.memory_space<vmem>>, vector<1x128xf32>
    %86 = vector.broadcast %85 : vector<1x128xf32> to vector<128x128xf32>
    %87 = arith.mulf %84, %86 : vector<128x128xf32>
    %88 = arith.addf %81, %87 : vector<128x128xf32>
    %c8 = arith.constant 8 : index
    %c0_56 = arith.constant 0 : index
    %c0_57 = arith.constant 0 : index
    %89 = vector.load %arg6[%c8, %c0_56, %c0_57] : memref<25x128x128xbf16, #tpu.memory_space<vmem>>, vector<1x128x128xbf16>
    %90 = vector.shape_cast %89 : vector<1x128x128xbf16> to vector<128x128xbf16>
    %cst_58 = arith.constant dense<0.000000e+00> : vector<128x128xf32>
    %91 = tpu.matmul %90, %31, %cst_58 {dimension_numbers = #tpu.dot_dimension_numbers<[1], [0], [0], [1], [0, 0, 1, 1], [], []>} : vector<128x128xbf16>, vector<128x128xbf16>, vector<128x128xf32> -> vector<128x128xf32>
    %c8_59 = arith.constant 8 : index
    %c0_60 = arith.constant 0 : index
    %92 = vector.load %arg7[%c8_59, %c0_60] : memref<25x128xf32, #tpu.memory_space<vmem>>, vector<1x128xf32>
    %93 = vector.broadcast %92 : vector<1x128xf32> to vector<128x128xf32>
    %94 = arith.mulf %91, %93 : vector<128x128xf32>
    %95 = arith.addf %88, %94 : vector<128x128xf32>
    %c9 = arith.constant 9 : index
    %c0_61 = arith.constant 0 : index
    %c0_62 = arith.constant 0 : index
    %96 = vector.load %arg6[%c9, %c0_61, %c0_62] : memref<25x128x128xbf16, #tpu.memory_space<vmem>>, vector<1x128x128xbf16>
    %97 = vector.shape_cast %96 : vector<1x128x128xbf16> to vector<128x128xbf16>
    %cst_63 = arith.constant dense<0.000000e+00> : vector<128x128xf32>
    %98 = tpu.matmul %97, %31, %cst_63 {dimension_numbers = #tpu.dot_dimension_numbers<[1], [0], [0], [1], [0, 0, 1, 1], [], []>} : vector<128x128xbf16>, vector<128x128xbf16>, vector<128x128xf32> -> vector<128x128xf32>
    %c9_64 = arith.constant 9 : index
    %c0_65 = arith.constant 0 : index
    %99 = vector.load %arg7[%c9_64, %c0_65] : memref<25x128xf32, #tpu.memory_space<vmem>>, vector<1x128xf32>
    %100 = vector.broadcast %99 : vector<1x128xf32> to vector<128x128xf32>
    %101 = arith.mulf %98, %100 : vector<128x128xf32>
    %102 = arith.addf %95, %101 : vector<128x128xf32>
    %c10 = arith.constant 10 : index
    %c0_66 = arith.constant 0 : index
    %c0_67 = arith.constant 0 : index
    %103 = vector.load %arg6[%c10, %c0_66, %c0_67] : memref<25x128x128xbf16, #tpu.memory_space<vmem>>, vector<1x128x128xbf16>
    %104 = vector.shape_cast %103 : vector<1x128x128xbf16> to vector<128x128xbf16>
    %cst_68 = arith.constant dense<0.000000e+00> : vector<128x128xf32>
    %105 = tpu.matmul %104, %31, %cst_68 {dimension_numbers = #tpu.dot_dimension_numbers<[1], [0], [0], [1], [0, 0, 1, 1], [], []>} : vector<128x128xbf16>, vector<128x128xbf16>, vector<128x128xf32> -> vector<128x128xf32>
    %c10_69 = arith.constant 10 : index
    %c0_70 = arith.constant 0 : index
    %106 = vector.load %arg7[%c10_69, %c0_70] : memref<25x128xf32, #tpu.memory_space<vmem>>, vector<1x128xf32>
    %107 = vector.broadcast %106 : vector<1x128xf32> to vector<128x128xf32>
    %108 = arith.mulf %105, %107 : vector<128x128xf32>
    %109 = arith.addf %102, %108 : vector<128x128xf32>
    %c11 = arith.constant 11 : index
    %c0_71 = arith.constant 0 : index
    %c0_72 = arith.constant 0 : index
    %110 = vector.load %arg6[%c11, %c0_71, %c0_72] : memref<25x128x128xbf16, #tpu.memory_space<vmem>>, vector<1x128x128xbf16>
    %111 = vector.shape_cast %110 : vector<1x128x128xbf16> to vector<128x128xbf16>
    %cst_73 = arith.constant dense<0.000000e+00> : vector<128x128xf32>
    %112 = tpu.matmul %111, %31, %cst_73 {dimension_numbers = #tpu.dot_dimension_numbers<[1], [0], [0], [1], [0, 0, 1, 1], [], []>} : vector<128x128xbf16>, vector<128x128xbf16>, vector<128x128xf32> -> vector<128x128xf32>
    %c11_74 = arith.constant 11 : index
    %c0_75 = arith.constant 0 : index
    %113 = vector.load %arg7[%c11_74, %c0_75] : memref<25x128xf32, #tpu.memory_space<vmem>>, vector<1x128xf32>
    %114 = vector.broadcast %113 : vector<1x128xf32> to vector<128x128xf32>
    %115 = arith.mulf %112, %114 : vector<128x128xf32>
    %116 = arith.addf %109, %115 : vector<128x128xf32>
    %c12 = arith.constant 12 : index
    %c0_76 = arith.constant 0 : index
    %c0_77 = arith.constant 0 : index
    %117 = vector.load %arg6[%c12, %c0_76, %c0_77] : memref<25x128x128xbf16, #tpu.memory_space<vmem>>, vector<1x128x128xbf16>
    %118 = vector.shape_cast %117 : vector<1x128x128xbf16> to vector<128x128xbf16>
    %cst_78 = arith.constant dense<0.000000e+00> : vector<128x128xf32>
    %119 = tpu.matmul %118, %31, %cst_78 {dimension_numbers = #tpu.dot_dimension_numbers<[1], [0], [0], [1], [0, 0, 1, 1], [], []>} : vector<128x128xbf16>, vector<128x128xbf16>, vector<128x128xf32> -> vector<128x128xf32>
    %c12_79 = arith.constant 12 : index
    %c0_80 = arith.constant 0 : index
    %120 = vector.load %arg7[%c12_79, %c0_80] : memref<25x128xf32, #tpu.memory_space<vmem>>, vector<1x128xf32>
    %121 = vector.broadcast %120 : vector<1x128xf32> to vector<128x128xf32>
    %122 = arith.mulf %119, %121 : vector<128x128xf32>
    %123 = arith.addf %116, %122 : vector<128x128xf32>
    %c13 = arith.constant 13 : index
    %c0_81 = arith.constant 0 : index
    %c0_82 = arith.constant 0 : index
    %124 = vector.load %arg6[%c13, %c0_81, %c0_82] : memref<25x128x128xbf16, #tpu.memory_space<vmem>>, vector<1x128x128xbf16>
    %125 = vector.shape_cast %124 : vector<1x128x128xbf16> to vector<128x128xbf16>
    %cst_83 = arith.constant dense<0.000000e+00> : vector<128x128xf32>
    %126 = tpu.matmul %125, %31, %cst_83 {dimension_numbers = #tpu.dot_dimension_numbers<[1], [0], [0], [1], [0, 0, 1, 1], [], []>} : vector<128x128xbf16>, vector<128x128xbf16>, vector<128x128xf32> -> vector<128x128xf32>
    %c13_84 = arith.constant 13 : index
    %c0_85 = arith.constant 0 : index
    %127 = vector.load %arg7[%c13_84, %c0_85] : memref<25x128xf32, #tpu.memory_space<vmem>>, vector<1x128xf32>
    %128 = vector.broadcast %127 : vector<1x128xf32> to vector<128x128xf32>
    %129 = arith.mulf %126, %128 : vector<128x128xf32>
    %130 = arith.addf %123, %129 : vector<128x128xf32>
    %c14 = arith.constant 14 : index
    %c0_86 = arith.constant 0 : index
    %c0_87 = arith.constant 0 : index
    %131 = vector.load %arg6[%c14, %c0_86, %c0_87] : memref<25x128x128xbf16, #tpu.memory_space<vmem>>, vector<1x128x128xbf16>
    %132 = vector.shape_cast %131 : vector<1x128x128xbf16> to vector<128x128xbf16>
    %cst_88 = arith.constant dense<0.000000e+00> : vector<128x128xf32>
    %133 = tpu.matmul %132, %31, %cst_88 {dimension_numbers = #tpu.dot_dimension_numbers<[1], [0], [0], [1], [0, 0, 1, 1], [], []>} : vector<128x128xbf16>, vector<128x128xbf16>, vector<128x128xf32> -> vector<128x128xf32>
    %c14_89 = arith.constant 14 : index
    %c0_90 = arith.constant 0 : index
    %134 = vector.load %arg7[%c14_89, %c0_90] : memref<25x128xf32, #tpu.memory_space<vmem>>, vector<1x128xf32>
    %135 = vector.broadcast %134 : vector<1x128xf32> to vector<128x128xf32>
    %136 = arith.mulf %133, %135 : vector<128x128xf32>
    %137 = arith.addf %130, %136 : vector<128x128xf32>
    %c15 = arith.constant 15 : index
    %c0_91 = arith.constant 0 : index
    %c0_92 = arith.constant 0 : index
    %138 = vector.load %arg6[%c15, %c0_91, %c0_92] : memref<25x128x128xbf16, #tpu.memory_space<vmem>>, vector<1x128x128xbf16>
    %139 = vector.shape_cast %138 : vector<1x128x128xbf16> to vector<128x128xbf16>
    %cst_93 = arith.constant dense<0.000000e+00> : vector<128x128xf32>
    %140 = tpu.matmul %139, %31, %cst_93 {dimension_numbers = #tpu.dot_dimension_numbers<[1], [0], [0], [1], [0, 0, 1, 1], [], []>} : vector<128x128xbf16>, vector<128x128xbf16>, vector<128x128xf32> -> vector<128x128xf32>
    %c15_94 = arith.constant 15 : index
    %c0_95 = arith.constant 0 : index
    %141 = vector.load %arg7[%c15_94, %c0_95] : memref<25x128xf32, #tpu.memory_space<vmem>>, vector<1x128xf32>
    %142 = vector.broadcast %141 : vector<1x128xf32> to vector<128x128xf32>
    %143 = arith.mulf %140, %142 : vector<128x128xf32>
    %144 = arith.addf %137, %143 : vector<128x128xf32>
    %c16 = arith.constant 16 : index
    %c0_96 = arith.constant 0 : index
    %c0_97 = arith.constant 0 : index
    %145 = vector.load %arg6[%c16, %c0_96, %c0_97] : memref<25x128x128xbf16, #tpu.memory_space<vmem>>, vector<1x128x128xbf16>
    %146 = vector.shape_cast %145 : vector<1x128x128xbf16> to vector<128x128xbf16>
    %cst_98 = arith.constant dense<0.000000e+00> : vector<128x128xf32>
    %147 = tpu.matmul %146, %31, %cst_98 {dimension_numbers = #tpu.dot_dimension_numbers<[1], [0], [0], [1], [0, 0, 1, 1], [], []>} : vector<128x128xbf16>, vector<128x128xbf16>, vector<128x128xf32> -> vector<128x128xf32>
    %c16_99 = arith.constant 16 : index
    %c0_100 = arith.constant 0 : index
    %148 = vector.load %arg7[%c16_99, %c0_100] : memref<25x128xf32, #tpu.memory_space<vmem>>, vector<1x128xf32>
    %149 = vector.broadcast %148 : vector<1x128xf32> to vector<128x128xf32>
    %150 = arith.mulf %147, %149 : vector<128x128xf32>
    %151 = arith.addf %144, %150 : vector<128x128xf32>
    %c17 = arith.constant 17 : index
    %c0_101 = arith.constant 0 : index
    %c0_102 = arith.constant 0 : index
    %152 = vector.load %arg6[%c17, %c0_101, %c0_102] : memref<25x128x128xbf16, #tpu.memory_space<vmem>>, vector<1x128x128xbf16>
    %153 = vector.shape_cast %152 : vector<1x128x128xbf16> to vector<128x128xbf16>
    %cst_103 = arith.constant dense<0.000000e+00> : vector<128x128xf32>
    %154 = tpu.matmul %153, %31, %cst_103 {dimension_numbers = #tpu.dot_dimension_numbers<[1], [0], [0], [1], [0, 0, 1, 1], [], []>} : vector<128x128xbf16>, vector<128x128xbf16>, vector<128x128xf32> -> vector<128x128xf32>
    %c17_104 = arith.constant 17 : index
    %c0_105 = arith.constant 0 : index
    %155 = vector.load %arg7[%c17_104, %c0_105] : memref<25x128xf32, #tpu.memory_space<vmem>>, vector<1x128xf32>
    %156 = vector.broadcast %155 : vector<1x128xf32> to vector<128x128xf32>
    %157 = arith.mulf %154, %156 : vector<128x128xf32>
    %158 = arith.addf %151, %157 : vector<128x128xf32>
    %c18 = arith.constant 18 : index
    %c0_106 = arith.constant 0 : index
    %c0_107 = arith.constant 0 : index
    %159 = vector.load %arg6[%c18, %c0_106, %c0_107] : memref<25x128x128xbf16, #tpu.memory_space<vmem>>, vector<1x128x128xbf16>
    %160 = vector.shape_cast %159 : vector<1x128x128xbf16> to vector<128x128xbf16>
    %cst_108 = arith.constant dense<0.000000e+00> : vector<128x128xf32>
    %161 = tpu.matmul %160, %31, %cst_108 {dimension_numbers = #tpu.dot_dimension_numbers<[1], [0], [0], [1], [0, 0, 1, 1], [], []>} : vector<128x128xbf16>, vector<128x128xbf16>, vector<128x128xf32> -> vector<128x128xf32>
    %c18_109 = arith.constant 18 : index
    %c0_110 = arith.constant 0 : index
    %162 = vector.load %arg7[%c18_109, %c0_110] : memref<25x128xf32, #tpu.memory_space<vmem>>, vector<1x128xf32>
    %163 = vector.broadcast %162 : vector<1x128xf32> to vector<128x128xf32>
    %164 = arith.mulf %161, %163 : vector<128x128xf32>
    %165 = arith.addf %158, %164 : vector<128x128xf32>
    %c19 = arith.constant 19 : index
    %c0_111 = arith.constant 0 : index
    %c0_112 = arith.constant 0 : index
    %166 = vector.load %arg6[%c19, %c0_111, %c0_112] : memref<25x128x128xbf16, #tpu.memory_space<vmem>>, vector<1x128x128xbf16>
    %167 = vector.shape_cast %166 : vector<1x128x128xbf16> to vector<128x128xbf16>
    %cst_113 = arith.constant dense<0.000000e+00> : vector<128x128xf32>
    %168 = tpu.matmul %167, %31, %cst_113 {dimension_numbers = #tpu.dot_dimension_numbers<[1], [0], [0], [1], [0, 0, 1, 1], [], []>} : vector<128x128xbf16>, vector<128x128xbf16>, vector<128x128xf32> -> vector<128x128xf32>
    %c19_114 = arith.constant 19 : index
    %c0_115 = arith.constant 0 : index
    %169 = vector.load %arg7[%c19_114, %c0_115] : memref<25x128xf32, #tpu.memory_space<vmem>>, vector<1x128xf32>
    %170 = vector.broadcast %169 : vector<1x128xf32> to vector<128x128xf32>
    %171 = arith.mulf %168, %170 : vector<128x128xf32>
    %172 = arith.addf %165, %171 : vector<128x128xf32>
    %c20 = arith.constant 20 : index
    %c0_116 = arith.constant 0 : index
    %c0_117 = arith.constant 0 : index
    %173 = vector.load %arg6[%c20, %c0_116, %c0_117] : memref<25x128x128xbf16, #tpu.memory_space<vmem>>, vector<1x128x128xbf16>
    %174 = vector.shape_cast %173 : vector<1x128x128xbf16> to vector<128x128xbf16>
    %cst_118 = arith.constant dense<0.000000e+00> : vector<128x128xf32>
    %175 = tpu.matmul %174, %31, %cst_118 {dimension_numbers = #tpu.dot_dimension_numbers<[1], [0], [0], [1], [0, 0, 1, 1], [], []>} : vector<128x128xbf16>, vector<128x128xbf16>, vector<128x128xf32> -> vector<128x128xf32>
    %c20_119 = arith.constant 20 : index
    %c0_120 = arith.constant 0 : index
    %176 = vector.load %arg7[%c20_119, %c0_120] : memref<25x128xf32, #tpu.memory_space<vmem>>, vector<1x128xf32>
    %177 = vector.broadcast %176 : vector<1x128xf32> to vector<128x128xf32>
    %178 = arith.mulf %175, %177 : vector<128x128xf32>
    %179 = arith.addf %172, %178 : vector<128x128xf32>
    %c21 = arith.constant 21 : index
    %c0_121 = arith.constant 0 : index
    %c0_122 = arith.constant 0 : index
    %180 = vector.load %arg6[%c21, %c0_121, %c0_122] : memref<25x128x128xbf16, #tpu.memory_space<vmem>>, vector<1x128x128xbf16>
    %181 = vector.shape_cast %180 : vector<1x128x128xbf16> to vector<128x128xbf16>
    %cst_123 = arith.constant dense<0.000000e+00> : vector<128x128xf32>
    %182 = tpu.matmul %181, %31, %cst_123 {dimension_numbers = #tpu.dot_dimension_numbers<[1], [0], [0], [1], [0, 0, 1, 1], [], []>} : vector<128x128xbf16>, vector<128x128xbf16>, vector<128x128xf32> -> vector<128x128xf32>
    %c21_124 = arith.constant 21 : index
    %c0_125 = arith.constant 0 : index
    %183 = vector.load %arg7[%c21_124, %c0_125] : memref<25x128xf32, #tpu.memory_space<vmem>>, vector<1x128xf32>
    %184 = vector.broadcast %183 : vector<1x128xf32> to vector<128x128xf32>
    %185 = arith.mulf %182, %184 : vector<128x128xf32>
    %186 = arith.addf %179, %185 : vector<128x128xf32>
    %c22 = arith.constant 22 : index
    %c0_126 = arith.constant 0 : index
    %c0_127 = arith.constant 0 : index
    %187 = vector.load %arg6[%c22, %c0_126, %c0_127] : memref<25x128x128xbf16, #tpu.memory_space<vmem>>, vector<1x128x128xbf16>
    %188 = vector.shape_cast %187 : vector<1x128x128xbf16> to vector<128x128xbf16>
    %cst_128 = arith.constant dense<0.000000e+00> : vector<128x128xf32>
    %189 = tpu.matmul %188, %31, %cst_128 {dimension_numbers = #tpu.dot_dimension_numbers<[1], [0], [0], [1], [0, 0, 1, 1], [], []>} : vector<128x128xbf16>, vector<128x128xbf16>, vector<128x128xf32> -> vector<128x128xf32>
    %c22_129 = arith.constant 22 : index
    %c0_130 = arith.constant 0 : index
    %190 = vector.load %arg7[%c22_129, %c0_130] : memref<25x128xf32, #tpu.memory_space<vmem>>, vector<1x128xf32>
    %191 = vector.broadcast %190 : vector<1x128xf32> to vector<128x128xf32>
    %192 = arith.mulf %189, %191 : vector<128x128xf32>
    %193 = arith.addf %186, %192 : vector<128x128xf32>
    %c23 = arith.constant 23 : index
    %c0_131 = arith.constant 0 : index
    %c0_132 = arith.constant 0 : index
    %194 = vector.load %arg6[%c23, %c0_131, %c0_132] : memref<25x128x128xbf16, #tpu.memory_space<vmem>>, vector<1x128x128xbf16>
    %195 = vector.shape_cast %194 : vector<1x128x128xbf16> to vector<128x128xbf16>
    %cst_133 = arith.constant dense<0.000000e+00> : vector<128x128xf32>
    %196 = tpu.matmul %195, %31, %cst_133 {dimension_numbers = #tpu.dot_dimension_numbers<[1], [0], [0], [1], [0, 0, 1, 1], [], []>} : vector<128x128xbf16>, vector<128x128xbf16>, vector<128x128xf32> -> vector<128x128xf32>
    %c23_134 = arith.constant 23 : index
    %c0_135 = arith.constant 0 : index
    %197 = vector.load %arg7[%c23_134, %c0_135] : memref<25x128xf32, #tpu.memory_space<vmem>>, vector<1x128xf32>
    %198 = vector.broadcast %197 : vector<1x128xf32> to vector<128x128xf32>
    %199 = arith.mulf %196, %198 : vector<128x128xf32>
    %200 = arith.addf %193, %199 : vector<128x128xf32>
    %c24 = arith.constant 24 : index
    %c0_136 = arith.constant 0 : index
    %c0_137 = arith.constant 0 : index
    %201 = vector.load %arg6[%c24, %c0_136, %c0_137] : memref<25x128x128xbf16, #tpu.memory_space<vmem>>, vector<1x128x128xbf16>
    %202 = vector.shape_cast %201 : vector<1x128x128xbf16> to vector<128x128xbf16>
    %cst_138 = arith.constant dense<0.000000e+00> : vector<128x128xf32>
    %203 = tpu.matmul %202, %31, %cst_138 {dimension_numbers = #tpu.dot_dimension_numbers<[1], [0], [0], [1], [0, 0, 1, 1], [], []>} : vector<128x128xbf16>, vector<128x128xbf16>, vector<128x128xf32> -> vector<128x128xf32>
    %c24_139 = arith.constant 24 : index
    %c0_140 = arith.constant 0 : index
    %204 = vector.load %arg7[%c24_139, %c0_140] : memref<25x128xf32, #tpu.memory_space<vmem>>, vector<1x128xf32>
    %205 = vector.broadcast %204 : vector<1x128xf32> to vector<128x128xf32>
    %206 = arith.mulf %203, %205 : vector<128x128xf32>
    %207 = arith.addf %200, %206 : vector<128x128xf32>
    %208 = arith.addf %6, %207 : vector<128x128xf32>
    %c0_141 = arith.constant 0 : index
    %c0_142 = arith.constant 0 : index
    %209 = vector.load %arg8[%c0_141, %c0_142] : memref<1x128xf32, #tpu.memory_space<vmem>>, vector<1x128xf32>
    %210 = vector.broadcast %209 : vector<1x128xf32> to vector<128x128xf32>
    %211 = arith.addf %208, %210 : vector<128x128xf32>
    %c0_143 = arith.constant 0 : index
    %c0_144 = arith.constant 0 : index
    %212 = vector.load %arg9[%c0_143, %c0_144] : memref<1x128xf32, #tpu.memory_space<vmem>>, vector<1x128xf32>
    %c0_145 = arith.constant 0 : index
    %c0_146 = arith.constant 0 : index
    %213 = vector.load %arg10[%c0_145, %c0_146] : memref<1x128xf32, #tpu.memory_space<vmem>>, vector<1x128xf32>
    %cst_147 = arith.constant dense<0.000000e+00> : vector<128xf32>
    %214 = vector.multi_reduction <add>, %211, %cst_147 [1] : vector<128x128xf32> to vector<128xf32>
    %215 = vector.shape_cast %214 : vector<128xf32> to vector<128x1xf32>
    %cst_148 = arith.constant 1.280000e+02 : f32
    %216 = vector.broadcast %cst_148 : f32 to vector<128x1xf32>
    %217 = arith.divf %215, %216 : vector<128x1xf32>
    %218 = vector.broadcast %217 : vector<128x1xf32> to vector<128x128xf32>
    %219 = arith.subf %211, %218 : vector<128x128xf32>
    %220 = arith.mulf %219, %219 : vector<128x128xf32>
    %cst_149 = arith.constant dense<0.000000e+00> : vector<128xf32>
    %221 = vector.multi_reduction <add>, %220, %cst_149 [1] : vector<128x128xf32> to vector<128xf32>
    %222 = vector.shape_cast %221 : vector<128xf32> to vector<128x1xf32>
    %cst_150 = arith.constant 1.280000e+02 : f32
    %223 = vector.broadcast %cst_150 : f32 to vector<128x1xf32>
    %224 = arith.divf %222, %223 : vector<128x1xf32>
    %225 = vector.broadcast %217 : vector<128x1xf32> to vector<128x128xf32>
    %226 = arith.subf %211, %225 : vector<128x128xf32>
    %cst_151 = arith.constant 9.99999974E-6 : f32
    %227 = vector.broadcast %cst_151 : f32 to vector<128x1xf32>
    %228 = arith.addf %224, %227 : vector<128x1xf32>
    %229 = math.rsqrt %228 : vector<128x1xf32>
    %230 = vector.broadcast %229 : vector<128x1xf32> to vector<128x128xf32>
    %231 = arith.mulf %226, %230 : vector<128x128xf32>
    %232 = vector.broadcast %212 : vector<1x128xf32> to vector<128x128xf32>
    %233 = arith.mulf %231, %232 : vector<128x128xf32>
    %234 = vector.broadcast %213 : vector<1x128xf32> to vector<128x128xf32>
    %235 = arith.addf %233, %234 : vector<128x128xf32>
    %236 = arith.truncf %235 : vector<128x128xf32> to vector<128x128xbf16>
    %c0_152 = arith.constant 0 : index
    %c0_153 = arith.constant 0 : index
    %237 = vector.load %arg11[%c0_152, %c0_153] : memref<128x256xbf16, #tpu.memory_space<vmem>>, vector<128x256xbf16>
    %cst_154 = arith.constant dense<0.000000e+00> : vector<128x256xf32>
    %238 = tpu.matmul %236, %237, %cst_154 {dimension_numbers = #tpu.dot_dimension_numbers<[1], [0], [0], [1], [0, 0, 1, 1], [], []>} : vector<128x128xbf16>, vector<128x256xbf16>, vector<128x256xf32> -> vector<128x256xf32>
    %c0_155 = arith.constant 0 : index
    %c0_156 = arith.constant 0 : index
    %239 = vector.load %arg12[%c0_155, %c0_156] : memref<1x256xf32, #tpu.memory_space<vmem>>, vector<1x256xf32>
    %240 = vector.broadcast %239 : vector<1x256xf32> to vector<128x256xf32>
    %241 = arith.addf %238, %240 : vector<128x256xf32>
    %242 = arith.mulf %241, %241 : vector<128x256xf32>
    %243 = arith.mulf %241, %242 : vector<128x256xf32>
    %cst_157 = arith.constant 4.471500e-02 : f32
    %244 = vector.broadcast %cst_157 : f32 to vector<128x256xf32>
    %245 = arith.mulf %244, %243 : vector<128x256xf32>
    %246 = arith.addf %241, %245 : vector<128x256xf32>
    %cst_158 = arith.constant 0.797884583 : f32
    %247 = vector.broadcast %cst_158 : f32 to vector<128x256xf32>
    %248 = arith.mulf %247, %246 : vector<128x256xf32>
    %249 = math.tanh %248 : vector<128x256xf32>
    %cst_159 = arith.constant 1.000000e+00 : f32
    %250 = vector.broadcast %cst_159 : f32 to vector<128x256xf32>
    %251 = arith.addf %250, %249 : vector<128x256xf32>
    %cst_160 = arith.constant 5.000000e-01 : f32
    %252 = vector.broadcast %cst_160 : f32 to vector<128x256xf32>
    %253 = arith.mulf %252, %251 : vector<128x256xf32>
    %254 = arith.mulf %241, %253 : vector<128x256xf32>
    %255 = arith.truncf %254 : vector<128x256xf32> to vector<128x256xbf16>
    %c0_161 = arith.constant 0 : index
    %c0_162 = arith.constant 0 : index
    %256 = vector.load %arg13[%c0_161, %c0_162] : memref<256x128xbf16, #tpu.memory_space<vmem>>, vector<256x128xbf16>
    %cst_163 = arith.constant dense<0.000000e+00> : vector<128x128xf32>
    %257 = tpu.matmul %255, %256, %cst_163 {dimension_numbers = #tpu.dot_dimension_numbers<[1], [0], [0], [1], [0, 0, 1, 1], [], []>} : vector<128x256xbf16>, vector<256x128xbf16>, vector<128x128xf32> -> vector<128x128xf32>
    %c0_164 = arith.constant 0 : index
    %c0_165 = arith.constant 0 : index
    %258 = vector.load %arg14[%c0_164, %c0_165] : memref<1x128xf32, #tpu.memory_space<vmem>>, vector<1x128xf32>
    %259 = vector.broadcast %258 : vector<1x128xf32> to vector<128x128xf32>
    %260 = arith.addf %257, %259 : vector<128x128xf32>
    %261 = arith.addf %211, %260 : vector<128x128xf32>
    %c0_166 = arith.constant 0 : index
    %c0_167 = arith.constant 0 : index
    %262 = vector.load %arg15[%c0_166, %c0_167] : memref<1x128xf32, #tpu.memory_space<vmem>>, vector<1x128xf32>
    %c0_168 = arith.constant 0 : index
    %c0_169 = arith.constant 0 : index
    %263 = vector.load %arg16[%c0_168, %c0_169] : memref<1x128xf32, #tpu.memory_space<vmem>>, vector<1x128xf32>
    %cst_170 = arith.constant dense<0.000000e+00> : vector<128xf32>
    %264 = vector.multi_reduction <add>, %261, %cst_170 [1] : vector<128x128xf32> to vector<128xf32>
    %265 = vector.shape_cast %264 : vector<128xf32> to vector<128x1xf32>
    %cst_171 = arith.constant 1.280000e+02 : f32
    %266 = vector.broadcast %cst_171 : f32 to vector<128x1xf32>
    %267 = arith.divf %265, %266 : vector<128x1xf32>
    %268 = vector.broadcast %267 : vector<128x1xf32> to vector<128x128xf32>
    %269 = arith.subf %261, %268 : vector<128x128xf32>
    %270 = arith.mulf %269, %269 : vector<128x128xf32>
    %cst_172 = arith.constant dense<0.000000e+00> : vector<128xf32>
    %271 = vector.multi_reduction <add>, %270, %cst_172 [1] : vector<128x128xf32> to vector<128xf32>
    %272 = vector.shape_cast %271 : vector<128xf32> to vector<128x1xf32>
    %cst_173 = arith.constant 1.280000e+02 : f32
    %273 = vector.broadcast %cst_173 : f32 to vector<128x1xf32>
    %274 = arith.divf %272, %273 : vector<128x1xf32>
    %275 = vector.broadcast %267 : vector<128x1xf32> to vector<128x128xf32>
    %276 = arith.subf %261, %275 : vector<128x128xf32>
    %cst_174 = arith.constant 9.99999974E-6 : f32
    %277 = vector.broadcast %cst_174 : f32 to vector<128x1xf32>
    %278 = arith.addf %274, %277 : vector<128x1xf32>
    %279 = math.rsqrt %278 : vector<128x1xf32>
    %280 = vector.broadcast %279 : vector<128x1xf32> to vector<128x128xf32>
    %281 = arith.mulf %276, %280 : vector<128x128xf32>
    %282 = vector.broadcast %262 : vector<1x128xf32> to vector<128x128xf32>
    %283 = arith.mulf %281, %282 : vector<128x128xf32>
    %284 = vector.broadcast %263 : vector<1x128xf32> to vector<128x128xf32>
    %285 = arith.addf %283, %284 : vector<128x128xf32>
    %286 = vector.shape_cast %285 : vector<128x128xf32> to vector<8x16x128xf32>
    %cst_175 = arith.constant dense<0.000000e+00> : vector<8x128xf32>
    %287 = vector.multi_reduction <add>, %286, %cst_175 [1] : vector<8x16x128xf32> to vector<8x128xf32>
    %cst_176 = arith.constant 1.600000e+01 : f32
    %288 = vector.broadcast %cst_176 : f32 to vector<8x128xf32>
    %289 = arith.divf %287, %288 : vector<8x128xf32>
    %290 = arith.truncf %289 : vector<8x128xf32> to vector<8x128xbf16>
    %c0_177 = arith.constant 0 : index
    %c0_178 = arith.constant 0 : index
    %291 = vector.load %arg17[%c0_177, %c0_178] : memref<128x128xbf16, #tpu.memory_space<vmem>>, vector<128x128xbf16>
    %cst_179 = arith.constant dense<0.000000e+00> : vector<8x128xf32>
    %292 = tpu.matmul %290, %291, %cst_179 {dimension_numbers = #tpu.dot_dimension_numbers<[1], [0], [0], [1], [0, 0, 1, 1], [], []>} : vector<8x128xbf16>, vector<128x128xbf16>, vector<8x128xf32> -> vector<8x128xf32>
    %c0_180 = arith.constant 0 : index
    %c0_181 = arith.constant 0 : index
    %293 = vector.load %arg18[%c0_180, %c0_181] : memref<1x128xf32, #tpu.memory_space<vmem>>, vector<1x128xf32>
    %294 = vector.broadcast %293 : vector<1x128xf32> to vector<8x128xf32>
    %295 = arith.addf %292, %294 : vector<8x128xf32>
    %c0_182 = arith.constant 0 : index
    %c0_183 = arith.constant 0 : index
    %296 = vector.load %arg19[%c0_182, %c0_183] : memref<8x128xf32, #tpu.memory_space<vmem>>, vector<8x128xf32>
    tpu.vector_store %arg19[%c0_182, %c0_183], %295 {strides = array<i32>} : memref<8x128xf32, #tpu.memory_space<vmem>>, vector<8x128xf32>,
    return
  }
  func.func @transform_0(%arg0: i32) -> (i32, i32) {
    %c0_i32 = arith.constant 0 : i32
    %c0_i32_0 = arith.constant 0 : i32
    return %arg0, %c0_i32 : i32, i32
  }
  func.func @transform_1(%arg0: i32) -> (i32, i32) {
    %c0_i32 = arith.constant 0 : i32
    %c0_i32_0 = arith.constant 0 : i32
    %c0_i32_1 = arith.constant 0 : i32
    return %c0_i32, %c0_i32_0 : i32, i32
  }
  func.func @transform_2(%arg0: i32) -> (i32, i32) {
    %c0_i32 = arith.constant 0 : i32
    %c0_i32_0 = arith.constant 0 : i32
    %c0_i32_1 = arith.constant 0 : i32
    return %c0_i32, %c0_i32_0 : i32, i32
  }
  func.func @transform_3(%arg0: i32) -> (i32, i32) {
    %c0_i32 = arith.constant 0 : i32
    %c0_i32_0 = arith.constant 0 : i32
    %c0_i32_1 = arith.constant 0 : i32
    return %c0_i32, %c0_i32_0 : i32, i32
  }
  func.func @transform_4(%arg0: i32) -> (i32, i32) {
    %c0_i32 = arith.constant 0 : i32
    %c0_i32_0 = arith.constant 0 : i32
    %c0_i32_1 = arith.constant 0 : i32
    return %c0_i32, %c0_i32_0 : i32, i32
  }
  func.func @transform_5(%arg0: i32) -> (i32, i32, i32) {
    %c0_i32 = arith.constant 0 : i32
    %c0_i32_0 = arith.constant 0 : i32
    %c0_i32_1 = arith.constant 0 : i32
    %c0_i32_2 = arith.constant 0 : i32
    return %c0_i32, %c0_i32_0, %c0_i32_1 : i32, i32, i32
  }
  func.func @transform_6(%arg0: i32) -> (i32, i32) {
    %c0_i32 = arith.constant 0 : i32
    %c0_i32_0 = arith.constant 0 : i32
    %c0_i32_1 = arith.constant 0 : i32
    return %c0_i32, %c0_i32_0 : i32, i32
  }
  func.func @transform_7(%arg0: i32) -> (i32, i32) {
    %c0_i32 = arith.constant 0 : i32
    %c0_i32_0 = arith.constant 0 : i32
    %c0_i32_1 = arith.constant 0 : i32
    return %c0_i32, %c0_i32_0 : i32, i32
  }
  func.func @transform_8(%arg0: i32) -> (i32, i32) {
    %c0_i32 = arith.constant 0 : i32
    %c0_i32_0 = arith.constant 0 : i32
    %c0_i32_1 = arith.constant 0 : i32
    return %c0_i32, %c0_i32_0 : i32, i32
  }
  func.func @transform_9(%arg0: i32) -> (i32, i32) {
    %c0_i32 = arith.constant 0 : i32
    %c0_i32_0 = arith.constant 0 : i32
    %c0_i32_1 = arith.constant 0 : i32
    return %c0_i32, %c0_i32_0 : i32, i32
  }
  func.func @transform_10(%arg0: i32) -> (i32, i32) {
    %c0_i32 = arith.constant 0 : i32
    %c0_i32_0 = arith.constant 0 : i32
    %c0_i32_1 = arith.constant 0 : i32
    return %c0_i32, %c0_i32_0 : i32, i32
  }
  func.func @transform_11(%arg0: i32) -> (i32, i32) {
    %c0_i32 = arith.constant 0 : i32
    %c0_i32_0 = arith.constant 0 : i32
    %c0_i32_1 = arith.constant 0 : i32
    return %c0_i32, %c0_i32_0 : i32, i32
  }
  func.func @transform_12(%arg0: i32) -> (i32, i32) {
    %c0_i32 = arith.constant 0 : i32
    %c0_i32_0 = arith.constant 0 : i32
    %c0_i32_1 = arith.constant 0 : i32
    return %c0_i32, %c0_i32_0 : i32, i32
  }
  func.func @transform_13(%arg0: i32) -> (i32, i32) {
    %c0_i32 = arith.constant 0 : i32
    %c0_i32_0 = arith.constant 0 : i32
    %c0_i32_1 = arith.constant 0 : i32
    return %c0_i32, %c0_i32_0 : i32, i32
  }
  func.func @transform_14(%arg0: i32) -> (i32, i32) {
    %c0_i32 = arith.constant 0 : i32
    %c0_i32_0 = arith.constant 0 : i32
    %c0_i32_1 = arith.constant 0 : i32
    return %c0_i32, %c0_i32_0 : i32, i32
  }
  func.func @transform_15(%arg0: i32) -> (i32, i32) {
    %c0_i32 = arith.constant 0 : i32
    %c0_i32_0 = arith.constant 0 : i32
    %c0_i32_1 = arith.constant 0 : i32
    return %c0_i32, %c0_i32_0 : i32, i32
  }
  func.func @transform_16(%arg0: i32) -> (i32, i32) {
    %c0_i32 = arith.constant 0 : i32
    %c0_i32_0 = arith.constant 0 : i32
    %c0_i32_1 = arith.constant 0 : i32
    return %c0_i32, %c0_i32_0 : i32, i32
  }
  func.func @transform_17(%arg0: i32) -> (i32, i32) {
    %c0_i32 = arith.constant 0 : i32
    %c0_i32_0 = arith.constant 0 : i32
    %c0_i32_1 = arith.constant 0 : i32
    return %c0_i32, %c0_i32_0 : i32, i32
  }
  func.func @transform_18(%arg0: i32) -> (i32, i32) {
    %c0_i32 = arith.constant 0 : i32
    %c0_i32_0 = arith.constant 0 : i32
    return %arg0, %c0_i32 : i32, i32
  }
}

</mosaic_0001>

<llo_original>
// kernel: lkca_forward.1
$region0: #{lkca_forward.1}
  #allocation0 [shape = 'u32[]', space=smem, size = 0x4, offset = 0x4, fixed_abs, tag = 'smem constant byte address 0x4 - core index']
  #allocation1 [shape = 'u32[72,128]{1,0:T(1,128)}', space=vmem, size = 0x9000, scoped, tag = 'internal scratch']
  %s0 = inlined_call_operand.vmem [shape: f32[256,128], index: 0, kind: input, shape index: {}]
  %s1 = inlined_call_operand.vmem [shape: bf16[128,128], index: 1, kind: input, shape index: {}]
  %s2 = inlined_call_operand.vmem [shape: f32[1,128], index: 2, kind: input, shape index: {}, may-alias: {2,4,7,9,13,15,17}]
  %s3 = inlined_call_operand.vmem [shape: f32[1,128], index: 3, kind: input, shape index: {}, may-alias: {3,8,14}]
  %s4 = inlined_call_operand.vmem [shape: f32[1,128], index: 4, kind: input, shape index: {}, may-alias: {2,4,7,9,13,15,17}]
  %s5 = inlined_call_operand.vmem [shape: bf16[25,128,128], index: 5, kind: input, shape index: {}]
  %s6 = inlined_call_operand.vmem [shape: f32[25,128], index: 6, kind: input, shape index: {}]
  %s7 = inlined_call_operand.vmem [shape: f32[1,128], index: 7, kind: input, shape index: {}, may-alias: {2,4,7,9,13,15,17}]
  %s8 = inlined_call_operand.vmem [shape: f32[1,128], index: 8, kind: input, shape index: {}, may-alias: {3,8,14}]
  %s9 = inlined_call_operand.vmem [shape: f32[1,128], index: 9, kind: input, shape index: {}, may-alias: {2,4,7,9,13,15,17}]
  %s10 = inlined_call_operand.vmem [shape: bf16[128,256], index: 10, kind: input, shape index: {}]
  %s11 = inlined_call_operand.vmem [shape: f32[1,256], index: 11, kind: input, shape index: {}]
  %s12 = inlined_call_operand.vmem [shape: bf16[256,128], index: 12, kind: input, shape index: {}]
  %s13 = inlined_call_operand.vmem [shape: f32[1,128], index: 13, kind: input, shape index: {}, may-alias: {2,4,7,9,13,15,17}]
  %s14 = inlined_call_operand.vmem [shape: f32[1,128], index: 14, kind: input, shape index: {}, may-alias: {3,8,14}]
  %s15 = inlined_call_operand.vmem [shape: f32[1,128], index: 15, kind: input, shape index: {}, may-alias: {2,4,7,9,13,15,17}]
  %s16 = inlined_call_operand.vmem [shape: bf16[128,128], index: 16, kind: input, shape index: {}]
  %s17 = inlined_call_operand.vmem [shape: f32[1,128], index: 17, kind: input, shape index: {}, may-alias: {2,4,7,9,13,15,17}]
  %s18 = inlined_call_operand.hbm [shape: f32[16,128], index: 18, kind: output, shape index: {}]
  %s19 = sld [smem:[#allocation0]]
  $region105: #{lkca_forward.1} parent=0
    _
  %s21 = ssub.s32 1, %s19
  %s22 = scalar_select 0, %s21, %s19
  $region1: #{lkca_forward.1} parent=0
    #allocation2 [shape = 'u8[8192]{0}', space=vmem, size = 0x2000, scoped, tag = 'output window, operand 0']
    #allocation3 [shape = 's32[2]{0}', space=sflag, size = 0x8, scoped, tag = 'scoped memory for lkca_forward.1']
    %23 = vsyncpa [#allocation3], 0
    %s24 = scalar_lea.sflag [#allocation3], 1
    %25 = vsyncpa %s24, 0
    loop: start=0, step=1, limit=4
    $region2: #{lkca_forward.1} parent=1 // loop_pre_header
      _
    $region3: #{lkca_forward.1} parent=1 // loop_header
      %s27 = sphi 0, %s31
      %p28 = scmp.ge.s32.totalorder %s27, 4
      %s37 = sphi 0, %s39
      %s40 = sphi 0, %s37
      %s41 = sphi 0, %s40
      %s57 = sphi 0, %s41
      %s61 = sphi 0, %s61
      %s63 = sphi 0, %s61
      %s64 = sphi 0, %s63
      %s78 = sphi 0, %s64
      %s82 = sphi 0, %s82
      %s84 = sphi 0, %s82
      %s85 = sphi 0, %s84
      %s99 = sphi 0, %s85
      %s103 = sphi 0, %s103
      %s105 = sphi 0, %s103
      %s106 = sphi 0, %s105
      %s120 = sphi 0, %s106
      %s124 = sphi 0, %s124
      %s126 = sphi 0, %s124
      %s127 = sphi 0, %s126
      %s141 = sphi 0, %s127
      %s145 = sphi 0, %s145
      %s147 = sphi 0, %s145
      %s148 = sphi 0, %s147
      %s162 = sphi 0, %s148
      %s166 = sphi 0, %s166
      %s168 = sphi 0, %s166
      %s169 = sphi 0, %s168
      %s183 = sphi 0, %s169
      %s187 = sphi 0, %s187
      %s189 = sphi 0, %s187
      %s190 = sphi 0, %s189
      %s204 = sphi 0, %s190
      %s208 = sphi 0, %s208
      %s210 = sphi 0, %s208
      %s211 = sphi 0, %s210
      %s225 = sphi 0, %s211
      %s229 = sphi 0, %s229
      %s231 = sphi 0, %s229
      %s232 = sphi 0, %s231
      %s246 = sphi 0, %s232
      %s250 = sphi 0, %s250
      %s252 = sphi 0, %s250
      %s253 = sphi 0, %s252
      %s267 = sphi 0, %s253
      %s271 = sphi 0, %s271
      %s273 = sphi 0, %s271
      %s274 = sphi 0, %s273
      %s288 = sphi 0, %s274
      %s292 = sphi 0, %s292
      %s294 = sphi 0, %s292
      %s295 = sphi 0, %s294
      %s309 = sphi 0, %s295
      %s313 = sphi 0, %s313
      %s315 = sphi 0, %s313
      %s316 = sphi 0, %s315
      %s330 = sphi 0, %s316
      %s334 = sphi 0, %s334
      %s336 = sphi 0, %s334
      %s337 = sphi 0, %s336
      %s351 = sphi 0, %s337
      %s355 = sphi 0, %s355
      %s357 = sphi 0, %s355
      %s358 = sphi 0, %s357
      %s372 = sphi 0, %s358
      %s376 = sphi 0, %s376
      %s378 = sphi 0, %s376
      %s379 = sphi 0, %s378
      %s393 = sphi 0, %s379
      %s397 = sphi 0, %s397
      %s399 = sphi 0, %s397
      %s400 = sphi 0, %s399
      %s414 = sphi 0, %s400
      %s420 = sphi 0, %s422
      %s423 = sphi 0, %s420
      %s424 = sphi 0, %s423
      %s440 = sphi 0, %s424
    $region4: #{lkca_forward.1} parent=1 // loop_header_branch
      %30 = sbr.rel (%p28) target = $region8
    $region5: #{lkca_forward.1} parent=1 // loop_body
      %s32 = ssub.s32 %s27, 1
      %s33 = ssub.s32 %s27, 2
      %s34 = sadd.s32 %s27, 1
      %s35 = ssub.s32 %s27, %s34
      %p36 = scmp.eq.s32.totalorder %s35, 0
      %s38 = sadd.s32 %s37, 1
      %s39 = scalar_select %p36, %s37, %s38
      %p42 = pneg %p36
      %p43 = scmp.eq.s32.totalorder %s27, 1
      %p44 = por %p42, %p43
      %p45 = scmp.ne.s32.totalorder %s37, %s40
      %p46 = scmp.eq.s32.totalorder %s27, 0
      %p47 = por %p45, %p46
      %p48 = scmp.ne.s32.totalorder %s37, %s40
      %p49 = scmp.eq.s32.totalorder %s32, 1
      %p50 = por %p48, %p49
      %p51 = scmp.ne.s32.totalorder %s40, %s41
      %p52 = scmp.eq.s32.totalorder %s32, 0
      %p53 = por %p51, %p52
      %p54 = scmp.ne.s32.totalorder %s40, %s41
      %p55 = scmp.eq.s32.totalorder %s33, 1
      %p56 = por %p54, %p55
      %p58 = scmp.ne.s32.totalorder %s41, %s57
      %p59 = scmp.eq.s32.totalorder %s33, 0
      %p60 = por %p58, %p59
      %s62 = sadd.s32 %s61, 1
      %p65 = scmp.eq.s32.totalorder %s27, 1
      %p66 = scmp.ne.s32.totalorder %s61, %s63
      %p67 = scmp.eq.s32.totalorder %s27, 0
      %p68 = por %p66, %p67
      %p69 = scmp.ne.s32.totalorder %s61, %s63
      %p70 = scmp.eq.s32.totalorder %s32, 1
      %p71 = por %p69, %p70
      %p72 = scmp.ne.s32.totalorder %s63, %s64
      %p73 = scmp.eq.s32.totalorder %s32, 0
      %p74 = por %p72, %p73
      %p75 = scmp.ne.s32.totalorder %s63, %s64
      %p76 = scmp.eq.s32.totalorder %s33, 1
      %p77 = por %p75, %p76
      %p79 = scmp.ne.s32.totalorder %s64, %s78
      %p80 = scmp.eq.s32.totalorder %s33, 0
      %p81 = por %p79, %p80
      %s83 = sadd.s32 %s82, 1
      %p86 = scmp.eq.s32.totalorder %s27, 1
      %p87 = scmp.ne.s32.totalorder %s82, %s84
      %p88 = scmp.eq.s32.totalorder %s27, 0
      %p89 = por %p87, %p88
      %p90 = scmp.ne.s32.totalorder %s82, %s84
      %p91 = scmp.eq.s32.totalorder %s32, 1
      %p92 = por %p90, %p91
      %p93 = scmp.ne.s32.totalorder %s84, %s85
      %p94 = scmp.eq.s32.totalorder %s32, 0
      %p95 = por %p93, %p94
      %p96 = scmp.ne.s32.totalorder %s84, %s85
      %p97 = scmp.eq.s32.totalorder %s33, 1
      %p98 = por %p96, %p97
      %p100 = scmp.ne.s32.totalorder %s85, %s99
      %p101 = scmp.eq.s32.totalorder %s33, 0
      %p102 = por %p100, %p101
      %s104 = sadd.s32 %s103, 1
      %p107 = scmp.eq.s32.totalorder %s27, 1
      %p108 = scmp.ne.s32.totalorder %s103, %s105
      %p109 = scmp.eq.s32.totalorder %s27, 0
      %p110 = por %p108, %p109
      %p111 = scmp.ne.s32.totalorder %s103, %s105
      %p112 = scmp.eq.s32.totalorder %s32, 1
      %p113 = por %p111, %p112
      %p114 = scmp.ne.s32.totalorder %s105, %s106
      %p115 = scmp.eq.s32.totalorder %s32, 0
      %p116 = por %p114, %p115
      %p117 = scmp.ne.s32.totalorder %s105, %s106
      %p118 = scmp.eq.s32.totalorder %s33, 1
      %p119 = por %p117, %p118
      %p121 = scmp.ne.s32.totalorder %s106, %s120
      %p122 = scmp.eq.s32.totalorder %s33, 0
      %p123 = por %p121, %p122
      %s125 = sadd.s32 %s124, 1
      %p128 = scmp.eq.s32.totalorder %s27, 1
      %p129 = scmp.ne.s32.totalorder %s124, %s126
      %p130 = scmp.eq.s32.totalorder %s27, 0
      %p131 = por %p129, %p130
      %p132 = scmp.ne.s32.totalorder %s124, %s126
      %p133 = scmp.eq.s32.totalorder %s32, 1
      %p134 = por %p132, %p133
      %p135 = scmp.ne.s32.totalorder %s126, %s127
      %p136 = scmp.eq.s32.totalorder %s32, 0
      %p137 = por %p135, %p136
      %p138 = scmp.ne.s32.totalorder %s126, %s127
      %p139 = scmp.eq.s32.totalorder %s33, 1
      %p140 = por %p138, %p139
      %p142 = scmp.ne.s32.totalorder %s127, %s141
      %p143 = scmp.eq.s32.totalorder %s33, 0
      %p144 = por %p142, %p143
      %s146 = sadd.s32 %s145, 1
      %p149 = scmp.eq.s32.totalorder %s27, 1
      %p150 = scmp.ne.s32.totalorder %s145, %s147
      %p151 = scmp.eq.s32.totalorder %s27, 0
      %p152 = por %p150, %p151
      %p153 = scmp.ne.s32.totalorder %s145, %s147
      %p154 = scmp.eq.s32.totalorder %s32, 1
      %p155 = por %p153, %p154
      %p156 = scmp.ne.s32.totalorder %s147, %s148
      %p157 = scmp.eq.s32.totalorder %s32, 0
      %p158 = por %p156, %p157
      %p159 = scmp.ne.s32.totalorder %s147, %s148
      %p160 = scmp.eq.s32.totalorder %s33, 1
      %p161 = por %p159, %p160
      %p163 = scmp.ne.s32.totalorder %s148, %s162
      %p164 = scmp.eq.s32.totalorder %s33, 0
      %p165 = por %p163, %p164
      %s167 = sadd.s32 %s166, 1
      %p170 = scmp.eq.s32.totalorder %s27, 1
      %p171 = scmp.ne.s32.totalorder %s166, %s168
      %p172 = scmp.eq.s32.totalorder %s27, 0
      %p173 = por %p171, %p172
      %p174 = scmp.ne.s32.totalorder %s166, %s168
      %p175 = scmp.eq.s32.totalorder %s32, 1
      %p176 = por %p174, %p175
      %p177 = scmp.ne.s32.totalorder %s168, %s169
      %p178 = scmp.eq.s32.totalorder %s32, 0
      %p179 = por %p177, %p178
      %p180 = scmp.ne.s32.totalorder %s168, %s169
      %p181 = scmp.eq.s32.totalorder %s33, 1
      %p182 = por %p180, %p181
      %p184 = scmp.ne.s32.totalorder %s169, %s183
      %p185 = scmp.eq.s32.totalorder %s33, 0
      %p186 = por %p184, %p185
      %s188 = sadd.s32 %s187, 1
      %p191 = scmp.eq.s32.totalorder %s27, 1
      %p192 = scmp.ne.s32.totalorder %s187, %s189
      %p193 = scmp.eq.s32.totalorder %s27, 0
      %p194 = por %p192, %p193
      %p195 = scmp.ne.s32.totalorder %s187, %s189
      %p196 = scmp.eq.s32.totalorder %s32, 1
      %p197 = por %p195, %p196
      %p198 = scmp.ne.s32.totalorder %s189, %s190
      %p199 = scmp.eq.s32.totalorder %s32, 0
      %p200 = por %p198, %p199
      %p201 = scmp.ne.s32.totalorder %s189, %s190
      %p202 = scmp.eq.s32.totalorder %s33, 1
      %p203 = por %p201, %p202
      %p205 = scmp.ne.s32.totalorder %s190, %s204
      %p206 = scmp.eq.s32.totalorder %s33, 0
      %p207 = por %p205, %p206
      %s209 = sadd.s32 %s208, 1
      %p212 = scmp.eq.s32.totalorder %s27, 1
      %p213 = scmp.ne.s32.totalorder %s208, %s210
      %p214 = scmp.eq.s32.totalorder %s27, 0
      %p215 = por %p213, %p214
      %p216 = scmp.ne.s32.totalorder %s208, %s210
      %p217 = scmp.eq.s32.totalorder %s32, 1
      %p218 = por %p216, %p217
      %p219 = scmp.ne.s32.totalorder %s210, %s211
      %p220 = scmp.eq.s32.totalorder %s32, 0
      %p221 = por %p219, %p220
      %p222 = scmp.ne.s32.totalorder %s210, %s211
      %p223 = scmp.eq.s32.totalorder %s33, 1
      %p224 = por %p222, %p223
      %p226 = scmp.ne.s32.totalorder %s211, %s225
      %p227 = scmp.eq.s32.totalorder %s33, 0
      %p228 = por %p226, %p227
      %s230 = sadd.s32 %s229, 1
      %p233 = scmp.eq.s32.totalorder %s27, 1
      %p234 = scmp.ne.s32.totalorder %s229, %s231
      %p235 = scmp.eq.s32.totalorder %s27, 0
      %p236 = por %p234, %p235
      %p237 = scmp.ne.s32.totalorder %s229, %s231
      %p238 = scmp.eq.s32.totalorder %s32, 1
      %p239 = por %p237, %p238
      %p240 = scmp.ne.s32.totalorder %s231, %s232
      %p241 = scmp.eq.s32.totalorder %s32, 0
      %p242 = por %p240, %p241
      %p243 = scmp.ne.s32.totalorder %s231, %s232
      %p244 = scmp.eq.s32.totalorder %s33, 1
      %p245 = por %p243, %p244
      %p247 = scmp.ne.s32.totalorder %s232, %s246
      %p248 = scmp.eq.s32.totalorder %s33, 0
      %p249 = por %p247, %p248
      %s251 = sadd.s32 %s250, 1
      %p254 = scmp.eq.s32.totalorder %s27, 1
      %p255 = scmp.ne.s32.totalorder %s250, %s252
      %p256 = scmp.eq.s32.totalorder %s27, 0
      %p257 = por %p255, %p256
      %p258 = scmp.ne.s32.totalorder %s250, %s252
      %p259 = scmp.eq.s32.totalorder %s32, 1
      %p260 = por %p258, %p259
      %p261 = scmp.ne.s32.totalorder %s252, %s253
      %p262 = scmp.eq.s32.totalorder %s32, 0
      %p263 = por %p261, %p262
      %p264 = scmp.ne.s32.totalorder %s252, %s253
      %p265 = scmp.eq.s32.totalorder %s33, 1
      %p266 = por %p264, %p265
      %p268 = scmp.ne.s32.totalorder %s253, %s267
      %p269 = scmp.eq.s32.totalorder %s33, 0
      %p270 = por %p268, %p269
      %s272 = sadd.s32 %s271, 1
      %p275 = scmp.eq.s32.totalorder %s27, 1
      %p276 = scmp.ne.s32.totalorder %s271, %s273
      %p277 = scmp.eq.s32.totalorder %s27, 0
      %p278 = por %p276, %p277
      %p279 = scmp.ne.s32.totalorder %s271, %s273
      %p280 = scmp.eq.s32.totalorder %s32, 1
      %p281 = por %p279, %p280
      %p282 = scmp.ne.s32.totalorder %s273, %s274
      %p283 = scmp.eq.s32.totalorder %s32, 0
      %p284 = por %p282, %p283
      %p285 = scmp.ne.s32.totalorder %s273, %s274
      %p286 = scmp.eq.s32.totalorder %s33, 1
      %p287 = por %p285, %p286
      %p289 = scmp.ne.s32.totalorder %s274, %s288
      %p290 = scmp.eq.s32.totalorder %s33, 0
      %p291 = por %p289, %p290
      %s293 = sadd.s32 %s292, 1
      %p296 = scmp.eq.s32.totalorder %s27, 1
      %p297 = scmp.ne.s32.totalorder %s292, %s294
      %p298 = scmp.eq.s32.totalorder %s27, 0
      %p299 = por %p297, %p298
      %p300 = scmp.ne.s32.totalorder %s292, %s294
      %p301 = scmp.eq.s32.totalorder %s32, 1
      %p302 = por %p300, %p301
      %p303 = scmp.ne.s32.totalorder %s294, %s295
      %p304 = scmp.eq.s32.totalorder %s32, 0
      %p305 = por %p303, %p304
      %p306 = scmp.ne.s32.totalorder %s294, %s295
      %p307 = scmp.eq.s32.totalorder %s33, 1
      %p308 = por %p306, %p307
      %p310 = scmp.ne.s32.totalorder %s295, %s309
      %p311 = scmp.eq.s32.totalorder %s33, 0
      %p312 = por %p310, %p311
      %s314 = sadd.s32 %s313, 1
      %p317 = scmp.eq.s32.totalorder %s27, 1
      %p318 = scmp.ne.s32.totalorder %s313, %s315
      %p319 = scmp.eq.s32.totalorder %s27, 0
      %p320 = por %p318, %p319
      %p321 = scmp.ne.s32.totalorder %s313, %s315
      %p322 = scmp.eq.s32.totalorder %s32, 1
      %p323 = por %p321, %p322
      %p324 = scmp.ne.s32.totalorder %s315, %s316
      %p325 = scmp.eq.s32.totalorder %s32, 0
      %p326 = por %p324, %p325
      %p327 = scmp.ne.s32.totalorder %s315, %s316
      %p328 = scmp.eq.s32.totalorder %s33, 1
      %p329 = por %p327, %p328
      %p331 = scmp.ne.s32.totalorder %s316, %s330
      %p332 = scmp.eq.s32.totalorder %s33, 0
      %p333 = por %p331, %p332
      %s335 = sadd.s32 %s334, 1
      %p338 = scmp.eq.s32.totalorder %s27, 1
      %p339 = scmp.ne.s32.totalorder %s334, %s336
      %p340 = scmp.eq.s32.totalorder %s27, 0
      %p341 = por %p339, %p340
      %p342 = scmp.ne.s32.totalorder %s334, %s336
      %p343 = scmp.eq.s32.totalorder %s32, 1
      %p344 = por %p342, %p343
      %p345 = scmp.ne.s32.totalorder %s336, %s337
      %p346 = scmp.eq.s32.totalorder %s32, 0
      %p347 = por %p345, %p346
      %p348 = scmp.ne.s32.totalorder %s336, %s337
      %p349 = scmp.eq.s32.totalorder %s33, 1
      %p350 = por %p348, %p349
      %p352 = scmp.ne.s32.totalorder %s337, %s351
      %p353 = scmp.eq.s32.totalorder %s33, 0
      %p354 = por %p352, %p353
      %s356 = sadd.s32 %s355, 1
      %p359 = scmp.eq.s32.totalorder %s27, 1
      %p360 = scmp.ne.s32.totalorder %s355, %s357
      %p361 = scmp.eq.s32.totalorder %s27, 0
      %p362 = por %p360, %p361
      %p363 = scmp.ne.s32.totalorder %s355, %s357
      %p364 = scmp.eq.s32.totalorder %s32, 1
      %p365 = por %p363, %p364
      %p366 = scmp.ne.s32.totalorder %s357, %s358
      %p367 = scmp.eq.s32.totalorder %s32, 0
      %p368 = por %p366, %p367
      %p369 = scmp.ne.s32.totalorder %s357, %s358
      %p370 = scmp.eq.s32.totalorder %s33, 1
      %p371 = por %p369, %p370
      %p373 = scmp.ne.s32.totalorder %s358, %s372
      %p374 = scmp.eq.s32.totalorder %s33, 0
      %p375 = por %p373, %p374
      %s377 = sadd.s32 %s376, 1
      %p380 = scmp.eq.s32.totalorder %s27, 1
      %p381 = scmp.ne.s32.totalorder %s376, %s378
      %p382 = scmp.eq.s32.totalorder %s27, 0
      %p383 = por %p381, %p382
      %p384 = scmp.ne.s32.totalorder %s376, %s378
      %p385 = scmp.eq.s32.totalorder %s32, 1
      %p386 = por %p384, %p385
      %p387 = scmp.ne.s32.totalorder %s378, %s379
      %p388 = scmp.eq.s32.totalorder %s32, 0
      %p389 = por %p387, %p388
      %p390 = scmp.ne.s32.totalorder %s378, %s379
      %p391 = scmp.eq.s32.totalorder %s33, 1
      %p392 = por %p390, %p391
      %p394 = scmp.ne.s32.totalorder %s379, %s393
      %p395 = scmp.eq.s32.totalorder %s33, 0
      %p396 = por %p394, %p395
      %s398 = sadd.s32 %s397, 1
      %p401 = scmp.eq.s32.totalorder %s27, 1
      %p402 = scmp.ne.s32.totalorder %s397, %s399
      %p403 = scmp.eq.s32.totalorder %s27, 0
      %p404 = por %p402, %p403
      %p405 = scmp.ne.s32.totalorder %s397, %s399
      %p406 = scmp.eq.s32.totalorder %s32, 1
      %p407 = por %p405, %p406
      %p408 = scmp.ne.s32.totalorder %s399, %s400
      %p409 = scmp.eq.s32.totalorder %s32, 0
      %p410 = por %p408, %p409
      %p411 = scmp.ne.s32.totalorder %s399, %s400
      %p412 = scmp.eq.s32.totalorder %s33, 1
      %p413 = por %p411, %p412
      %p415 = scmp.ne.s32.totalorder %s400, %s414
      %p416 = scmp.eq.s32.totalorder %s33, 0
      %p417 = por %p415, %p416
      %s418 = ssub.s32 %s27, %s34
      %p419 = scmp.eq.s32.totalorder %s418, 0
      %s421 = sadd.s32 %s420, 1
      %s422 = scalar_select %p419, %s420, %s421
      %p425 = pneg %p419
      %p426 = scmp.eq.s32.totalorder %s27, 1
      %p427 = por %p425, %p426
      %p428 = scmp.ne.s32.totalorder %s420, %s423
      %p429 = scmp.eq.s32.totalorder %s27, 0
      %p430 = por %p428, %p429
      %p431 = scmp.ne.s32.totalorder %s420, %s423
      %p432 = scmp.eq.s32.totalorder %s32, 1
      %p433 = por %p431, %p432
      %p434 = scmp.ne.s32.totalorder %s423, %s424
      %p435 = scmp.eq.s32.totalorder %s32, 0
      %p436 = por %p434, %p435
      %p437 = scmp.ne.s32.totalorder %s423, %s424
      %p438 = scmp.eq.s32.totalorder %s33, 1
      %p439 = por %p437, %p438
      %p441 = scmp.ne.s32.totalorder %s424, %s440
      %p442 = scmp.eq.s32.totalorder %s33, 0
      %p443 = por %p441, %p442
      %p444 = scmp.le.s32.totalorder 1, %s27
      %p445 = scmp.lt.s32.totalorder %s27, 3
      %p446 = pnand %p444, %p445
      %p447 = pneg %p446
      // Predicated region
      $region9: #{lkca_forward.1} parent=5 // pred_check
        _
      $region10: #{lkca_forward.1} parent=5 // pred_check_branch
        %449 = sbr.rel (%p446) target = $region12
      $region11: #{lkca_forward.1} parent=5 // pred_region
        %s450 = ssub.s32 %s27, 1
        // Predicated region
        $region13: #{lkca_forward.1} parent=11 // pred_check
          %p451 = pneg %p74
        $region14: #{lkca_forward.1} parent=11 // pred_check_branch
          %453 = sbr.rel (%p451) target = $region16
        $region15: #{lkca_forward.1} parent=11 // pred_region
          _
        $region16: #{lkca_forward.1} parent=11 // pred_fallthru
          _
        // Predicated region
        $region17: #{lkca_forward.1} parent=11 // pred_check
          %p454 = pneg %p95
        $region18: #{lkca_forward.1} parent=11 // pred_check_branch
          %456 = sbr.rel (%p454) target = $region20
        $region19: #{lkca_forward.1} parent=11 // pred_region
          _
        $region20: #{lkca_forward.1} parent=11 // pred_fallthru
          _
        // Predicated region
        $region21: #{lkca_forward.1} parent=11 // pred_check
          %p457 = pneg %p116
        $region22: #{lkca_forward.1} parent=11 // pred_check_branch
          %459 = sbr.rel (%p457) target = $region24
        $region23: #{lkca_forward.1} parent=11 // pred_region
          _
        $region24: #{lkca_forward.1} parent=11 // pred_fallthru
          _
        // Predicated region
        $region25: #{lkca_forward.1} parent=11 // pred_check
          %p460 = pneg %p137
        $region26: #{lkca_forward.1} parent=11 // pred_check_branch
          %462 = sbr.rel (%p460) target = $region28
        $region27: #{lkca_forward.1} parent=11 // pred_region
          _
        $region28: #{lkca_forward.1} parent=11 // pred_fallthru
          _
        // Predicated region
        $region29: #{lkca_forward.1} parent=11 // pred_check
          %p463 = pneg %p158
        $region30: #{lkca_forward.1} parent=11 // pred_check_branch
          %465 = sbr.rel (%p463) target = $region32
        $region31: #{lkca_forward.1} parent=11 // pred_region
          _
        $region32: #{lkca_forward.1} parent=11 // pred_fallthru
          _
        // Predicated region
        $region33: #{lkca_forward.1} parent=11 // pred_check
          %p466 = pneg %p179
        $region34: #{lkca_forward.1} parent=11 // pred_check_branch
          %468 = sbr.rel (%p466) target = $region36
        $region35: #{lkca_forward.1} parent=11 // pred_region
          _
        $region36: #{lkca_forward.1} parent=11 // pred_fallthru
          _
        // Predicated region
        $region37: #{lkca_forward.1} parent=11 // pred_check
          %p469 = pneg %p200
        $region38: #{lkca_forward.1} parent=11 // pred_check_branch
          %471 = sbr.rel (%p469) target = $region40
        $region39: #{lkca_forward.1} parent=11 // pred_region
          _
        $region40: #{lkca_forward.1} parent=11 // pred_fallthru
          _
        // Predicated region
        $region41: #{lkca_forward.1} parent=11 // pred_check
          %p472 = pneg %p221
        $region42: #{lkca_forward.1} parent=11 // pred_check_branch
          %474 = sbr.rel (%p472) target = $region44
        $region43: #{lkca_forward.1} parent=11 // pred_region
          _
        $region44: #{lkca_forward.1} parent=11 // pred_fallthru
          _
        // Predicated region
        $region45: #{lkca_forward.1} parent=11 // pred_check
          %p475 = pneg %p242
        $region46: #{lkca_forward.1} parent=11 // pred_check_branch
          %477 = sbr.rel (%p475) target = $region48
        $region47: #{lkca_forward.1} parent=11 // pred_region
          _
        $region48: #{lkca_forward.1} parent=11 // pred_fallthru
          _
        // Predicated region
        $region49: #{lkca_forward.1} parent=11 // pred_check
          %p478 = pneg %p263
        $region50: #{lkca_forward.1} parent=11 // pred_check_branch
          %480 = sbr.rel (%p478) target = $region52
        $region51: #{lkca_forward.1} parent=11 // pred_region
          _
        $region52: #{lkca_forward.1} parent=11 // pred_fallthru
          _
        // Predicated region
        $region53: #{lkca_forward.1} parent=11 // pred_check
          %p481 = pneg %p284
        $region54: #{lkca_forward.1} parent=11 // pred_check_branch
          %483 = sbr.rel (%p481) target = $region56
        $region55: #{lkca_forward.1} parent=11 // pred_region
          _
        $region56: #{lkca_forward.1} parent=11 // pred_fallthru
          _
        // Predicated region
        $region57: #{lkca_forward.1} parent=11 // pred_check
          %p484 = pneg %p305
        $region58: #{lkca_forward.1} parent=11 // pred_check_branch
          %486 = sbr.rel (%p484) target = $region60
        $region59: #{lkca_forward.1} parent=11 // pred_region
          _
        $region60: #{lkca_forward.1} parent=11 // pred_fallthru
          _
        // Predicated region
        $region61: #{lkca_forward.1} parent=11 // pred_check
          %p487 = pneg %p326
        $region62: #{lkca_forward.1} parent=11 // pred_check_branch
          %489 = sbr.rel (%p487) target = $region64
        $region63: #{lkca_forward.1} parent=11 // pred_region
          _
        $region64: #{lkca_forward.1} parent=11 // pred_fallthru
          _
        // Predicated region
        $region65: #{lkca_forward.1} parent=11 // pred_check
          %p490 = pneg %p347
        $region66: #{lkca_forward.1} parent=11 // pred_check_branch
          %492 = sbr.rel (%p490) target = $region68
        $region67: #{lkca_forward.1} parent=11 // pred_region
          _
        $region68: #{lkca_forward.1} parent=11 // pred_fallthru
          _
        // Predicated region
        $region69: #{lkca_forward.1} parent=11 // pred_check
          %p493 = pneg %p368
        $region70: #{lkca_forward.1} parent=11 // pred_check_branch
          %495 = sbr.rel (%p493) target = $region72
        $region71: #{lkca_forward.1} parent=11 // pred_region
          _
        $region72: #{lkca_forward.1} parent=11 // pred_fallthru
          _
        // Predicated region
        $region73: #{lkca_forward.1} parent=11 // pred_check
          %p496 = pneg %p389
        $region74: #{lkca_forward.1} parent=11 // pred_check_branch
          %498 = sbr.rel (%p496) target = $region76
        $region75: #{lkca_forward.1} parent=11 // pred_region
          _
        $region76: #{lkca_forward.1} parent=11 // pred_fallthru
          _
        // Predicated region
        $region77: #{lkca_forward.1} parent=11 // pred_check
          %p499 = pneg %p410
        $region78: #{lkca_forward.1} parent=11 // pred_check_branch
          %501 = sbr.rel (%p499) target = $region80
        $region79: #{lkca_forward.1} parent=11 // pred_region
          _
        $region80: #{lkca_forward.1} parent=11 // pred_fallthru
          _
      $region12: #{lkca_forward.1} parent=5 // pred_fallthru
        _
      %p502 = scmp.lt.s32.totalorder %s27, 2
      // Predicated region
      $region81: #{lkca_forward.1} parent=5 // pred_check
        %p503 = pneg %p502
      $region82: #{lkca_forward.1} parent=5 // pred_check_branch
        %505 = sbr.rel (%p503) target = $region84
      $region83: #{lkca_forward.1} parent=5 // pred_region
        // Predicated region
        $region85: #{lkca_forward.1} parent=83 // pred_check
          %p506 = pneg %p47
        $region86: #{lkca_forward.1} parent=83 // pred_check_branch
          %508 = sbr.rel (%p506) target = $region88
        $region87: #{lkca_forward.1} parent=83 // pred_region
          %s509 = smul.u32 16, %s27
          %p510 = scmp.lt.s32.totalorder %s509, 31
          %s511 = scalar_select %p510, %s509, 31
          %s512 = smul.addr %s511, 8
          %s513 = scalar_lea.vmem %s0, %s512
          %s514 = smul.u32 16, %s27
        $region88: #{lkca_forward.1} parent=83 // pred_fallthru
          _
      $region84: #{lkca_forward.1} parent=5 // pred_fallthru
        _
      %p515 = scmp.le.s32.totalorder 1, %s27
      %p516 = scmp.lt.s32.totalorder %s27, 3
      %p517 = pnand %p515, %p516
      %p518 = pneg %p517
      // Predicated region
      $region89: #{lkca_forward.1} parent=5 // pred_check
        _
      $region90: #{lkca_forward.1} parent=5 // pred_check_branch
        %520 = sbr.rel (%p517) target = $region92
      $region91: #{lkca_forward.1} parent=5 // pred_region
        %s521 = ssub.s32 %s27, 1
        %s522 = smul.u32 16, %s32
        %p523 = scmp.lt.s32.totalorder %s522, 31
        %s524 = scalar_select %p523, %s522, 31
        %s525 = smul.addr %s524, 8
        %s526 = scalar_lea.vmem %s0, %s525
        %p527 = pneg %p53
        %p528 = pneg %p50
        %p529 = pneg %p74
        %p530 = pneg %p71
        %p531 = pneg %p95
        %p532 = pneg %p92
        %p533 = pneg %p116
        %p534 = pneg %p113
        %p535 = pneg %p137
        %p536 = pneg %p134
        %p537 = pneg %p158
        %p538 = pneg %p155
        %p539 = pneg %p179
        %p540 = pneg %p176
        %p541 = pneg %p200
        %p542 = pneg %p197
        %p543 = pneg %p221
        %p544 = pneg %p218
        %p545 = pneg %p242
        %p546 = pneg %p239
        %p547 = pneg %p263
        %p548 = pneg %p260
        %p549 = pneg %p284
        %p550 = pneg %p281
        %p551 = pneg %p305
        %p552 = pneg %p302
        %p553 = pneg %p326
        %p554 = pneg %p323
        %p555 = pneg %p347
        %p556 = pneg %p344
        %p557 = pneg %p368
        %p558 = pneg %p365
        %p559 = pneg %p389
        %p560 = pneg %p386
        %p561 = pneg %p410
        %p562 = pneg %p407
        %p563 = pneg %p436
        %p564 = pneg %p433
        %s565 = sand.u32 %s423, 1
        %s566 = scalar_lea.sflag [#allocation3], %s565
        %s567 = sand.u32 %s423, 1
        %s568 = smul.addr %s567, 8
        %s569 = scalar_lea.vmem [#allocation2], %s568
        %s570 = smul.u32 16, %s32
        %p571 = scmp.lt.s32.totalorder %s570, 31
        %s572 = scalar_select %p571, %s570, 31
        %s573 = smul.addr %s572, 8
        %s574 = scalar_lea.vmem %s0, %s573
        %s575 = smul.u32 16, %s32
        %v576 = vld [vmem:[%s574] sm:$0xff]
        %v577 = vld [vmem:[%s574 + $0x8] sm:$0xff]
        %v578 = vld [vmem:[%s574 + $0x10] sm:$0xff]
        %v579 = vld [vmem:[%s574 + $0x18] sm:$0xff]
        %v580 = vld [vmem:[%s574 + $0x20] sm:$0xff]
        %v581 = vld [vmem:[%s574 + $0x28] sm:$0xff]
        %v582 = vld [vmem:[%s574 + $0x30] sm:$0xff]
        %v583 = vld [vmem:[%s574 + $0x38] sm:$0xff]
        %v584 = vld [vmem:[%s574 + $0x40] sm:$0xff]
        %v585 = vld [vmem:[%s574 + $0x48] sm:$0xff]
        %v586 = vld [vmem:[%s574 + $0x50] sm:$0xff]
        %v587 = vld [vmem:[%s574 + $0x58] sm:$0xff]
        %v588 = vld [vmem:[%s574 + $0x60] sm:$0xff]
        %v589 = vld [vmem:[%s574 + $0x68] sm:$0xff]
        %v590 = vld [vmem:[%s574 + $0x70] sm:$0xff]
        %v591 = vld [vmem:[%s574 + $0x78] sm:$0xff]
        %v592 = vpack.c.bf16 %v577, %v576
        %v593 = vpack.c.bf16 %v579, %v578
        %v594 = vpack.c.bf16 %v581, %v580
        %v595 = vpack.c.bf16 %v583, %v582
        %v596 = vpack.c.bf16 %v585, %v584
        %v597 = vpack.c.bf16 %v587, %v586
        %v598 = vpack.c.bf16 %v589, %v588
        %v599 = vpack.c.bf16 %v591, %v590
        %v600 = vld [vmem:[%s1] sm:$0xf]
        %v601 = vld [vmem:[%s1 + $0x4] sm:$0xf]
        %v602 = vld [vmem:[%s1 + $0x8] sm:$0xf]
        %v603 = vld [vmem:[%s1 + $0xc] sm:$0xf]
        %v604 = vld [vmem:[%s1 + $0x10] sm:$0xf]
        %v605 = vld [vmem:[%s1 + $0x14] sm:$0xf]
        %v606 = vld [vmem:[%s1 + $0x18] sm:$0xf]
        %v607 = vld [vmem:[%s1 + $0x1c] sm:$0xf]
        %v608 = vld [vmem:[%s1 + $0x20] sm:$0xf]
        %v609 = vld [vmem:[%s1 + $0x24] sm:$0xf]
        %v610 = vld [vmem:[%s1 + $0x28] sm:$0xf]
        %v611 = vld [vmem:[%s1 + $0x2c] sm:$0xf]
        %v612 = vld [vmem:[%s1 + $0x30] sm:$0xf]
        %v613 = vld [vmem:[%s1 + $0x34] sm:$0xf]
        %v614 = vld [vmem:[%s1 + $0x38] sm:$0xf]
        %v615 = vld [vmem:[%s1 + $0x3c] sm:$0xf]
        %v616 = vld [vmem:[%s2] sm:$0x1]
        %v618 = vperm.slane %v616, 0
        %v636 = vunpack.c.l.b16 %v600
        %v637 = vunpack.c.l.b16 %v601
        %v638 = vunpack.c.l.b16 %v602
        %v639 = vunpack.c.l.b16 %v603
        %v640 = vunpack.c.l.b16 %v604
        %v641 = vunpack.c.l.b16 %v605
        %v642 = vunpack.c.l.b16 %v606
        %v643 = vunpack.c.l.b16 %v607
        %v644 = vunpack.c.l.b16 %v608
        %v645 = vunpack.c.l.b16 %v609
        %v646 = vunpack.c.l.b16 %v610
        %v647 = vunpack.c.l.b16 %v611
        %v648 = vunpack.c.l.b16 %v612
        %v649 = vunpack.c.l.b16 %v613
        %v650 = vunpack.c.l.b16 %v614
        %v651 = vunpack.c.l.b16 %v615
        %v652 = vpack.c.b16 %v637, %v636
        %v653 = vpack.c.b16 %v639, %v638
        %v654 = vpack.c.b16 %v641, %v640
        %v655 = vpack.c.b16 %v643, %v642
        %v656 = vpack.c.b16 %v645, %v644
        %v657 = vpack.c.b16 %v647, %v646
        %v658 = vpack.c.b16 %v649, %v648
        %v659 = vpack.c.b16 %v651, %v650
        %668 = vmatpush.bf16.msra.mxu0 %v659
        %669 = vmatpush.bf16.msra.mxu0 %v658
        %670 = vmatpush.bf16.msra.mxu0 %v657
        %671 = vmatpush.bf16.msra.mxu0 %v656
        %672 = vmatpush.bf16.msra.mxu0 %v655
        %673 = vmatpush.bf16.msra.mxu0 %v654
        %674 = vmatpush.bf16.msra.mxu0 %v653
        %675 = vmatpush.bf16.msra.mxu0 %v652
        %676 = vmatmul.bf16.gmra.mxu0 %v592
        %v677 = vpop.f32.mrf.mxu0
        %v678 = vadd.f32 %v618, %v677
        %v679 = vpop.f32.mrf.mxu0
        %v680 = vadd.f32 %v618, %v679
        %681 = vmatmul.bf16.gmra.mxu0 %v593
        %v682 = vpop.f32.mrf.mxu0
        %v683 = vadd.f32 %v618, %v682
        %v684 = vpop.f32.mrf.mxu0
        %v685 = vadd.f32 %v618, %v684
        %686 = vmatmul.bf16.gmra.mxu0 %v594
        %v687 = vpop.f32.mrf.mxu0
        %v688 = vadd.f32 %v618, %v687
        %v689 = vpop.f32.mrf.mxu0
        %v690 = vadd.f32 %v618, %v689
        %691 = vmatmul.bf16.gmra.mxu0 %v595
        %v692 = vpop.f32.mrf.mxu0
        %v693 = vadd.f32 %v618, %v692
        %v694 = vpop.f32.mrf.mxu0
        %v695 = vadd.f32 %v618, %v694
        %696 = vmatmul.bf16.gmra.mxu0 %v596
        %v697 = vpop.f32.mrf.mxu0
        %v698 = vadd.f32 %v618, %v697
        %v699 = vpop.f32.mrf.mxu0
        %v700 = vadd.f32 %v618, %v699
        %701 = vmatmul.bf16.gmra.mxu0 %v597
        %v702 = vpop.f32.mrf.mxu0
        %v703 = vadd.f32 %v618, %v702
        %v704 = vpop.f32.mrf.mxu0
        %v705 = vadd.f32 %v618, %v704
        %706 = vmatmul.bf16.gmra.mxu0 %v598
        %v707 = vpop.f32.mrf.mxu0
        %v708 = vadd.f32 %v618, %v707
        %v709 = vpop.f32.mrf.mxu0
        %v710 = vadd.f32 %v618, %v709
        %711 = vmatmul.bf16.gmra.mxu0 %v599
        %v712 = vpop.f32.mrf.mxu0
        %v713 = vadd.f32 %v618, %v712
        %v714 = vpop.f32.mrf.mxu0
        %v715 = vadd.f32 %v618, %v714
        %716 = vdwg.mxu0
        %v717 = vld [vmem:[%s3] sm:$0x1]
        %v718 = vld [vmem:[%s4] sm:$0x1]
        %719 = vadd.xlane.f32.xlu0 %v678
        %v720 = vpop.xlane.xlu0 %719
        %721 = vadd.xlane.f32.xlu0 %v680
        %v722 = vpop.xlane.xlu0 %721
        %723 = vadd.xlane.f32.xlu0 %v683
        %v724 = vpop.xlane.xlu0 %723
        %725 = vadd.xlane.f32.xlu0 %v685
        %v726 = vpop.xlane.xlu0 %725
        %727 = vadd.xlane.f32.xlu0 %v688
        %v728 = vpop.xlane.xlu0 %727
        %729 = vadd.xlane.f32.xlu0 %v690
        %v730 = vpop.xlane.xlu0 %729
        %731 = vadd.xlane.f32.xlu0 %v693
        %v732 = vpop.xlane.xlu0 %731
        %733 = vadd.xlane.f32.xlu0 %v695
        %v734 = vpop.xlane.xlu0 %733
        %735 = vadd.xlane.f32.xlu0 %v698
        %v736 = vpop.xlane.xlu0 %735
        %737 = vadd.xlane.f32.xlu0 %v700
        %v738 = vpop.xlane.xlu0 %737
        %739 = vadd.xlane.f32.xlu0 %v703
        %v740 = vpop.xlane.xlu0 %739
        %741 = vadd.xlane.f32.xlu0 %v705
        %v742 = vpop.xlane.xlu0 %741
        %743 = vadd.xlane.f32.xlu0 %v708
        %v744 = vpop.xlane.xlu0 %743
        %745 = vadd.xlane.f32.xlu0 %v710
        %v746 = vpop.xlane.xlu0 %745
        %747 = vadd.xlane.f32.xlu0 %v713
        %v748 = vpop.xlane.xlu0 %747
        %749 = vadd.xlane.f32.xlu0 %v715
        %v750 = vpop.xlane.xlu0 %749
        %v751 = vrcp.pop 128.0
        %v752 = vmul.f32 128.0, %v751
        %v753 = vsub.f32 1.0, %v752
        %v754 = vmul.f32 %v751, %v753
        %v755 = vadd.f32 %v751, %v754
        %vm756 = vweird.f32 %v751
        %v757 = vsel %vm756, %v751, %v755
        %v758 = vmul.f32 %v720, %v757
        %v759 = vmul.f32 %v722, %v757
        %v760 = vmul.f32 %v724, %v757
        %v761 = vmul.f32 %v726, %v757
        %v762 = vmul.f32 %v728, %v757
        %v763 = vmul.f32 %v730, %v757
        %v764 = vmul.f32 %v732, %v757
        %v765 = vmul.f32 %v734, %v757
        %v766 = vmul.f32 %v736, %v757
        %v767 = vmul.f32 %v738, %v757
        %v768 = vmul.f32 %v740, %v757
        %v769 = vmul.f32 %v742, %v757
        %v770 = vmul.f32 %v744, %v757
        %v771 = vmul.f32 %v746, %v757
        %v772 = vmul.f32 %v748, %v757
        %v773 = vmul.f32 %v750, %v757
        %v774 = vsub.f32 %v678, %v758
        %v775 = vsub.f32 %v680, %v759
        %v776 = vsub.f32 %v683, %v760
        %v777 = vsub.f32 %v685, %v761
        %v778 = vsub.f32 %v688, %v762
        %v779 = vsub.f32 %v690, %v763
        %v780 = vsub.f32 %v693, %v764
        %v781 = vsub.f32 %v695, %v765
        %v782 = vsub.f32 %v698, %v766
        %v783 = vsub.f32 %v700, %v767
        %v784 = vsub.f32 %v703, %v768
        %v785 = vsub.f32 %v705, %v769
        %v786 = vsub.f32 %v708, %v770
        %v787 = vsub.f32 %v710, %v771
        %v788 = vsub.f32 %v713, %v772
        %v789 = vsub.f32 %v715, %v773
        %v790 = vmul.f32 %v774, %v774
        %v791 = vmul.f32 %v775, %v775
        %v792 = vmul.f32 %v776, %v776
        %v793 = vmul.f32 %v777, %v777
        %v794 = vmul.f32 %v778, %v778
        %v795 = vmul.f32 %v779, %v779
        %v796 = vmul.f32 %v780, %v780
        %v797 = vmul.f32 %v781, %v781
        %v798 = vmul.f32 %v782, %v782
        %v799 = vmul.f32 %v783, %v783
        %v800 = vmul.f32 %v784, %v784
        %v801 = vmul.f32 %v785, %v785
        %v802 = vmul.f32 %v786, %v786
        %v803 = vmul.f32 %v787, %v787
        %v804 = vmul.f32 %v788, %v788
        %v805 = vmul.f32 %v789, %v789
        %806 = vadd.xlane.f32.xlu0 %v790
        %v807 = vpop.xlane.xlu0 %806
        %808 = vadd.xlane.f32.xlu0 %v791
        %v809 = vpop.xlane.xlu0 %808
        %810 = vadd.xlane.f32.xlu0 %v792
        %v811 = vpop.xlane.xlu0 %810
        %812 = vadd.xlane.f32.xlu0 %v793
        %v813 = vpop.xlane.xlu0 %812
        %814 = vadd.xlane.f32.xlu0 %v794
        %v815 = vpop.xlane.xlu0 %814
        %816 = vadd.xlane.f32.xlu0 %v795
        %v817 = vpop.xlane.xlu0 %816
        %818 = vadd.xlane.f32.xlu0 %v796
        %v819 = vpop.xlane.xlu0 %818
        %820 = vadd.xlane.f32.xlu0 %v797
        %v821 = vpop.xlane.xlu0 %820
        %822 = vadd.xlane.f32.xlu0 %v798
        %v823 = vpop.xlane.xlu0 %822
        %824 = vadd.xlane.f32.xlu0 %v799
        %v825 = vpop.xlane.xlu0 %824
        %826 = vadd.xlane.f32.xlu0 %v800
        %v827 = vpop.xlane.xlu0 %826
        %828 = vadd.xlane.f32.xlu0 %v801
        %v829 = vpop.xlane.xlu0 %828
        %830 = vadd.xlane.f32.xlu0 %v802
        %v831 = vpop.xlane.xlu0 %830
        %832 = vadd.xlane.f32.xlu0 %v803
        %v833 = vpop.xlane.xlu0 %832
        %834 = vadd.xlane.f32.xlu0 %v804
        %v835 = vpop.xlane.xlu0 %834
        %836 = vadd.xlane.f32.xlu0 %v805
        %v837 = vpop.xlane.xlu0 %836
        %v838 = vmul.f32 %v807, %v757
        %v839 = vmul.f32 %v809, %v757
        %v840 = vmul.f32 %v811, %v757
        %v841 = vmul.f32 %v813, %v757
        %v842 = vmul.f32 %v815, %v757
        %v843 = vmul.f32 %v817, %v757
        %v844 = vmul.f32 %v819, %v757
        %v845 = vmul.f32 %v821, %v757
        %v846 = vmul.f32 %v823, %v757
        %v847 = vmul.f32 %v825, %v757
        %v848 = vmul.f32 %v827, %v757
        %v849 = vmul.f32 %v829, %v757
        %v850 = vmul.f32 %v831, %v757
        %v851 = vmul.f32 %v833, %v757
        %v852 = vmul.f32 %v835, %v757
        %v853 = vmul.f32 %v837, %v757
        %v854 = vadd.f32 %v838, 1e-05
        %v855 = vadd.f32 %v839, 1e-05
        %v856 = vadd.f32 %v840, 1e-05
        %v857 = vadd.f32 %v841, 1e-05
        %v858 = vadd.f32 %v842, 1e-05
        %v859 = vadd.f32 %v843, 1e-05
        %v860 = vadd.f32 %v844, 1e-05
        %v861 = vadd.f32 %v845, 1e-05
        %v862 = vadd.f32 %v846, 1e-05
        %v863 = vadd.f32 %v847, 1e-05
        %v864 = vadd.f32 %v848, 1e-05
        %v865 = vadd.f32 %v849, 1e-05
        %v866 = vadd.f32 %v850, 1e-05
        %v867 = vadd.f32 %v851, 1e-05
        %v868 = vadd.f32 %v852, 1e-05
        %v869 = vadd.f32 %v853, 1e-05
        %v870 = vrsqrt.pop %v854
        %v871 = vmul.f32 %v870, %v854
        %v872 = vmul.f32 %v871, %v870
        %v873 = vmul.f32 0.5, %v872
        %v874 = vsub.f32 1.5, %v873
        %v875 = vmul.f32 %v870, %v874
        %vm876 = vweird.f32 %v854
        %vm877 = vweird.f32 %v870
        %vm878 = vmor %vm876, %vm877
        %v879 = vsel %vm878, %v870, %v875
        %v880 = vrsqrt.pop %v855
        %v881 = vmul.f32 %v880, %v855
        %v882 = vmul.f32 %v881, %v880
        %v883 = vmul.f32 0.5, %v882
        %v884 = vsub.f32 1.5, %v883
        %v885 = vmul.f32 %v880, %v884
        %vm886 = vweird.f32 %v855
        %vm887 = vweird.f32 %v880
        %vm888 = vmor %vm886, %vm887
        %v889 = vsel %vm888, %v880, %v885
        %v890 = vrsqrt.pop %v856
        %v891 = vmul.f32 %v890, %v856
        %v892 = vmul.f32 %v891, %v890
        %v893 = vmul.f32 0.5, %v892
        %v894 = vsub.f32 1.5, %v893
        %v895 = vmul.f32 %v890, %v894
        %vm896 = vweird.f32 %v856
        %vm897 = vweird.f32 %v890
        %vm898 = vmor %vm896, %vm897
        %v899 = vsel %vm898, %v890, %v895
        %v900 = vrsqrt.pop %v857
        %v901 = vmul.f32 %v900, %v857
        %v902 = vmul.f32 %v901, %v900
        %v903 = vmul.f32 0.5, %v902
        %v904 = vsub.f32 1.5, %v903
        %v905 = vmul.f32 %v900, %v904
        %vm906 = vweird.f32 %v857
        %vm907 = vweird.f32 %v900
        %vm908 = vmor %vm906, %vm907
        %v909 = vsel %vm908, %v900, %v905
        %v910 = vrsqrt.pop %v858
        %v911 = vmul.f32 %v910, %v858
        %v912 = vmul.f32 %v911, %v910
        %v913 = vmul.f32 0.5, %v912
        %v914 = vsub.f32 1.5, %v913
        %v915 = vmul.f32 %v910, %v914
        %vm916 = vweird.f32 %v858
        %vm917 = vweird.f32 %v910
        %vm918 = vmor %vm916, %vm917
        %v919 = vsel %vm918, %v910, %v915
        %v920 = vrsqrt.pop %v859
        %v921 = vmul.f32 %v920, %v859
        %v922 = vmul.f32 %v921, %v920
        %v923 = vmul.f32 0.5, %v922
        %v924 = vsub.f32 1.5, %v923
        %v925 = vmul.f32 %v920, %v924
        %vm926 = vweird.f32 %v859
        %vm927 = vweird.f32 %v920
        %vm928 = vmor %vm926, %vm927
        %v929 = vsel %vm928, %v920, %v925
        %v930 = vrsqrt.pop %v860
        %v931 = vmul.f32 %v930, %v860
        %v932 = vmul.f32 %v931, %v930
        %v933 = vmul.f32 0.5, %v932
        %v934 = vsub.f32 1.5, %v933
        %v935 = vmul.f32 %v930, %v934
        %vm936 = vweird.f32 %v860
        %vm937 = vweird.f32 %v930
        %vm938 = vmor %vm936, %vm937
        %v939 = vsel %vm938, %v930, %v935
        %v940 = vrsqrt.pop %v861
        %v941 = vmul.f32 %v940, %v861
        %v942 = vmul.f32 %v941, %v940
        %v943 = vmul.f32 0.5, %v942
        %v944 = vsub.f32 1.5, %v943
        %v945 = vmul.f32 %v940, %v944
        %vm946 = vweird.f32 %v861
        %vm947 = vweird.f32 %v940
        %vm948 = vmor %vm946, %vm947
        %v949 = vsel %vm948, %v940, %v945
        %v950 = vrsqrt.pop %v862
        %v951 = vmul.f32 %v950, %v862
        %v952 = vmul.f32 %v951, %v950
        %v953 = vmul.f32 0.5, %v952
        %v954 = vsub.f32 1.5, %v953
        %v955 = vmul.f32 %v950, %v954
        %vm956 = vweird.f32 %v862
        %vm957 = vweird.f32 %v950
        %vm958 = vmor %vm956, %vm957
        %v959 = vsel %vm958, %v950, %v955
        %v960 = vrsqrt.pop %v863
        %v961 = vmul.f32 %v960, %v863
        %v962 = vmul.f32 %v961, %v960
        %v963 = vmul.f32 0.5, %v962
        %v964 = vsub.f32 1.5, %v963
        %v965 = vmul.f32 %v960, %v964
        %vm966 = vweird.f32 %v863
        %vm967 = vweird.f32 %v960
        %vm968 = vmor %vm966, %vm967
        %v969 = vsel %vm968, %v960, %v965
        %v970 = vrsqrt.pop %v864
        %v971 = vmul.f32 %v970, %v864
        %v972 = vmul.f32 %v971, %v970
        %v973 = vmul.f32 0.5, %v972
        %v974 = vsub.f32 1.5, %v973
        %v975 = vmul.f32 %v970, %v974
        %vm976 = vweird.f32 %v864
        %vm977 = vweird.f32 %v970
        %vm978 = vmor %vm976, %vm977
        %v979 = vsel %vm978, %v970, %v975
        %v980 = vrsqrt.pop %v865
        %v981 = vmul.f32 %v980, %v865
        %v982 = vmul.f32 %v981, %v980
        %v983 = vmul.f32 0.5, %v982
        %v984 = vsub.f32 1.5, %v983
        %v985 = vmul.f32 %v980, %v984
        %vm986 = vweird.f32 %v865
        %vm987 = vweird.f32 %v980
        %vm988 = vmor %vm986, %vm987
        %v989 = vsel %vm988, %v980, %v985
        %v990 = vrsqrt.pop %v866
        %v991 = vmul.f32 %v990, %v866
        %v992 = vmul.f32 %v991, %v990
        %v993 = vmul.f32 0.5, %v992
        %v994 = vsub.f32 1.5, %v993
        %v995 = vmul.f32 %v990, %v994
        %vm996 = vweird.f32 %v866
        %vm997 = vweird.f32 %v990
        %vm998 = vmor %vm996, %vm997
        %v999 = vsel %vm998, %v990, %v995
        %v1000 = vrsqrt.pop %v867
        %v1001 = vmul.f32 %v1000, %v867
        %v1002 = vmul.f32 %v1001, %v1000
        %v1003 = vmul.f32 0.5, %v1002
        %v1004 = vsub.f32 1.5, %v1003
        %v1005 = vmul.f32 %v1000, %v1004
        %vm1006 = vweird.f32 %v867
        %vm1007 = vweird.f32 %v1000
        %vm1008 = vmor %vm1006, %vm1007
        %v1009 = vsel %vm1008, %v1000, %v1005
        %v1010 = vrsqrt.pop %v868
        %v1011 = vmul.f32 %v1010, %v868
        %v1012 = vmul.f32 %v1011, %v1010
        %v1013 = vmul.f32 0.5, %v1012
        %v1014 = vsub.f32 1.5, %v1013
        %v1015 = vmul.f32 %v1010, %v1014
        %vm1016 = vweird.f32 %v868
        %vm1017 = vweird.f32 %v1010
        %vm1018 = vmor %vm1016, %vm1017
        %v1019 = vsel %vm1018, %v1010, %v1015
        %v1020 = vrsqrt.pop %v869
        %v1021 = vmul.f32 %v1020, %v869
        %v1022 = vmul.f32 %v1021, %v1020
        %v1023 = vmul.f32 0.5, %v1022
        %v1024 = vsub.f32 1.5, %v1023
        %v1025 = vmul.f32 %v1020, %v1024
        %vm1026 = vweird.f32 %v869
        %vm1027 = vweird.f32 %v1020
        %vm1028 = vmor %vm1026, %vm1027
        %v1029 = vsel %vm1028, %v1020, %v1025
        %v1030 = vmul.f32 %v774, %v879
        %v1031 = vmul.f32 %v775, %v889
        %v1032 = vmul.f32 %v776, %v899
        %v1033 = vmul.f32 %v777, %v909
        %v1034 = vmul.f32 %v778, %v919
        %v1035 = vmul.f32 %v779, %v929
        %v1036 = vmul.f32 %v780, %v939
        %v1037 = vmul.f32 %v781, %v949
        %v1038 = vmul.f32 %v782, %v959
        %v1039 = vmul.f32 %v783, %v969
        %v1040 = vmul.f32 %v784, %v979
        %v1041 = vmul.f32 %v785, %v989
        %v1042 = vmul.f32 %v786, %v999
        %v1043 = vmul.f32 %v787, %v1009
        %v1044 = vmul.f32 %v788, %v1019
        %v1045 = vmul.f32 %v789, %v1029
        %v1047 = vperm.slane %v717, 0
        %v1049 = vmul.f32 %v1030, %v1047
        %v1050 = vmul.f32 %v1031, %v1047
        %v1051 = vmul.f32 %v1032, %v1047
        %v1052 = vmul.f32 %v1033, %v1047
        %v1053 = vmul.f32 %v1034, %v1047
        %v1054 = vmul.f32 %v1035, %v1047
        %v1055 = vmul.f32 %v1036, %v1047
        %v1056 = vmul.f32 %v1037, %v1047
        %v1057 = vmul.f32 %v1038, %v1047
        %v1058 = vmul.f32 %v1039, %v1047
        %v1059 = vmul.f32 %v1040, %v1047
        %v1060 = vmul.f32 %v1041, %v1047
        %v1061 = vmul.f32 %v1042, %v1047
        %v1062 = vmul.f32 %v1043, %v1047
        %v1063 = vmul.f32 %v1044, %v1047
        %v1064 = vmul.f32 %v1045, %v1047
        %v1066 = vperm.slane %v718, 0
        %v1068 = vadd.f32 %v1049, %v1066
        %v1069 = vadd.f32 %v1050, %v1066
        %v1070 = vadd.f32 %v1051, %v1066
        %v1071 = vadd.f32 %v1052, %v1066
        %v1072 = vadd.f32 %v1053, %v1066
        %v1073 = vadd.f32 %v1054, %v1066
        %v1074 = vadd.f32 %v1055, %v1066
        %v1075 = vadd.f32 %v1056, %v1066
        %v1076 = vadd.f32 %v1057, %v1066
        %v1077 = vadd.f32 %v1058, %v1066
        %v1078 = vadd.f32 %v1059, %v1066
        %v1079 = vadd.f32 %v1060, %v1066
        %v1080 = vadd.f32 %v1061, %v1066
        %v1081 = vadd.f32 %v1062, %v1066
        %v1082 = vadd.f32 %v1063, %v1066
        %v1083 = vadd.f32 %v1064, %v1066
        %v1084 = vpack.c.bf16 %v1069, %v1068
        %v1085 = vpack.c.bf16 %v1071, %v1070
        %v1086 = vpack.c.bf16 %v1073, %v1072
        %v1087 = vpack.c.bf16 %v1075, %v1074
        %v1088 = vpack.c.bf16 %v1077, %v1076
        %v1089 = vpack.c.bf16 %v1079, %v1078
        %v1090 = vpack.c.bf16 %v1081, %v1080
        %v1091 = vpack.c.bf16 %v1083, %v1082
        %v1092 = vld [vmem:[%s5] sm:$0xf]
        %v1093 = vld [vmem:[%s5 + $0x4] sm:$0xf]
        %v1094 = vld [vmem:[%s5 + $0x8] sm:$0xf]
        %v1095 = vld [vmem:[%s5 + $0xc] sm:$0xf]
        %v1096 = vld [vmem:[%s5 + $0x10] sm:$0xf]
        %v1097 = vld [vmem:[%s5 + $0x14] sm:$0xf]
        %v1098 = vld [vmem:[%s5 + $0x18] sm:$0xf]
        %v1099 = vld [vmem:[%s5 + $0x1c] sm:$0xf]
        %v1100 = vld [vmem:[%s5 + $0x20] sm:$0xf]
        %v1101 = vld [vmem:[%s5 + $0x24] sm:$0xf]
        %v1102 = vld [vmem:[%s5 + $0x28] sm:$0xf]
        %v1103 = vld [vmem:[%s5 + $0x2c] sm:$0xf]
        %v1104 = vld [vmem:[%s5 + $0x30] sm:$0xf]
        %v1105 = vld [vmem:[%s5 + $0x34] sm:$0xf]
        %v1106 = vld [vmem:[%s5 + $0x38] sm:$0xf]
        %v1107 = vld [vmem:[%s5 + $0x3c] sm:$0xf]
        %v1124 = vunpack.c.l.b16 %v1092
        %v1125 = vunpack.c.l.b16 %v1093
        %v1126 = vunpack.c.l.b16 %v1094
        %v1127 = vunpack.c.l.b16 %v1095
        %v1128 = vunpack.c.l.b16 %v1096
        %v1129 = vunpack.c.l.b16 %v1097
        %v1130 = vunpack.c.l.b16 %v1098
        %v1131 = vunpack.c.l.b16 %v1099
        %v1132 = vunpack.c.l.b16 %v1100
        %v1133 = vunpack.c.l.b16 %v1101
        %v1134 = vunpack.c.l.b16 %v1102
        %v1135 = vunpack.c.l.b16 %v1103
        %v1136 = vunpack.c.l.b16 %v1104
        %v1137 = vunpack.c.l.b16 %v1105
        %v1138 = vunpack.c.l.b16 %v1106
        %v1139 = vunpack.c.l.b16 %v1107
        %v1140 = vpack.c.b16 %v1125, %v1124
        %v1141 = vpack.c.b16 %v1127, %v1126
        %v1142 = vpack.c.b16 %v1129, %v1128
        %v1143 = vpack.c.b16 %v1131, %v1130
        %v1144 = vpack.c.b16 %v1133, %v1132
        %v1145 = vpack.c.b16 %v1135, %v1134
        %v1146 = vpack.c.b16 %v1137, %v1136
        %v1147 = vpack.c.b16 %v1139, %v1138
        %1156 = vmatpush.bf16.msra.mxu0 %v1091
        %1157 = vmatpush.bf16.msra.mxu0 %v1090
        %1158 = vmatpush.bf16.msra.mxu0 %v1089
        %1159 = vmatpush.bf16.msra.mxu0 %v1088
        %1160 = vmatpush.bf16.msra.mxu0 %v1087
        %1161 = vmatpush.bf16.msra.mxu0 %v1086
        %1162 = vmatpush.bf16.msra.mxu0 %v1085
        %1163 = vmatpush.bf16.msra.mxu0 %v1084
        %1164 = vmatmul.bf16.gmra.mxu0 %v1140
        %v1165 = vpop.f32.mrf.mxu0
        %v1166 = vadd.f32 0.0, %v1165
        %v1167 = vpop.f32.mrf.mxu0
        %v1168 = vadd.f32 0.0, %v1167
        %1169 = vmatmul.bf16.gmra.mxu0 %v1141
        %v1170 = vpop.f32.mrf.mxu0
        %v1171 = vadd.f32 0.0, %v1170
        %v1172 = vpop.f32.mrf.mxu0
        %v1173 = vadd.f32 0.0, %v1172
        %1174 = vmatmul.bf16.gmra.mxu0 %v1142
        %v1175 = vpop.f32.mrf.mxu0
        %v1176 = vadd.f32 0.0, %v1175
        %v1177 = vpop.f32.mrf.mxu0
        %v1178 = vadd.f32 0.0, %v1177
        %1179 = vmatmul.bf16.gmra.mxu0 %v1143
        %v1180 = vpop.f32.mrf.mxu0
        %v1181 = vadd.f32 0.0, %v1180
        %v1182 = vpop.f32.mrf.mxu0
        %v1183 = vadd.f32 0.0, %v1182
        %1184 = vmatmul.bf16.gmra.mxu0 %v1144
        %v1185 = vpop.f32.mrf.mxu0
        %v1186 = vadd.f32 0.0, %v1185
        %v1187 = vpop.f32.mrf.mxu0
        %v1188 = vadd.f32 0.0, %v1187
        %1189 = vmatmul.bf16.gmra.mxu0 %v1145
        %v1190 = vpop.f32.mrf.mxu0
        %v1191 = vadd.f32 0.0, %v1190
        %v1192 = vpop.f32.mrf.mxu0
        %v1193 = vadd.f32 0.0, %v1192
        %1194 = vmatmul.bf16.gmra.mxu0 %v1146
        %v1195 = vpop.f32.mrf.mxu0
        %v1196 = vadd.f32 0.0, %v1195
        %v1197 = vpop.f32.mrf.mxu0
        %v1198 = vadd.f32 0.0, %v1197
        %1199 = vmatmul.bf16.gmra.mxu0 %v1147
        %v1200 = vpop.f32.mrf.mxu0
        %v1201 = vadd.f32 0.0, %v1200
        %v1202 = vpop.f32.mrf.mxu0
        %v1203 = vadd.f32 0.0, %v1202
        %1204 = vdwg.mxu0
        %v1205 = vld [vmem:[%s6] sm:$0x1]
        %v1206 = vperm.slane %v1205, 0
        %v1207 = vmul.f32 %v1166, %v1206
        %v1208 = vmul.f32 %v1168, %v1206
        %v1209 = vmul.f32 %v1171, %v1206
        %v1210 = vmul.f32 %v1173, %v1206
        %v1211 = vmul.f32 %v1176, %v1206
        %v1212 = vmul.f32 %v1178, %v1206
        %v1213 = vmul.f32 %v1181, %v1206
        %v1214 = vmul.f32 %v1183, %v1206
        %v1215 = vmul.f32 %v1186, %v1206
        %v1216 = vmul.f32 %v1188, %v1206
        %v1217 = vmul.f32 %v1191, %v1206
        %v1218 = vmul.f32 %v1193, %v1206
        %v1219 = vmul.f32 %v1196, %v1206
        %v1220 = vmul.f32 %v1198, %v1206
        %v1221 = vmul.f32 %v1201, %v1206
        %v1222 = vmul.f32 %v1203, %v1206
        %v1223 = vadd.f32 %v1207, 0.0
        %v1224 = vadd.f32 %v1208, 0.0
        %v1225 = vadd.f32 %v1209, 0.0
        %v1226 = vadd.f32 %v1210, 0.0
        %v1227 = vadd.f32 %v1211, 0.0
        %v1228 = vadd.f32 %v1212, 0.0
        %v1229 = vadd.f32 %v1213, 0.0
        %v1230 = vadd.f32 %v1214, 0.0
        %v1231 = vadd.f32 %v1215, 0.0
        %v1232 = vadd.f32 %v1216, 0.0
        %v1233 = vadd.f32 %v1217, 0.0
        %v1234 = vadd.f32 %v1218, 0.0
        %v1235 = vadd.f32 %v1219, 0.0
        %v1236 = vadd.f32 %v1220, 0.0
        %v1237 = vadd.f32 %v1221, 0.0
        %v1238 = vadd.f32 %v1222, 0.0
        %s1239 = scalar_lea.vmem %s5, 64
        %v1240 = vld [vmem:[%s1239] sm:$0xf]
        %v1241 = vld [vmem:[%s1239 + $0x4] sm:$0xf]
        %v1242 = vld [vmem:[%s1239 + $0x8] sm:$0xf]
        %v1243 = vld [vmem:[%s1239 + $0xc] sm:$0xf]
        %v1244 = vld [vmem:[%s1239 + $0x10] sm:$0xf]
        %v1245 = vld [vmem:[%s1239 + $0x14] sm:$0xf]
        %v1246 = vld [vmem:[%s1239 + $0x18] sm:$0xf]
        %v1247 = vld [vmem:[%s1239 + $0x1c] sm:$0xf]
        %v1248 = vld [vmem:[%s1239 + $0x20] sm:$0xf]
        %v1249 = vld [vmem:[%s1239 + $0x24] sm:$0xf]
        %v1250 = vld [vmem:[%s1239 + $0x28] sm:$0xf]
        %v1251 = vld [vmem:[%s1239 + $0x2c] sm:$0xf]
        %v1252 = vld [vmem:[%s1239 + $0x30] sm:$0xf]
        %v1253 = vld [vmem:[%s1239 + $0x34] sm:$0xf]
        %v1254 = vld [vmem:[%s1239 + $0x38] sm:$0xf]
        %v1255 = vld [vmem:[%s1239 + $0x3c] sm:$0xf]
        %v1272 = vunpack.c.l.b16 %v1240
        %v1273 = vunpack.c.l.b16 %v1241
        %v1274 = vunpack.c.l.b16 %v1242
        %v1275 = vunpack.c.l.b16 %v1243
        %v1276 = vunpack.c.l.b16 %v1244
        %v1277 = vunpack.c.l.b16 %v1245
        %v1278 = vunpack.c.l.b16 %v1246
        %v1279 = vunpack.c.l.b16 %v1247
        %v1280 = vunpack.c.l.b16 %v1248
        %v1281 = vunpack.c.l.b16 %v1249
        %v1282 = vunpack.c.l.b16 %v1250
        %v1283 = vunpack.c.l.b16 %v1251
        %v1284 = vunpack.c.l.b16 %v1252
        %v1285 = vunpack.c.l.b16 %v1253
        %v1286 = vunpack.c.l.b16 %v1254
        %v1287 = vunpack.c.l.b16 %v1255
        %v1288 = vpack.c.b16 %v1273, %v1272
        %v1289 = vpack.c.b16 %v1275, %v1274
        %v1290 = vpack.c.b16 %v1277, %v1276
        %v1291 = vpack.c.b16 %v1279, %v1278
        %v1292 = vpack.c.b16 %v1281, %v1280
        %v1293 = vpack.c.b16 %v1283, %v1282
        %v1294 = vpack.c.b16 %v1285, %v1284
        %v1295 = vpack.c.b16 %v1287, %v1286
        %1304 = vmatpush.bf16.msra.mxu0 %v1091
        %1305 = vmatpush.bf16.msra.mxu0 %v1090
        %1306 = vmatpush.bf16.msra.mxu0 %v1089
        %1307 = vmatpush.bf16.msra.mxu0 %v1088
        %1308 = vmatpush.bf16.msra.mxu0 %v1087
        %1309 = vmatpush.bf16.msra.mxu0 %v1086
        %1310 = vmatpush.bf16.msra.mxu0 %v1085
        %1311 = vmatpush.bf16.msra.mxu0 %v1084
        %1312 = vmatmul.bf16.gmra.mxu0 %v1288
        %v1313 = vpop.f32.mrf.mxu0
        %v1314 = vadd.f32 0.0, %v1313
        %v1315 = vpop.f32.mrf.mxu0
        %v1316 = vadd.f32 0.0, %v1315
        %1317 = vmatmul.bf16.gmra.mxu0 %v1289
        %v1318 = vpop.f32.mrf.mxu0
        %v1319 = vadd.f32 0.0, %v1318
        %v1320 = vpop.f32.mrf.mxu0
        %v1321 = vadd.f32 0.0, %v1320
        %1322 = vmatmul.bf16.gmra.mxu0 %v1290
        %v1323 = vpop.f32.mrf.mxu0
        %v1324 = vadd.f32 0.0, %v1323
        %v1325 = vpop.f32.mrf.mxu0
        %v1326 = vadd.f32 0.0, %v1325
        %1327 = vmatmul.bf16.gmra.mxu0 %v1291
        %v1328 = vpop.f32.mrf.mxu0
        %v1329 = vadd.f32 0.0, %v1328
        %v1330 = vpop.f32.mrf.mxu0
        %v1331 = vadd.f32 0.0, %v1330
        %1332 = vmatmul.bf16.gmra.mxu0 %v1292
        %v1333 = vpop.f32.mrf.mxu0
        %v1334 = vadd.f32 0.0, %v1333
        %v1335 = vpop.f32.mrf.mxu0
        %v1336 = vadd.f32 0.0, %v1335
        %1337 = vmatmul.bf16.gmra.mxu0 %v1293
        %v1338 = vpop.f32.mrf.mxu0
        %v1339 = vadd.f32 0.0, %v1338
        %v1340 = vpop.f32.mrf.mxu0
        %v1341 = vadd.f32 0.0, %v1340
        %1342 = vmatmul.bf16.gmra.mxu0 %v1294
        %v1343 = vpop.f32.mrf.mxu0
        %v1344 = vadd.f32 0.0, %v1343
        %v1345 = vpop.f32.mrf.mxu0
        %v1346 = vadd.f32 0.0, %v1345
        %1347 = vmatmul.bf16.gmra.mxu0 %v1295
        %v1348 = vpop.f32.mrf.mxu0
        %v1349 = vadd.f32 0.0, %v1348
        %v1350 = vpop.f32.mrf.mxu0
        %v1351 = vadd.f32 0.0, %v1350
        %1352 = vdwg.mxu0
        %v1353 = vld [vmem:[%s6 + $0x1] sm:$0x1]
        %v1354 = vperm.slane %v1353, 0
        %v1355 = vmul.f32 %v1314, %v1354
        %v1356 = vmul.f32 %v1316, %v1354
        %v1357 = vmul.f32 %v1319, %v1354
        %v1358 = vmul.f32 %v1321, %v1354
        %v1359 = vmul.f32 %v1324, %v1354
        %v1360 = vmul.f32 %v1326, %v1354
        %v1361 = vmul.f32 %v1329, %v1354
        %v1362 = vmul.f32 %v1331, %v1354
        %v1363 = vmul.f32 %v1334, %v1354
        %v1364 = vmul.f32 %v1336, %v1354
        %v1365 = vmul.f32 %v1339, %v1354
        %v1366 = vmul.f32 %v1341, %v1354
        %v1367 = vmul.f32 %v1344, %v1354
        %v1368 = vmul.f32 %v1346, %v1354
        %v1369 = vmul.f32 %v1349, %v1354
        %v1370 = vmul.f32 %v1351, %v1354
        %v1371 = vadd.f32 %v1223, %v1355
        %v1372 = vadd.f32 %v1224, %v1356
        %v1373 = vadd.f32 %v1225, %v1357
        %v1374 = vadd.f32 %v1226, %v1358
        %v1375 = vadd.f32 %v1227, %v1359
        %v1376 = vadd.f32 %v1228, %v1360
        %v1377 = vadd.f32 %v1229, %v1361
        %v1378 = vadd.f32 %v1230, %v1362
        %v1379 = vadd.f32 %v1231, %v1363
        %v1380 = vadd.f32 %v1232, %v1364
        %v1381 = vadd.f32 %v1233, %v1365
        %v1382 = vadd.f32 %v1234, %v1366
        %v1383 = vadd.f32 %v1235, %v1367
        %v1384 = vadd.f32 %v1236, %v1368
        %v1385 = vadd.f32 %v1237, %v1369
        %v1386 = vadd.f32 %v1238, %v1370
        %s1387 = scalar_lea.vmem %s5, 128
        %v1388 = vld [vmem:[%s1387] sm:$0xf]
        %v1389 = vld [vmem:[%s1387 + $0x4] sm:$0xf]
        %v1390 = vld [vmem:[%s1387 + $0x8] sm:$0xf]
        %v1391 = vld [vmem:[%s1387 + $0xc] sm:$0xf]
        %v1392 = vld [vmem:[%s1387 + $0x10] sm:$0xf]
        %v1393 = vld [vmem:[%s1387 + $0x14] sm:$0xf]
        %v1394 = vld [vmem:[%s1387 + $0x18] sm:$0xf]
        %v1395 = vld [vmem:[%s1387 + $0x1c] sm:$0xf]
        %v1396 = vld [vmem:[%s1387 + $0x20] sm:$0xf]
        %v1397 = vld [vmem:[%s1387 + $0x24] sm:$0xf]
        %v1398 = vld [vmem:[%s1387 + $0x28] sm:$0xf]
        %v1399 = vld [vmem:[%s1387 + $0x2c] sm:$0xf]
        %v1400 = vld [vmem:[%s1387 + $0x30] sm:$0xf]
        %v1401 = vld [vmem:[%s1387 + $0x34] sm:$0xf]
        %v1402 = vld [vmem:[%s1387 + $0x38] sm:$0xf]
        %v1403 = vld [vmem:[%s1387 + $0x3c] sm:$0xf]
        %v1420 = vunpack.c.l.b16 %v1388
        %v1421 = vunpack.c.l.b16 %v1389
        %v1422 = vunpack.c.l.b16 %v1390
        %v1423 = vunpack.c.l.b16 %v1391
        %v1424 = vunpack.c.l.b16 %v1392
        %v1425 = vunpack.c.l.b16 %v1393
        %v1426 = vunpack.c.l.b16 %v1394
        %v1427 = vunpack.c.l.b16 %v1395
        %v1428 = vunpack.c.l.b16 %v1396
        %v1429 = vunpack.c.l.b16 %v1397
        %v1430 = vunpack.c.l.b16 %v1398
        %v1431 = vunpack.c.l.b16 %v1399
        %v1432 = vunpack.c.l.b16 %v1400
        %v1433 = vunpack.c.l.b16 %v1401
        %v1434 = vunpack.c.l.b16 %v1402
        %v1435 = vunpack.c.l.b16 %v1403
        %v1436 = vpack.c.b16 %v1421, %v1420
        %v1437 = vpack.c.b16 %v1423, %v1422
        %v1438 = vpack.c.b16 %v1425, %v1424
        %v1439 = vpack.c.b16 %v1427, %v1426
        %v1440 = vpack.c.b16 %v1429, %v1428
        %v1441 = vpack.c.b16 %v1431, %v1430
        %v1442 = vpack.c.b16 %v1433, %v1432
        %v1443 = vpack.c.b16 %v1435, %v1434
        %1452 = vmatpush.bf16.msra.mxu0 %v1091
        %1453 = vmatpush.bf16.msra.mxu0 %v1090
        %1454 = vmatpush.bf16.msra.mxu0 %v1089
        %1455 = vmatpush.bf16.msra.mxu0 %v1088
        %1456 = vmatpush.bf16.msra.mxu0 %v1087
        %1457 = vmatpush.bf16.msra.mxu0 %v1086
        %1458 = vmatpush.bf16.msra.mxu0 %v1085
        %1459 = vmatpush.bf16.msra.mxu0 %v1084
        %1460 = vmatmul.bf16.gmra.mxu0 %v1436
        %v1461 = vpop.f32.mrf.mxu0
        %v1462 = vadd.f32 0.0, %v1461
        %v1463 = vpop.f32.mrf.mxu0
        %v1464 = vadd.f32 0.0, %v1463
        %1465 = vmatmul.bf16.gmra.mxu0 %v1437
        %v1466 = vpop.f32.mrf.mxu0
        %v1467 = vadd.f32 0.0, %v1466
        %v1468 = vpop.f32.mrf.mxu0
        %v1469 = vadd.f32 0.0, %v1468
        %1470 = vmatmul.bf16.gmra.mxu0 %v1438
        %v1471 = vpop.f32.mrf.mxu0
        %v1472 = vadd.f32 0.0, %v1471
        %v1473 = vpop.f32.mrf.mxu0
        %v1474 = vadd.f32 0.0, %v1473
        %1475 = vmatmul.bf16.gmra.mxu0 %v1439
        %v1476 = vpop.f32.mrf.mxu0
        %v1477 = vadd.f32 0.0, %v1476
        %v1478 = vpop.f32.mrf.mxu0
        %v1479 = vadd.f32 0.0, %v1478
        %1480 = vmatmul.bf16.gmra.mxu0 %v1440
        %v1481 = vpop.f32.mrf.mxu0
        %v1482 = vadd.f32 0.0, %v1481
        %v1483 = vpop.f32.mrf.mxu0
        %v1484 = vadd.f32 0.0, %v1483
        %1485 = vmatmul.bf16.gmra.mxu0 %v1441
        %v1486 = vpop.f32.mrf.mxu0
        %v1487 = vadd.f32 0.0, %v1486
        %v1488 = vpop.f32.mrf.mxu0
        %v1489 = vadd.f32 0.0, %v1488
        %1490 = vmatmul.bf16.gmra.mxu0 %v1442
        %v1491 = vpop.f32.mrf.mxu0
        %v1492 = vadd.f32 0.0, %v1491
        %v1493 = vpop.f32.mrf.mxu0
        %v1494 = vadd.f32 0.0, %v1493
        %1495 = vmatmul.bf16.gmra.mxu0 %v1443
        %v1496 = vpop.f32.mrf.mxu0
        %v1497 = vadd.f32 0.0, %v1496
        %v1498 = vpop.f32.mrf.mxu0
        %v1499 = vadd.f32 0.0, %v1498
        %1500 = vdwg.mxu0
        %v1501 = vld [vmem:[%s6 + $0x2] sm:$0x1]
        %v1502 = vperm.slane %v1501, 0
        %v1503 = vmul.f32 %v1462, %v1502
        %v1504 = vmul.f32 %v1464, %v1502
        %v1505 = vmul.f32 %v1467, %v1502
        %v1506 = vmul.f32 %v1469, %v1502
        %v1507 = vmul.f32 %v1472, %v1502
        %v1508 = vmul.f32 %v1474, %v1502
        %v1509 = vmul.f32 %v1477, %v1502
        %v1510 = vmul.f32 %v1479, %v1502
        %v1511 = vmul.f32 %v1482, %v1502
        %v1512 = vmul.f32 %v1484, %v1502
        %v1513 = vmul.f32 %v1487, %v1502
        %v1514 = vmul.f32 %v1489, %v1502
        %v1515 = vmul.f32 %v1492, %v1502
        %v1516 = vmul.f32 %v1494, %v1502
        %v1517 = vmul.f32 %v1497, %v1502
        %v1518 = vmul.f32 %v1499, %v1502
        %v1519 = vadd.f32 %v1371, %v1503
        %v1520 = vadd.f32 %v1372, %v1504
        %v1521 = vadd.f32 %v1373, %v1505
        %v1522 = vadd.f32 %v1374, %v1506
        %v1523 = vadd.f32 %v1375, %v1507
        %v1524 = vadd.f32 %v1376, %v1508
        %v1525 = vadd.f32 %v1377, %v1509
        %v1526 = vadd.f32 %v1378, %v1510
        %v1527 = vadd.f32 %v1379, %v1511
        %v1528 = vadd.f32 %v1380, %v1512
        %v1529 = vadd.f32 %v1381, %v1513
        %v1530 = vadd.f32 %v1382, %v1514
        %v1531 = vadd.f32 %v1383, %v1515
        %v1532 = vadd.f32 %v1384, %v1516
        %v1533 = vadd.f32 %v1385, %v1517
        %v1534 = vadd.f32 %v1386, %v1518
        %s1535 = scalar_lea.vmem %s5, 192
        %v1536 = vld [vmem:[%s1535] sm:$0xf]
        %v1537 = vld [vmem:[%s1535 + $0x4] sm:$0xf]
        %v1538 = vld [vmem:[%s1535 + $0x8] sm:$0xf]
        %v1539 = vld [vmem:[%s1535 + $0xc] sm:$0xf]
        %v1540 = vld [vmem:[%s1535 + $0x10] sm:$0xf]
        %v1541 = vld [vmem:[%s1535 + $0x14] sm:$0xf]
        %v1542 = vld [vmem:[%s1535 + $0x18] sm:$0xf]
        %v1543 = vld [vmem:[%s1535 + $0x1c] sm:$0xf]
        %v1544 = vld [vmem:[%s1535 + $0x20] sm:$0xf]
        %v1545 = vld [vmem:[%s1535 + $0x24] sm:$0xf]
        %v1546 = vld [vmem:[%s1535 + $0x28] sm:$0xf]
        %v1547 = vld [vmem:[%s1535 + $0x2c] sm:$0xf]
        %v1548 = vld [vmem:[%s1535 + $0x30] sm:$0xf]
        %v1549 = vld [vmem:[%s1535 + $0x34] sm:$0xf]
        %v1550 = vld [vmem:[%s1535 + $0x38] sm:$0xf]
        %v1551 = vld [vmem:[%s1535 + $0x3c] sm:$0xf]
        %v1568 = vunpack.c.l.b16 %v1536
        %v1569 = vunpack.c.l.b16 %v1537
        %v1570 = vunpack.c.l.b16 %v1538
        %v1571 = vunpack.c.l.b16 %v1539
        %v1572 = vunpack.c.l.b16 %v1540
        %v1573 = vunpack.c.l.b16 %v1541
        %v1574 = vunpack.c.l.b16 %v1542
        %v1575 = vunpack.c.l.b16 %v1543
        %v1576 = vunpack.c.l.b16 %v1544
        %v1577 = vunpack.c.l.b16 %v1545
        %v1578 = vunpack.c.l.b16 %v1546
        %v1579 = vunpack.c.l.b16 %v1547
        %v1580 = vunpack.c.l.b16 %v1548
        %v1581 = vunpack.c.l.b16 %v1549
        %v1582 = vunpack.c.l.b16 %v1550
        %v1583 = vunpack.c.l.b16 %v1551
        %v1584 = vpack.c.b16 %v1569, %v1568
        %v1585 = vpack.c.b16 %v1571, %v1570
        %v1586 = vpack.c.b16 %v1573, %v1572
        %v1587 = vpack.c.b16 %v1575, %v1574
        %v1588 = vpack.c.b16 %v1577, %v1576
        %v1589 = vpack.c.b16 %v1579, %v1578
        %v1590 = vpack.c.b16 %v1581, %v1580
        %v1591 = vpack.c.b16 %v1583, %v1582
        %1600 = vmatpush.bf16.msra.mxu0 %v1091
        %1601 = vmatpush.bf16.msra.mxu0 %v1090
        %1602 = vmatpush.bf16.msra.mxu0 %v1089
        %1603 = vmatpush.bf16.msra.mxu0 %v1088
        %1604 = vmatpush.bf16.msra.mxu0 %v1087
        %1605 = vmatpush.bf16.msra.mxu0 %v1086
        %1606 = vmatpush.bf16.msra.mxu0 %v1085
        %1607 = vmatpush.bf16.msra.mxu0 %v1084
        %1608 = vmatmul.bf16.gmra.mxu0 %v1584
        %v1609 = vpop.f32.mrf.mxu0
        %v1610 = vadd.f32 0.0, %v1609
        %v1611 = vpop.f32.mrf.mxu0
        %v1612 = vadd.f32 0.0, %v1611
        %1613 = vmatmul.bf16.gmra.mxu0 %v1585
        %v1614 = vpop.f32.mrf.mxu0
        %v1615 = vadd.f32 0.0, %v1614
        %v1616 = vpop.f32.mrf.mxu0
        %v1617 = vadd.f32 0.0, %v1616
        %1618 = vmatmul.bf16.gmra.mxu0 %v1586
        %v1619 = vpop.f32.mrf.mxu0
        %v1620 = vadd.f32 0.0, %v1619
        %v1621 = vpop.f32.mrf.mxu0
        %v1622 = vadd.f32 0.0, %v1621
        %1623 = vmatmul.bf16.gmra.mxu0 %v1587
        %v1624 = vpop.f32.mrf.mxu0
        %v1625 = vadd.f32 0.0, %v1624
        %v1626 = vpop.f32.mrf.mxu0
        %v1627 = vadd.f32 0.0, %v1626
        %1628 = vmatmul.bf16.gmra.mxu0 %v1588
        %v1629 = vpop.f32.mrf.mxu0
        %v1630 = vadd.f32 0.0, %v1629
        %v1631 = vpop.f32.mrf.mxu0
        %v1632 = vadd.f32 0.0, %v1631
        %1633 = vmatmul.bf16.gmra.mxu0 %v1589
        %v1634 = vpop.f32.mrf.mxu0
        %v1635 = vadd.f32 0.0, %v1634
        %v1636 = vpop.f32.mrf.mxu0
        %v1637 = vadd.f32 0.0, %v1636
        %1638 = vmatmul.bf16.gmra.mxu0 %v1590
        %v1639 = vpop.f32.mrf.mxu0
        %v1640 = vadd.f32 0.0, %v1639
        %v1641 = vpop.f32.mrf.mxu0
        %v1642 = vadd.f32 0.0, %v1641
        %1643 = vmatmul.bf16.gmra.mxu0 %v1591
        %v1644 = vpop.f32.mrf.mxu0
        %v1645 = vadd.f32 0.0, %v1644
        %v1646 = vpop.f32.mrf.mxu0
        %v1647 = vadd.f32 0.0, %v1646
        %1648 = vdwg.mxu0
        %v1649 = vld [vmem:[%s6 + $0x3] sm:$0x1]
        %v1650 = vperm.slane %v1649, 0
        %v1651 = vmul.f32 %v1610, %v1650
        %v1652 = vmul.f32 %v1612, %v1650
        %v1653 = vmul.f32 %v1615, %v1650
        %v1654 = vmul.f32 %v1617, %v1650
        %v1655 = vmul.f32 %v1620, %v1650
        %v1656 = vmul.f32 %v1622, %v1650
        %v1657 = vmul.f32 %v1625, %v1650
        %v1658 = vmul.f32 %v1627, %v1650
        %v1659 = vmul.f32 %v1630, %v1650
        %v1660 = vmul.f32 %v1632, %v1650
        %v1661 = vmul.f32 %v1635, %v1650
        %v1662 = vmul.f32 %v1637, %v1650
        %v1663 = vmul.f32 %v1640, %v1650
        %v1664 = vmul.f32 %v1642, %v1650
        %v1665 = vmul.f32 %v1645, %v1650
        %v1666 = vmul.f32 %v1647, %v1650
        %v1667 = vadd.f32 %v1519, %v1651
        %v1668 = vadd.f32 %v1520, %v1652
        %v1669 = vadd.f32 %v1521, %v1653
        %v1670 = vadd.f32 %v1522, %v1654
        %v1671 = vadd.f32 %v1523, %v1655
        %v1672 = vadd.f32 %v1524, %v1656
        %v1673 = vadd.f32 %v1525, %v1657
        %v1674 = vadd.f32 %v1526, %v1658
        %v1675 = vadd.f32 %v1527, %v1659
        %v1676 = vadd.f32 %v1528, %v1660
        %v1677 = vadd.f32 %v1529, %v1661
        %v1678 = vadd.f32 %v1530, %v1662
        %v1679 = vadd.f32 %v1531, %v1663
        %v1680 = vadd.f32 %v1532, %v1664
        %v1681 = vadd.f32 %v1533, %v1665
        %v1682 = vadd.f32 %v1534, %v1666
        %s1683 = scalar_lea.vmem %s5, 256
        %v1684 = vld [vmem:[%s1683] sm:$0xf]
        %v1685 = vld [vmem:[%s1683 + $0x4] sm:$0xf]
        %v1686 = vld [vmem:[%s1683 + $0x8] sm:$0xf]
        %v1687 = vld [vmem:[%s1683 + $0xc] sm:$0xf]
        %v1688 = vld [vmem:[%s1683 + $0x10] sm:$0xf]
        %v1689 = vld [vmem:[%s1683 + $0x14] sm:$0xf]
        %v1690 = vld [vmem:[%s1683 + $0x18] sm:$0xf]
        %v1691 = vld [vmem:[%s1683 + $0x1c] sm:$0xf]
        %v1692 = vld [vmem:[%s1683 + $0x20] sm:$0xf]
        %v1693 = vld [vmem:[%s1683 + $0x24] sm:$0xf]
        %v1694 = vld [vmem:[%s1683 + $0x28] sm:$0xf]
        %v1695 = vld [vmem:[%s1683 + $0x2c] sm:$0xf]
        %v1696 = vld [vmem:[%s1683 + $0x30] sm:$0xf]
        %v1697 = vld [vmem:[%s1683 + $0x34] sm:$0xf]
        %v1698 = vld [vmem:[%s1683 + $0x38] sm:$0xf]
        %v1699 = vld [vmem:[%s1683 + $0x3c] sm:$0xf]
        %v1716 = vunpack.c.l.b16 %v1684
        %v1717 = vunpack.c.l.b16 %v1685
        %v1718 = vunpack.c.l.b16 %v1686
        %v1719 = vunpack.c.l.b16 %v1687
        %v1720 = vunpack.c.l.b16 %v1688
        %v1721 = vunpack.c.l.b16 %v1689
        %v1722 = vunpack.c.l.b16 %v1690
        %v1723 = vunpack.c.l.b16 %v1691
        %v1724 = vunpack.c.l.b16 %v1692
        %v1725 = vunpack.c.l.b16 %v1693
        %v1726 = vunpack.c.l.b16 %v1694
        %v1727 = vunpack.c.l.b16 %v1695
        %v1728 = vunpack.c.l.b16 %v1696
        %v1729 = vunpack.c.l.b16 %v1697
        %v1730 = vunpack.c.l.b16 %v1698
        %v1731 = vunpack.c.l.b16 %v1699
        %v1732 = vpack.c.b16 %v1717, %v1716
        %v1733 = vpack.c.b16 %v1719, %v1718
        %v1734 = vpack.c.b16 %v1721, %v1720
        %v1735 = vpack.c.b16 %v1723, %v1722
        %v1736 = vpack.c.b16 %v1725, %v1724
        %v1737 = vpack.c.b16 %v1727, %v1726
        %v1738 = vpack.c.b16 %v1729, %v1728
        %v1739 = vpack.c.b16 %v1731, %v1730
        %1748 = vmatpush.bf16.msra.mxu0 %v1091
        %1749 = vmatpush.bf16.msra.mxu0 %v1090
        %1750 = vmatpush.bf16.msra.mxu0 %v1089
        %1751 = vmatpush.bf16.msra.mxu0 %v1088
        %1752 = vmatpush.bf16.msra.mxu0 %v1087
        %1753 = vmatpush.bf16.msra.mxu0 %v1086
        %1754 = vmatpush.bf16.msra.mxu0 %v1085
        %1755 = vmatpush.bf16.msra.mxu0 %v1084
        %1756 = vmatmul.bf16.gmra.mxu0 %v1732
        %v1757 = vpop.f32.mrf.mxu0
        %v1758 = vadd.f32 0.0, %v1757
        %v1759 = vpop.f32.mrf.mxu0
        %v1760 = vadd.f32 0.0, %v1759
        %1761 = vmatmul.bf16.gmra.mxu0 %v1733
        %v1762 = vpop.f32.mrf.mxu0
        %v1763 = vadd.f32 0.0, %v1762
        %v1764 = vpop.f32.mrf.mxu0
        %v1765 = vadd.f32 0.0, %v1764
        %1766 = vmatmul.bf16.gmra.mxu0 %v1734
        %v1767 = vpop.f32.mrf.mxu0
        %v1768 = vadd.f32 0.0, %v1767
        %v1769 = vpop.f32.mrf.mxu0
        %v1770 = vadd.f32 0.0, %v1769
        %1771 = vmatmul.bf16.gmra.mxu0 %v1735
        %v1772 = vpop.f32.mrf.mxu0
        %v1773 = vadd.f32 0.0, %v1772
        %v1774 = vpop.f32.mrf.mxu0
        %v1775 = vadd.f32 0.0, %v1774
        %1776 = vmatmul.bf16.gmra.mxu0 %v1736
        %v1777 = vpop.f32.mrf.mxu0
        %v1778 = vadd.f32 0.0, %v1777
        %v1779 = vpop.f32.mrf.mxu0
        %v1780 = vadd.f32 0.0, %v1779
        %1781 = vmatmul.bf16.gmra.mxu0 %v1737
        %v1782 = vpop.f32.mrf.mxu0
        %v1783 = vadd.f32 0.0, %v1782
        %v1784 = vpop.f32.mrf.mxu0
        %v1785 = vadd.f32 0.0, %v1784
        %1786 = vmatmul.bf16.gmra.mxu0 %v1738
        %v1787 = vpop.f32.mrf.mxu0
        %v1788 = vadd.f32 0.0, %v1787
        %v1789 = vpop.f32.mrf.mxu0
        %v1790 = vadd.f32 0.0, %v1789
        %1791 = vmatmul.bf16.gmra.mxu0 %v1739
        %v1792 = vpop.f32.mrf.mxu0
        %v1793 = vadd.f32 0.0, %v1792
        %v1794 = vpop.f32.mrf.mxu0
        %v1795 = vadd.f32 0.0, %v1794
        %1796 = vdwg.mxu0
        %v1797 = vld [vmem:[%s6 + $0x4] sm:$0x1]
        %v1798 = vperm.slane %v1797, 0
        %v1799 = vmul.f32 %v1758, %v1798
        %v1800 = vmul.f32 %v1760, %v1798
        %v1801 = vmul.f32 %v1763, %v1798
        %v1802 = vmul.f32 %v1765, %v1798
        %v1803 = vmul.f32 %v1768, %v1798
        %v1804 = vmul.f32 %v1770, %v1798
        %v1805 = vmul.f32 %v1773, %v1798
        %v1806 = vmul.f32 %v1775, %v1798
        %v1807 = vmul.f32 %v1778, %v1798
        %v1808 = vmul.f32 %v1780, %v1798
        %v1809 = vmul.f32 %v1783, %v1798
        %v1810 = vmul.f32 %v1785, %v1798
        %v1811 = vmul.f32 %v1788, %v1798
        %v1812 = vmul.f32 %v1790, %v1798
        %v1813 = vmul.f32 %v1793, %v1798
        %v1814 = vmul.f32 %v1795, %v1798
        %v1815 = vadd.f32 %v1667, %v1799
        %v1816 = vadd.f32 %v1668, %v1800
        %v1817 = vadd.f32 %v1669, %v1801
        %v1818 = vadd.f32 %v1670, %v1802
        %v1819 = vadd.f32 %v1671, %v1803
        %v1820 = vadd.f32 %v1672, %v1804
        %v1821 = vadd.f32 %v1673, %v1805
        %v1822 = vadd.f32 %v1674, %v1806
        %v1823 = vadd.f32 %v1675, %v1807
        %v1824 = vadd.f32 %v1676, %v1808
        %v1825 = vadd.f32 %v1677, %v1809
        %v1826 = vadd.f32 %v1678, %v1810
        %v1827 = vadd.f32 %v1679, %v1811
        %v1828 = vadd.f32 %v1680, %v1812
        %v1829 = vadd.f32 %v1681, %v1813
        %v1830 = vadd.f32 %v1682, %v1814
        %s1831 = scalar_lea.vmem %s5, 320
        %v1832 = vld [vmem:[%s1831] sm:$0xf]
        %v1833 = vld [vmem:[%s1831 + $0x4] sm:$0xf]
        %v1834 = vld [vmem:[%s1831 + $0x8] sm:$0xf]
        %v1835 = vld [vmem:[%s1831 + $0xc] sm:$0xf]
        %v1836 = vld [vmem:[%s1831 + $0x10] sm:$0xf]
        %v1837 = vld [vmem:[%s1831 + $0x14] sm:$0xf]
        %v1838 = vld [vmem:[%s1831 + $0x18] sm:$0xf]
        %v1839 = vld [vmem:[%s1831 + $0x1c] sm:$0xf]
        %v1840 = vld [vmem:[%s1831 + $0x20] sm:$0xf]
        %v1841 = vld [vmem:[%s1831 + $0x24] sm:$0xf]
        %v1842 = vld [vmem:[%s1831 + $0x28] sm:$0xf]
        %v1843 = vld [vmem:[%s1831 + $0x2c] sm:$0xf]
        %v1844 = vld [vmem:[%s1831 + $0x30] sm:$0xf]
        %v1845 = vld [vmem:[%s1831 + $0x34] sm:$0xf]
        %v1846 = vld [vmem:[%s1831 + $0x38] sm:$0xf]
        %v1847 = vld [vmem:[%s1831 + $0x3c] sm:$0xf]
        %v1864 = vunpack.c.l.b16 %v1832
        %v1865 = vunpack.c.l.b16 %v1833
        %v1866 = vunpack.c.l.b16 %v1834
        %v1867 = vunpack.c.l.b16 %v1835
        %v1868 = vunpack.c.l.b16 %v1836
        %v1869 = vunpack.c.l.b16 %v1837
        %v1870 = vunpack.c.l.b16 %v1838
        %v1871 = vunpack.c.l.b16 %v1839
        %v1872 = vunpack.c.l.b16 %v1840
        %v1873 = vunpack.c.l.b16 %v1841
        %v1874 = vunpack.c.l.b16 %v1842
        %v1875 = vunpack.c.l.b16 %v1843
        %v1876 = vunpack.c.l.b16 %v1844
        %v1877 = vunpack.c.l.b16 %v1845
        %v1878 = vunpack.c.l.b16 %v1846
        %v1879 = vunpack.c.l.b16 %v1847
        %v1880 = vpack.c.b16 %v1865, %v1864
        %v1881 = vpack.c.b16 %v1867, %v1866
        %v1882 = vpack.c.b16 %v1869, %v1868
        %v1883 = vpack.c.b16 %v1871, %v1870
        %v1884 = vpack.c.b16 %v1873, %v1872
        %v1885 = vpack.c.b16 %v1875, %v1874
        %v1886 = vpack.c.b16 %v1877, %v1876
        %v1887 = vpack.c.b16 %v1879, %v1878
        %1896 = vmatpush.bf16.msra.mxu0 %v1091
        %1897 = vmatpush.bf16.msra.mxu0 %v1090
        %1898 = vmatpush.bf16.msra.mxu0 %v1089
        %1899 = vmatpush.bf16.msra.mxu0 %v1088
        %1900 = vmatpush.bf16.msra.mxu0 %v1087
        %1901 = vmatpush.bf16.msra.mxu0 %v1086
        %1902 = vmatpush.bf16.msra.mxu0 %v1085
        %1903 = vmatpush.bf16.msra.mxu0 %v1084
        %1904 = vmatmul.bf16.gmra.mxu0 %v1880
        %v1905 = vpop.f32.mrf.mxu0
        %v1906 = vadd.f32 0.0, %v1905
        %v1907 = vpop.f32.mrf.mxu0
        %v1908 = vadd.f32 0.0, %v1907
        %1909 = vmatmul.bf16.gmra.mxu0 %v1881
        %v1910 = vpop.f32.mrf.mxu0
        %v1911 = vadd.f32 0.0, %v1910
        %v1912 = vpop.f32.mrf.mxu0
        %v1913 = vadd.f32 0.0, %v1912
        %1914 = vmatmul.bf16.gmra.mxu0 %v1882
        %v1915 = vpop.f32.mrf.mxu0
        %v1916 = vadd.f32 0.0, %v1915
        %v1917 = vpop.f32.mrf.mxu0
        %v1918 = vadd.f32 0.0, %v1917
        %1919 = vmatmul.bf16.gmra.mxu0 %v1883
        %v1920 = vpop.f32.mrf.mxu0
        %v1921 = vadd.f32 0.0, %v1920
        %v1922 = vpop.f32.mrf.mxu0
        %v1923 = vadd.f32 0.0, %v1922
        %1924 = vmatmul.bf16.gmra.mxu0 %v1884
        %v1925 = vpop.f32.mrf.mxu0
        %v1926 = vadd.f32 0.0, %v1925
        %v1927 = vpop.f32.mrf.mxu0
        %v1928 = vadd.f32 0.0, %v1927
        %1929 = vmatmul.bf16.gmra.mxu0 %v1885
        %v1930 = vpop.f32.mrf.mxu0
        %v1931 = vadd.f32 0.0, %v1930
        %v1932 = vpop.f32.mrf.mxu0
        %v1933 = vadd.f32 0.0, %v1932
        %1934 = vmatmul.bf16.gmra.mxu0 %v1886
        %v1935 = vpop.f32.mrf.mxu0
        %v1936 = vadd.f32 0.0, %v1935
        %v1937 = vpop.f32.mrf.mxu0
        %v1938 = vadd.f32 0.0, %v1937
        %1939 = vmatmul.bf16.gmra.mxu0 %v1887
        %v1940 = vpop.f32.mrf.mxu0
        %v1941 = vadd.f32 0.0, %v1940
        %v1942 = vpop.f32.mrf.mxu0
        %v1943 = vadd.f32 0.0, %v1942
        %1944 = vdwg.mxu0
        %v1945 = vld [vmem:[%s6 + $0x5] sm:$0x1]
        %v1946 = vperm.slane %v1945, 0
        %v1947 = vmul.f32 %v1906, %v1946
        %v1948 = vmul.f32 %v1908, %v1946
        %v1949 = vmul.f32 %v1911, %v1946
        %v1950 = vmul.f32 %v1913, %v1946
        %v1951 = vmul.f32 %v1916, %v1946
        %v1952 = vmul.f32 %v1918, %v1946
        %v1953 = vmul.f32 %v1921, %v1946
        %v1954 = vmul.f32 %v1923, %v1946
        %v1955 = vmul.f32 %v1926, %v1946
        %v1956 = vmul.f32 %v1928, %v1946
        %v1957 = vmul.f32 %v1931, %v1946
        %v1958 = vmul.f32 %v1933, %v1946
        %v1959 = vmul.f32 %v1936, %v1946
        %v1960 = vmul.f32 %v1938, %v1946
        %v1961 = vmul.f32 %v1941, %v1946
        %v1962 = vmul.f32 %v1943, %v1946
        %v1963 = vadd.f32 %v1815, %v1947
        %v1964 = vadd.f32 %v1816, %v1948
        %v1965 = vadd.f32 %v1817, %v1949
        %v1966 = vadd.f32 %v1818, %v1950
        %v1967 = vadd.f32 %v1819, %v1951
        %v1968 = vadd.f32 %v1820, %v1952
        %v1969 = vadd.f32 %v1821, %v1953
        %v1970 = vadd.f32 %v1822, %v1954
        %v1971 = vadd.f32 %v1823, %v1955
        %v1972 = vadd.f32 %v1824, %v1956
        %v1973 = vadd.f32 %v1825, %v1957
        %v1974 = vadd.f32 %v1826, %v1958
        %v1975 = vadd.f32 %v1827, %v1959
        %v1976 = vadd.f32 %v1828, %v1960
        %v1977 = vadd.f32 %v1829, %v1961
        %v1978 = vadd.f32 %v1830, %v1962
        %s1979 = scalar_lea.vmem %s5, 384
        %v1980 = vld [vmem:[%s1979] sm:$0xf]
        %v1981 = vld [vmem:[%s1979 + $0x4] sm:$0xf]
        %v1982 = vld [vmem:[%s1979 + $0x8] sm:$0xf]
        %v1983 = vld [vmem:[%s1979 + $0xc] sm:$0xf]
        %v1984 = vld [vmem:[%s1979 + $0x10] sm:$0xf]
        %v1985 = vld [vmem:[%s1979 + $0x14] sm:$0xf]
        %v1986 = vld [vmem:[%s1979 + $0x18] sm:$0xf]
        %v1987 = vld [vmem:[%s1979 + $0x1c] sm:$0xf]
        %v1988 = vld [vmem:[%s1979 + $0x20] sm:$0xf]
        %v1989 = vld [vmem:[%s1979 + $0x24] sm:$0xf]
        %v1990 = vld [vmem:[%s1979 + $0x28] sm:$0xf]
        %v1991 = vld [vmem:[%s1979 + $0x2c] sm:$0xf]
        %v1992 = vld [vmem:[%s1979 + $0x30] sm:$0xf]
        %v1993 = vld [vmem:[%s1979 + $0x34] sm:$0xf]
        %v1994 = vld [vmem:[%s1979 + $0x38] sm:$0xf]
        %v1995 = vld [vmem:[%s1979 + $0x3c] sm:$0xf]
        %v2012 = vunpack.c.l.b16 %v1980
        %v2013 = vunpack.c.l.b16 %v1981
        %v2014 = vunpack.c.l.b16 %v1982
        %v2015 = vunpack.c.l.b16 %v1983
        %v2016 = vunpack.c.l.b16 %v1984
        %v2017 = vunpack.c.l.b16 %v1985
        %v2018 = vunpack.c.l.b16 %v1986
        %v2019 = vunpack.c.l.b16 %v1987
        %v2020 = vunpack.c.l.b16 %v1988
        %v2021 = vunpack.c.l.b16 %v1989
        %v2022 = vunpack.c.l.b16 %v1990
        %v2023 = vunpack.c.l.b16 %v1991
        %v2024 = vunpack.c.l.b16 %v1992
        %v2025 = vunpack.c.l.b16 %v1993
        %v2026 = vunpack.c.l.b16 %v1994
        %v2027 = vunpack.c.l.b16 %v1995
        %v2028 = vpack.c.b16 %v2013, %v2012
        %v2029 = vpack.c.b16 %v2015, %v2014
        %v2030 = vpack.c.b16 %v2017, %v2016
        %v2031 = vpack.c.b16 %v2019, %v2018
        %v2032 = vpack.c.b16 %v2021, %v2020
        %v2033 = vpack.c.b16 %v2023, %v2022
        %v2034 = vpack.c.b16 %v2025, %v2024
        %v2035 = vpack.c.b16 %v2027, %v2026
        %2044 = vmatpush.bf16.msra.mxu0 %v1091
        %2045 = vmatpush.bf16.msra.mxu0 %v1090
        %2046 = vmatpush.bf16.msra.mxu0 %v1089
        %2047 = vmatpush.bf16.msra.mxu0 %v1088
        %2048 = vmatpush.bf16.msra.mxu0 %v1087
        %2049 = vmatpush.bf16.msra.mxu0 %v1086
        %2050 = vmatpush.bf16.msra.mxu0 %v1085
        %2051 = vmatpush.bf16.msra.mxu0 %v1084
        %2052 = vmatmul.bf16.gmra.mxu0 %v2028
        %v2053 = vpop.f32.mrf.mxu0
        %v2054 = vadd.f32 0.0, %v2053
        %v2055 = vpop.f32.mrf.mxu0
        %v2056 = vadd.f32 0.0, %v2055
        %2057 = vmatmul.bf16.gmra.mxu0 %v2029
        %v2058 = vpop.f32.mrf.mxu0
        %v2059 = vadd.f32 0.0, %v2058
        %v2060 = vpop.f32.mrf.mxu0
        %v2061 = vadd.f32 0.0, %v2060
        %2062 = vmatmul.bf16.gmra.mxu0 %v2030
        %v2063 = vpop.f32.mrf.mxu0
        %v2064 = vadd.f32 0.0, %v2063
        %v2065 = vpop.f32.mrf.mxu0
        %v2066 = vadd.f32 0.0, %v2065
        %2067 = vmatmul.bf16.gmra.mxu0 %v2031
        %v2068 = vpop.f32.mrf.mxu0
        %v2069 = vadd.f32 0.0, %v2068
        %v2070 = vpop.f32.mrf.mxu0
        %v2071 = vadd.f32 0.0, %v2070
        %2072 = vmatmul.bf16.gmra.mxu0 %v2032
        %v2073 = vpop.f32.mrf.mxu0
        %v2074 = vadd.f32 0.0, %v2073
        %v2075 = vpop.f32.mrf.mxu0
        %v2076 = vadd.f32 0.0, %v2075
        %2077 = vmatmul.bf16.gmra.mxu0 %v2033
        %v2078 = vpop.f32.mrf.mxu0
        %v2079 = vadd.f32 0.0, %v2078
        %v2080 = vpop.f32.mrf.mxu0
        %v2081 = vadd.f32 0.0, %v2080
        %2082 = vmatmul.bf16.gmra.mxu0 %v2034
        %v2083 = vpop.f32.mrf.mxu0
        %v2084 = vadd.f32 0.0, %v2083
        %v2085 = vpop.f32.mrf.mxu0
        %v2086 = vadd.f32 0.0, %v2085
        %2087 = vmatmul.bf16.gmra.mxu0 %v2035
        %v2088 = vpop.f32.mrf.mxu0
        %v2089 = vadd.f32 0.0, %v2088
        %v2090 = vpop.f32.mrf.mxu0
        %v2091 = vadd.f32 0.0, %v2090
        %2092 = vdwg.mxu0
        %v2093 = vld [vmem:[%s6 + $0x6] sm:$0x1]
        %v2094 = vperm.slane %v2093, 0
        %v2095 = vmul.f32 %v2054, %v2094
        %v2096 = vmul.f32 %v2056, %v2094
        %v2097 = vmul.f32 %v2059, %v2094
        %v2098 = vmul.f32 %v2061, %v2094
        %v2099 = vmul.f32 %v2064, %v2094
        %v2100 = vmul.f32 %v2066, %v2094
        %v2101 = vmul.f32 %v2069, %v2094
        %v2102 = vmul.f32 %v2071, %v2094
        %v2103 = vmul.f32 %v2074, %v2094
        %v2104 = vmul.f32 %v2076, %v2094
        %v2105 = vmul.f32 %v2079, %v2094
        %v2106 = vmul.f32 %v2081, %v2094
        %v2107 = vmul.f32 %v2084, %v2094
        %v2108 = vmul.f32 %v2086, %v2094
        %v2109 = vmul.f32 %v2089, %v2094
        %v2110 = vmul.f32 %v2091, %v2094
        %v2111 = vadd.f32 %v1963, %v2095
        %v2112 = vadd.f32 %v1964, %v2096
        %v2113 = vadd.f32 %v1965, %v2097
        %v2114 = vadd.f32 %v1966, %v2098
        %v2115 = vadd.f32 %v1967, %v2099
        %v2116 = vadd.f32 %v1968, %v2100
        %v2117 = vadd.f32 %v1969, %v2101
        %v2118 = vadd.f32 %v1970, %v2102
        %v2119 = vadd.f32 %v1971, %v2103
        %v2120 = vadd.f32 %v1972, %v2104
        %v2121 = vadd.f32 %v1973, %v2105
        %v2122 = vadd.f32 %v1974, %v2106
        %v2123 = vadd.f32 %v1975, %v2107
        %v2124 = vadd.f32 %v1976, %v2108
        %v2125 = vadd.f32 %v1977, %v2109
        %v2126 = vadd.f32 %v1978, %v2110
        %s2127 = scalar_lea.vmem %s5, 448
        %v2128 = vld [vmem:[%s2127] sm:$0xf]
        %v2129 = vld [vmem:[%s2127 + $0x4] sm:$0xf]
        %v2130 = vld [vmem:[%s2127 + $0x8] sm:$0xf]
        %v2131 = vld [vmem:[%s2127 + $0xc] sm:$0xf]
        %v2132 = vld [vmem:[%s2127 + $0x10] sm:$0xf]
        %v2133 = vld [vmem:[%s2127 + $0x14] sm:$0xf]
        %v2134 = vld [vmem:[%s2127 + $0x18] sm:$0xf]
        %v2135 = vld [vmem:[%s2127 + $0x1c] sm:$0xf]
        %v2136 = vld [vmem:[%s2127 + $0x20] sm:$0xf]
        %v2137 = vld [vmem:[%s2127 + $0x24] sm:$0xf]
        %v2138 = vld [vmem:[%s2127 + $0x28] sm:$0xf]
        %v2139 = vld [vmem:[%s2127 + $0x2c] sm:$0xf]
        %v2140 = vld [vmem:[%s2127 + $0x30] sm:$0xf]
        %v2141 = vld [vmem:[%s2127 + $0x34] sm:$0xf]
        %v2142 = vld [vmem:[%s2127 + $0x38] sm:$0xf]
        %v2143 = vld [vmem:[%s2127 + $0x3c] sm:$0xf]
        %v2160 = vunpack.c.l.b16 %v2128
        %v2161 = vunpack.c.l.b16 %v2129
        %v2162 = vunpack.c.l.b16 %v2130
        %v2163 = vunpack.c.l.b16 %v2131
        %v2164 = vunpack.c.l.b16 %v2132
        %v2165 = vunpack.c.l.b16 %v2133
        %v2166 = vunpack.c.l.b16 %v2134
        %v2167 = vunpack.c.l.b16 %v2135
        %v2168 = vunpack.c.l.b16 %v2136
        %v2169 = vunpack.c.l.b16 %v2137
        %v2170 = vunpack.c.l.b16 %v2138
        %v2171 = vunpack.c.l.b16 %v2139
        %v2172 = vunpack.c.l.b16 %v2140
        %v2173 = vunpack.c.l.b16 %v2141
        %v2174 = vunpack.c.l.b16 %v2142
        %v2175 = vunpack.c.l.b16 %v2143
        %v2176 = vpack.c.b16 %v2161, %v2160
        %v2177 = vpack.c.b16 %v2163, %v2162
        %v2178 = vpack.c.b16 %v2165, %v2164
        %v2179 = vpack.c.b16 %v2167, %v2166
        %v2180 = vpack.c.b16 %v2169, %v2168
        %v2181 = vpack.c.b16 %v2171, %v2170
        %v2182 = vpack.c.b16 %v2173, %v2172
        %v2183 = vpack.c.b16 %v2175, %v2174
        %2192 = vmatpush.bf16.msra.mxu0 %v1091
        %2193 = vmatpush.bf16.msra.mxu0 %v1090
        %2194 = vmatpush.bf16.msra.mxu0 %v1089
        %2195 = vmatpush.bf16.msra.mxu0 %v1088
        %2196 = vmatpush.bf16.msra.mxu0 %v1087
        %2197 = vmatpush.bf16.msra.mxu0 %v1086
        %2198 = vmatpush.bf16.msra.mxu0 %v1085
        %2199 = vmatpush.bf16.msra.mxu0 %v1084
        %2200 = vmatmul.bf16.gmra.mxu0 %v2176
        %v2201 = vpop.f32.mrf.mxu0
        %v2202 = vadd.f32 0.0, %v2201
        %v2203 = vpop.f32.mrf.mxu0
        %v2204 = vadd.f32 0.0, %v2203
        %2205 = vmatmul.bf16.gmra.mxu0 %v2177
        %v2206 = vpop.f32.mrf.mxu0
        %v2207 = vadd.f32 0.0, %v2206
        %v2208 = vpop.f32.mrf.mxu0
        %v2209 = vadd.f32 0.0, %v2208
        %2210 = vmatmul.bf16.gmra.mxu0 %v2178
        %v2211 = vpop.f32.mrf.mxu0
        %v2212 = vadd.f32 0.0, %v2211
        %v2213 = vpop.f32.mrf.mxu0
        %v2214 = vadd.f32 0.0, %v2213
        %2215 = vmatmul.bf16.gmra.mxu0 %v2179
        %v2216 = vpop.f32.mrf.mxu0
        %v2217 = vadd.f32 0.0, %v2216
        %v2218 = vpop.f32.mrf.mxu0
        %v2219 = vadd.f32 0.0, %v2218
        %2220 = vmatmul.bf16.gmra.mxu0 %v2180
        %v2221 = vpop.f32.mrf.mxu0
        %v2222 = vadd.f32 0.0, %v2221
        %v2223 = vpop.f32.mrf.mxu0
        %v2224 = vadd.f32 0.0, %v2223
        %2225 = vmatmul.bf16.gmra.mxu0 %v2181
        %v2226 = vpop.f32.mrf.mxu0
        %v2227 = vadd.f32 0.0, %v2226
        %v2228 = vpop.f32.mrf.mxu0
        %v2229 = vadd.f32 0.0, %v2228
        %2230 = vmatmul.bf16.gmra.mxu0 %v2182
        %v2231 = vpop.f32.mrf.mxu0
        %v2232 = vadd.f32 0.0, %v2231
        %v2233 = vpop.f32.mrf.mxu0
        %v2234 = vadd.f32 0.0, %v2233
        %2235 = vmatmul.bf16.gmra.mxu0 %v2183
        %v2236 = vpop.f32.mrf.mxu0
        %v2237 = vadd.f32 0.0, %v2236
        %v2238 = vpop.f32.mrf.mxu0
        %v2239 = vadd.f32 0.0, %v2238
        %2240 = vdwg.mxu0
        %v2241 = vld [vmem:[%s6 + $0x7] sm:$0x1]
        %v2242 = vperm.slane %v2241, 0
        %v2243 = vmul.f32 %v2202, %v2242
        %v2244 = vmul.f32 %v2204, %v2242
        %v2245 = vmul.f32 %v2207, %v2242
        %v2246 = vmul.f32 %v2209, %v2242
        %v2247 = vmul.f32 %v2212, %v2242
        %v2248 = vmul.f32 %v2214, %v2242
        %v2249 = vmul.f32 %v2217, %v2242
        %v2250 = vmul.f32 %v2219, %v2242
        %v2251 = vmul.f32 %v2222, %v2242
        %v2252 = vmul.f32 %v2224, %v2242
        %v2253 = vmul.f32 %v2227, %v2242
        %v2254 = vmul.f32 %v2229, %v2242
        %v2255 = vmul.f32 %v2232, %v2242
        %v2256 = vmul.f32 %v2234, %v2242
        %v2257 = vmul.f32 %v2237, %v2242
        %v2258 = vmul.f32 %v2239, %v2242
        %v2259 = vadd.f32 %v2111, %v2243
        %v2260 = vadd.f32 %v2112, %v2244
        %v2261 = vadd.f32 %v2113, %v2245
        %v2262 = vadd.f32 %v2114, %v2246
        %v2263 = vadd.f32 %v2115, %v2247
        %v2264 = vadd.f32 %v2116, %v2248
        %v2265 = vadd.f32 %v2117, %v2249
        %v2266 = vadd.f32 %v2118, %v2250
        %v2267 = vadd.f32 %v2119, %v2251
        %v2268 = vadd.f32 %v2120, %v2252
        %v2269 = vadd.f32 %v2121, %v2253
        %v2270 = vadd.f32 %v2122, %v2254
        %v2271 = vadd.f32 %v2123, %v2255
        %v2272 = vadd.f32 %v2124, %v2256
        %v2273 = vadd.f32 %v2125, %v2257
        %v2274 = vadd.f32 %v2126, %v2258
        %s2275 = scalar_lea.vmem %s5, 512
        %v2276 = vld [vmem:[%s2275] sm:$0xf]
        %v2277 = vld [vmem:[%s2275 + $0x4] sm:$0xf]
        %v2278 = vld [vmem:[%s2275 + $0x8] sm:$0xf]
        %v2279 = vld [vmem:[%s2275 + $0xc] sm:$0xf]
        %v2280 = vld [vmem:[%s2275 + $0x10] sm:$0xf]
        %v2281 = vld [vmem:[%s2275 + $0x14] sm:$0xf]
        %v2282 = vld [vmem:[%s2275 + $0x18] sm:$0xf]
        %v2283 = vld [vmem:[%s2275 + $0x1c] sm:$0xf]
        %v2284 = vld [vmem:[%s2275 + $0x20] sm:$0xf]
        %v2285 = vld [vmem:[%s2275 + $0x24] sm:$0xf]
        %v2286 = vld [vmem:[%s2275 + $0x28] sm:$0xf]
        %v2287 = vld [vmem:[%s2275 + $0x2c] sm:$0xf]
        %v2288 = vld [vmem:[%s2275 + $0x30] sm:$0xf]
        %v2289 = vld [vmem:[%s2275 + $0x34] sm:$0xf]
        %v2290 = vld [vmem:[%s2275 + $0x38] sm:$0xf]
        %v2291 = vld [vmem:[%s2275 + $0x3c] sm:$0xf]
        %v2308 = vunpack.c.l.b16 %v2276
        %v2309 = vunpack.c.l.b16 %v2277
        %v2310 = vunpack.c.l.b16 %v2278
        %v2311 = vunpack.c.l.b16 %v2279
        %v2312 = vunpack.c.l.b16 %v2280
        %v2313 = vunpack.c.l.b16 %v2281
        %v2314 = vunpack.c.l.b16 %v2282
        %v2315 = vunpack.c.l.b16 %v2283
        %v2316 = vunpack.c.l.b16 %v2284
        %v2317 = vunpack.c.l.b16 %v2285
        %v2318 = vunpack.c.l.b16 %v2286
        %v2319 = vunpack.c.l.b16 %v2287
        %v2320 = vunpack.c.l.b16 %v2288
        %v2321 = vunpack.c.l.b16 %v2289
        %v2322 = vunpack.c.l.b16 %v2290
        %v2323 = vunpack.c.l.b16 %v2291
        %v2324 = vpack.c.b16 %v2309, %v2308
        %v2325 = vpack.c.b16 %v2311, %v2310
        %v2326 = vpack.c.b16 %v2313, %v2312
        %v2327 = vpack.c.b16 %v2315, %v2314
        %v2328 = vpack.c.b16 %v2317, %v2316
        %v2329 = vpack.c.b16 %v2319, %v2318
        %v2330 = vpack.c.b16 %v2321, %v2320
        %v2331 = vpack.c.b16 %v2323, %v2322
        %2340 = vmatpush.bf16.msra.mxu0 %v1091
        %2341 = vmatpush.bf16.msra.mxu0 %v1090
        %2342 = vmatpush.bf16.msra.mxu0 %v1089
        %2343 = vmatpush.bf16.msra.mxu0 %v1088
        %2344 = vmatpush.bf16.msra.mxu0 %v1087
        %2345 = vmatpush.bf16.msra.mxu0 %v1086
        %2346 = vmatpush.bf16.msra.mxu0 %v1085
        %2347 = vmatpush.bf16.msra.mxu0 %v1084
        %2348 = vmatmul.bf16.gmra.mxu0 %v2324
        %v2349 = vpop.f32.mrf.mxu0
        %v2350 = vadd.f32 0.0, %v2349
        %v2351 = vpop.f32.mrf.mxu0
        %v2352 = vadd.f32 0.0, %v2351
        %2353 = vmatmul.bf16.gmra.mxu0 %v2325
        %v2354 = vpop.f32.mrf.mxu0
        %v2355 = vadd.f32 0.0, %v2354
        %v2356 = vpop.f32.mrf.mxu0
        %v2357 = vadd.f32 0.0, %v2356
        %2358 = vmatmul.bf16.gmra.mxu0 %v2326
        %v2359 = vpop.f32.mrf.mxu0
        %v2360 = vadd.f32 0.0, %v2359
        %v2361 = vpop.f32.mrf.mxu0
        %v2362 = vadd.f32 0.0, %v2361
        %2363 = vmatmul.bf16.gmra.mxu0 %v2327
        %v2364 = vpop.f32.mrf.mxu0
        %v2365 = vadd.f32 0.0, %v2364
        %v2366 = vpop.f32.mrf.mxu0
        %v2367 = vadd.f32 0.0, %v2366
        %2368 = vmatmul.bf16.gmra.mxu0 %v2328
        %v2369 = vpop.f32.mrf.mxu0
        %v2370 = vadd.f32 0.0, %v2369
        %v2371 = vpop.f32.mrf.mxu0
        %v2372 = vadd.f32 0.0, %v2371
        %2373 = vmatmul.bf16.gmra.mxu0 %v2329
        %v2374 = vpop.f32.mrf.mxu0
        %v2375 = vadd.f32 0.0, %v2374
        %v2376 = vpop.f32.mrf.mxu0
        %v2377 = vadd.f32 0.0, %v2376
        %2378 = vmatmul.bf16.gmra.mxu0 %v2330
        %v2379 = vpop.f32.mrf.mxu0
        %v2380 = vadd.f32 0.0, %v2379
        %v2381 = vpop.f32.mrf.mxu0
        %v2382 = vadd.f32 0.0, %v2381
        %2383 = vmatmul.bf16.gmra.mxu0 %v2331
        %v2384 = vpop.f32.mrf.mxu0
        %v2385 = vadd.f32 0.0, %v2384
        %v2386 = vpop.f32.mrf.mxu0
        %v2387 = vadd.f32 0.0, %v2386
        %2388 = vdwg.mxu0
        %v2389 = vld [vmem:[%s6 + $0x8] sm:$0x1]
        %v2390 = vperm.slane %v2389, 0
        %v2391 = vmul.f32 %v2350, %v2390
        %v2392 = vmul.f32 %v2352, %v2390
        %v2393 = vmul.f32 %v2355, %v2390
        %v2394 = vmul.f32 %v2357, %v2390
        %v2395 = vmul.f32 %v2360, %v2390
        %v2396 = vmul.f32 %v2362, %v2390
        %v2397 = vmul.f32 %v2365, %v2390
        %v2398 = vmul.f32 %v2367, %v2390
        %v2399 = vmul.f32 %v2370, %v2390
        %v2400 = vmul.f32 %v2372, %v2390
        %v2401 = vmul.f32 %v2375, %v2390
        %v2402 = vmul.f32 %v2377, %v2390
        %v2403 = vmul.f32 %v2380, %v2390
        %v2404 = vmul.f32 %v2382, %v2390
        %v2405 = vmul.f32 %v2385, %v2390
        %v2406 = vmul.f32 %v2387, %v2390
        %v2407 = vadd.f32 %v2259, %v2391
        %v2408 = vadd.f32 %v2260, %v2392
        %v2409 = vadd.f32 %v2261, %v2393
        %v2410 = vadd.f32 %v2262, %v2394
        %v2411 = vadd.f32 %v2263, %v2395
        %v2412 = vadd.f32 %v2264, %v2396
        %v2413 = vadd.f32 %v2265, %v2397
        %v2414 = vadd.f32 %v2266, %v2398
        %v2415 = vadd.f32 %v2267, %v2399
        %v2416 = vadd.f32 %v2268, %v2400
        %v2417 = vadd.f32 %v2269, %v2401
        %v2418 = vadd.f32 %v2270, %v2402
        %v2419 = vadd.f32 %v2271, %v2403
        %v2420 = vadd.f32 %v2272, %v2404
        %v2421 = vadd.f32 %v2273, %v2405
        %v2422 = vadd.f32 %v2274, %v2406
        %s2423 = scalar_lea.vmem %s5, 576
        %v2424 = vld [vmem:[%s2423] sm:$0xf]
        %v2425 = vld [vmem:[%s2423 + $0x4] sm:$0xf]
        %v2426 = vld [vmem:[%s2423 + $0x8] sm:$0xf]
        %v2427 = vld [vmem:[%s2423 + $0xc] sm:$0xf]
        %v2428 = vld [vmem:[%s2423 + $0x10] sm:$0xf]
        %v2429 = vld [vmem:[%s2423 + $0x14] sm:$0xf]
        %v2430 = vld [vmem:[%s2423 + $0x18] sm:$0xf]
        %v2431 = vld [vmem:[%s2423 + $0x1c] sm:$0xf]
        %v2432 = vld [vmem:[%s2423 + $0x20] sm:$0xf]
        %v2433 = vld [vmem:[%s2423 + $0x24] sm:$0xf]
        %v2434 = vld [vmem:[%s2423 + $0x28] sm:$0xf]
        %v2435 = vld [vmem:[%s2423 + $0x2c] sm:$0xf]
        %v2436 = vld [vmem:[%s2423 + $0x30] sm:$0xf]
        %v2437 = vld [vmem:[%s2423 + $0x34] sm:$0xf]
        %v2438 = vld [vmem:[%s2423 + $0x38] sm:$0xf]
        %v2439 = vld [vmem:[%s2423 + $0x3c] sm:$0xf]
        %v2456 = vunpack.c.l.b16 %v2424
        %v2457 = vunpack.c.l.b16 %v2425
        %v2458 = vunpack.c.l.b16 %v2426
        %v2459 = vunpack.c.l.b16 %v2427
        %v2460 = vunpack.c.l.b16 %v2428
        %v2461 = vunpack.c.l.b16 %v2429
        %v2462 = vunpack.c.l.b16 %v2430
        %v2463 = vunpack.c.l.b16 %v2431
        %v2464 = vunpack.c.l.b16 %v2432
        %v2465 = vunpack.c.l.b16 %v2433
        %v2466 = vunpack.c.l.b16 %v2434
        %v2467 = vunpack.c.l.b16 %v2435
        %v2468 = vunpack.c.l.b16 %v2436
        %v2469 = vunpack.c.l.b16 %v2437
        %v2470 = vunpack.c.l.b16 %v2438
        %v2471 = vunpack.c.l.b16 %v2439
        %v2472 = vpack.c.b16 %v2457, %v2456
        %v2473 = vpack.c.b16 %v2459, %v2458
        %v2474 = vpack.c.b16 %v2461, %v2460
        %v2475 = vpack.c.b16 %v2463, %v2462
        %v2476 = vpack.c.b16 %v2465, %v2464
        %v2477 = vpack.c.b16 %v2467, %v2466
        %v2478 = vpack.c.b16 %v2469, %v2468
        %v2479 = vpack.c.b16 %v2471, %v2470
        %2488 = vmatpush.bf16.msra.mxu0 %v1091
        %2489 = vmatpush.bf16.msra.mxu0 %v1090
        %2490 = vmatpush.bf16.msra.mxu0 %v1089
        %2491 = vmatpush.bf16.msra.mxu0 %v1088
        %2492 = vmatpush.bf16.msra.mxu0 %v1087
        %2493 = vmatpush.bf16.msra.mxu0 %v1086
        %2494 = vmatpush.bf16.msra.mxu0 %v1085
        %2495 = vmatpush.bf16.msra.mxu0 %v1084
        %2496 = vmatmul.bf16.gmra.mxu0 %v2472
        %v2497 = vpop.f32.mrf.mxu0
        %v2498 = vadd.f32 0.0, %v2497
        %v2499 = vpop.f32.mrf.mxu0
        %v2500 = vadd.f32 0.0, %v2499
        %2501 = vmatmul.bf16.gmra.mxu0 %v2473
        %v2502 = vpop.f32.mrf.mxu0
        %v2503 = vadd.f32 0.0, %v2502
        %v2504 = vpop.f32.mrf.mxu0
        %v2505 = vadd.f32 0.0, %v2504
        %2506 = vmatmul.bf16.gmra.mxu0 %v2474
        %v2507 = vpop.f32.mrf.mxu0
        %v2508 = vadd.f32 0.0, %v2507
        %v2509 = vpop.f32.mrf.mxu0
        %v2510 = vadd.f32 0.0, %v2509
        %2511 = vmatmul.bf16.gmra.mxu0 %v2475
        %v2512 = vpop.f32.mrf.mxu0
        %v2513 = vadd.f32 0.0, %v2512
        %v2514 = vpop.f32.mrf.mxu0
        %v2515 = vadd.f32 0.0, %v2514
        %2516 = vmatmul.bf16.gmra.mxu0 %v2476
        %v2517 = vpop.f32.mrf.mxu0
        %v2518 = vadd.f32 0.0, %v2517
        %v2519 = vpop.f32.mrf.mxu0
        %v2520 = vadd.f32 0.0, %v2519
        %2521 = vmatmul.bf16.gmra.mxu0 %v2477
        %v2522 = vpop.f32.mrf.mxu0
        %v2523 = vadd.f32 0.0, %v2522
        %v2524 = vpop.f32.mrf.mxu0
        %v2525 = vadd.f32 0.0, %v2524
        %2526 = vmatmul.bf16.gmra.mxu0 %v2478
        %v2527 = vpop.f32.mrf.mxu0
        %v2528 = vadd.f32 0.0, %v2527
        %v2529 = vpop.f32.mrf.mxu0
        %v2530 = vadd.f32 0.0, %v2529
        %2531 = vmatmul.bf16.gmra.mxu0 %v2479
        %v2532 = vpop.f32.mrf.mxu0
        %v2533 = vadd.f32 0.0, %v2532
        %v2534 = vpop.f32.mrf.mxu0
        %v2535 = vadd.f32 0.0, %v2534
        %2536 = vdwg.mxu0
        %v2537 = vld [vmem:[%s6 + $0x9] sm:$0x1]
        %v2538 = vperm.slane %v2537, 0
        %v2539 = vmul.f32 %v2498, %v2538
        %v2540 = vmul.f32 %v2500, %v2538
        %v2541 = vmul.f32 %v2503, %v2538
        %v2542 = vmul.f32 %v2505, %v2538
        %v2543 = vmul.f32 %v2508, %v2538
        %v2544 = vmul.f32 %v2510, %v2538
        %v2545 = vmul.f32 %v2513, %v2538
        %v2546 = vmul.f32 %v2515, %v2538
        %v2547 = vmul.f32 %v2518, %v2538
        %v2548 = vmul.f32 %v2520, %v2538
        %v2549 = vmul.f32 %v2523, %v2538
        %v2550 = vmul.f32 %v2525, %v2538
        %v2551 = vmul.f32 %v2528, %v2538
        %v2552 = vmul.f32 %v2530, %v2538
        %v2553 = vmul.f32 %v2533, %v2538
        %v2554 = vmul.f32 %v2535, %v2538
        %v2555 = vadd.f32 %v2407, %v2539
        %v2556 = vadd.f32 %v2408, %v2540
        %v2557 = vadd.f32 %v2409, %v2541
        %v2558 = vadd.f32 %v2410, %v2542
        %v2559 = vadd.f32 %v2411, %v2543
        %v2560 = vadd.f32 %v2412, %v2544
        %v2561 = vadd.f32 %v2413, %v2545
        %v2562 = vadd.f32 %v2414, %v2546
        %v2563 = vadd.f32 %v2415, %v2547
        %v2564 = vadd.f32 %v2416, %v2548
        %v2565 = vadd.f32 %v2417, %v2549
        %v2566 = vadd.f32 %v2418, %v2550
        %v2567 = vadd.f32 %v2419, %v2551
        %v2568 = vadd.f32 %v2420, %v2552
        %v2569 = vadd.f32 %v2421, %v2553
        %v2570 = vadd.f32 %v2422, %v2554
        %s2571 = scalar_lea.vmem %s5, 640
        %v2572 = vld [vmem:[%s2571] sm:$0xf]
        %v2573 = vld [vmem:[%s2571 + $0x4] sm:$0xf]
        %v2574 = vld [vmem:[%s2571 + $0x8] sm:$0xf]
        %v2575 = vld [vmem:[%s2571 + $0xc] sm:$0xf]
        %v2576 = vld [vmem:[%s2571 + $0x10] sm:$0xf]
        %v2577 = vld [vmem:[%s2571 + $0x14] sm:$0xf]
        %v2578 = vld [vmem:[%s2571 + $0x18] sm:$0xf]
        %v2579 = vld [vmem:[%s2571 + $0x1c] sm:$0xf]
        %v2580 = vld [vmem:[%s2571 + $0x20] sm:$0xf]
        %v2581 = vld [vmem:[%s2571 + $0x24] sm:$0xf]
        %v2582 = vld [vmem:[%s2571 + $0x28] sm:$0xf]
        %v2583 = vld [vmem:[%s2571 + $0x2c] sm:$0xf]
        %v2584 = vld [vmem:[%s2571 + $0x30] sm:$0xf]
        %v2585 = vld [vmem:[%s2571 + $0x34] sm:$0xf]
        %v2586 = vld [vmem:[%s2571 + $0x38] sm:$0xf]
        %v2587 = vld [vmem:[%s2571 + $0x3c] sm:$0xf]
        %v2604 = vunpack.c.l.b16 %v2572
        %v2605 = vunpack.c.l.b16 %v2573
        %v2606 = vunpack.c.l.b16 %v2574
        %v2607 = vunpack.c.l.b16 %v2575
        %v2608 = vunpack.c.l.b16 %v2576
        %v2609 = vunpack.c.l.b16 %v2577
        %v2610 = vunpack.c.l.b16 %v2578
        %v2611 = vunpack.c.l.b16 %v2579
        %v2612 = vunpack.c.l.b16 %v2580
        %v2613 = vunpack.c.l.b16 %v2581
        %v2614 = vunpack.c.l.b16 %v2582
        %v2615 = vunpack.c.l.b16 %v2583
        %v2616 = vunpack.c.l.b16 %v2584
        %v2617 = vunpack.c.l.b16 %v2585
        %v2618 = vunpack.c.l.b16 %v2586
        %v2619 = vunpack.c.l.b16 %v2587
        %v2620 = vpack.c.b16 %v2605, %v2604
        %v2621 = vpack.c.b16 %v2607, %v2606
        %v2622 = vpack.c.b16 %v2609, %v2608
        %v2623 = vpack.c.b16 %v2611, %v2610
        %v2624 = vpack.c.b16 %v2613, %v2612
        %v2625 = vpack.c.b16 %v2615, %v2614
        %v2626 = vpack.c.b16 %v2617, %v2616
        %v2627 = vpack.c.b16 %v2619, %v2618
        %2636 = vmatpush.bf16.msra.mxu0 %v1091
        %2637 = vmatpush.bf16.msra.mxu0 %v1090
        %2638 = vmatpush.bf16.msra.mxu0 %v1089
        %2639 = vmatpush.bf16.msra.mxu0 %v1088
        %2640 = vmatpush.bf16.msra.mxu0 %v1087
        %2641 = vmatpush.bf16.msra.mxu0 %v1086
        %2642 = vmatpush.bf16.msra.mxu0 %v1085
        %2643 = vmatpush.bf16.msra.mxu0 %v1084
        %2644 = vmatmul.bf16.gmra.mxu0 %v2620
        %v2645 = vpop.f32.mrf.mxu0
        %v2646 = vadd.f32 0.0, %v2645
        %v2647 = vpop.f32.mrf.mxu0
        %v2648 = vadd.f32 0.0, %v2647
        %2649 = vmatmul.bf16.gmra.mxu0 %v2621
        %v2650 = vpop.f32.mrf.mxu0
        %v2651 = vadd.f32 0.0, %v2650
        %v2652 = vpop.f32.mrf.mxu0
        %v2653 = vadd.f32 0.0, %v2652
        %2654 = vmatmul.bf16.gmra.mxu0 %v2622
        %v2655 = vpop.f32.mrf.mxu0
        %v2656 = vadd.f32 0.0, %v2655
        %v2657 = vpop.f32.mrf.mxu0
        %v2658 = vadd.f32 0.0, %v2657
        %2659 = vmatmul.bf16.gmra.mxu0 %v2623
        %v2660 = vpop.f32.mrf.mxu0
        %v2661 = vadd.f32 0.0, %v2660
        %v2662 = vpop.f32.mrf.mxu0
        %v2663 = vadd.f32 0.0, %v2662
        %2664 = vmatmul.bf16.gmra.mxu0 %v2624
        %v2665 = vpop.f32.mrf.mxu0
        %v2666 = vadd.f32 0.0, %v2665
        %v2667 = vpop.f32.mrf.mxu0
        %v2668 = vadd.f32 0.0, %v2667
        %2669 = vmatmul.bf16.gmra.mxu0 %v2625
        %v2670 = vpop.f32.mrf.mxu0
        %v2671 = vadd.f32 0.0, %v2670
        %v2672 = vpop.f32.mrf.mxu0
        %v2673 = vadd.f32 0.0, %v2672
        %2674 = vmatmul.bf16.gmra.mxu0 %v2626
        %v2675 = vpop.f32.mrf.mxu0
        %v2676 = vadd.f32 0.0, %v2675
        %v2677 = vpop.f32.mrf.mxu0
        %v2678 = vadd.f32 0.0, %v2677
        %2679 = vmatmul.bf16.gmra.mxu0 %v2627
        %v2680 = vpop.f32.mrf.mxu0
        %v2681 = vadd.f32 0.0, %v2680
        %v2682 = vpop.f32.mrf.mxu0
        %v2683 = vadd.f32 0.0, %v2682
        %2684 = vdwg.mxu0
        %v2685 = vld [vmem:[%s6 + $0xa] sm:$0x1]
        %v2686 = vperm.slane %v2685, 0
        %v2687 = vmul.f32 %v2646, %v2686
        %v2688 = vmul.f32 %v2648, %v2686
        %v2689 = vmul.f32 %v2651, %v2686
        %v2690 = vmul.f32 %v2653, %v2686
        %v2691 = vmul.f32 %v2656, %v2686
        %v2692 = vmul.f32 %v2658, %v2686
        %v2693 = vmul.f32 %v2661, %v2686
        %v2694 = vmul.f32 %v2663, %v2686
        %v2695 = vmul.f32 %v2666, %v2686
        %v2696 = vmul.f32 %v2668, %v2686
        %v2697 = vmul.f32 %v2671, %v2686
        %v2698 = vmul.f32 %v2673, %v2686
        %v2699 = vmul.f32 %v2676, %v2686
        %v2700 = vmul.f32 %v2678, %v2686
        %v2701 = vmul.f32 %v2681, %v2686
        %v2702 = vmul.f32 %v2683, %v2686
        %v2703 = vadd.f32 %v2555, %v2687
        %v2704 = vadd.f32 %v2556, %v2688
        %v2705 = vadd.f32 %v2557, %v2689
        %v2706 = vadd.f32 %v2558, %v2690
        %v2707 = vadd.f32 %v2559, %v2691
        %v2708 = vadd.f32 %v2560, %v2692
        %v2709 = vadd.f32 %v2561, %v2693
        %v2710 = vadd.f32 %v2562, %v2694
        %v2711 = vadd.f32 %v2563, %v2695
        %v2712 = vadd.f32 %v2564, %v2696
        %v2713 = vadd.f32 %v2565, %v2697
        %v2714 = vadd.f32 %v2566, %v2698
        %v2715 = vadd.f32 %v2567, %v2699
        %v2716 = vadd.f32 %v2568, %v2700
        %v2717 = vadd.f32 %v2569, %v2701
        %v2718 = vadd.f32 %v2570, %v2702
        %s2719 = scalar_lea.vmem %s5, 704
        %v2720 = vld [vmem:[%s2719] sm:$0xf]
        %v2721 = vld [vmem:[%s2719 + $0x4] sm:$0xf]
        %v2722 = vld [vmem:[%s2719 + $0x8] sm:$0xf]
        %v2723 = vld [vmem:[%s2719 + $0xc] sm:$0xf]
        %v2724 = vld [vmem:[%s2719 + $0x10] sm:$0xf]
        %v2725 = vld [vmem:[%s2719 + $0x14] sm:$0xf]
        %v2726 = vld [vmem:[%s2719 + $0x18] sm:$0xf]
        %v2727 = vld [vmem:[%s2719 + $0x1c] sm:$0xf]
        %v2728 = vld [vmem:[%s2719 + $0x20] sm:$0xf]
        %v2729 = vld [vmem:[%s2719 + $0x24] sm:$0xf]
        %v2730 = vld [vmem:[%s2719 + $0x28] sm:$0xf]
        %v2731 = vld [vmem:[%s2719 + $0x2c] sm:$0xf]
        %v2732 = vld [vmem:[%s2719 + $0x30] sm:$0xf]
        %v2733 = vld [vmem:[%s2719 + $0x34] sm:$0xf]
        %v2734 = vld [vmem:[%s2719 + $0x38] sm:$0xf]
        %v2735 = vld [vmem:[%s2719 + $0x3c] sm:$0xf]
        %v2752 = vunpack.c.l.b16 %v2720
        %v2753 = vunpack.c.l.b16 %v2721
        %v2754 = vunpack.c.l.b16 %v2722
        %v2755 = vunpack.c.l.b16 %v2723
        %v2756 = vunpack.c.l.b16 %v2724
        %v2757 = vunpack.c.l.b16 %v2725
        %v2758 = vunpack.c.l.b16 %v2726
        %v2759 = vunpack.c.l.b16 %v2727
        %v2760 = vunpack.c.l.b16 %v2728
        %v2761 = vunpack.c.l.b16 %v2729
        %v2762 = vunpack.c.l.b16 %v2730
        %v2763 = vunpack.c.l.b16 %v2731
        %v2764 = vunpack.c.l.b16 %v2732
        %v2765 = vunpack.c.l.b16 %v2733
        %v2766 = vunpack.c.l.b16 %v2734
        %v2767 = vunpack.c.l.b16 %v2735
        %v2768 = vpack.c.b16 %v2753, %v2752
        %v2769 = vpack.c.b16 %v2755, %v2754
        %v2770 = vpack.c.b16 %v2757, %v2756
        %v2771 = vpack.c.b16 %v2759, %v2758
        %v2772 = vpack.c.b16 %v2761, %v2760
        %v2773 = vpack.c.b16 %v2763, %v2762
        %v2774 = vpack.c.b16 %v2765, %v2764
        %v2775 = vpack.c.b16 %v2767, %v2766
        %2784 = vmatpush.bf16.msra.mxu0 %v1091
        %2785 = vmatpush.bf16.msra.mxu0 %v1090
        %2786 = vmatpush.bf16.msra.mxu0 %v1089
        %2787 = vmatpush.bf16.msra.mxu0 %v1088
        %2788 = vmatpush.bf16.msra.mxu0 %v1087
        %2789 = vmatpush.bf16.msra.mxu0 %v1086
        %2790 = vmatpush.bf16.msra.mxu0 %v1085
        %2791 = vmatpush.bf16.msra.mxu0 %v1084
        %2792 = vmatmul.bf16.gmra.mxu0 %v2768
        %v2793 = vpop.f32.mrf.mxu0
        %v2794 = vadd.f32 0.0, %v2793
        %v2795 = vpop.f32.mrf.mxu0
        %v2796 = vadd.f32 0.0, %v2795
        %2797 = vmatmul.bf16.gmra.mxu0 %v2769
        %v2798 = vpop.f32.mrf.mxu0
        %v2799 = vadd.f32 0.0, %v2798
        %v2800 = vpop.f32.mrf.mxu0
        %v2801 = vadd.f32 0.0, %v2800
        %2802 = vmatmul.bf16.gmra.mxu0 %v2770
        %v2803 = vpop.f32.mrf.mxu0
        %v2804 = vadd.f32 0.0, %v2803
        %v2805 = vpop.f32.mrf.mxu0
        %v2806 = vadd.f32 0.0, %v2805
        %2807 = vmatmul.bf16.gmra.mxu0 %v2771
        %v2808 = vpop.f32.mrf.mxu0
        %v2809 = vadd.f32 0.0, %v2808
        %v2810 = vpop.f32.mrf.mxu0
        %v2811 = vadd.f32 0.0, %v2810
        %2812 = vmatmul.bf16.gmra.mxu0 %v2772
        %v2813 = vpop.f32.mrf.mxu0
        %v2814 = vadd.f32 0.0, %v2813
        %v2815 = vpop.f32.mrf.mxu0
        %v2816 = vadd.f32 0.0, %v2815
        %2817 = vmatmul.bf16.gmra.mxu0 %v2773
        %v2818 = vpop.f32.mrf.mxu0
        %v2819 = vadd.f32 0.0, %v2818
        %v2820 = vpop.f32.mrf.mxu0
        %v2821 = vadd.f32 0.0, %v2820
        %2822 = vmatmul.bf16.gmra.mxu0 %v2774
        %v2823 = vpop.f32.mrf.mxu0
        %v2824 = vadd.f32 0.0, %v2823
        %v2825 = vpop.f32.mrf.mxu0
        %v2826 = vadd.f32 0.0, %v2825
        %2827 = vmatmul.bf16.gmra.mxu0 %v2775
        %v2828 = vpop.f32.mrf.mxu0
        %v2829 = vadd.f32 0.0, %v2828
        %v2830 = vpop.f32.mrf.mxu0
        %v2831 = vadd.f32 0.0, %v2830
        %2832 = vdwg.mxu0
        %v2833 = vld [vmem:[%s6 + $0xb] sm:$0x1]
        %v2834 = vperm.slane %v2833, 0
        %v2835 = vmul.f32 %v2794, %v2834
        %v2836 = vmul.f32 %v2796, %v2834
        %v2837 = vmul.f32 %v2799, %v2834
        %v2838 = vmul.f32 %v2801, %v2834
        %v2839 = vmul.f32 %v2804, %v2834
        %v2840 = vmul.f32 %v2806, %v2834
        %v2841 = vmul.f32 %v2809, %v2834
        %v2842 = vmul.f32 %v2811, %v2834
        %v2843 = vmul.f32 %v2814, %v2834
        %v2844 = vmul.f32 %v2816, %v2834
        %v2845 = vmul.f32 %v2819, %v2834
        %v2846 = vmul.f32 %v2821, %v2834
        %v2847 = vmul.f32 %v2824, %v2834
        %v2848 = vmul.f32 %v2826, %v2834
        %v2849 = vmul.f32 %v2829, %v2834
        %v2850 = vmul.f32 %v2831, %v2834
        %v2851 = vadd.f32 %v2703, %v2835
        %v2852 = vadd.f32 %v2704, %v2836
        %v2853 = vadd.f32 %v2705, %v2837
        %v2854 = vadd.f32 %v2706, %v2838
        %v2855 = vadd.f32 %v2707, %v2839
        %v2856 = vadd.f32 %v2708, %v2840
        %v2857 = vadd.f32 %v2709, %v2841
        %v2858 = vadd.f32 %v2710, %v2842
        %v2859 = vadd.f32 %v2711, %v2843
        %v2860 = vadd.f32 %v2712, %v2844
        %v2861 = vadd.f32 %v2713, %v2845
        %v2862 = vadd.f32 %v2714, %v2846
        %v2863 = vadd.f32 %v2715, %v2847
        %v2864 = vadd.f32 %v2716, %v2848
        %v2865 = vadd.f32 %v2717, %v2849
        %v2866 = vadd.f32 %v2718, %v2850
        %s2867 = scalar_lea.vmem %s5, 768
        %v2868 = vld [vmem:[%s2867] sm:$0xf]
        %v2869 = vld [vmem:[%s2867 + $0x4] sm:$0xf]
        %v2870 = vld [vmem:[%s2867 + $0x8] sm:$0xf]
        %v2871 = vld [vmem:[%s2867 + $0xc] sm:$0xf]
        %v2872 = vld [vmem:[%s2867 + $0x10] sm:$0xf]
        %v2873 = vld [vmem:[%s2867 + $0x14] sm:$0xf]
        %v2874 = vld [vmem:[%s2867 + $0x18] sm:$0xf]
        %v2875 = vld [vmem:[%s2867 + $0x1c] sm:$0xf]
        %v2876 = vld [vmem:[%s2867 + $0x20] sm:$0xf]
        %v2877 = vld [vmem:[%s2867 + $0x24] sm:$0xf]
        %v2878 = vld [vmem:[%s2867 + $0x28] sm:$0xf]
        %v2879 = vld [vmem:[%s2867 + $0x2c] sm:$0xf]
        %v2880 = vld [vmem:[%s2867 + $0x30] sm:$0xf]
        %v2881 = vld [vmem:[%s2867 + $0x34] sm:$0xf]
        %v2882 = vld [vmem:[%s2867 + $0x38] sm:$0xf]
        %v2883 = vld [vmem:[%s2867 + $0x3c] sm:$0xf]
        %v2900 = vunpack.c.l.b16 %v2868
        %v2901 = vunpack.c.l.b16 %v2869
        %v2902 = vunpack.c.l.b16 %v2870
        %v2903 = vunpack.c.l.b16 %v2871
        %v2904 = vunpack.c.l.b16 %v2872
        %v2905 = vunpack.c.l.b16 %v2873
        %v2906 = vunpack.c.l.b16 %v2874
        %v2907 = vunpack.c.l.b16 %v2875
        %v2908 = vunpack.c.l.b16 %v2876
        %v2909 = vunpack.c.l.b16 %v2877
        %v2910 = vunpack.c.l.b16 %v2878
        %v2911 = vunpack.c.l.b16 %v2879
        %v2912 = vunpack.c.l.b16 %v2880
        %v2913 = vunpack.c.l.b16 %v2881
        %v2914 = vunpack.c.l.b16 %v2882
        %v2915 = vunpack.c.l.b16 %v2883
        %v2916 = vpack.c.b16 %v2901, %v2900
        %v2917 = vpack.c.b16 %v2903, %v2902
        %v2918 = vpack.c.b16 %v2905, %v2904
        %v2919 = vpack.c.b16 %v2907, %v2906
        %v2920 = vpack.c.b16 %v2909, %v2908
        %v2921 = vpack.c.b16 %v2911, %v2910
        %v2922 = vpack.c.b16 %v2913, %v2912
        %v2923 = vpack.c.b16 %v2915, %v2914
        %2932 = vmatpush.bf16.msra.mxu0 %v1091
        %2933 = vmatpush.bf16.msra.mxu0 %v1090
        %2934 = vmatpush.bf16.msra.mxu0 %v1089
        %2935 = vmatpush.bf16.msra.mxu0 %v1088
        %2936 = vmatpush.bf16.msra.mxu0 %v1087
        %2937 = vmatpush.bf16.msra.mxu0 %v1086
        %2938 = vmatpush.bf16.msra.mxu0 %v1085
        %2939 = vmatpush.bf16.msra.mxu0 %v1084
        %2940 = vmatmul.bf16.gmra.mxu0 %v2916
        %v2941 = vpop.f32.mrf.mxu0
        %v2942 = vadd.f32 0.0, %v2941
        %v2943 = vpop.f32.mrf.mxu0
        %v2944 = vadd.f32 0.0, %v2943
        %2945 = vmatmul.bf16.gmra.mxu0 %v2917
        %v2946 = vpop.f32.mrf.mxu0
        %v2947 = vadd.f32 0.0, %v2946
        %v2948 = vpop.f32.mrf.mxu0
        %v2949 = vadd.f32 0.0, %v2948
        %2950 = vmatmul.bf16.gmra.mxu0 %v2918
        %v2951 = vpop.f32.mrf.mxu0
        %v2952 = vadd.f32 0.0, %v2951
        %v2953 = vpop.f32.mrf.mxu0
        %v2954 = vadd.f32 0.0, %v2953
        %2955 = vmatmul.bf16.gmra.mxu0 %v2919
        %v2956 = vpop.f32.mrf.mxu0
        %v2957 = vadd.f32 0.0, %v2956
        %v2958 = vpop.f32.mrf.mxu0
        %v2959 = vadd.f32 0.0, %v2958
        %2960 = vmatmul.bf16.gmra.mxu0 %v2920
        %v2961 = vpop.f32.mrf.mxu0
        %v2962 = vadd.f32 0.0, %v2961
        %v2963 = vpop.f32.mrf.mxu0
        %v2964 = vadd.f32 0.0, %v2963
        %2965 = vmatmul.bf16.gmra.mxu0 %v2921
        %v2966 = vpop.f32.mrf.mxu0
        %v2967 = vadd.f32 0.0, %v2966
        %v2968 = vpop.f32.mrf.mxu0
        %v2969 = vadd.f32 0.0, %v2968
        %2970 = vmatmul.bf16.gmra.mxu0 %v2922
        %v2971 = vpop.f32.mrf.mxu0
        %v2972 = vadd.f32 0.0, %v2971
        %v2973 = vpop.f32.mrf.mxu0
        %v2974 = vadd.f32 0.0, %v2973
        %2975 = vmatmul.bf16.gmra.mxu0 %v2923
        %v2976 = vpop.f32.mrf.mxu0
        %v2977 = vadd.f32 0.0, %v2976
        %v2978 = vpop.f32.mrf.mxu0
        %v2979 = vadd.f32 0.0, %v2978
        %2980 = vdwg.mxu0
        %v2981 = vld [vmem:[%s6 + $0xc] sm:$0x1]
        %v2982 = vperm.slane %v2981, 0
        %v2983 = vmul.f32 %v2942, %v2982
        %v2984 = vmul.f32 %v2944, %v2982
        %v2985 = vmul.f32 %v2947, %v2982
        %v2986 = vmul.f32 %v2949, %v2982
        %v2987 = vmul.f32 %v2952, %v2982
        %v2988 = vmul.f32 %v2954, %v2982
        %v2989 = vmul.f32 %v2957, %v2982
        %v2990 = vmul.f32 %v2959, %v2982
        %v2991 = vmul.f32 %v2962, %v2982
        %v2992 = vmul.f32 %v2964, %v2982
        %v2993 = vmul.f32 %v2967, %v2982
        %v2994 = vmul.f32 %v2969, %v2982
        %v2995 = vmul.f32 %v2972, %v2982
        %v2996 = vmul.f32 %v2974, %v2982
        %v2997 = vmul.f32 %v2977, %v2982
        %v2998 = vmul.f32 %v2979, %v2982
        %v2999 = vadd.f32 %v2851, %v2983
        %v3000 = vadd.f32 %v2852, %v2984
        %v3001 = vadd.f32 %v2853, %v2985
        %v3002 = vadd.f32 %v2854, %v2986
        %v3003 = vadd.f32 %v2855, %v2987
        %v3004 = vadd.f32 %v2856, %v2988
        %v3005 = vadd.f32 %v2857, %v2989
        %v3006 = vadd.f32 %v2858, %v2990
        %v3007 = vadd.f32 %v2859, %v2991
        %v3008 = vadd.f32 %v2860, %v2992
        %v3009 = vadd.f32 %v2861, %v2993
        %v3010 = vadd.f32 %v2862, %v2994
        %v3011 = vadd.f32 %v2863, %v2995
        %v3012 = vadd.f32 %v2864, %v2996
        %v3013 = vadd.f32 %v2865, %v2997
        %v3014 = vadd.f32 %v2866, %v2998
        %s3015 = scalar_lea.vmem %s5, 832
        %v3016 = vld [vmem:[%s3015] sm:$0xf]
        %v3017 = vld [vmem:[%s3015 + $0x4] sm:$0xf]
        %v3018 = vld [vmem:[%s3015 + $0x8] sm:$0xf]
        %v3019 = vld [vmem:[%s3015 + $0xc] sm:$0xf]
        %v3020 = vld [vmem:[%s3015 + $0x10] sm:$0xf]
        %v3021 = vld [vmem:[%s3015 + $0x14] sm:$0xf]
        %v3022 = vld [vmem:[%s3015 + $0x18] sm:$0xf]
        %v3023 = vld [vmem:[%s3015 + $0x1c] sm:$0xf]
        %v3024 = vld [vmem:[%s3015 + $0x20] sm:$0xf]
        %v3025 = vld [vmem:[%s3015 + $0x24] sm:$0xf]
        %v3026 = vld [vmem:[%s3015 + $0x28] sm:$0xf]
        %v3027 = vld [vmem:[%s3015 + $0x2c] sm:$0xf]
        %v3028 = vld [vmem:[%s3015 + $0x30] sm:$0xf]
        %v3029 = vld [vmem:[%s3015 + $0x34] sm:$0xf]
        %v3030 = vld [vmem:[%s3015 + $0x38] sm:$0xf]
        %v3031 = vld [vmem:[%s3015 + $0x3c] sm:$0xf]
        %v3048 = vunpack.c.l.b16 %v3016
        %v3049 = vunpack.c.l.b16 %v3017
        %v3050 = vunpack.c.l.b16 %v3018
        %v3051 = vunpack.c.l.b16 %v3019
        %v3052 = vunpack.c.l.b16 %v3020
        %v3053 = vunpack.c.l.b16 %v3021
        %v3054 = vunpack.c.l.b16 %v3022
        %v3055 = vunpack.c.l.b16 %v3023
        %v3056 = vunpack.c.l.b16 %v3024
        %v3057 = vunpack.c.l.b16 %v3025
        %v3058 = vunpack.c.l.b16 %v3026
        %v3059 = vunpack.c.l.b16 %v3027
        %v3060 = vunpack.c.l.b16 %v3028
        %v3061 = vunpack.c.l.b16 %v3029
        %v3062 = vunpack.c.l.b16 %v3030
        %v3063 = vunpack.c.l.b16 %v3031
        %v3064 = vpack.c.b16 %v3049, %v3048
        %v3065 = vpack.c.b16 %v3051, %v3050
        %v3066 = vpack.c.b16 %v3053, %v3052
        %v3067 = vpack.c.b16 %v3055, %v3054
        %v3068 = vpack.c.b16 %v3057, %v3056
        %v3069 = vpack.c.b16 %v3059, %v3058
        %v3070 = vpack.c.b16 %v3061, %v3060
        %v3071 = vpack.c.b16 %v3063, %v3062
        %3080 = vmatpush.bf16.msra.mxu0 %v1091
        %3081 = vmatpush.bf16.msra.mxu0 %v1090
        %3082 = vmatpush.bf16.msra.mxu0 %v1089
        %3083 = vmatpush.bf16.msra.mxu0 %v1088
        %3084 = vmatpush.bf16.msra.mxu0 %v1087
        %3085 = vmatpush.bf16.msra.mxu0 %v1086
        %3086 = vmatpush.bf16.msra.mxu0 %v1085
        %3087 = vmatpush.bf16.msra.mxu0 %v1084
        %3088 = vmatmul.bf16.gmra.mxu0 %v3064
        %v3089 = vpop.f32.mrf.mxu0
        %v3090 = vadd.f32 0.0, %v3089
        %v3091 = vpop.f32.mrf.mxu0
        %v3092 = vadd.f32 0.0, %v3091
        %3093 = vmatmul.bf16.gmra.mxu0 %v3065
        %v3094 = vpop.f32.mrf.mxu0
        %v3095 = vadd.f32 0.0, %v3094
        %v3096 = vpop.f32.mrf.mxu0
        %v3097 = vadd.f32 0.0, %v3096
        %3098 = vmatmul.bf16.gmra.mxu0 %v3066
        %v3099 = vpop.f32.mrf.mxu0
        %v3100 = vadd.f32 0.0, %v3099
        %v3101 = vpop.f32.mrf.mxu0
        %v3102 = vadd.f32 0.0, %v3101
        %3103 = vmatmul.bf16.gmra.mxu0 %v3067
        %v3104 = vpop.f32.mrf.mxu0
        %v3105 = vadd.f32 0.0, %v3104
        %v3106 = vpop.f32.mrf.mxu0
        %v3107 = vadd.f32 0.0, %v3106
        %3108 = vmatmul.bf16.gmra.mxu0 %v3068
        %v3109 = vpop.f32.mrf.mxu0
        %v3110 = vadd.f32 0.0, %v3109
        %v3111 = vpop.f32.mrf.mxu0
        %v3112 = vadd.f32 0.0, %v3111
        %3113 = vmatmul.bf16.gmra.mxu0 %v3069
        %v3114 = vpop.f32.mrf.mxu0
        %v3115 = vadd.f32 0.0, %v3114
        %v3116 = vpop.f32.mrf.mxu0
        %v3117 = vadd.f32 0.0, %v3116
        %3118 = vmatmul.bf16.gmra.mxu0 %v3070
        %v3119 = vpop.f32.mrf.mxu0
        %v3120 = vadd.f32 0.0, %v3119
        %v3121 = vpop.f32.mrf.mxu0
        %v3122 = vadd.f32 0.0, %v3121
        %3123 = vmatmul.bf16.gmra.mxu0 %v3071
        %v3124 = vpop.f32.mrf.mxu0
        %v3125 = vadd.f32 0.0, %v3124
        %v3126 = vpop.f32.mrf.mxu0
        %v3127 = vadd.f32 0.0, %v3126
        %3128 = vdwg.mxu0
        %v3129 = vld [vmem:[%s6 + $0xd] sm:$0x1]
        %v3130 = vperm.slane %v3129, 0
        %v3131 = vmul.f32 %v3090, %v3130
        %v3132 = vmul.f32 %v3092, %v3130
        %v3133 = vmul.f32 %v3095, %v3130
        %v3134 = vmul.f32 %v3097, %v3130
        %v3135 = vmul.f32 %v3100, %v3130
        %v3136 = vmul.f32 %v3102, %v3130
        %v3137 = vmul.f32 %v3105, %v3130
        %v3138 = vmul.f32 %v3107, %v3130
        %v3139 = vmul.f32 %v3110, %v3130
        %v3140 = vmul.f32 %v3112, %v3130
        %v3141 = vmul.f32 %v3115, %v3130
        %v3142 = vmul.f32 %v3117, %v3130
        %v3143 = vmul.f32 %v3120, %v3130
        %v3144 = vmul.f32 %v3122, %v3130
        %v3145 = vmul.f32 %v3125, %v3130
        %v3146 = vmul.f32 %v3127, %v3130
        %v3147 = vadd.f32 %v2999, %v3131
        %v3148 = vadd.f32 %v3000, %v3132
        %v3149 = vadd.f32 %v3001, %v3133
        %v3150 = vadd.f32 %v3002, %v3134
        %v3151 = vadd.f32 %v3003, %v3135
        %v3152 = vadd.f32 %v3004, %v3136
        %v3153 = vadd.f32 %v3005, %v3137
        %v3154 = vadd.f32 %v3006, %v3138
        %v3155 = vadd.f32 %v3007, %v3139
        %v3156 = vadd.f32 %v3008, %v3140
        %v3157 = vadd.f32 %v3009, %v3141
        %v3158 = vadd.f32 %v3010, %v3142
        %v3159 = vadd.f32 %v3011, %v3143
        %v3160 = vadd.f32 %v3012, %v3144
        %v3161 = vadd.f32 %v3013, %v3145
        %v3162 = vadd.f32 %v3014, %v3146
        %s3163 = scalar_lea.vmem %s5, 896
        %v3164 = vld [vmem:[%s3163] sm:$0xf]
        %v3165 = vld [vmem:[%s3163 + $0x4] sm:$0xf]
        %v3166 = vld [vmem:[%s3163 + $0x8] sm:$0xf]
        %v3167 = vld [vmem:[%s3163 + $0xc] sm:$0xf]
        %v3168 = vld [vmem:[%s3163 + $0x10] sm:$0xf]
        %v3169 = vld [vmem:[%s3163 + $0x14] sm:$0xf]
        %v3170 = vld [vmem:[%s3163 + $0x18] sm:$0xf]
        %v3171 = vld [vmem:[%s3163 + $0x1c] sm:$0xf]
        %v3172 = vld [vmem:[%s3163 + $0x20] sm:$0xf]
        %v3173 = vld [vmem:[%s3163 + $0x24] sm:$0xf]
        %v3174 = vld [vmem:[%s3163 + $0x28] sm:$0xf]
        %v3175 = vld [vmem:[%s3163 + $0x2c] sm:$0xf]
        %v3176 = vld [vmem:[%s3163 + $0x30] sm:$0xf]
        %v3177 = vld [vmem:[%s3163 + $0x34] sm:$0xf]
        %v3178 = vld [vmem:[%s3163 + $0x38] sm:$0xf]
        %v3179 = vld [vmem:[%s3163 + $0x3c] sm:$0xf]
        %v3196 = vunpack.c.l.b16 %v3164
        %v3197 = vunpack.c.l.b16 %v3165
        %v3198 = vunpack.c.l.b16 %v3166
        %v3199 = vunpack.c.l.b16 %v3167
        %v3200 = vunpack.c.l.b16 %v3168
        %v3201 = vunpack.c.l.b16 %v3169
        %v3202 = vunpack.c.l.b16 %v3170
        %v3203 = vunpack.c.l.b16 %v3171
        %v3204 = vunpack.c.l.b16 %v3172
        %v3205 = vunpack.c.l.b16 %v3173
        %v3206 = vunpack.c.l.b16 %v3174
        %v3207 = vunpack.c.l.b16 %v3175
        %v3208 = vunpack.c.l.b16 %v3176
        %v3209 = vunpack.c.l.b16 %v3177
        %v3210 = vunpack.c.l.b16 %v3178
        %v3211 = vunpack.c.l.b16 %v3179
        %v3212 = vpack.c.b16 %v3197, %v3196
        %v3213 = vpack.c.b16 %v3199, %v3198
        %v3214 = vpack.c.b16 %v3201, %v3200
        %v3215 = vpack.c.b16 %v3203, %v3202
        %v3216 = vpack.c.b16 %v3205, %v3204
        %v3217 = vpack.c.b16 %v3207, %v3206
        %v3218 = vpack.c.b16 %v3209, %v3208
        %v3219 = vpack.c.b16 %v3211, %v3210
        %3228 = vmatpush.bf16.msra.mxu0 %v1091
        %3229 = vmatpush.bf16.msra.mxu0 %v1090
        %3230 = vmatpush.bf16.msra.mxu0 %v1089
        %3231 = vmatpush.bf16.msra.mxu0 %v1088
        %3232 = vmatpush.bf16.msra.mxu0 %v1087
        %3233 = vmatpush.bf16.msra.mxu0 %v1086
        %3234 = vmatpush.bf16.msra.mxu0 %v1085
        %3235 = vmatpush.bf16.msra.mxu0 %v1084
        %3236 = vmatmul.bf16.gmra.mxu0 %v3212
        %v3237 = vpop.f32.mrf.mxu0
        %v3238 = vadd.f32 0.0, %v3237
        %v3239 = vpop.f32.mrf.mxu0
        %v3240 = vadd.f32 0.0, %v3239
        %3241 = vmatmul.bf16.gmra.mxu0 %v3213
        %v3242 = vpop.f32.mrf.mxu0
        %v3243 = vadd.f32 0.0, %v3242
        %v3244 = vpop.f32.mrf.mxu0
        %v3245 = vadd.f32 0.0, %v3244
        %3246 = vmatmul.bf16.gmra.mxu0 %v3214
        %v3247 = vpop.f32.mrf.mxu0
        %v3248 = vadd.f32 0.0, %v3247
        %v3249 = vpop.f32.mrf.mxu0
        %v3250 = vadd.f32 0.0, %v3249
        %3251 = vmatmul.bf16.gmra.mxu0 %v3215
        %v3252 = vpop.f32.mrf.mxu0
        %v3253 = vadd.f32 0.0, %v3252
        %v3254 = vpop.f32.mrf.mxu0
        %v3255 = vadd.f32 0.0, %v3254
        %3256 = vmatmul.bf16.gmra.mxu0 %v3216
        %v3257 = vpop.f32.mrf.mxu0
        %v3258 = vadd.f32 0.0, %v3257
        %v3259 = vpop.f32.mrf.mxu0
        %v3260 = vadd.f32 0.0, %v3259
        %3261 = vmatmul.bf16.gmra.mxu0 %v3217
        %v3262 = vpop.f32.mrf.mxu0
        %v3263 = vadd.f32 0.0, %v3262
        %v3264 = vpop.f32.mrf.mxu0
        %v3265 = vadd.f32 0.0, %v3264
        %3266 = vmatmul.bf16.gmra.mxu0 %v3218
        %v3267 = vpop.f32.mrf.mxu0
        %v3268 = vadd.f32 0.0, %v3267
        %v3269 = vpop.f32.mrf.mxu0
        %v3270 = vadd.f32 0.0, %v3269
        %3271 = vmatmul.bf16.gmra.mxu0 %v3219
        %v3272 = vpop.f32.mrf.mxu0
        %v3273 = vadd.f32 0.0, %v3272
        %v3274 = vpop.f32.mrf.mxu0
        %v3275 = vadd.f32 0.0, %v3274
        %3276 = vdwg.mxu0
        %v3277 = vld [vmem:[%s6 + $0xe] sm:$0x1]
        %v3278 = vperm.slane %v3277, 0
        %v3279 = vmul.f32 %v3238, %v3278
        %v3280 = vmul.f32 %v3240, %v3278
        %v3281 = vmul.f32 %v3243, %v3278
        %v3282 = vmul.f32 %v3245, %v3278
        %v3283 = vmul.f32 %v3248, %v3278
        %v3284 = vmul.f32 %v3250, %v3278
        %v3285 = vmul.f32 %v3253, %v3278
        %v3286 = vmul.f32 %v3255, %v3278
        %v3287 = vmul.f32 %v3258, %v3278
        %v3288 = vmul.f32 %v3260, %v3278
        %v3289 = vmul.f32 %v3263, %v3278
        %v3290 = vmul.f32 %v3265, %v3278
        %v3291 = vmul.f32 %v3268, %v3278
        %v3292 = vmul.f32 %v3270, %v3278
        %v3293 = vmul.f32 %v3273, %v3278
        %v3294 = vmul.f32 %v3275, %v3278
        %v3295 = vadd.f32 %v3147, %v3279
        %v3296 = vadd.f32 %v3148, %v3280
        %v3297 = vadd.f32 %v3149, %v3281
        %v3298 = vadd.f32 %v3150, %v3282
        %v3299 = vadd.f32 %v3151, %v3283
        %v3300 = vadd.f32 %v3152, %v3284
        %v3301 = vadd.f32 %v3153, %v3285
        %v3302 = vadd.f32 %v3154, %v3286
        %v3303 = vadd.f32 %v3155, %v3287
        %v3304 = vadd.f32 %v3156, %v3288
        %v3305 = vadd.f32 %v3157, %v3289
        %v3306 = vadd.f32 %v3158, %v3290
        %v3307 = vadd.f32 %v3159, %v3291
        %v3308 = vadd.f32 %v3160, %v3292
        %v3309 = vadd.f32 %v3161, %v3293
        %v3310 = vadd.f32 %v3162, %v3294
        %s3311 = scalar_lea.vmem %s5, 960
        %v3312 = vld [vmem:[%s3311] sm:$0xf]
        %v3313 = vld [vmem:[%s3311 + $0x4] sm:$0xf]
        %v3314 = vld [vmem:[%s3311 + $0x8] sm:$0xf]
        %v3315 = vld [vmem:[%s3311 + $0xc] sm:$0xf]
        %v3316 = vld [vmem:[%s3311 + $0x10] sm:$0xf]
        %v3317 = vld [vmem:[%s3311 + $0x14] sm:$0xf]
        %v3318 = vld [vmem:[%s3311 + $0x18] sm:$0xf]
        %v3319 = vld [vmem:[%s3311 + $0x1c] sm:$0xf]
        %v3320 = vld [vmem:[%s3311 + $0x20] sm:$0xf]
        %v3321 = vld [vmem:[%s3311 + $0x24] sm:$0xf]
        %v3322 = vld [vmem:[%s3311 + $0x28] sm:$0xf]
        %v3323 = vld [vmem:[%s3311 + $0x2c] sm:$0xf]
        %v3324 = vld [vmem:[%s3311 + $0x30] sm:$0xf]
        %v3325 = vld [vmem:[%s3311 + $0x34] sm:$0xf]
        %v3326 = vld [vmem:[%s3311 + $0x38] sm:$0xf]
        %v3327 = vld [vmem:[%s3311 + $0x3c] sm:$0xf]
        %v3344 = vunpack.c.l.b16 %v3312
        %v3345 = vunpack.c.l.b16 %v3313
        %v3346 = vunpack.c.l.b16 %v3314
        %v3347 = vunpack.c.l.b16 %v3315
        %v3348 = vunpack.c.l.b16 %v3316
        %v3349 = vunpack.c.l.b16 %v3317
        %v3350 = vunpack.c.l.b16 %v3318
        %v3351 = vunpack.c.l.b16 %v3319
        %v3352 = vunpack.c.l.b16 %v3320
        %v3353 = vunpack.c.l.b16 %v3321
        %v3354 = vunpack.c.l.b16 %v3322
        %v3355 = vunpack.c.l.b16 %v3323
        %v3356 = vunpack.c.l.b16 %v3324
        %v3357 = vunpack.c.l.b16 %v3325
        %v3358 = vunpack.c.l.b16 %v3326
        %v3359 = vunpack.c.l.b16 %v3327
        %v3360 = vpack.c.b16 %v3345, %v3344
        %v3361 = vpack.c.b16 %v3347, %v3346
        %v3362 = vpack.c.b16 %v3349, %v3348
        %v3363 = vpack.c.b16 %v3351, %v3350
        %v3364 = vpack.c.b16 %v3353, %v3352
        %v3365 = vpack.c.b16 %v3355, %v3354
        %v3366 = vpack.c.b16 %v3357, %v3356
        %v3367 = vpack.c.b16 %v3359, %v3358
        %3376 = vmatpush.bf16.msra.mxu0 %v1091
        %3377 = vmatpush.bf16.msra.mxu0 %v1090
        %3378 = vmatpush.bf16.msra.mxu0 %v1089
        %3379 = vmatpush.bf16.msra.mxu0 %v1088
        %3380 = vmatpush.bf16.msra.mxu0 %v1087
        %3381 = vmatpush.bf16.msra.mxu0 %v1086
        %3382 = vmatpush.bf16.msra.mxu0 %v1085
        %3383 = vmatpush.bf16.msra.mxu0 %v1084
        %3384 = vmatmul.bf16.gmra.mxu0 %v3360
        %v3385 = vpop.f32.mrf.mxu0
        %v3386 = vadd.f32 0.0, %v3385
        %v3387 = vpop.f32.mrf.mxu0
        %v3388 = vadd.f32 0.0, %v3387
        %3389 = vmatmul.bf16.gmra.mxu0 %v3361
        %v3390 = vpop.f32.mrf.mxu0
        %v3391 = vadd.f32 0.0, %v3390
        %v3392 = vpop.f32.mrf.mxu0
        %v3393 = vadd.f32 0.0, %v3392
        %3394 = vmatmul.bf16.gmra.mxu0 %v3362
        %v3395 = vpop.f32.mrf.mxu0
        %v3396 = vadd.f32 0.0, %v3395
        %v3397 = vpop.f32.mrf.mxu0
        %v3398 = vadd.f32 0.0, %v3397
        %3399 = vmatmul.bf16.gmra.mxu0 %v3363
        %v3400 = vpop.f32.mrf.mxu0
        %v3401 = vadd.f32 0.0, %v3400
        %v3402 = vpop.f32.mrf.mxu0
        %v3403 = vadd.f32 0.0, %v3402
        %3404 = vmatmul.bf16.gmra.mxu0 %v3364
        %v3405 = vpop.f32.mrf.mxu0
        %v3406 = vadd.f32 0.0, %v3405
        %v3407 = vpop.f32.mrf.mxu0
        %v3408 = vadd.f32 0.0, %v3407
        %3409 = vmatmul.bf16.gmra.mxu0 %v3365
        %v3410 = vpop.f32.mrf.mxu0
        %v3411 = vadd.f32 0.0, %v3410
        %v3412 = vpop.f32.mrf.mxu0
        %v3413 = vadd.f32 0.0, %v3412
        %3414 = vmatmul.bf16.gmra.mxu0 %v3366
        %v3415 = vpop.f32.mrf.mxu0
        %v3416 = vadd.f32 0.0, %v3415
        %v3417 = vpop.f32.mrf.mxu0
        %v3418 = vadd.f32 0.0, %v3417
        %3419 = vmatmul.bf16.gmra.mxu0 %v3367
        %v3420 = vpop.f32.mrf.mxu0
        %v3421 = vadd.f32 0.0, %v3420
        %v3422 = vpop.f32.mrf.mxu0
        %v3423 = vadd.f32 0.0, %v3422
        %3424 = vdwg.mxu0
        %v3425 = vld [vmem:[%s6 + $0xf] sm:$0x1]
        %v3426 = vperm.slane %v3425, 0
        %v3427 = vmul.f32 %v3386, %v3426
        %v3428 = vmul.f32 %v3388, %v3426
        %v3429 = vmul.f32 %v3391, %v3426
        %v3430 = vmul.f32 %v3393, %v3426
        %v3431 = vmul.f32 %v3396, %v3426
        %v3432 = vmul.f32 %v3398, %v3426
        %v3433 = vmul.f32 %v3401, %v3426
        %v3434 = vmul.f32 %v3403, %v3426
        %v3435 = vmul.f32 %v3406, %v3426
        %v3436 = vmul.f32 %v3408, %v3426
        %v3437 = vmul.f32 %v3411, %v3426
        %v3438 = vmul.f32 %v3413, %v3426
        %v3439 = vmul.f32 %v3416, %v3426
        %v3440 = vmul.f32 %v3418, %v3426
        %v3441 = vmul.f32 %v3421, %v3426
        %v3442 = vmul.f32 %v3423, %v3426
        %v3443 = vadd.f32 %v3295, %v3427
        %v3444 = vadd.f32 %v3296, %v3428
        %v3445 = vadd.f32 %v3297, %v3429
        %v3446 = vadd.f32 %v3298, %v3430
        %v3447 = vadd.f32 %v3299, %v3431
        %v3448 = vadd.f32 %v3300, %v3432
        %v3449 = vadd.f32 %v3301, %v3433
        %v3450 = vadd.f32 %v3302, %v3434
        %v3451 = vadd.f32 %v3303, %v3435
        %v3452 = vadd.f32 %v3304, %v3436
        %v3453 = vadd.f32 %v3305, %v3437
        %v3454 = vadd.f32 %v3306, %v3438
        %v3455 = vadd.f32 %v3307, %v3439
        %v3456 = vadd.f32 %v3308, %v3440
        %v3457 = vadd.f32 %v3309, %v3441
        %v3458 = vadd.f32 %v3310, %v3442
        %s3459 = scalar_lea.vmem %s5, 1024
        %v3460 = vld [vmem:[%s3459] sm:$0xf]
        %v3461 = vld [vmem:[%s3459 + $0x4] sm:$0xf]
        %v3462 = vld [vmem:[%s3459 + $0x8] sm:$0xf]
        %v3463 = vld [vmem:[%s3459 + $0xc] sm:$0xf]
        %v3464 = vld [vmem:[%s3459 + $0x10] sm:$0xf]
        %v3465 = vld [vmem:[%s3459 + $0x14] sm:$0xf]
        %v3466 = vld [vmem:[%s3459 + $0x18] sm:$0xf]
        %v3467 = vld [vmem:[%s3459 + $0x1c] sm:$0xf]
        %v3468 = vld [vmem:[%s3459 + $0x20] sm:$0xf]
        %v3469 = vld [vmem:[%s3459 + $0x24] sm:$0xf]
        %v3470 = vld [vmem:[%s3459 + $0x28] sm:$0xf]
        %v3471 = vld [vmem:[%s3459 + $0x2c] sm:$0xf]
        %v3472 = vld [vmem:[%s3459 + $0x30] sm:$0xf]
        %v3473 = vld [vmem:[%s3459 + $0x34] sm:$0xf]
        %v3474 = vld [vmem:[%s3459 + $0x38] sm:$0xf]
        %v3475 = vld [vmem:[%s3459 + $0x3c] sm:$0xf]
        %v3492 = vunpack.c.l.b16 %v3460
        %v3493 = vunpack.c.l.b16 %v3461
        %v3494 = vunpack.c.l.b16 %v3462
        %v3495 = vunpack.c.l.b16 %v3463
        %v3496 = vunpack.c.l.b16 %v3464
        %v3497 = vunpack.c.l.b16 %v3465
        %v3498 = vunpack.c.l.b16 %v3466
        %v3499 = vunpack.c.l.b16 %v3467
        %v3500 = vunpack.c.l.b16 %v3468
        %v3501 = vunpack.c.l.b16 %v3469
        %v3502 = vunpack.c.l.b16 %v3470
        %v3503 = vunpack.c.l.b16 %v3471
        %v3504 = vunpack.c.l.b16 %v3472
        %v3505 = vunpack.c.l.b16 %v3473
        %v3506 = vunpack.c.l.b16 %v3474
        %v3507 = vunpack.c.l.b16 %v3475
        %v3508 = vpack.c.b16 %v3493, %v3492
        %v3509 = vpack.c.b16 %v3495, %v3494
        %v3510 = vpack.c.b16 %v3497, %v3496
        %v3511 = vpack.c.b16 %v3499, %v3498
        %v3512 = vpack.c.b16 %v3501, %v3500
        %v3513 = vpack.c.b16 %v3503, %v3502
        %v3514 = vpack.c.b16 %v3505, %v3504
        %v3515 = vpack.c.b16 %v3507, %v3506
        %3524 = vmatpush.bf16.msra.mxu0 %v1091
        %3525 = vmatpush.bf16.msra.mxu0 %v1090
        %3526 = vmatpush.bf16.msra.mxu0 %v1089
        %3527 = vmatpush.bf16.msra.mxu0 %v1088
        %3528 = vmatpush.bf16.msra.mxu0 %v1087
        %3529 = vmatpush.bf16.msra.mxu0 %v1086
        %3530 = vmatpush.bf16.msra.mxu0 %v1085
        %3531 = vmatpush.bf16.msra.mxu0 %v1084
        %3532 = vmatmul.bf16.gmra.mxu0 %v3508
        %v3533 = vpop.f32.mrf.mxu0
        %v3534 = vadd.f32 0.0, %v3533
        %v3535 = vpop.f32.mrf.mxu0
        %v3536 = vadd.f32 0.0, %v3535
        %3537 = vmatmul.bf16.gmra.mxu0 %v3509
        %v3538 = vpop.f32.mrf.mxu0
        %v3539 = vadd.f32 0.0, %v3538
        %v3540 = vpop.f32.mrf.mxu0
        %v3541 = vadd.f32 0.0, %v3540
        %3542 = vmatmul.bf16.gmra.mxu0 %v3510
        %v3543 = vpop.f32.mrf.mxu0
        %v3544 = vadd.f32 0.0, %v3543
        %v3545 = vpop.f32.mrf.mxu0
        %v3546 = vadd.f32 0.0, %v3545
        %3547 = vmatmul.bf16.gmra.mxu0 %v3511
        %v3548 = vpop.f32.mrf.mxu0
        %v3549 = vadd.f32 0.0, %v3548
        %v3550 = vpop.f32.mrf.mxu0
        %v3551 = vadd.f32 0.0, %v3550
        %3552 = vmatmul.bf16.gmra.mxu0 %v3512
        %v3553 = vpop.f32.mrf.mxu0
        %v3554 = vadd.f32 0.0, %v3553
        %v3555 = vpop.f32.mrf.mxu0
        %v3556 = vadd.f32 0.0, %v3555
        %3557 = vmatmul.bf16.gmra.mxu0 %v3513
        %v3558 = vpop.f32.mrf.mxu0
        %v3559 = vadd.f32 0.0, %v3558
        %v3560 = vpop.f32.mrf.mxu0
        %v3561 = vadd.f32 0.0, %v3560
        %3562 = vmatmul.bf16.gmra.mxu0 %v3514
        %v3563 = vpop.f32.mrf.mxu0
        %v3564 = vadd.f32 0.0, %v3563
        %v3565 = vpop.f32.mrf.mxu0
        %v3566 = vadd.f32 0.0, %v3565
        %3567 = vmatmul.bf16.gmra.mxu0 %v3515
        %v3568 = vpop.f32.mrf.mxu0
        %v3569 = vadd.f32 0.0, %v3568
        %v3570 = vpop.f32.mrf.mxu0
        %v3571 = vadd.f32 0.0, %v3570
        %3572 = vdwg.mxu0
        %v3573 = vld [vmem:[%s6 + $0x10] sm:$0x1]
        %v3574 = vperm.slane %v3573, 0
        %v3575 = vmul.f32 %v3534, %v3574
        %v3576 = vmul.f32 %v3536, %v3574
        %v3577 = vmul.f32 %v3539, %v3574
        %v3578 = vmul.f32 %v3541, %v3574
        %v3579 = vmul.f32 %v3544, %v3574
        %v3580 = vmul.f32 %v3546, %v3574
        %v3581 = vmul.f32 %v3549, %v3574
        %v3582 = vmul.f32 %v3551, %v3574
        %v3583 = vmul.f32 %v3554, %v3574
        %v3584 = vmul.f32 %v3556, %v3574
        %v3585 = vmul.f32 %v3559, %v3574
        %v3586 = vmul.f32 %v3561, %v3574
        %v3587 = vmul.f32 %v3564, %v3574
        %v3588 = vmul.f32 %v3566, %v3574
        %v3589 = vmul.f32 %v3569, %v3574
        %v3590 = vmul.f32 %v3571, %v3574
        %v3591 = vadd.f32 %v3443, %v3575
        %v3592 = vadd.f32 %v3444, %v3576
        %v3593 = vadd.f32 %v3445, %v3577
        %v3594 = vadd.f32 %v3446, %v3578
        %v3595 = vadd.f32 %v3447, %v3579
        %v3596 = vadd.f32 %v3448, %v3580
        %v3597 = vadd.f32 %v3449, %v3581
        %v3598 = vadd.f32 %v3450, %v3582
        %v3599 = vadd.f32 %v3451, %v3583
        %v3600 = vadd.f32 %v3452, %v3584
        %v3601 = vadd.f32 %v3453, %v3585
        %v3602 = vadd.f32 %v3454, %v3586
        %v3603 = vadd.f32 %v3455, %v3587
        %v3604 = vadd.f32 %v3456, %v3588
        %v3605 = vadd.f32 %v3457, %v3589
        %v3606 = vadd.f32 %v3458, %v3590
        %s3607 = scalar_lea.vmem %s5, 1088
        %v3608 = vld [vmem:[%s3607] sm:$0xf]
        %v3609 = vld [vmem:[%s3607 + $0x4] sm:$0xf]
        %v3610 = vld [vmem:[%s3607 + $0x8] sm:$0xf]
        %v3611 = vld [vmem:[%s3607 + $0xc] sm:$0xf]
        %v3612 = vld [vmem:[%s3607 + $0x10] sm:$0xf]
        %v3613 = vld [vmem:[%s3607 + $0x14] sm:$0xf]
        %v3614 = vld [vmem:[%s3607 + $0x18] sm:$0xf]
        %v3615 = vld [vmem:[%s3607 + $0x1c] sm:$0xf]
        %v3616 = vld [vmem:[%s3607 + $0x20] sm:$0xf]
        %v3617 = vld [vmem:[%s3607 + $0x24] sm:$0xf]
        %v3618 = vld [vmem:[%s3607 + $0x28] sm:$0xf]
        %v3619 = vld [vmem:[%s3607 + $0x2c] sm:$0xf]
        %v3620 = vld [vmem:[%s3607 + $0x30] sm:$0xf]
        %v3621 = vld [vmem:[%s3607 + $0x34] sm:$0xf]
        %v3622 = vld [vmem:[%s3607 + $0x38] sm:$0xf]
        %v3623 = vld [vmem:[%s3607 + $0x3c] sm:$0xf]
        %v3640 = vunpack.c.l.b16 %v3608
        %v3641 = vunpack.c.l.b16 %v3609
        %v3642 = vunpack.c.l.b16 %v3610
        %v3643 = vunpack.c.l.b16 %v3611
        %v3644 = vunpack.c.l.b16 %v3612
        %v3645 = vunpack.c.l.b16 %v3613
        %v3646 = vunpack.c.l.b16 %v3614
        %v3647 = vunpack.c.l.b16 %v3615
        %v3648 = vunpack.c.l.b16 %v3616
        %v3649 = vunpack.c.l.b16 %v3617
        %v3650 = vunpack.c.l.b16 %v3618
        %v3651 = vunpack.c.l.b16 %v3619
        %v3652 = vunpack.c.l.b16 %v3620
        %v3653 = vunpack.c.l.b16 %v3621
        %v3654 = vunpack.c.l.b16 %v3622
        %v3655 = vunpack.c.l.b16 %v3623
        %v3656 = vpack.c.b16 %v3641, %v3640
        %v3657 = vpack.c.b16 %v3643, %v3642
        %v3658 = vpack.c.b16 %v3645, %v3644
        %v3659 = vpack.c.b16 %v3647, %v3646
        %v3660 = vpack.c.b16 %v3649, %v3648
        %v3661 = vpack.c.b16 %v3651, %v3650
        %v3662 = vpack.c.b16 %v3653, %v3652
        %v3663 = vpack.c.b16 %v3655, %v3654
        %3672 = vmatpush.bf16.msra.mxu0 %v1091
        %3673 = vmatpush.bf16.msra.mxu0 %v1090
        %3674 = vmatpush.bf16.msra.mxu0 %v1089
        %3675 = vmatpush.bf16.msra.mxu0 %v1088
        %3676 = vmatpush.bf16.msra.mxu0 %v1087
        %3677 = vmatpush.bf16.msra.mxu0 %v1086
        %3678 = vmatpush.bf16.msra.mxu0 %v1085
        %3679 = vmatpush.bf16.msra.mxu0 %v1084
        %3680 = vmatmul.bf16.gmra.mxu0 %v3656
        %v3681 = vpop.f32.mrf.mxu0
        %v3682 = vadd.f32 0.0, %v3681
        %v3683 = vpop.f32.mrf.mxu0
        %v3684 = vadd.f32 0.0, %v3683
        %3685 = vmatmul.bf16.gmra.mxu0 %v3657
        %v3686 = vpop.f32.mrf.mxu0
        %v3687 = vadd.f32 0.0, %v3686
        %v3688 = vpop.f32.mrf.mxu0
        %v3689 = vadd.f32 0.0, %v3688
        %3690 = vmatmul.bf16.gmra.mxu0 %v3658
        %v3691 = vpop.f32.mrf.mxu0
        %v3692 = vadd.f32 0.0, %v3691
        %v3693 = vpop.f32.mrf.mxu0
        %v3694 = vadd.f32 0.0, %v3693
        %3695 = vmatmul.bf16.gmra.mxu0 %v3659
        %v3696 = vpop.f32.mrf.mxu0
        %v3697 = vadd.f32 0.0, %v3696
        %v3698 = vpop.f32.mrf.mxu0
        %v3699 = vadd.f32 0.0, %v3698
        %3700 = vmatmul.bf16.gmra.mxu0 %v3660
        %v3701 = vpop.f32.mrf.mxu0
        %v3702 = vadd.f32 0.0, %v3701
        %v3703 = vpop.f32.mrf.mxu0
        %v3704 = vadd.f32 0.0, %v3703
        %3705 = vmatmul.bf16.gmra.mxu0 %v3661
        %v3706 = vpop.f32.mrf.mxu0
        %v3707 = vadd.f32 0.0, %v3706
        %v3708 = vpop.f32.mrf.mxu0
        %v3709 = vadd.f32 0.0, %v3708
        %3710 = vmatmul.bf16.gmra.mxu0 %v3662
        %v3711 = vpop.f32.mrf.mxu0
        %v3712 = vadd.f32 0.0, %v3711
        %v3713 = vpop.f32.mrf.mxu0
        %v3714 = vadd.f32 0.0, %v3713
        %3715 = vmatmul.bf16.gmra.mxu0 %v3663
        %v3716 = vpop.f32.mrf.mxu0
        %v3717 = vadd.f32 0.0, %v3716
        %v3718 = vpop.f32.mrf.mxu0
        %v3719 = vadd.f32 0.0, %v3718
        %3720 = vdwg.mxu0
        %v3721 = vld [vmem:[%s6 + $0x11] sm:$0x1]
        %v3722 = vperm.slane %v3721, 0
        %v3723 = vmul.f32 %v3682, %v3722
        %v3724 = vmul.f32 %v3684, %v3722
        %v3725 = vmul.f32 %v3687, %v3722
        %v3726 = vmul.f32 %v3689, %v3722
        %v3727 = vmul.f32 %v3692, %v3722
        %v3728 = vmul.f32 %v3694, %v3722
        %v3729 = vmul.f32 %v3697, %v3722
        %v3730 = vmul.f32 %v3699, %v3722
        %v3731 = vmul.f32 %v3702, %v3722
        %v3732 = vmul.f32 %v3704, %v3722
        %v3733 = vmul.f32 %v3707, %v3722
        %v3734 = vmul.f32 %v3709, %v3722
        %v3735 = vmul.f32 %v3712, %v3722
        %v3736 = vmul.f32 %v3714, %v3722
        %v3737 = vmul.f32 %v3717, %v3722
        %v3738 = vmul.f32 %v3719, %v3722
        %v3739 = vadd.f32 %v3591, %v3723
        %v3740 = vadd.f32 %v3592, %v3724
        %v3741 = vadd.f32 %v3593, %v3725
        %v3742 = vadd.f32 %v3594, %v3726
        %v3743 = vadd.f32 %v3595, %v3727
        %v3744 = vadd.f32 %v3596, %v3728
        %v3745 = vadd.f32 %v3597, %v3729
        %v3746 = vadd.f32 %v3598, %v3730
        %v3747 = vadd.f32 %v3599, %v3731
        %v3748 = vadd.f32 %v3600, %v3732
        %v3749 = vadd.f32 %v3601, %v3733
        %v3750 = vadd.f32 %v3602, %v3734
        %v3751 = vadd.f32 %v3603, %v3735
        %v3752 = vadd.f32 %v3604, %v3736
        %v3753 = vadd.f32 %v3605, %v3737
        %v3754 = vadd.f32 %v3606, %v3738
        %s3755 = scalar_lea.vmem %s5, 1152
        %v3756 = vld [vmem:[%s3755] sm:$0xf]
        %v3757 = vld [vmem:[%s3755 + $0x4] sm:$0xf]
        %v3758 = vld [vmem:[%s3755 + $0x8] sm:$0xf]
        %v3759 = vld [vmem:[%s3755 + $0xc] sm:$0xf]
        %v3760 = vld [vmem:[%s3755 + $0x10] sm:$0xf]
        %v3761 = vld [vmem:[%s3755 + $0x14] sm:$0xf]
        %v3762 = vld [vmem:[%s3755 + $0x18] sm:$0xf]
        %v3763 = vld [vmem:[%s3755 + $0x1c] sm:$0xf]
        %v3764 = vld [vmem:[%s3755 + $0x20] sm:$0xf]
        %v3765 = vld [vmem:[%s3755 + $0x24] sm:$0xf]
        %v3766 = vld [vmem:[%s3755 + $0x28] sm:$0xf]
        %v3767 = vld [vmem:[%s3755 + $0x2c] sm:$0xf]
        %v3768 = vld [vmem:[%s3755 + $0x30] sm:$0xf]
        %v3769 = vld [vmem:[%s3755 + $0x34] sm:$0xf]
        %v3770 = vld [vmem:[%s3755 + $0x38] sm:$0xf]
        %v3771 = vld [vmem:[%s3755 + $0x3c] sm:$0xf]
        %v3788 = vunpack.c.l.b16 %v3756
        %v3789 = vunpack.c.l.b16 %v3757
        %v3790 = vunpack.c.l.b16 %v3758
        %v3791 = vunpack.c.l.b16 %v3759
        %v3792 = vunpack.c.l.b16 %v3760
        %v3793 = vunpack.c.l.b16 %v3761
        %v3794 = vunpack.c.l.b16 %v3762
        %v3795 = vunpack.c.l.b16 %v3763
        %v3796 = vunpack.c.l.b16 %v3764
        %v3797 = vunpack.c.l.b16 %v3765
        %v3798 = vunpack.c.l.b16 %v3766
        %v3799 = vunpack.c.l.b16 %v3767
        %v3800 = vunpack.c.l.b16 %v3768
        %v3801 = vunpack.c.l.b16 %v3769
        %v3802 = vunpack.c.l.b16 %v3770
        %v3803 = vunpack.c.l.b16 %v3771
        %v3804 = vpack.c.b16 %v3789, %v3788
        %v3805 = vpack.c.b16 %v3791, %v3790
        %v3806 = vpack.c.b16 %v3793, %v3792
        %v3807 = vpack.c.b16 %v3795, %v3794
        %v3808 = vpack.c.b16 %v3797, %v3796
        %v3809 = vpack.c.b16 %v3799, %v3798
        %v3810 = vpack.c.b16 %v3801, %v3800
        %v3811 = vpack.c.b16 %v3803, %v3802
        %3820 = vmatpush.bf16.msra.mxu0 %v1091
        %3821 = vmatpush.bf16.msra.mxu0 %v1090
        %3822 = vmatpush.bf16.msra.mxu0 %v1089
        %3823 = vmatpush.bf16.msra.mxu0 %v1088
        %3824 = vmatpush.bf16.msra.mxu0 %v1087
        %3825 = vmatpush.bf16.msra.mxu0 %v1086
        %3826 = vmatpush.bf16.msra.mxu0 %v1085
        %3827 = vmatpush.bf16.msra.mxu0 %v1084
        %3828 = vmatmul.bf16.gmra.mxu0 %v3804
        %v3829 = vpop.f32.mrf.mxu0
        %v3830 = vadd.f32 0.0, %v3829
        %v3831 = vpop.f32.mrf.mxu0
        %v3832 = vadd.f32 0.0, %v3831
        %3833 = vmatmul.bf16.gmra.mxu0 %v3805
        %v3834 = vpop.f32.mrf.mxu0
        %v3835 = vadd.f32 0.0, %v3834
        %v3836 = vpop.f32.mrf.mxu0
        %v3837 = vadd.f32 0.0, %v3836
        %3838 = vmatmul.bf16.gmra.mxu0 %v3806
        %v3839 = vpop.f32.mrf.mxu0
        %v3840 = vadd.f32 0.0, %v3839
        %v3841 = vpop.f32.mrf.mxu0
        %v3842 = vadd.f32 0.0, %v3841
        %3843 = vmatmul.bf16.gmra.mxu0 %v3807
        %v3844 = vpop.f32.mrf.mxu0
        %v3845 = vadd.f32 0.0, %v3844
        %v3846 = vpop.f32.mrf.mxu0
        %v3847 = vadd.f32 0.0, %v3846
        %3848 = vmatmul.bf16.gmra.mxu0 %v3808
        %v3849 = vpop.f32.mrf.mxu0
        %v3850 = vadd.f32 0.0, %v3849
        %v3851 = vpop.f32.mrf.mxu0
        %v3852 = vadd.f32 0.0, %v3851
        %3853 = vmatmul.bf16.gmra.mxu0 %v3809
        %v3854 = vpop.f32.mrf.mxu0
        %v3855 = vadd.f32 0.0, %v3854
        %v3856 = vpop.f32.mrf.mxu0
        %v3857 = vadd.f32 0.0, %v3856
        %3858 = vmatmul.bf16.gmra.mxu0 %v3810
        %v3859 = vpop.f32.mrf.mxu0
        %v3860 = vadd.f32 0.0, %v3859
        %v3861 = vpop.f32.mrf.mxu0
        %v3862 = vadd.f32 0.0, %v3861
        %3863 = vmatmul.bf16.gmra.mxu0 %v3811
        %v3864 = vpop.f32.mrf.mxu0
        %v3865 = vadd.f32 0.0, %v3864
        %v3866 = vpop.f32.mrf.mxu0
        %v3867 = vadd.f32 0.0, %v3866
        %3868 = vdwg.mxu0
        %v3869 = vld [vmem:[%s6 + $0x12] sm:$0x1]
        %v3870 = vperm.slane %v3869, 0
        %v3871 = vmul.f32 %v3830, %v3870
        %v3872 = vmul.f32 %v3832, %v3870
        %v3873 = vmul.f32 %v3835, %v3870
        %v3874 = vmul.f32 %v3837, %v3870
        %v3875 = vmul.f32 %v3840, %v3870
        %v3876 = vmul.f32 %v3842, %v3870
        %v3877 = vmul.f32 %v3845, %v3870
        %v3878 = vmul.f32 %v3847, %v3870
        %v3879 = vmul.f32 %v3850, %v3870
        %v3880 = vmul.f32 %v3852, %v3870
        %v3881 = vmul.f32 %v3855, %v3870
        %v3882 = vmul.f32 %v3857, %v3870
        %v3883 = vmul.f32 %v3860, %v3870
        %v3884 = vmul.f32 %v3862, %v3870
        %v3885 = vmul.f32 %v3865, %v3870
        %v3886 = vmul.f32 %v3867, %v3870
        %v3887 = vadd.f32 %v3739, %v3871
        %v3888 = vadd.f32 %v3740, %v3872
        %v3889 = vadd.f32 %v3741, %v3873
        %v3890 = vadd.f32 %v3742, %v3874
        %v3891 = vadd.f32 %v3743, %v3875
        %v3892 = vadd.f32 %v3744, %v3876
        %v3893 = vadd.f32 %v3745, %v3877
        %v3894 = vadd.f32 %v3746, %v3878
        %v3895 = vadd.f32 %v3747, %v3879
        %v3896 = vadd.f32 %v3748, %v3880
        %v3897 = vadd.f32 %v3749, %v3881
        %v3898 = vadd.f32 %v3750, %v3882
        %v3899 = vadd.f32 %v3751, %v3883
        %v3900 = vadd.f32 %v3752, %v3884
        %v3901 = vadd.f32 %v3753, %v3885
        %v3902 = vadd.f32 %v3754, %v3886
        %s3903 = scalar_lea.vmem %s5, 1216
        %v3904 = vld [vmem:[%s3903] sm:$0xf]
        %v3905 = vld [vmem:[%s3903 + $0x4] sm:$0xf]
        %v3906 = vld [vmem:[%s3903 + $0x8] sm:$0xf]
        %v3907 = vld [vmem:[%s3903 + $0xc] sm:$0xf]
        %v3908 = vld [vmem:[%s3903 + $0x10] sm:$0xf]
        %v3909 = vld [vmem:[%s3903 + $0x14] sm:$0xf]
        %v3910 = vld [vmem:[%s3903 + $0x18] sm:$0xf]
        %v3911 = vld [vmem:[%s3903 + $0x1c] sm:$0xf]
        %v3912 = vld [vmem:[%s3903 + $0x20] sm:$0xf]
        %v3913 = vld [vmem:[%s3903 + $0x24] sm:$0xf]
        %v3914 = vld [vmem:[%s3903 + $0x28] sm:$0xf]
        %v3915 = vld [vmem:[%s3903 + $0x2c] sm:$0xf]
        %v3916 = vld [vmem:[%s3903 + $0x30] sm:$0xf]
        %v3917 = vld [vmem:[%s3903 + $0x34] sm:$0xf]
        %v3918 = vld [vmem:[%s3903 + $0x38] sm:$0xf]
        %v3919 = vld [vmem:[%s3903 + $0x3c] sm:$0xf]
        %v3936 = vunpack.c.l.b16 %v3904
        %v3937 = vunpack.c.l.b16 %v3905
        %v3938 = vunpack.c.l.b16 %v3906
        %v3939 = vunpack.c.l.b16 %v3907
        %v3940 = vunpack.c.l.b16 %v3908
        %v3941 = vunpack.c.l.b16 %v3909
        %v3942 = vunpack.c.l.b16 %v3910
        %v3943 = vunpack.c.l.b16 %v3911
        %v3944 = vunpack.c.l.b16 %v3912
        %v3945 = vunpack.c.l.b16 %v3913
        %v3946 = vunpack.c.l.b16 %v3914
        %v3947 = vunpack.c.l.b16 %v3915
        %v3948 = vunpack.c.l.b16 %v3916
        %v3949 = vunpack.c.l.b16 %v3917
        %v3950 = vunpack.c.l.b16 %v3918
        %v3951 = vunpack.c.l.b16 %v3919
        %v3952 = vpack.c.b16 %v3937, %v3936
        %v3953 = vpack.c.b16 %v3939, %v3938
        %v3954 = vpack.c.b16 %v3941, %v3940
        %v3955 = vpack.c.b16 %v3943, %v3942
        %v3956 = vpack.c.b16 %v3945, %v3944
        %v3957 = vpack.c.b16 %v3947, %v3946
        %v3958 = vpack.c.b16 %v3949, %v3948
        %v3959 = vpack.c.b16 %v3951, %v3950
        %3968 = vmatpush.bf16.msra.mxu0 %v1091
        %3969 = vmatpush.bf16.msra.mxu0 %v1090
        %3970 = vmatpush.bf16.msra.mxu0 %v1089
        %3971 = vmatpush.bf16.msra.mxu0 %v1088
        %3972 = vmatpush.bf16.msra.mxu0 %v1087
        %3973 = vmatpush.bf16.msra.mxu0 %v1086
        %3974 = vmatpush.bf16.msra.mxu0 %v1085
        %3975 = vmatpush.bf16.msra.mxu0 %v1084
        %3976 = vmatmul.bf16.gmra.mxu0 %v3952
        %v3977 = vpop.f32.mrf.mxu0
        %v3978 = vadd.f32 0.0, %v3977
        %v3979 = vpop.f32.mrf.mxu0
        %v3980 = vadd.f32 0.0, %v3979
        %3981 = vmatmul.bf16.gmra.mxu0 %v3953
        %v3982 = vpop.f32.mrf.mxu0
        %v3983 = vadd.f32 0.0, %v3982
        %v3984 = vpop.f32.mrf.mxu0
        %v3985 = vadd.f32 0.0, %v3984
        %3986 = vmatmul.bf16.gmra.mxu0 %v3954
        %v3987 = vpop.f32.mrf.mxu0
        %v3988 = vadd.f32 0.0, %v3987
        %v3989 = vpop.f32.mrf.mxu0
        %v3990 = vadd.f32 0.0, %v3989
        %3991 = vmatmul.bf16.gmra.mxu0 %v3955
        %v3992 = vpop.f32.mrf.mxu0
        %v3993 = vadd.f32 0.0, %v3992
        %v3994 = vpop.f32.mrf.mxu0
        %v3995 = vadd.f32 0.0, %v3994
        %3996 = vmatmul.bf16.gmra.mxu0 %v3956
        %v3997 = vpop.f32.mrf.mxu0
        %v3998 = vadd.f32 0.0, %v3997
        %v3999 = vpop.f32.mrf.mxu0
        %v4000 = vadd.f32 0.0, %v3999
        %4001 = vmatmul.bf16.gmra.mxu0 %v3957
        %v4002 = vpop.f32.mrf.mxu0
        %v4003 = vadd.f32 0.0, %v4002
        %v4004 = vpop.f32.mrf.mxu0
        %v4005 = vadd.f32 0.0, %v4004
        %4006 = vmatmul.bf16.gmra.mxu0 %v3958
        %v4007 = vpop.f32.mrf.mxu0
        %v4008 = vadd.f32 0.0, %v4007
        %v4009 = vpop.f32.mrf.mxu0
        %v4010 = vadd.f32 0.0, %v4009
        %4011 = vmatmul.bf16.gmra.mxu0 %v3959
        %v4012 = vpop.f32.mrf.mxu0
        %v4013 = vadd.f32 0.0, %v4012
        %v4014 = vpop.f32.mrf.mxu0
        %v4015 = vadd.f32 0.0, %v4014
        %4016 = vdwg.mxu0
        %v4017 = vld [vmem:[%s6 + $0x13] sm:$0x1]
        %v4018 = vperm.slane %v4017, 0
        %v4019 = vmul.f32 %v3978, %v4018
        %v4020 = vmul.f32 %v3980, %v4018
        %v4021 = vmul.f32 %v3983, %v4018
        %v4022 = vmul.f32 %v3985, %v4018
        %v4023 = vmul.f32 %v3988, %v4018
        %v4024 = vmul.f32 %v3990, %v4018
        %v4025 = vmul.f32 %v3993, %v4018
        %v4026 = vmul.f32 %v3995, %v4018
        %v4027 = vmul.f32 %v3998, %v4018
        %v4028 = vmul.f32 %v4000, %v4018
        %v4029 = vmul.f32 %v4003, %v4018
        %v4030 = vmul.f32 %v4005, %v4018
        %v4031 = vmul.f32 %v4008, %v4018
        %v4032 = vmul.f32 %v4010, %v4018
        %v4033 = vmul.f32 %v4013, %v4018
        %v4034 = vmul.f32 %v4015, %v4018
        %v4035 = vadd.f32 %v3887, %v4019
        %v4036 = vadd.f32 %v3888, %v4020
        %v4037 = vadd.f32 %v3889, %v4021
        %v4038 = vadd.f32 %v3890, %v4022
        %v4039 = vadd.f32 %v3891, %v4023
        %v4040 = vadd.f32 %v3892, %v4024
        %v4041 = vadd.f32 %v3893, %v4025
        %v4042 = vadd.f32 %v3894, %v4026
        %v4043 = vadd.f32 %v3895, %v4027
        %v4044 = vadd.f32 %v3896, %v4028
        %v4045 = vadd.f32 %v3897, %v4029
        %v4046 = vadd.f32 %v3898, %v4030
        %v4047 = vadd.f32 %v3899, %v4031
        %v4048 = vadd.f32 %v3900, %v4032
        %v4049 = vadd.f32 %v3901, %v4033
        %v4050 = vadd.f32 %v3902, %v4034
        %s4051 = scalar_lea.vmem %s5, 1280
        %v4052 = vld [vmem:[%s4051] sm:$0xf]
        %v4053 = vld [vmem:[%s4051 + $0x4] sm:$0xf]
        %v4054 = vld [vmem:[%s4051 + $0x8] sm:$0xf]
        %v4055 = vld [vmem:[%s4051 + $0xc] sm:$0xf]
        %v4056 = vld [vmem:[%s4051 + $0x10] sm:$0xf]
        %v4057 = vld [vmem:[%s4051 + $0x14] sm:$0xf]
        %v4058 = vld [vmem:[%s4051 + $0x18] sm:$0xf]
        %v4059 = vld [vmem:[%s4051 + $0x1c] sm:$0xf]
        %v4060 = vld [vmem:[%s4051 + $0x20] sm:$0xf]
        %v4061 = vld [vmem:[%s4051 + $0x24] sm:$0xf]
        %v4062 = vld [vmem:[%s4051 + $0x28] sm:$0xf]
        %v4063 = vld [vmem:[%s4051 + $0x2c] sm:$0xf]
        %v4064 = vld [vmem:[%s4051 + $0x30] sm:$0xf]
        %v4065 = vld [vmem:[%s4051 + $0x34] sm:$0xf]
        %v4066 = vld [vmem:[%s4051 + $0x38] sm:$0xf]
        %v4067 = vld [vmem:[%s4051 + $0x3c] sm:$0xf]
        %v4084 = vunpack.c.l.b16 %v4052
        %v4085 = vunpack.c.l.b16 %v4053
        %v4086 = vunpack.c.l.b16 %v4054
        %v4087 = vunpack.c.l.b16 %v4055
        %v4088 = vunpack.c.l.b16 %v4056
        %v4089 = vunpack.c.l.b16 %v4057
        %v4090 = vunpack.c.l.b16 %v4058
        %v4091 = vunpack.c.l.b16 %v4059
        %v4092 = vunpack.c.l.b16 %v4060
        %v4093 = vunpack.c.l.b16 %v4061
        %v4094 = vunpack.c.l.b16 %v4062
        %v4095 = vunpack.c.l.b16 %v4063
        %v4096 = vunpack.c.l.b16 %v4064
        %v4097 = vunpack.c.l.b16 %v4065
        %v4098 = vunpack.c.l.b16 %v4066
        %v4099 = vunpack.c.l.b16 %v4067
        %v4100 = vpack.c.b16 %v4085, %v4084
        %v4101 = vpack.c.b16 %v4087, %v4086
        %v4102 = vpack.c.b16 %v4089, %v4088
        %v4103 = vpack.c.b16 %v4091, %v4090
        %v4104 = vpack.c.b16 %v4093, %v4092
        %v4105 = vpack.c.b16 %v4095, %v4094
        %v4106 = vpack.c.b16 %v4097, %v4096
        %v4107 = vpack.c.b16 %v4099, %v4098
        %4116 = vmatpush.bf16.msra.mxu0 %v1091
        %4117 = vmatpush.bf16.msra.mxu0 %v1090
        %4118 = vmatpush.bf16.msra.mxu0 %v1089
        %4119 = vmatpush.bf16.msra.mxu0 %v1088
        %4120 = vmatpush.bf16.msra.mxu0 %v1087
        %4121 = vmatpush.bf16.msra.mxu0 %v1086
        %4122 = vmatpush.bf16.msra.mxu0 %v1085
        %4123 = vmatpush.bf16.msra.mxu0 %v1084
        %4124 = vmatmul.bf16.gmra.mxu0 %v4100
        %v4125 = vpop.f32.mrf.mxu0
        %v4126 = vadd.f32 0.0, %v4125
        %v4127 = vpop.f32.mrf.mxu0
        %v4128 = vadd.f32 0.0, %v4127
        %4129 = vmatmul.bf16.gmra.mxu0 %v4101
        %v4130 = vpop.f32.mrf.mxu0
        %v4131 = vadd.f32 0.0, %v4130
        %v4132 = vpop.f32.mrf.mxu0
        %v4133 = vadd.f32 0.0, %v4132
        %4134 = vmatmul.bf16.gmra.mxu0 %v4102
        %v4135 = vpop.f32.mrf.mxu0
        %v4136 = vadd.f32 0.0, %v4135
        %v4137 = vpop.f32.mrf.mxu0
        %v4138 = vadd.f32 0.0, %v4137
        %4139 = vmatmul.bf16.gmra.mxu0 %v4103
        %v4140 = vpop.f32.mrf.mxu0
        %v4141 = vadd.f32 0.0, %v4140
        %v4142 = vpop.f32.mrf.mxu0
        %v4143 = vadd.f32 0.0, %v4142
        %4144 = vmatmul.bf16.gmra.mxu0 %v4104
        %v4145 = vpop.f32.mrf.mxu0
        %v4146 = vadd.f32 0.0, %v4145
        %v4147 = vpop.f32.mrf.mxu0
        %v4148 = vadd.f32 0.0, %v4147
        %4149 = vmatmul.bf16.gmra.mxu0 %v4105
        %v4150 = vpop.f32.mrf.mxu0
        %v4151 = vadd.f32 0.0, %v4150
        %v4152 = vpop.f32.mrf.mxu0
        %v4153 = vadd.f32 0.0, %v4152
        %4154 = vmatmul.bf16.gmra.mxu0 %v4106
        %v4155 = vpop.f32.mrf.mxu0
        %v4156 = vadd.f32 0.0, %v4155
        %v4157 = vpop.f32.mrf.mxu0
        %v4158 = vadd.f32 0.0, %v4157
        %4159 = vmatmul.bf16.gmra.mxu0 %v4107
        %v4160 = vpop.f32.mrf.mxu0
        %v4161 = vadd.f32 0.0, %v4160
        %v4162 = vpop.f32.mrf.mxu0
        %v4163 = vadd.f32 0.0, %v4162
        %4164 = vdwg.mxu0
        %v4165 = vld [vmem:[%s6 + $0x14] sm:$0x1]
        %v4166 = vperm.slane %v4165, 0
        %v4167 = vmul.f32 %v4126, %v4166
        %v4168 = vmul.f32 %v4128, %v4166
        %v4169 = vmul.f32 %v4131, %v4166
        %v4170 = vmul.f32 %v4133, %v4166
        %v4171 = vmul.f32 %v4136, %v4166
        %v4172 = vmul.f32 %v4138, %v4166
        %v4173 = vmul.f32 %v4141, %v4166
        %v4174 = vmul.f32 %v4143, %v4166
        %v4175 = vmul.f32 %v4146, %v4166
        %v4176 = vmul.f32 %v4148, %v4166
        %v4177 = vmul.f32 %v4151, %v4166
        %v4178 = vmul.f32 %v4153, %v4166
        %v4179 = vmul.f32 %v4156, %v4166
        %v4180 = vmul.f32 %v4158, %v4166
        %v4181 = vmul.f32 %v4161, %v4166
        %v4182 = vmul.f32 %v4163, %v4166
        %v4183 = vadd.f32 %v4035, %v4167
        %v4184 = vadd.f32 %v4036, %v4168
        %v4185 = vadd.f32 %v4037, %v4169
        %v4186 = vadd.f32 %v4038, %v4170
        %v4187 = vadd.f32 %v4039, %v4171
        %v4188 = vadd.f32 %v4040, %v4172
        %v4189 = vadd.f32 %v4041, %v4173
        %v4190 = vadd.f32 %v4042, %v4174
        %v4191 = vadd.f32 %v4043, %v4175
        %v4192 = vadd.f32 %v4044, %v4176
        %v4193 = vadd.f32 %v4045, %v4177
        %v4194 = vadd.f32 %v4046, %v4178
        %v4195 = vadd.f32 %v4047, %v4179
        %v4196 = vadd.f32 %v4048, %v4180
        %v4197 = vadd.f32 %v4049, %v4181
        %v4198 = vadd.f32 %v4050, %v4182
        %s4199 = scalar_lea.vmem %s5, 1344
        %v4200 = vld [vmem:[%s4199] sm:$0xf]
        %v4201 = vld [vmem:[%s4199 + $0x4] sm:$0xf]
        %v4202 = vld [vmem:[%s4199 + $0x8] sm:$0xf]
        %v4203 = vld [vmem:[%s4199 + $0xc] sm:$0xf]
        %v4204 = vld [vmem:[%s4199 + $0x10] sm:$0xf]
        %v4205 = vld [vmem:[%s4199 + $0x14] sm:$0xf]
        %v4206 = vld [vmem:[%s4199 + $0x18] sm:$0xf]
        %v4207 = vld [vmem:[%s4199 + $0x1c] sm:$0xf]
        %v4208 = vld [vmem:[%s4199 + $0x20] sm:$0xf]
        %v4209 = vld [vmem:[%s4199 + $0x24] sm:$0xf]
        %v4210 = vld [vmem:[%s4199 + $0x28] sm:$0xf]
        %v4211 = vld [vmem:[%s4199 + $0x2c] sm:$0xf]
        %v4212 = vld [vmem:[%s4199 + $0x30] sm:$0xf]
        %v4213 = vld [vmem:[%s4199 + $0x34] sm:$0xf]
        %v4214 = vld [vmem:[%s4199 + $0x38] sm:$0xf]
        %v4215 = vld [vmem:[%s4199 + $0x3c] sm:$0xf]
        %v4232 = vunpack.c.l.b16 %v4200
        %v4233 = vunpack.c.l.b16 %v4201
        %v4234 = vunpack.c.l.b16 %v4202
        %v4235 = vunpack.c.l.b16 %v4203
        %v4236 = vunpack.c.l.b16 %v4204
        %v4237 = vunpack.c.l.b16 %v4205
        %v4238 = vunpack.c.l.b16 %v4206
        %v4239 = vunpack.c.l.b16 %v4207
        %v4240 = vunpack.c.l.b16 %v4208
        %v4241 = vunpack.c.l.b16 %v4209
        %v4242 = vunpack.c.l.b16 %v4210
        %v4243 = vunpack.c.l.b16 %v4211
        %v4244 = vunpack.c.l.b16 %v4212
        %v4245 = vunpack.c.l.b16 %v4213
        %v4246 = vunpack.c.l.b16 %v4214
        %v4247 = vunpack.c.l.b16 %v4215
        %v4248 = vpack.c.b16 %v4233, %v4232
        %v4249 = vpack.c.b16 %v4235, %v4234
        %v4250 = vpack.c.b16 %v4237, %v4236
        %v4251 = vpack.c.b16 %v4239, %v4238
        %v4252 = vpack.c.b16 %v4241, %v4240
        %v4253 = vpack.c.b16 %v4243, %v4242
        %v4254 = vpack.c.b16 %v4245, %v4244
        %v4255 = vpack.c.b16 %v4247, %v4246
        %4264 = vmatpush.bf16.msra.mxu0 %v1091
        %4265 = vmatpush.bf16.msra.mxu0 %v1090
        %4266 = vmatpush.bf16.msra.mxu0 %v1089
        %4267 = vmatpush.bf16.msra.mxu0 %v1088
        %4268 = vmatpush.bf16.msra.mxu0 %v1087
        %4269 = vmatpush.bf16.msra.mxu0 %v1086
        %4270 = vmatpush.bf16.msra.mxu0 %v1085
        %4271 = vmatpush.bf16.msra.mxu0 %v1084
        %4272 = vmatmul.bf16.gmra.mxu0 %v4248
        %v4273 = vpop.f32.mrf.mxu0
        %v4274 = vadd.f32 0.0, %v4273
        %v4275 = vpop.f32.mrf.mxu0
        %v4276 = vadd.f32 0.0, %v4275
        %4277 = vmatmul.bf16.gmra.mxu0 %v4249
        %v4278 = vpop.f32.mrf.mxu0
        %v4279 = vadd.f32 0.0, %v4278
        %v4280 = vpop.f32.mrf.mxu0
        %v4281 = vadd.f32 0.0, %v4280
        %4282 = vmatmul.bf16.gmra.mxu0 %v4250
        %v4283 = vpop.f32.mrf.mxu0
        %v4284 = vadd.f32 0.0, %v4283
        %v4285 = vpop.f32.mrf.mxu0
        %v4286 = vadd.f32 0.0, %v4285
        %4287 = vmatmul.bf16.gmra.mxu0 %v4251
        %v4288 = vpop.f32.mrf.mxu0
        %v4289 = vadd.f32 0.0, %v4288
        %v4290 = vpop.f32.mrf.mxu0
        %v4291 = vadd.f32 0.0, %v4290
        %4292 = vmatmul.bf16.gmra.mxu0 %v4252
        %v4293 = vpop.f32.mrf.mxu0
        %v4294 = vadd.f32 0.0, %v4293
        %v4295 = vpop.f32.mrf.mxu0
        %v4296 = vadd.f32 0.0, %v4295
        %4297 = vmatmul.bf16.gmra.mxu0 %v4253
        %v4298 = vpop.f32.mrf.mxu0
        %v4299 = vadd.f32 0.0, %v4298
        %v4300 = vpop.f32.mrf.mxu0
        %v4301 = vadd.f32 0.0, %v4300
        %4302 = vmatmul.bf16.gmra.mxu0 %v4254
        %v4303 = vpop.f32.mrf.mxu0
        %v4304 = vadd.f32 0.0, %v4303
        %v4305 = vpop.f32.mrf.mxu0
        %v4306 = vadd.f32 0.0, %v4305
        %4307 = vmatmul.bf16.gmra.mxu0 %v4255
        %v4308 = vpop.f32.mrf.mxu0
        %v4309 = vadd.f32 0.0, %v4308
        %v4310 = vpop.f32.mrf.mxu0
        %v4311 = vadd.f32 0.0, %v4310
        %4312 = vdwg.mxu0
        %v4313 = vld [vmem:[%s6 + $0x15] sm:$0x1]
        %v4314 = vperm.slane %v4313, 0
        %v4315 = vmul.f32 %v4274, %v4314
        %v4316 = vmul.f32 %v4276, %v4314
        %v4317 = vmul.f32 %v4279, %v4314
        %v4318 = vmul.f32 %v4281, %v4314
        %v4319 = vmul.f32 %v4284, %v4314
        %v4320 = vmul.f32 %v4286, %v4314
        %v4321 = vmul.f32 %v4289, %v4314
        %v4322 = vmul.f32 %v4291, %v4314
        %v4323 = vmul.f32 %v4294, %v4314
        %v4324 = vmul.f32 %v4296, %v4314
        %v4325 = vmul.f32 %v4299, %v4314
        %v4326 = vmul.f32 %v4301, %v4314
        %v4327 = vmul.f32 %v4304, %v4314
        %v4328 = vmul.f32 %v4306, %v4314
        %v4329 = vmul.f32 %v4309, %v4314
        %v4330 = vmul.f32 %v4311, %v4314
        %v4331 = vadd.f32 %v4183, %v4315
        %v4332 = vadd.f32 %v4184, %v4316
        %v4333 = vadd.f32 %v4185, %v4317
        %v4334 = vadd.f32 %v4186, %v4318
        %v4335 = vadd.f32 %v4187, %v4319
        %v4336 = vadd.f32 %v4188, %v4320
        %v4337 = vadd.f32 %v4189, %v4321
        %v4338 = vadd.f32 %v4190, %v4322
        %v4339 = vadd.f32 %v4191, %v4323
        %v4340 = vadd.f32 %v4192, %v4324
        %v4341 = vadd.f32 %v4193, %v4325
        %v4342 = vadd.f32 %v4194, %v4326
        %v4343 = vadd.f32 %v4195, %v4327
        %v4344 = vadd.f32 %v4196, %v4328
        %v4345 = vadd.f32 %v4197, %v4329
        %v4346 = vadd.f32 %v4198, %v4330
        %s4347 = scalar_lea.vmem %s5, 1408
        %v4348 = vld [vmem:[%s4347] sm:$0xf]
        %v4349 = vld [vmem:[%s4347 + $0x4] sm:$0xf]
        %v4350 = vld [vmem:[%s4347 + $0x8] sm:$0xf]
        %v4351 = vld [vmem:[%s4347 + $0xc] sm:$0xf]
        %v4352 = vld [vmem:[%s4347 + $0x10] sm:$0xf]
        %v4353 = vld [vmem:[%s4347 + $0x14] sm:$0xf]
        %v4354 = vld [vmem:[%s4347 + $0x18] sm:$0xf]
        %v4355 = vld [vmem:[%s4347 + $0x1c] sm:$0xf]
        %v4356 = vld [vmem:[%s4347 + $0x20] sm:$0xf]
        %v4357 = vld [vmem:[%s4347 + $0x24] sm:$0xf]
        %v4358 = vld [vmem:[%s4347 + $0x28] sm:$0xf]
        %v4359 = vld [vmem:[%s4347 + $0x2c] sm:$0xf]
        %v4360 = vld [vmem:[%s4347 + $0x30] sm:$0xf]
        %v4361 = vld [vmem:[%s4347 + $0x34] sm:$0xf]
        %v4362 = vld [vmem:[%s4347 + $0x38] sm:$0xf]
        %v4363 = vld [vmem:[%s4347 + $0x3c] sm:$0xf]
        %v4380 = vunpack.c.l.b16 %v4348
        %v4381 = vunpack.c.l.b16 %v4349
        %v4382 = vunpack.c.l.b16 %v4350
        %v4383 = vunpack.c.l.b16 %v4351
        %v4384 = vunpack.c.l.b16 %v4352
        %v4385 = vunpack.c.l.b16 %v4353
        %v4386 = vunpack.c.l.b16 %v4354
        %v4387 = vunpack.c.l.b16 %v4355
        %v4388 = vunpack.c.l.b16 %v4356
        %v4389 = vunpack.c.l.b16 %v4357
        %v4390 = vunpack.c.l.b16 %v4358
        %v4391 = vunpack.c.l.b16 %v4359
        %v4392 = vunpack.c.l.b16 %v4360
        %v4393 = vunpack.c.l.b16 %v4361
        %v4394 = vunpack.c.l.b16 %v4362
        %v4395 = vunpack.c.l.b16 %v4363
        %v4396 = vpack.c.b16 %v4381, %v4380
        %v4397 = vpack.c.b16 %v4383, %v4382
        %v4398 = vpack.c.b16 %v4385, %v4384
        %v4399 = vpack.c.b16 %v4387, %v4386
        %v4400 = vpack.c.b16 %v4389, %v4388
        %v4401 = vpack.c.b16 %v4391, %v4390
        %v4402 = vpack.c.b16 %v4393, %v4392
        %v4403 = vpack.c.b16 %v4395, %v4394
        %4412 = vmatpush.bf16.msra.mxu0 %v1091
        %4413 = vmatpush.bf16.msra.mxu0 %v1090
        %4414 = vmatpush.bf16.msra.mxu0 %v1089
        %4415 = vmatpush.bf16.msra.mxu0 %v1088
        %4416 = vmatpush.bf16.msra.mxu0 %v1087
        %4417 = vmatpush.bf16.msra.mxu0 %v1086
        %4418 = vmatpush.bf16.msra.mxu0 %v1085
        %4419 = vmatpush.bf16.msra.mxu0 %v1084
        %4420 = vmatmul.bf16.gmra.mxu0 %v4396
        %v4421 = vpop.f32.mrf.mxu0
        %v4422 = vadd.f32 0.0, %v4421
        %v4423 = vpop.f32.mrf.mxu0
        %v4424 = vadd.f32 0.0, %v4423
        %4425 = vmatmul.bf16.gmra.mxu0 %v4397
        %v4426 = vpop.f32.mrf.mxu0
        %v4427 = vadd.f32 0.0, %v4426
        %v4428 = vpop.f32.mrf.mxu0
        %v4429 = vadd.f32 0.0, %v4428
        %4430 = vmatmul.bf16.gmra.mxu0 %v4398
        %v4431 = vpop.f32.mrf.mxu0
        %v4432 = vadd.f32 0.0, %v4431
        %v4433 = vpop.f32.mrf.mxu0
        %v4434 = vadd.f32 0.0, %v4433
        %4435 = vmatmul.bf16.gmra.mxu0 %v4399
        %v4436 = vpop.f32.mrf.mxu0
        %v4437 = vadd.f32 0.0, %v4436
        %v4438 = vpop.f32.mrf.mxu0
        %v4439 = vadd.f32 0.0, %v4438
        %4440 = vmatmul.bf16.gmra.mxu0 %v4400
        %v4441 = vpop.f32.mrf.mxu0
        %v4442 = vadd.f32 0.0, %v4441
        %v4443 = vpop.f32.mrf.mxu0
        %v4444 = vadd.f32 0.0, %v4443
        %4445 = vmatmul.bf16.gmra.mxu0 %v4401
        %v4446 = vpop.f32.mrf.mxu0
        %v4447 = vadd.f32 0.0, %v4446
        %v4448 = vpop.f32.mrf.mxu0
        %v4449 = vadd.f32 0.0, %v4448
        %4450 = vmatmul.bf16.gmra.mxu0 %v4402
        %v4451 = vpop.f32.mrf.mxu0
        %v4452 = vadd.f32 0.0, %v4451
        %v4453 = vpop.f32.mrf.mxu0
        %v4454 = vadd.f32 0.0, %v4453
        %4455 = vmatmul.bf16.gmra.mxu0 %v4403
        %v4456 = vpop.f32.mrf.mxu0
        %v4457 = vadd.f32 0.0, %v4456
        %v4458 = vpop.f32.mrf.mxu0
        %v4459 = vadd.f32 0.0, %v4458
        %4460 = vdwg.mxu0
        %v4461 = vld [vmem:[%s6 + $0x16] sm:$0x1]
        %v4462 = vperm.slane %v4461, 0
        %v4463 = vmul.f32 %v4422, %v4462
        %v4464 = vmul.f32 %v4424, %v4462
        %v4465 = vmul.f32 %v4427, %v4462
        %v4466 = vmul.f32 %v4429, %v4462
        %v4467 = vmul.f32 %v4432, %v4462
        %v4468 = vmul.f32 %v4434, %v4462
        %v4469 = vmul.f32 %v4437, %v4462
        %v4470 = vmul.f32 %v4439, %v4462
        %v4471 = vmul.f32 %v4442, %v4462
        %v4472 = vmul.f32 %v4444, %v4462
        %v4473 = vmul.f32 %v4447, %v4462
        %v4474 = vmul.f32 %v4449, %v4462
        %v4475 = vmul.f32 %v4452, %v4462
        %v4476 = vmul.f32 %v4454, %v4462
        %v4477 = vmul.f32 %v4457, %v4462
        %v4478 = vmul.f32 %v4459, %v4462
        %v4479 = vadd.f32 %v4331, %v4463
        %v4480 = vadd.f32 %v4332, %v4464
        %v4481 = vadd.f32 %v4333, %v4465
        %v4482 = vadd.f32 %v4334, %v4466
        %v4483 = vadd.f32 %v4335, %v4467
        %v4484 = vadd.f32 %v4336, %v4468
        %v4485 = vadd.f32 %v4337, %v4469
        %v4486 = vadd.f32 %v4338, %v4470
        %v4487 = vadd.f32 %v4339, %v4471
        %v4488 = vadd.f32 %v4340, %v4472
        %v4489 = vadd.f32 %v4341, %v4473
        %v4490 = vadd.f32 %v4342, %v4474
        %v4491 = vadd.f32 %v4343, %v4475
        %v4492 = vadd.f32 %v4344, %v4476
        %v4493 = vadd.f32 %v4345, %v4477
        %v4494 = vadd.f32 %v4346, %v4478
        %s4495 = scalar_lea.vmem %s5, 1472
        %v4496 = vld [vmem:[%s4495] sm:$0xf]
        %v4497 = vld [vmem:[%s4495 + $0x4] sm:$0xf]
        %v4498 = vld [vmem:[%s4495 + $0x8] sm:$0xf]
        %v4499 = vld [vmem:[%s4495 + $0xc] sm:$0xf]
        %v4500 = vld [vmem:[%s4495 + $0x10] sm:$0xf]
        %v4501 = vld [vmem:[%s4495 + $0x14] sm:$0xf]
        %v4502 = vld [vmem:[%s4495 + $0x18] sm:$0xf]
        %v4503 = vld [vmem:[%s4495 + $0x1c] sm:$0xf]
        %v4504 = vld [vmem:[%s4495 + $0x20] sm:$0xf]
        %v4505 = vld [vmem:[%s4495 + $0x24] sm:$0xf]
        %v4506 = vld [vmem:[%s4495 + $0x28] sm:$0xf]
        %v4507 = vld [vmem:[%s4495 + $0x2c] sm:$0xf]
        %v4508 = vld [vmem:[%s4495 + $0x30] sm:$0xf]
        %v4509 = vld [vmem:[%s4495 + $0x34] sm:$0xf]
        %v4510 = vld [vmem:[%s4495 + $0x38] sm:$0xf]
        %v4511 = vld [vmem:[%s4495 + $0x3c] sm:$0xf]
        %v4528 = vunpack.c.l.b16 %v4496
        %v4529 = vunpack.c.l.b16 %v4497
        %v4530 = vunpack.c.l.b16 %v4498
        %v4531 = vunpack.c.l.b16 %v4499
        %v4532 = vunpack.c.l.b16 %v4500
        %v4533 = vunpack.c.l.b16 %v4501
        %v4534 = vunpack.c.l.b16 %v4502
        %v4535 = vunpack.c.l.b16 %v4503
        %v4536 = vunpack.c.l.b16 %v4504
        %v4537 = vunpack.c.l.b16 %v4505
        %v4538 = vunpack.c.l.b16 %v4506
        %v4539 = vunpack.c.l.b16 %v4507
        %v4540 = vunpack.c.l.b16 %v4508
        %v4541 = vunpack.c.l.b16 %v4509
        %v4542 = vunpack.c.l.b16 %v4510
        %v4543 = vunpack.c.l.b16 %v4511
        %v4544 = vpack.c.b16 %v4529, %v4528
        %v4545 = vpack.c.b16 %v4531, %v4530
        %v4546 = vpack.c.b16 %v4533, %v4532
        %v4547 = vpack.c.b16 %v4535, %v4534
        %v4548 = vpack.c.b16 %v4537, %v4536
        %v4549 = vpack.c.b16 %v4539, %v4538
        %v4550 = vpack.c.b16 %v4541, %v4540
        %v4551 = vpack.c.b16 %v4543, %v4542
        %4560 = vmatpush.bf16.msra.mxu0 %v1091
        %4561 = vmatpush.bf16.msra.mxu0 %v1090
        %4562 = vmatpush.bf16.msra.mxu0 %v1089
        %4563 = vmatpush.bf16.msra.mxu0 %v1088
        %4564 = vmatpush.bf16.msra.mxu0 %v1087
        %4565 = vmatpush.bf16.msra.mxu0 %v1086
        %4566 = vmatpush.bf16.msra.mxu0 %v1085
        %4567 = vmatpush.bf16.msra.mxu0 %v1084
        %4568 = vmatmul.bf16.gmra.mxu0 %v4544
        %v4569 = vpop.f32.mrf.mxu0
        %v4570 = vadd.f32 0.0, %v4569
        %v4571 = vpop.f32.mrf.mxu0
        %v4572 = vadd.f32 0.0, %v4571
        %4573 = vmatmul.bf16.gmra.mxu0 %v4545
        %v4574 = vpop.f32.mrf.mxu0
        %v4575 = vadd.f32 0.0, %v4574
        %v4576 = vpop.f32.mrf.mxu0
        %v4577 = vadd.f32 0.0, %v4576
        %4578 = vmatmul.bf16.gmra.mxu0 %v4546
        %v4579 = vpop.f32.mrf.mxu0
        %v4580 = vadd.f32 0.0, %v4579
        %v4581 = vpop.f32.mrf.mxu0
        %v4582 = vadd.f32 0.0, %v4581
        %4583 = vmatmul.bf16.gmra.mxu0 %v4547
        %v4584 = vpop.f32.mrf.mxu0
        %v4585 = vadd.f32 0.0, %v4584
        %v4586 = vpop.f32.mrf.mxu0
        %v4587 = vadd.f32 0.0, %v4586
        %4588 = vmatmul.bf16.gmra.mxu0 %v4548
        %v4589 = vpop.f32.mrf.mxu0
        %v4590 = vadd.f32 0.0, %v4589
        %v4591 = vpop.f32.mrf.mxu0
        %v4592 = vadd.f32 0.0, %v4591
        %4593 = vmatmul.bf16.gmra.mxu0 %v4549
        %v4594 = vpop.f32.mrf.mxu0
        %v4595 = vadd.f32 0.0, %v4594
        %v4596 = vpop.f32.mrf.mxu0
        %v4597 = vadd.f32 0.0, %v4596
        %4598 = vmatmul.bf16.gmra.mxu0 %v4550
        %v4599 = vpop.f32.mrf.mxu0
        %v4600 = vadd.f32 0.0, %v4599
        %v4601 = vpop.f32.mrf.mxu0
        %v4602 = vadd.f32 0.0, %v4601
        %4603 = vmatmul.bf16.gmra.mxu0 %v4551
        %v4604 = vpop.f32.mrf.mxu0
        %v4605 = vadd.f32 0.0, %v4604
        %v4606 = vpop.f32.mrf.mxu0
        %v4607 = vadd.f32 0.0, %v4606
        %4608 = vdwg.mxu0
        %v4609 = vld [vmem:[%s6 + $0x17] sm:$0x1]
        %v4610 = vperm.slane %v4609, 0
        %v4611 = vmul.f32 %v4570, %v4610
        %v4612 = vmul.f32 %v4572, %v4610
        %v4613 = vmul.f32 %v4575, %v4610
        %v4614 = vmul.f32 %v4577, %v4610
        %v4615 = vmul.f32 %v4580, %v4610
        %v4616 = vmul.f32 %v4582, %v4610
        %v4617 = vmul.f32 %v4585, %v4610
        %v4618 = vmul.f32 %v4587, %v4610
        %v4619 = vmul.f32 %v4590, %v4610
        %v4620 = vmul.f32 %v4592, %v4610
        %v4621 = vmul.f32 %v4595, %v4610
        %v4622 = vmul.f32 %v4597, %v4610
        %v4623 = vmul.f32 %v4600, %v4610
        %v4624 = vmul.f32 %v4602, %v4610
        %v4625 = vmul.f32 %v4605, %v4610
        %v4626 = vmul.f32 %v4607, %v4610
        %v4627 = vadd.f32 %v4479, %v4611
        %v4628 = vadd.f32 %v4480, %v4612
        %v4629 = vadd.f32 %v4481, %v4613
        %v4630 = vadd.f32 %v4482, %v4614
        %v4631 = vadd.f32 %v4483, %v4615
        %v4632 = vadd.f32 %v4484, %v4616
        %v4633 = vadd.f32 %v4485, %v4617
        %v4634 = vadd.f32 %v4486, %v4618
        %v4635 = vadd.f32 %v4487, %v4619
        %v4636 = vadd.f32 %v4488, %v4620
        %v4637 = vadd.f32 %v4489, %v4621
        %v4638 = vadd.f32 %v4490, %v4622
        %v4639 = vadd.f32 %v4491, %v4623
        %v4640 = vadd.f32 %v4492, %v4624
        %v4641 = vadd.f32 %v4493, %v4625
        %v4642 = vadd.f32 %v4494, %v4626
        %s4643 = scalar_lea.vmem %s5, 1536
        %v4644 = vld [vmem:[%s4643] sm:$0xf]
        %v4645 = vld [vmem:[%s4643 + $0x4] sm:$0xf]
        %v4646 = vld [vmem:[%s4643 + $0x8] sm:$0xf]
        %v4647 = vld [vmem:[%s4643 + $0xc] sm:$0xf]
        %v4648 = vld [vmem:[%s4643 + $0x10] sm:$0xf]
        %v4649 = vld [vmem:[%s4643 + $0x14] sm:$0xf]
        %v4650 = vld [vmem:[%s4643 + $0x18] sm:$0xf]
        %v4651 = vld [vmem:[%s4643 + $0x1c] sm:$0xf]
        %v4652 = vld [vmem:[%s4643 + $0x20] sm:$0xf]
        %v4653 = vld [vmem:[%s4643 + $0x24] sm:$0xf]
        %v4654 = vld [vmem:[%s4643 + $0x28] sm:$0xf]
        %v4655 = vld [vmem:[%s4643 + $0x2c] sm:$0xf]
        %v4656 = vld [vmem:[%s4643 + $0x30] sm:$0xf]
        %v4657 = vld [vmem:[%s4643 + $0x34] sm:$0xf]
        %v4658 = vld [vmem:[%s4643 + $0x38] sm:$0xf]
        %v4659 = vld [vmem:[%s4643 + $0x3c] sm:$0xf]
        %v4676 = vunpack.c.l.b16 %v4644
        %v4677 = vunpack.c.l.b16 %v4645
        %v4678 = vunpack.c.l.b16 %v4646
        %v4679 = vunpack.c.l.b16 %v4647
        %v4680 = vunpack.c.l.b16 %v4648
        %v4681 = vunpack.c.l.b16 %v4649
        %v4682 = vunpack.c.l.b16 %v4650
        %v4683 = vunpack.c.l.b16 %v4651
        %v4684 = vunpack.c.l.b16 %v4652
        %v4685 = vunpack.c.l.b16 %v4653
        %v4686 = vunpack.c.l.b16 %v4654
        %v4687 = vunpack.c.l.b16 %v4655
        %v4688 = vunpack.c.l.b16 %v4656
        %v4689 = vunpack.c.l.b16 %v4657
        %v4690 = vunpack.c.l.b16 %v4658
        %v4691 = vunpack.c.l.b16 %v4659
        %v4692 = vpack.c.b16 %v4677, %v4676
        %v4693 = vpack.c.b16 %v4679, %v4678
        %v4694 = vpack.c.b16 %v4681, %v4680
        %v4695 = vpack.c.b16 %v4683, %v4682
        %v4696 = vpack.c.b16 %v4685, %v4684
        %v4697 = vpack.c.b16 %v4687, %v4686
        %v4698 = vpack.c.b16 %v4689, %v4688
        %v4699 = vpack.c.b16 %v4691, %v4690
        %4708 = vmatpush.bf16.msra.mxu0 %v1091
        %4709 = vmatpush.bf16.msra.mxu0 %v1090
        %4710 = vmatpush.bf16.msra.mxu0 %v1089
        %4711 = vmatpush.bf16.msra.mxu0 %v1088
        %4712 = vmatpush.bf16.msra.mxu0 %v1087
        %4713 = vmatpush.bf16.msra.mxu0 %v1086
        %4714 = vmatpush.bf16.msra.mxu0 %v1085
        %4715 = vmatpush.bf16.msra.mxu0 %v1084
        %4716 = vmatmul.bf16.gmra.mxu0 %v4692
        %v4717 = vpop.f32.mrf.mxu0
        %v4718 = vadd.f32 0.0, %v4717
        %v4719 = vpop.f32.mrf.mxu0
        %v4720 = vadd.f32 0.0, %v4719
        %4721 = vmatmul.bf16.gmra.mxu0 %v4693
        %v4722 = vpop.f32.mrf.mxu0
        %v4723 = vadd.f32 0.0, %v4722
        %v4724 = vpop.f32.mrf.mxu0
        %v4725 = vadd.f32 0.0, %v4724
        %4726 = vmatmul.bf16.gmra.mxu0 %v4694
        %v4727 = vpop.f32.mrf.mxu0
        %v4728 = vadd.f32 0.0, %v4727
        %v4729 = vpop.f32.mrf.mxu0
        %v4730 = vadd.f32 0.0, %v4729
        %4731 = vmatmul.bf16.gmra.mxu0 %v4695
        %v4732 = vpop.f32.mrf.mxu0
        %v4733 = vadd.f32 0.0, %v4732
        %v4734 = vpop.f32.mrf.mxu0
        %v4735 = vadd.f32 0.0, %v4734
        %4736 = vmatmul.bf16.gmra.mxu0 %v4696
        %v4737 = vpop.f32.mrf.mxu0
        %v4738 = vadd.f32 0.0, %v4737
        %v4739 = vpop.f32.mrf.mxu0
        %v4740 = vadd.f32 0.0, %v4739
        %4741 = vmatmul.bf16.gmra.mxu0 %v4697
        %v4742 = vpop.f32.mrf.mxu0
        %v4743 = vadd.f32 0.0, %v4742
        %v4744 = vpop.f32.mrf.mxu0
        %v4745 = vadd.f32 0.0, %v4744
        %4746 = vmatmul.bf16.gmra.mxu0 %v4698
        %v4747 = vpop.f32.mrf.mxu0
        %v4748 = vadd.f32 0.0, %v4747
        %v4749 = vpop.f32.mrf.mxu0
        %v4750 = vadd.f32 0.0, %v4749
        %4751 = vmatmul.bf16.gmra.mxu0 %v4699
        %v4752 = vpop.f32.mrf.mxu0
        %v4753 = vadd.f32 0.0, %v4752
        %v4754 = vpop.f32.mrf.mxu0
        %v4755 = vadd.f32 0.0, %v4754
        %4756 = vdwg.mxu0
        %v4757 = vld [vmem:[%s6 + $0x18] sm:$0x1]
        %v4758 = vperm.slane %v4757, 0
        %v4759 = vmul.f32 %v4718, %v4758
        %v4760 = vmul.f32 %v4720, %v4758
        %v4761 = vmul.f32 %v4723, %v4758
        %v4762 = vmul.f32 %v4725, %v4758
        %v4763 = vmul.f32 %v4728, %v4758
        %v4764 = vmul.f32 %v4730, %v4758
        %v4765 = vmul.f32 %v4733, %v4758
        %v4766 = vmul.f32 %v4735, %v4758
        %v4767 = vmul.f32 %v4738, %v4758
        %v4768 = vmul.f32 %v4740, %v4758
        %v4769 = vmul.f32 %v4743, %v4758
        %v4770 = vmul.f32 %v4745, %v4758
        %v4771 = vmul.f32 %v4748, %v4758
        %v4772 = vmul.f32 %v4750, %v4758
        %v4773 = vmul.f32 %v4753, %v4758
        %v4774 = vmul.f32 %v4755, %v4758
        %v4775 = vadd.f32 %v4627, %v4759
        %v4776 = vadd.f32 %v4628, %v4760
        %v4777 = vadd.f32 %v4629, %v4761
        %v4778 = vadd.f32 %v4630, %v4762
        %v4779 = vadd.f32 %v4631, %v4763
        %v4780 = vadd.f32 %v4632, %v4764
        %v4781 = vadd.f32 %v4633, %v4765
        %v4782 = vadd.f32 %v4634, %v4766
        %v4783 = vadd.f32 %v4635, %v4767
        %v4784 = vadd.f32 %v4636, %v4768
        %v4785 = vadd.f32 %v4637, %v4769
        %v4786 = vadd.f32 %v4638, %v4770
        %v4787 = vadd.f32 %v4639, %v4771
        %v4788 = vadd.f32 %v4640, %v4772
        %v4789 = vadd.f32 %v4641, %v4773
        %v4790 = vadd.f32 %v4642, %v4774
        %v4791 = vadd.f32 %v678, %v4775
        %v4792 = vadd.f32 %v680, %v4776
        %v4793 = vadd.f32 %v683, %v4777
        %v4794 = vadd.f32 %v685, %v4778
        %v4795 = vadd.f32 %v688, %v4779
        %v4796 = vadd.f32 %v690, %v4780
        %v4797 = vadd.f32 %v693, %v4781
        %v4798 = vadd.f32 %v695, %v4782
        %v4799 = vadd.f32 %v698, %v4783
        %v4800 = vadd.f32 %v700, %v4784
        %v4801 = vadd.f32 %v703, %v4785
        %v4802 = vadd.f32 %v705, %v4786
        %v4803 = vadd.f32 %v708, %v4787
        %v4804 = vadd.f32 %v710, %v4788
        %v4805 = vadd.f32 %v713, %v4789
        %v4806 = vadd.f32 %v715, %v4790
        %v4807 = vld [vmem:[%s7] sm:$0x1]
        %v4809 = vperm.slane %v4807, 0
        %v4811 = vadd.f32 %v4791, %v4809
        %v4812 = vadd.f32 %v4792, %v4809
        %v4813 = vadd.f32 %v4793, %v4809
        %v4814 = vadd.f32 %v4794, %v4809
        %v4815 = vadd.f32 %v4795, %v4809
        %v4816 = vadd.f32 %v4796, %v4809
        %v4817 = vadd.f32 %v4797, %v4809
        %v4818 = vadd.f32 %v4798, %v4809
        %v4819 = vadd.f32 %v4799, %v4809
        %v4820 = vadd.f32 %v4800, %v4809
        %v4821 = vadd.f32 %v4801, %v4809
        %v4822 = vadd.f32 %v4802, %v4809
        %v4823 = vadd.f32 %v4803, %v4809
        %v4824 = vadd.f32 %v4804, %v4809
        %v4825 = vadd.f32 %v4805, %v4809
        %v4826 = vadd.f32 %v4806, %v4809
        %v4827 = vld [vmem:[%s8] sm:$0x1]
        %v4828 = vld [vmem:[%s9] sm:$0x1]
        %4829 = vadd.xlane.f32.xlu0 %v4811
        %v4830 = vpop.xlane.xlu0 %4829
        %4831 = vadd.xlane.f32.xlu0 %v4812
        %v4832 = vpop.xlane.xlu0 %4831
        %4833 = vadd.xlane.f32.xlu0 %v4813
        %v4834 = vpop.xlane.xlu0 %4833
        %4835 = vadd.xlane.f32.xlu0 %v4814
        %v4836 = vpop.xlane.xlu0 %4835
        %4837 = vadd.xlane.f32.xlu0 %v4815
        %v4838 = vpop.xlane.xlu0 %4837
        %4839 = vadd.xlane.f32.xlu0 %v4816
        %v4840 = vpop.xlane.xlu0 %4839
        %4841 = vadd.xlane.f32.xlu0 %v4817
        %v4842 = vpop.xlane.xlu0 %4841
        %4843 = vadd.xlane.f32.xlu0 %v4818
        %v4844 = vpop.xlane.xlu0 %4843
        %4845 = vadd.xlane.f32.xlu0 %v4819
        %v4846 = vpop.xlane.xlu0 %4845
        %4847 = vadd.xlane.f32.xlu0 %v4820
        %v4848 = vpop.xlane.xlu0 %4847
        %4849 = vadd.xlane.f32.xlu0 %v4821
        %v4850 = vpop.xlane.xlu0 %4849
        %4851 = vadd.xlane.f32.xlu0 %v4822
        %v4852 = vpop.xlane.xlu0 %4851
        %4853 = vadd.xlane.f32.xlu0 %v4823
        %v4854 = vpop.xlane.xlu0 %4853
        %4855 = vadd.xlane.f32.xlu0 %v4824
        %v4856 = vpop.xlane.xlu0 %4855
        %4857 = vadd.xlane.f32.xlu0 %v4825
        %v4858 = vpop.xlane.xlu0 %4857
        %4859 = vadd.xlane.f32.xlu0 %v4826
        %v4860 = vpop.xlane.xlu0 %4859
        %v4861 = vmul.f32 %v4830, %v757
        %v4862 = vmul.f32 %v4832, %v757
        %v4863 = vmul.f32 %v4834, %v757
        %v4864 = vmul.f32 %v4836, %v757
        %v4865 = vmul.f32 %v4838, %v757
        %v4866 = vmul.f32 %v4840, %v757
        %v4867 = vmul.f32 %v4842, %v757
        %v4868 = vmul.f32 %v4844, %v757
        %v4869 = vmul.f32 %v4846, %v757
        %v4870 = vmul.f32 %v4848, %v757
        %v4871 = vmul.f32 %v4850, %v757
        %v4872 = vmul.f32 %v4852, %v757
        %v4873 = vmul.f32 %v4854, %v757
        %v4874 = vmul.f32 %v4856, %v757
        %v4875 = vmul.f32 %v4858, %v757
        %v4876 = vmul.f32 %v4860, %v757
        %v4877 = vsub.f32 %v4811, %v4861
        %v4878 = vsub.f32 %v4812, %v4862
        %v4879 = vsub.f32 %v4813, %v4863
        %v4880 = vsub.f32 %v4814, %v4864
        %v4881 = vsub.f32 %v4815, %v4865
        %v4882 = vsub.f32 %v4816, %v4866
        %v4883 = vsub.f32 %v4817, %v4867
        %v4884 = vsub.f32 %v4818, %v4868
        %v4885 = vsub.f32 %v4819, %v4869
        %v4886 = vsub.f32 %v4820, %v4870
        %v4887 = vsub.f32 %v4821, %v4871
        %v4888 = vsub.f32 %v4822, %v4872
        %v4889 = vsub.f32 %v4823, %v4873
        %v4890 = vsub.f32 %v4824, %v4874
        %v4891 = vsub.f32 %v4825, %v4875
        %v4892 = vsub.f32 %v4826, %v4876
        %v4893 = vmul.f32 %v4877, %v4877
        %v4894 = vmul.f32 %v4878, %v4878
        %v4895 = vmul.f32 %v4879, %v4879
        %v4896 = vmul.f32 %v4880, %v4880
        %v4897 = vmul.f32 %v4881, %v4881
        %v4898 = vmul.f32 %v4882, %v4882
        %v4899 = vmul.f32 %v4883, %v4883
        %v4900 = vmul.f32 %v4884, %v4884
        %v4901 = vmul.f32 %v4885, %v4885
        %v4902 = vmul.f32 %v4886, %v4886
        %v4903 = vmul.f32 %v4887, %v4887
        %v4904 = vmul.f32 %v4888, %v4888
        %v4905 = vmul.f32 %v4889, %v4889
        %v4906 = vmul.f32 %v4890, %v4890
        %v4907 = vmul.f32 %v4891, %v4891
        %v4908 = vmul.f32 %v4892, %v4892
        %4909 = vadd.xlane.f32.xlu0 %v4893
        %v4910 = vpop.xlane.xlu0 %4909
        %4911 = vadd.xlane.f32.xlu0 %v4894
        %v4912 = vpop.xlane.xlu0 %4911
        %4913 = vadd.xlane.f32.xlu0 %v4895
        %v4914 = vpop.xlane.xlu0 %4913
        %4915 = vadd.xlane.f32.xlu0 %v4896
        %v4916 = vpop.xlane.xlu0 %4915
        %4917 = vadd.xlane.f32.xlu0 %v4897
        %v4918 = vpop.xlane.xlu0 %4917
        %4919 = vadd.xlane.f32.xlu0 %v4898
        %v4920 = vpop.xlane.xlu0 %4919
        %4921 = vadd.xlane.f32.xlu0 %v4899
        %v4922 = vpop.xlane.xlu0 %4921
        %4923 = vadd.xlane.f32.xlu0 %v4900
        %v4924 = vpop.xlane.xlu0 %4923
        %4925 = vadd.xlane.f32.xlu0 %v4901
        %v4926 = vpop.xlane.xlu0 %4925
        %4927 = vadd.xlane.f32.xlu0 %v4902
        %v4928 = vpop.xlane.xlu0 %4927
        %4929 = vadd.xlane.f32.xlu0 %v4903
        %v4930 = vpop.xlane.xlu0 %4929
        %4931 = vadd.xlane.f32.xlu0 %v4904
        %v4932 = vpop.xlane.xlu0 %4931
        %4933 = vadd.xlane.f32.xlu0 %v4905
        %v4934 = vpop.xlane.xlu0 %4933
        %4935 = vadd.xlane.f32.xlu0 %v4906
        %v4936 = vpop.xlane.xlu0 %4935
        %4937 = vadd.xlane.f32.xlu0 %v4907
        %v4938 = vpop.xlane.xlu0 %4937
        %4939 = vadd.xlane.f32.xlu0 %v4908
        %v4940 = vpop.xlane.xlu0 %4939
        %v4941 = vmul.f32 %v4910, %v757
        %v4942 = vmul.f32 %v4912, %v757
        %v4943 = vmul.f32 %v4914, %v757
        %v4944 = vmul.f32 %v4916, %v757
        %v4945 = vmul.f32 %v4918, %v757
        %v4946 = vmul.f32 %v4920, %v757
        %v4947 = vmul.f32 %v4922, %v757
        %v4948 = vmul.f32 %v4924, %v757
        %v4949 = vmul.f32 %v4926, %v757
        %v4950 = vmul.f32 %v4928, %v757
        %v4951 = vmul.f32 %v4930, %v757
        %v4952 = vmul.f32 %v4932, %v757
        %v4953 = vmul.f32 %v4934, %v757
        %v4954 = vmul.f32 %v4936, %v757
        %v4955 = vmul.f32 %v4938, %v757
        %v4956 = vmul.f32 %v4940, %v757
        %v4957 = vadd.f32 %v4941, 1e-05
        %v4958 = vadd.f32 %v4942, 1e-05
        %v4959 = vadd.f32 %v4943, 1e-05
        %v4960 = vadd.f32 %v4944, 1e-05
        %v4961 = vadd.f32 %v4945, 1e-05
        %v4962 = vadd.f32 %v4946, 1e-05
        %v4963 = vadd.f32 %v4947, 1e-05
        %v4964 = vadd.f32 %v4948, 1e-05
        %v4965 = vadd.f32 %v4949, 1e-05
        %v4966 = vadd.f32 %v4950, 1e-05
        %v4967 = vadd.f32 %v4951, 1e-05
        %v4968 = vadd.f32 %v4952, 1e-05
        %v4969 = vadd.f32 %v4953, 1e-05
        %v4970 = vadd.f32 %v4954, 1e-05
        %v4971 = vadd.f32 %v4955, 1e-05
        %v4972 = vadd.f32 %v4956, 1e-05
        %v4973 = vrsqrt.pop %v4957
        %v4974 = vmul.f32 %v4973, %v4957
        %v4975 = vmul.f32 %v4974, %v4973
        %v4976 = vmul.f32 0.5, %v4975
        %v4977 = vsub.f32 1.5, %v4976
        %v4978 = vmul.f32 %v4973, %v4977
        %vm4979 = vweird.f32 %v4957
        %vm4980 = vweird.f32 %v4973
        %vm4981 = vmor %vm4979, %vm4980
        %v4982 = vsel %vm4981, %v4973, %v4978
        %v4983 = vrsqrt.pop %v4958
        %v4984 = vmul.f32 %v4983, %v4958
        %v4985 = vmul.f32 %v4984, %v4983
        %v4986 = vmul.f32 0.5, %v4985
        %v4987 = vsub.f32 1.5, %v4986
        %v4988 = vmul.f32 %v4983, %v4987
        %vm4989 = vweird.f32 %v4958
        %vm4990 = vweird.f32 %v4983
        %vm4991 = vmor %vm4989, %vm4990
        %v4992 = vsel %vm4991, %v4983, %v4988
        %v4993 = vrsqrt.pop %v4959
        %v4994 = vmul.f32 %v4993, %v4959
        %v4995 = vmul.f32 %v4994, %v4993
        %v4996 = vmul.f32 0.5, %v4995
        %v4997 = vsub.f32 1.5, %v4996
        %v4998 = vmul.f32 %v4993, %v4997
        %vm4999 = vweird.f32 %v4959
        %vm5000 = vweird.f32 %v4993
        %vm5001 = vmor %vm4999, %vm5000
        %v5002 = vsel %vm5001, %v4993, %v4998
        %v5003 = vrsqrt.pop %v4960
        %v5004 = vmul.f32 %v5003, %v4960
        %v5005 = vmul.f32 %v5004, %v5003
        %v5006 = vmul.f32 0.5, %v5005
        %v5007 = vsub.f32 1.5, %v5006
        %v5008 = vmul.f32 %v5003, %v5007
        %vm5009 = vweird.f32 %v4960
        %vm5010 = vweird.f32 %v5003
        %vm5011 = vmor %vm5009, %vm5010
        %v5012 = vsel %vm5011, %v5003, %v5008
        %v5013 = vrsqrt.pop %v4961
        %v5014 = vmul.f32 %v5013, %v4961
        %v5015 = vmul.f32 %v5014, %v5013
        %v5016 = vmul.f32 0.5, %v5015
        %v5017 = vsub.f32 1.5, %v5016
        %v5018 = vmul.f32 %v5013, %v5017
        %vm5019 = vweird.f32 %v4961
        %vm5020 = vweird.f32 %v5013
        %vm5021 = vmor %vm5019, %vm5020
        %v5022 = vsel %vm5021, %v5013, %v5018
        %v5023 = vrsqrt.pop %v4962
        %v5024 = vmul.f32 %v5023, %v4962
        %v5025 = vmul.f32 %v5024, %v5023
        %v5026 = vmul.f32 0.5, %v5025
        %v5027 = vsub.f32 1.5, %v5026
        %v5028 = vmul.f32 %v5023, %v5027
        %vm5029 = vweird.f32 %v4962
        %vm5030 = vweird.f32 %v5023
        %vm5031 = vmor %vm5029, %vm5030
        %v5032 = vsel %vm5031, %v5023, %v5028
        %v5033 = vrsqrt.pop %v4963
        %v5034 = vmul.f32 %v5033, %v4963
        %v5035 = vmul.f32 %v5034, %v5033
        %v5036 = vmul.f32 0.5, %v5035
        %v5037 = vsub.f32 1.5, %v5036
        %v5038 = vmul.f32 %v5033, %v5037
        %vm5039 = vweird.f32 %v4963
        %vm5040 = vweird.f32 %v5033
        %vm5041 = vmor %vm5039, %vm5040
        %v5042 = vsel %vm5041, %v5033, %v5038
        %v5043 = vrsqrt.pop %v4964
        %v5044 = vmul.f32 %v5043, %v4964
        %v5045 = vmul.f32 %v5044, %v5043
        %v5046 = vmul.f32 0.5, %v5045
        %v5047 = vsub.f32 1.5, %v5046
        %v5048 = vmul.f32 %v5043, %v5047
        %vm5049 = vweird.f32 %v4964
        %vm5050 = vweird.f32 %v5043
        %vm5051 = vmor %vm5049, %vm5050
        %v5052 = vsel %vm5051, %v5043, %v5048
        %v5053 = vrsqrt.pop %v4965
        %v5054 = vmul.f32 %v5053, %v4965
        %v5055 = vmul.f32 %v5054, %v5053
        %v5056 = vmul.f32 0.5, %v5055
        %v5057 = vsub.f32 1.5, %v5056
        %v5058 = vmul.f32 %v5053, %v5057
        %vm5059 = vweird.f32 %v4965
        %vm5060 = vweird.f32 %v5053
        %vm5061 = vmor %vm5059, %vm5060
        %v5062 = vsel %vm5061, %v5053, %v5058
        %v5063 = vrsqrt.pop %v4966
        %v5064 = vmul.f32 %v5063, %v4966
        %v5065 = vmul.f32 %v5064, %v5063
        %v5066 = vmul.f32 0.5, %v5065
        %v5067 = vsub.f32 1.5, %v5066
        %v5068 = vmul.f32 %v5063, %v5067
        %vm5069 = vweird.f32 %v4966
        %vm5070 = vweird.f32 %v5063
        %vm5071 = vmor %vm5069, %vm5070
        %v5072 = vsel %vm5071, %v5063, %v5068
        %v5073 = vrsqrt.pop %v4967
        %v5074 = vmul.f32 %v5073, %v4967
        %v5075 = vmul.f32 %v5074, %v5073
        %v5076 = vmul.f32 0.5, %v5075
        %v5077 = vsub.f32 1.5, %v5076
        %v5078 = vmul.f32 %v5073, %v5077
        %vm5079 = vweird.f32 %v4967
        %vm5080 = vweird.f32 %v5073
        %vm5081 = vmor %vm5079, %vm5080
        %v5082 = vsel %vm5081, %v5073, %v5078
        %v5083 = vrsqrt.pop %v4968
        %v5084 = vmul.f32 %v5083, %v4968
        %v5085 = vmul.f32 %v5084, %v5083
        %v5086 = vmul.f32 0.5, %v5085
        %v5087 = vsub.f32 1.5, %v5086
        %v5088 = vmul.f32 %v5083, %v5087
        %vm5089 = vweird.f32 %v4968
        %vm5090 = vweird.f32 %v5083
        %vm5091 = vmor %vm5089, %vm5090
        %v5092 = vsel %vm5091, %v5083, %v5088
        %v5093 = vrsqrt.pop %v4969
        %v5094 = vmul.f32 %v5093, %v4969
        %v5095 = vmul.f32 %v5094, %v5093
        %v5096 = vmul.f32 0.5, %v5095
        %v5097 = vsub.f32 1.5, %v5096
        %v5098 = vmul.f32 %v5093, %v5097
        %vm5099 = vweird.f32 %v4969
        %vm5100 = vweird.f32 %v5093
        %vm5101 = vmor %vm5099, %vm5100
        %v5102 = vsel %vm5101, %v5093, %v5098
        %v5103 = vrsqrt.pop %v4970
        %v5104 = vmul.f32 %v5103, %v4970
        %v5105 = vmul.f32 %v5104, %v5103
        %v5106 = vmul.f32 0.5, %v5105
        %v5107 = vsub.f32 1.5, %v5106
        %v5108 = vmul.f32 %v5103, %v5107
        %vm5109 = vweird.f32 %v4970
        %vm5110 = vweird.f32 %v5103
        %vm5111 = vmor %vm5109, %vm5110
        %v5112 = vsel %vm5111, %v5103, %v5108
        %v5113 = vrsqrt.pop %v4971
        %v5114 = vmul.f32 %v5113, %v4971
        %v5115 = vmul.f32 %v5114, %v5113
        %v5116 = vmul.f32 0.5, %v5115
        %v5117 = vsub.f32 1.5, %v5116
        %v5118 = vmul.f32 %v5113, %v5117
        %vm5119 = vweird.f32 %v4971
        %vm5120 = vweird.f32 %v5113
        %vm5121 = vmor %vm5119, %vm5120
        %v5122 = vsel %vm5121, %v5113, %v5118
        %v5123 = vrsqrt.pop %v4972
        %v5124 = vmul.f32 %v5123, %v4972
        %v5125 = vmul.f32 %v5124, %v5123
        %v5126 = vmul.f32 0.5, %v5125
        %v5127 = vsub.f32 1.5, %v5126
        %v5128 = vmul.f32 %v5123, %v5127
        %vm5129 = vweird.f32 %v4972
        %vm5130 = vweird.f32 %v5123
        %vm5131 = vmor %vm5129, %vm5130
        %v5132 = vsel %vm5131, %v5123, %v5128
        %v5133 = vmul.f32 %v4877, %v4982
        %v5134 = vmul.f32 %v4878, %v4992
        %v5135 = vmul.f32 %v4879, %v5002
        %v5136 = vmul.f32 %v4880, %v5012
        %v5137 = vmul.f32 %v4881, %v5022
        %v5138 = vmul.f32 %v4882, %v5032
        %v5139 = vmul.f32 %v4883, %v5042
        %v5140 = vmul.f32 %v4884, %v5052
        %v5141 = vmul.f32 %v4885, %v5062
        %v5142 = vmul.f32 %v4886, %v5072
        %v5143 = vmul.f32 %v4887, %v5082
        %v5144 = vmul.f32 %v4888, %v5092
        %v5145 = vmul.f32 %v4889, %v5102
        %v5146 = vmul.f32 %v4890, %v5112
        %v5147 = vmul.f32 %v4891, %v5122
        %v5148 = vmul.f32 %v4892, %v5132
        %v5150 = vperm.slane %v4827, 0
        %v5152 = vmul.f32 %v5133, %v5150
        %v5153 = vmul.f32 %v5134, %v5150
        %v5154 = vmul.f32 %v5135, %v5150
        %v5155 = vmul.f32 %v5136, %v5150
        %v5156 = vmul.f32 %v5137, %v5150
        %v5157 = vmul.f32 %v5138, %v5150
        %v5158 = vmul.f32 %v5139, %v5150
        %v5159 = vmul.f32 %v5140, %v5150
        %v5160 = vmul.f32 %v5141, %v5150
        %v5161 = vmul.f32 %v5142, %v5150
        %v5162 = vmul.f32 %v5143, %v5150
        %v5163 = vmul.f32 %v5144, %v5150
        %v5164 = vmul.f32 %v5145, %v5150
        %v5165 = vmul.f32 %v5146, %v5150
        %v5166 = vmul.f32 %v5147, %v5150
        %v5167 = vmul.f32 %v5148, %v5150
        %v5169 = vperm.slane %v4828, 0
        %v5171 = vadd.f32 %v5152, %v5169
        %v5172 = vadd.f32 %v5153, %v5169
        %v5173 = vadd.f32 %v5154, %v5169
        %v5174 = vadd.f32 %v5155, %v5169
        %v5175 = vadd.f32 %v5156, %v5169
        %v5176 = vadd.f32 %v5157, %v5169
        %v5177 = vadd.f32 %v5158, %v5169
        %v5178 = vadd.f32 %v5159, %v5169
        %v5179 = vadd.f32 %v5160, %v5169
        %v5180 = vadd.f32 %v5161, %v5169
        %v5181 = vadd.f32 %v5162, %v5169
        %v5182 = vadd.f32 %v5163, %v5169
        %v5183 = vadd.f32 %v5164, %v5169
        %v5184 = vadd.f32 %v5165, %v5169
        %v5185 = vadd.f32 %v5166, %v5169
        %v5186 = vadd.f32 %v5167, %v5169
        %v5187 = vpack.c.bf16 %v5172, %v5171
        %v5188 = vpack.c.bf16 %v5174, %v5173
        %v5189 = vpack.c.bf16 %v5176, %v5175
        %v5190 = vpack.c.bf16 %v5178, %v5177
        %v5191 = vpack.c.bf16 %v5180, %v5179
        %v5192 = vpack.c.bf16 %v5182, %v5181
        %v5193 = vpack.c.bf16 %v5184, %v5183
        %v5194 = vpack.c.bf16 %v5186, %v5185
        %v5195 = vld [vmem:[%s10] sm:$0xff]
        %v5196 = vld [vmem:[%s10 + $0x8] sm:$0xff]
        %v5197 = vld [vmem:[%s10 + $0x10] sm:$0xff]
        %v5198 = vld [vmem:[%s10 + $0x18] sm:$0xff]
        %v5199 = vld [vmem:[%s10 + $0x20] sm:$0xff]
        %v5200 = vld [vmem:[%s10 + $0x28] sm:$0xff]
        %v5201 = vld [vmem:[%s10 + $0x30] sm:$0xff]
        %v5202 = vld [vmem:[%s10 + $0x38] sm:$0xff]
        %v5203 = vld [vmem:[%s10 + $0x40] sm:$0xff]
        %v5204 = vld [vmem:[%s10 + $0x48] sm:$0xff]
        %v5205 = vld [vmem:[%s10 + $0x50] sm:$0xff]
        %v5206 = vld [vmem:[%s10 + $0x58] sm:$0xff]
        %v5207 = vld [vmem:[%s10 + $0x60] sm:$0xff]
        %v5208 = vld [vmem:[%s10 + $0x68] sm:$0xff]
        %v5209 = vld [vmem:[%s10 + $0x70] sm:$0xff]
        %v5210 = vld [vmem:[%s10 + $0x78] sm:$0xff]
        %v5211 = vld [vmem:[%s11] sm:$0x3]
        %v5213 = vperm.slane %v5211, 0
        %v5214 = vperm.slane %v5211, 1
        %v5233 = vunpack.c.l.b16 %v5195
        %v5234 = vunpack.c.h.b16 %v5195
        %v5235 = vunpack.c.l.b16 %v5196
        %v5236 = vunpack.c.h.b16 %v5196
        %v5237 = vunpack.c.l.b16 %v5197
        %v5238 = vunpack.c.h.b16 %v5197
        %v5239 = vunpack.c.l.b16 %v5198
        %v5240 = vunpack.c.h.b16 %v5198
        %v5241 = vunpack.c.l.b16 %v5199
        %v5242 = vunpack.c.h.b16 %v5199
        %v5243 = vunpack.c.l.b16 %v5200
        %v5244 = vunpack.c.h.b16 %v5200
        %v5245 = vunpack.c.l.b16 %v5201
        %v5246 = vunpack.c.h.b16 %v5201
        %v5247 = vunpack.c.l.b16 %v5202
        %v5248 = vunpack.c.h.b16 %v5202
        %v5249 = vunpack.c.l.b16 %v5203
        %v5250 = vunpack.c.h.b16 %v5203
        %v5251 = vunpack.c.l.b16 %v5204
        %v5252 = vunpack.c.h.b16 %v5204
        %v5253 = vunpack.c.l.b16 %v5205
        %v5254 = vunpack.c.h.b16 %v5205
        %v5255 = vunpack.c.l.b16 %v5206
        %v5256 = vunpack.c.h.b16 %v5206
        %v5257 = vunpack.c.l.b16 %v5207
        %v5258 = vunpack.c.h.b16 %v5207
        %v5259 = vunpack.c.l.b16 %v5208
        %v5260 = vunpack.c.h.b16 %v5208
        %v5261 = vunpack.c.l.b16 %v5209
        %v5262 = vunpack.c.h.b16 %v5209
        %v5263 = vunpack.c.l.b16 %v5210
        %v5264 = vunpack.c.h.b16 %v5210
        %v5265 = vpack.c.b16 %v5235, %v5233
        %v5266 = vpack.c.b16 %v5236, %v5234
        %v5267 = vpack.c.b16 %v5239, %v5237
        %v5268 = vpack.c.b16 %v5240, %v5238
        %v5269 = vpack.c.b16 %v5243, %v5241
        %v5270 = vpack.c.b16 %v5244, %v5242
        %v5271 = vpack.c.b16 %v5247, %v5245
        %v5272 = vpack.c.b16 %v5248, %v5246
        %v5273 = vpack.c.b16 %v5251, %v5249
        %v5274 = vpack.c.b16 %v5252, %v5250
        %v5275 = vpack.c.b16 %v5255, %v5253
        %v5276 = vpack.c.b16 %v5256, %v5254
        %v5277 = vpack.c.b16 %v5259, %v5257
        %v5278 = vpack.c.b16 %v5260, %v5258
        %v5279 = vpack.c.b16 %v5263, %v5261
        %v5280 = vpack.c.b16 %v5264, %v5262
        %5297 = vmatpush.bf16.msra.mxu0 %v5279
        %5298 = vmatpush.bf16.msra.mxu0 %v5277
        %5299 = vmatpush.bf16.msra.mxu0 %v5275
        %5300 = vmatpush.bf16.msra.mxu0 %v5273
        %5301 = vmatpush.bf16.msra.mxu0 %v5271
        %5302 = vmatpush.bf16.msra.mxu0 %v5269
        %5303 = vmatpush.bf16.msra.mxu0 %v5267
        %5304 = vmatpush.bf16.msra.mxu0 %v5265
        %5305 = vmatmul.bf16.gmra.mxu0 %v5187
        %v5306 = vpop.f32.mrf.mxu0
        %v5307 = vadd.f32 %v5213, %v5306
        %v5308 = vpop.f32.mrf.mxu0
        %v5309 = vadd.f32 %v5213, %v5308
        %5310 = vmatmul.bf16.gmra.mxu0 %v5188
        %v5311 = vpop.f32.mrf.mxu0
        %v5312 = vadd.f32 %v5213, %v5311
        %v5313 = vpop.f32.mrf.mxu0
        %v5314 = vadd.f32 %v5213, %v5313
        %5315 = vmatmul.bf16.gmra.mxu0 %v5189
        %v5316 = vpop.f32.mrf.mxu0
        %v5317 = vadd.f32 %v5213, %v5316
        %v5318 = vpop.f32.mrf.mxu0
        %v5319 = vadd.f32 %v5213, %v5318
        %5320 = vmatmul.bf16.gmra.mxu0 %v5190
        %v5321 = vpop.f32.mrf.mxu0
        %v5322 = vadd.f32 %v5213, %v5321
        %v5323 = vpop.f32.mrf.mxu0
        %v5324 = vadd.f32 %v5213, %v5323
        %5325 = vmatmul.bf16.gmra.mxu0 %v5191
        %v5326 = vpop.f32.mrf.mxu0
        %v5327 = vadd.f32 %v5213, %v5326
        %v5328 = vpop.f32.mrf.mxu0
        %v5329 = vadd.f32 %v5213, %v5328
        %5330 = vmatmul.bf16.gmra.mxu0 %v5192
        %v5331 = vpop.f32.mrf.mxu0
        %v5332 = vadd.f32 %v5213, %v5331
        %v5333 = vpop.f32.mrf.mxu0
        %v5334 = vadd.f32 %v5213, %v5333
        %5335 = vmatmul.bf16.gmra.mxu0 %v5193
        %v5336 = vpop.f32.mrf.mxu0
        %v5337 = vadd.f32 %v5213, %v5336
        %v5338 = vpop.f32.mrf.mxu0
        %v5339 = vadd.f32 %v5213, %v5338
        %5340 = vmatmul.bf16.gmra.mxu0 %v5194
        %v5341 = vpop.f32.mrf.mxu0
        %v5342 = vadd.f32 %v5213, %v5341
        %v5343 = vpop.f32.mrf.mxu0
        %v5344 = vadd.f32 %v5213, %v5343
        %5345 = vdwg.mxu0
        %5346 = vmatpush.bf16.msra.mxu0 %v5280
        %5347 = vmatpush.bf16.msra.mxu0 %v5278
        %5348 = vmatpush.bf16.msra.mxu0 %v5276
        %5349 = vmatpush.bf16.msra.mxu0 %v5274
        %5350 = vmatpush.bf16.msra.mxu0 %v5272
        %5351 = vmatpush.bf16.msra.mxu0 %v5270
        %5352 = vmatpush.bf16.msra.mxu0 %v5268
        %5353 = vmatpush.bf16.msra.mxu0 %v5266
        %5354 = vmatmul.bf16.gmra.mxu0 %v5187
        %v5355 = vpop.f32.mrf.mxu0
        %v5356 = vadd.f32 %v5214, %v5355
        %v5357 = vpop.f32.mrf.mxu0
        %v5358 = vadd.f32 %v5214, %v5357
        %5359 = vmatmul.bf16.gmra.mxu0 %v5188
        %v5360 = vpop.f32.mrf.mxu0
        %v5361 = vadd.f32 %v5214, %v5360
        %v5362 = vpop.f32.mrf.mxu0
        %v5363 = vadd.f32 %v5214, %v5362
        %5364 = vmatmul.bf16.gmra.mxu0 %v5189
        %v5365 = vpop.f32.mrf.mxu0
        %v5366 = vadd.f32 %v5214, %v5365
        %v5367 = vpop.f32.mrf.mxu0
        %v5368 = vadd.f32 %v5214, %v5367
        %5369 = vmatmul.bf16.gmra.mxu0 %v5190
        %v5370 = vpop.f32.mrf.mxu0
        %v5371 = vadd.f32 %v5214, %v5370
        %v5372 = vpop.f32.mrf.mxu0
        %v5373 = vadd.f32 %v5214, %v5372
        %5374 = vmatmul.bf16.gmra.mxu0 %v5191
        %v5375 = vpop.f32.mrf.mxu0
        %v5376 = vadd.f32 %v5214, %v5375
        %v5377 = vpop.f32.mrf.mxu0
        %v5378 = vadd.f32 %v5214, %v5377
        %5379 = vmatmul.bf16.gmra.mxu0 %v5192
        %v5380 = vpop.f32.mrf.mxu0
        %v5381 = vadd.f32 %v5214, %v5380
        %v5382 = vpop.f32.mrf.mxu0
        %v5383 = vadd.f32 %v5214, %v5382
        %5384 = vmatmul.bf16.gmra.mxu0 %v5193
        %v5385 = vpop.f32.mrf.mxu0
        %v5386 = vadd.f32 %v5214, %v5385
        %v5387 = vpop.f32.mrf.mxu0
        %v5388 = vadd.f32 %v5214, %v5387
        %5389 = vmatmul.bf16.gmra.mxu0 %v5194
        %v5390 = vpop.f32.mrf.mxu0
        %v5391 = vadd.f32 %v5214, %v5390
        %v5392 = vpop.f32.mrf.mxu0
        %v5393 = vadd.f32 %v5214, %v5392
        %5394 = vdwg.mxu0
        %v5395 = vmul.f32 %v5307, %v5307
        %v5396 = vmul.f32 %v5356, %v5356
        %v5397 = vmul.f32 %v5309, %v5309
        %v5398 = vmul.f32 %v5358, %v5358
        %v5399 = vmul.f32 %v5312, %v5312
        %v5400 = vmul.f32 %v5361, %v5361
        %v5401 = vmul.f32 %v5314, %v5314
        %v5402 = vmul.f32 %v5363, %v5363
        %v5403 = vmul.f32 %v5317, %v5317
        %v5404 = vmul.f32 %v5366, %v5366
        %v5405 = vmul.f32 %v5319, %v5319
        %v5406 = vmul.f32 %v5368, %v5368
        %v5407 = vmul.f32 %v5322, %v5322
        %v5408 = vmul.f32 %v5371, %v5371
        %v5409 = vmul.f32 %v5324, %v5324
        %v5410 = vmul.f32 %v5373, %v5373
        %v5411 = vmul.f32 %v5327, %v5327
        %v5412 = vmul.f32 %v5376, %v5376
        %v5413 = vmul.f32 %v5329, %v5329
        %v5414 = vmul.f32 %v5378, %v5378
        %v5415 = vmul.f32 %v5332, %v5332
        %v5416 = vmul.f32 %v5381, %v5381
        %v5417 = vmul.f32 %v5334, %v5334
        %v5418 = vmul.f32 %v5383, %v5383
        %v5419 = vmul.f32 %v5337, %v5337
        %v5420 = vmul.f32 %v5386, %v5386
        %v5421 = vmul.f32 %v5339, %v5339
        %v5422 = vmul.f32 %v5388, %v5388
        %v5423 = vmul.f32 %v5342, %v5342
        %v5424 = vmul.f32 %v5391, %v5391
        %v5425 = vmul.f32 %v5344, %v5344
        %v5426 = vmul.f32 %v5393, %v5393
        %v5427 = vmul.f32 %v5307, %v5395
        %v5428 = vmul.f32 %v5356, %v5396
        %v5429 = vmul.f32 %v5309, %v5397
        %v5430 = vmul.f32 %v5358, %v5398
        %v5431 = vmul.f32 %v5312, %v5399
        %v5432 = vmul.f32 %v5361, %v5400
        %v5433 = vmul.f32 %v5314, %v5401
        %v5434 = vmul.f32 %v5363, %v5402
        %v5435 = vmul.f32 %v5317, %v5403
        %v5436 = vmul.f32 %v5366, %v5404
        %v5437 = vmul.f32 %v5319, %v5405
        %v5438 = vmul.f32 %v5368, %v5406
        %v5439 = vmul.f32 %v5322, %v5407
        %v5440 = vmul.f32 %v5371, %v5408
        %v5441 = vmul.f32 %v5324, %v5409
        %v5442 = vmul.f32 %v5373, %v5410
        %v5443 = vmul.f32 %v5327, %v5411
        %v5444 = vmul.f32 %v5376, %v5412
        %v5445 = vmul.f32 %v5329, %v5413
        %v5446 = vmul.f32 %v5378, %v5414
        %v5447 = vmul.f32 %v5332, %v5415
        %v5448 = vmul.f32 %v5381, %v5416
        %v5449 = vmul.f32 %v5334, %v5417
        %v5450 = vmul.f32 %v5383, %v5418
        %v5451 = vmul.f32 %v5337, %v5419
        %v5452 = vmul.f32 %v5386, %v5420
        %v5453 = vmul.f32 %v5339, %v5421
        %v5454 = vmul.f32 %v5388, %v5422
        %v5455 = vmul.f32 %v5342, %v5423
        %v5456 = vmul.f32 %v5391, %v5424
        %v5457 = vmul.f32 %v5344, %v5425
        %v5458 = vmul.f32 %v5393, %v5426
        %v5459 = vmul.f32 %v5427, 0.044715
        %v5460 = vmul.f32 %v5428, 0.044715
        %v5461 = vmul.f32 %v5429, 0.044715
        %v5462 = vmul.f32 %v5430, 0.044715
        %v5463 = vmul.f32 %v5431, 0.044715
        %v5464 = vmul.f32 %v5432, 0.044715
        %v5465 = vmul.f32 %v5433, 0.044715
        %v5466 = vmul.f32 %v5434, 0.044715
        %v5467 = vmul.f32 %v5435, 0.044715
        %v5468 = vmul.f32 %v5436, 0.044715
        %v5469 = vmul.f32 %v5437, 0.044715
        %v5470 = vmul.f32 %v5438, 0.044715
        %v5471 = vmul.f32 %v5439, 0.044715
        %v5472 = vmul.f32 %v5440, 0.044715
        %v5473 = vmul.f32 %v5441, 0.044715
        %v5474 = vmul.f32 %v5442, 0.044715
        %v5475 = vmul.f32 %v5443, 0.044715
        %v5476 = vmul.f32 %v5444, 0.044715
        %v5477 = vmul.f32 %v5445, 0.044715
        %v5478 = vmul.f32 %v5446, 0.044715
        %v5479 = vmul.f32 %v5447, 0.044715
        %v5480 = vmul.f32 %v5448, 0.044715
        %v5481 = vmul.f32 %v5449, 0.044715
        %v5482 = vmul.f32 %v5450, 0.044715
        %v5483 = vmul.f32 %v5451, 0.044715
        %v5484 = vmul.f32 %v5452, 0.044715
        %v5485 = vmul.f32 %v5453, 0.044715
        %v5486 = vmul.f32 %v5454, 0.044715
        %v5487 = vmul.f32 %v5455, 0.044715
        %v5488 = vmul.f32 %v5456, 0.044715
        %v5489 = vmul.f32 %v5457, 0.044715
        %v5490 = vmul.f32 %v5458, 0.044715
        %v5491 = vadd.f32 %v5307, %v5459
        %v5492 = vadd.f32 %v5356, %v5460
        %v5493 = vadd.f32 %v5309, %v5461
        %v5494 = vadd.f32 %v5358, %v5462
        %v5495 = vadd.f32 %v5312, %v5463
        %v5496 = vadd.f32 %v5361, %v5464
        %v5497 = vadd.f32 %v5314, %v5465
        %v5498 = vadd.f32 %v5363, %v5466
        %v5499 = vadd.f32 %v5317, %v5467
        %v5500 = vadd.f32 %v5366, %v5468
        %v5501 = vadd.f32 %v5319, %v5469
        %v5502 = vadd.f32 %v5368, %v5470
        %v5503 = vadd.f32 %v5322, %v5471
        %v5504 = vadd.f32 %v5371, %v5472
        %v5505 = vadd.f32 %v5324, %v5473
        %v5506 = vadd.f32 %v5373, %v5474
        %v5507 = vadd.f32 %v5327, %v5475
        %v5508 = vadd.f32 %v5376, %v5476
        %v5509 = vadd.f32 %v5329, %v5477
        %v5510 = vadd.f32 %v5378, %v5478
        %v5511 = vadd.f32 %v5332, %v5479
        %v5512 = vadd.f32 %v5381, %v5480
        %v5513 = vadd.f32 %v5334, %v5481
        %v5514 = vadd.f32 %v5383, %v5482
        %v5515 = vadd.f32 %v5337, %v5483
        %v5516 = vadd.f32 %v5386, %v5484
        %v5517 = vadd.f32 %v5339, %v5485
        %v5518 = vadd.f32 %v5388, %v5486
        %v5519 = vadd.f32 %v5342, %v5487
        %v5520 = vadd.f32 %v5391, %v5488
        %v5521 = vadd.f32 %v5344, %v5489
        %v5522 = vadd.f32 %v5393, %v5490
        %v5523 = vmul.f32 %v5491, 0.7978846
        %v5524 = vmul.f32 %v5492, 0.7978846
        %v5525 = vmul.f32 %v5493, 0.7978846
        %v5526 = vmul.f32 %v5494, 0.7978846
        %v5527 = vmul.f32 %v5495, 0.7978846
        %v5528 = vmul.f32 %v5496, 0.7978846
        %v5529 = vmul.f32 %v5497, 0.7978846
        %v5530 = vmul.f32 %v5498, 0.7978846
        %v5531 = vmul.f32 %v5499, 0.7978846
        %v5532 = vmul.f32 %v5500, 0.7978846
        %v5533 = vmul.f32 %v5501, 0.7978846
        %v5534 = vmul.f32 %v5502, 0.7978846
        %v5535 = vmul.f32 %v5503, 0.7978846
        %v5536 = vmul.f32 %v5504, 0.7978846
        %v5537 = vmul.f32 %v5505, 0.7978846
        %v5538 = vmul.f32 %v5506, 0.7978846
        %v5539 = vmul.f32 %v5507, 0.7978846
        %v5540 = vmul.f32 %v5508, 0.7978846
        %v5541 = vmul.f32 %v5509, 0.7978846
        %v5542 = vmul.f32 %v5510, 0.7978846
        %v5543 = vmul.f32 %v5511, 0.7978846
        %v5544 = vmul.f32 %v5512, 0.7978846
        %v5545 = vmul.f32 %v5513, 0.7978846
        %v5546 = vmul.f32 %v5514, 0.7978846
        %v5547 = vmul.f32 %v5515, 0.7978846
        %v5548 = vmul.f32 %v5516, 0.7978846
        %v5549 = vmul.f32 %v5517, 0.7978846
        %v5550 = vmul.f32 %v5518, 0.7978846
        %v5551 = vmul.f32 %v5519, 0.7978846
        %v5552 = vmul.f32 %v5520, 0.7978846
        %v5553 = vmul.f32 %v5521, 0.7978846
        %v5554 = vmul.f32 %v5522, 0.7978846
        %v5555 = vtanh.pop %v5523
        %v5556 = vtanh.pop %v5524
        %v5557 = vtanh.pop %v5525
        %v5558 = vtanh.pop %v5526
        %v5559 = vtanh.pop %v5527
        %v5560 = vtanh.pop %v5528
        %v5561 = vtanh.pop %v5529
        %v5562 = vtanh.pop %v5530
        %v5563 = vtanh.pop %v5531
        %v5564 = vtanh.pop %v5532
        %v5565 = vtanh.pop %v5533
        %v5566 = vtanh.pop %v5534
        %v5567 = vtanh.pop %v5535
        %v5568 = vtanh.pop %v5536
        %v5569 = vtanh.pop %v5537
        %v5570 = vtanh.pop %v5538
        %v5571 = vtanh.pop %v5539
        %v5572 = vtanh.pop %v5540
        %v5573 = vtanh.pop %v5541
        %v5574 = vtanh.pop %v5542
        %v5575 = vtanh.pop %v5543
        %v5576 = vtanh.pop %v5544
        %v5577 = vtanh.pop %v5545
        %v5578 = vtanh.pop %v5546
        %v5579 = vtanh.pop %v5547
        %v5580 = vtanh.pop %v5548
        %v5581 = vtanh.pop %v5549
        %v5582 = vtanh.pop %v5550
        %v5583 = vtanh.pop %v5551
        %v5584 = vtanh.pop %v5552
        %v5585 = vtanh.pop %v5553
        %v5586 = vtanh.pop %v5554
        %v5587 = vadd.f32 %v5555, 1.0
        %v5588 = vadd.f32 %v5556, 1.0
        %v5589 = vadd.f32 %v5557, 1.0
        %v5590 = vadd.f32 %v5558, 1.0
        %v5591 = vadd.f32 %v5559, 1.0
        %v5592 = vadd.f32 %v5560, 1.0
        %v5593 = vadd.f32 %v5561, 1.0
        %v5594 = vadd.f32 %v5562, 1.0
        %v5595 = vadd.f32 %v5563, 1.0
        %v5596 = vadd.f32 %v5564, 1.0
        %v5597 = vadd.f32 %v5565, 1.0
        %v5598 = vadd.f32 %v5566, 1.0
        %v5599 = vadd.f32 %v5567, 1.0
        %v5600 = vadd.f32 %v5568, 1.0
        %v5601 = vadd.f32 %v5569, 1.0
        %v5602 = vadd.f32 %v5570, 1.0
        %v5603 = vadd.f32 %v5571, 1.0
        %v5604 = vadd.f32 %v5572, 1.0
        %v5605 = vadd.f32 %v5573, 1.0
        %v5606 = vadd.f32 %v5574, 1.0
        %v5607 = vadd.f32 %v5575, 1.0
        %v5608 = vadd.f32 %v5576, 1.0
        %v5609 = vadd.f32 %v5577, 1.0
        %v5610 = vadd.f32 %v5578, 1.0
        %v5611 = vadd.f32 %v5579, 1.0
        %v5612 = vadd.f32 %v5580, 1.0
        %v5613 = vadd.f32 %v5581, 1.0
        %v5614 = vadd.f32 %v5582, 1.0
        %v5615 = vadd.f32 %v5583, 1.0
        %v5616 = vadd.f32 %v5584, 1.0
        %v5617 = vadd.f32 %v5585, 1.0
        %v5618 = vadd.f32 %v5586, 1.0
        %v5619 = vmul.f32 %v5587, 0.5
        %v5620 = vmul.f32 %v5588, 0.5
        %v5621 = vmul.f32 %v5589, 0.5
        %v5622 = vmul.f32 %v5590, 0.5
        %v5623 = vmul.f32 %v5591, 0.5
        %v5624 = vmul.f32 %v5592, 0.5
        %v5625 = vmul.f32 %v5593, 0.5
        %v5626 = vmul.f32 %v5594, 0.5
        %v5627 = vmul.f32 %v5595, 0.5
        %v5628 = vmul.f32 %v5596, 0.5
        %v5629 = vmul.f32 %v5597, 0.5
        %v5630 = vmul.f32 %v5598, 0.5
        %v5631 = vmul.f32 %v5599, 0.5
        %v5632 = vmul.f32 %v5600, 0.5
        %v5633 = vmul.f32 %v5601, 0.5
        %v5634 = vmul.f32 %v5602, 0.5
        %v5635 = vmul.f32 %v5603, 0.5
        %v5636 = vmul.f32 %v5604, 0.5
        %v5637 = vmul.f32 %v5605, 0.5
        %v5638 = vmul.f32 %v5606, 0.5
        %v5639 = vmul.f32 %v5607, 0.5
        %v5640 = vmul.f32 %v5608, 0.5
        %v5641 = vmul.f32 %v5609, 0.5
        %v5642 = vmul.f32 %v5610, 0.5
        %v5643 = vmul.f32 %v5611, 0.5
        %v5644 = vmul.f32 %v5612, 0.5
        %v5645 = vmul.f32 %v5613, 0.5
        %v5646 = vmul.f32 %v5614, 0.5
        %v5647 = vmul.f32 %v5615, 0.5
        %v5648 = vmul.f32 %v5616, 0.5
        %v5649 = vmul.f32 %v5617, 0.5
        %v5650 = vmul.f32 %v5618, 0.5
        %v5651 = vmul.f32 %v5307, %v5619
        %v5652 = vmul.f32 %v5356, %v5620
        %v5653 = vmul.f32 %v5309, %v5621
        %v5654 = vmul.f32 %v5358, %v5622
        %v5655 = vmul.f32 %v5312, %v5623
        %v5656 = vmul.f32 %v5361, %v5624
        %v5657 = vmul.f32 %v5314, %v5625
        %v5658 = vmul.f32 %v5363, %v5626
        %v5659 = vmul.f32 %v5317, %v5627
        %v5660 = vmul.f32 %v5366, %v5628
        %v5661 = vmul.f32 %v5319, %v5629
        %v5662 = vmul.f32 %v5368, %v5630
        %v5663 = vmul.f32 %v5322, %v5631
        %v5664 = vmul.f32 %v5371, %v5632
        %v5665 = vmul.f32 %v5324, %v5633
        %v5666 = vmul.f32 %v5373, %v5634
        %v5667 = vmul.f32 %v5327, %v5635
        %v5668 = vmul.f32 %v5376, %v5636
        %v5669 = vmul.f32 %v5329, %v5637
        %v5670 = vmul.f32 %v5378, %v5638
        %v5671 = vmul.f32 %v5332, %v5639
        %v5672 = vmul.f32 %v5381, %v5640
        %v5673 = vmul.f32 %v5334, %v5641
        %v5674 = vmul.f32 %v5383, %v5642
        %v5675 = vmul.f32 %v5337, %v5643
        %v5676 = vmul.f32 %v5386, %v5644
        %v5677 = vmul.f32 %v5339, %v5645
        %v5678 = vmul.f32 %v5388, %v5646
        %v5679 = vmul.f32 %v5342, %v5647
        %v5680 = vmul.f32 %v5391, %v5648
        %v5681 = vmul.f32 %v5344, %v5649
        %v5682 = vmul.f32 %v5393, %v5650
        %v5683 = vpack.c.bf16 %v5653, %v5651
        %v5684 = vpack.c.bf16 %v5654, %v5652
        %v5685 = vpack.c.bf16 %v5657, %v5655
        %v5686 = vpack.c.bf16 %v5658, %v5656
        %v5687 = vpack.c.bf16 %v5661, %v5659
        %v5688 = vpack.c.bf16 %v5662, %v5660
        %v5689 = vpack.c.bf16 %v5665, %v5663
        %v5690 = vpack.c.bf16 %v5666, %v5664
        %v5691 = vpack.c.bf16 %v5669, %v5667
        %v5692 = vpack.c.bf16 %v5670, %v5668
        %v5693 = vpack.c.bf16 %v5673, %v5671
        %v5694 = vpack.c.bf16 %v5674, %v5672
        %v5695 = vpack.c.bf16 %v5677, %v5675
        %v5696 = vpack.c.bf16 %v5678, %v5676
        %v5697 = vpack.c.bf16 %v5681, %v5679
        %v5698 = vpack.c.bf16 %v5682, %v5680
        %v5699 = vld [vmem:[%s12] sm:$0xf]
        %v5700 = vld [vmem:[%s12 + $0x4] sm:$0xf]
        %v5701 = vld [vmem:[%s12 + $0x8] sm:$0xf]
        %v5702 = vld [vmem:[%s12 + $0xc] sm:$0xf]
        %v5703 = vld [vmem:[%s12 + $0x10] sm:$0xf]
        %v5704 = vld [vmem:[%s12 + $0x14] sm:$0xf]
        %v5705 = vld [vmem:[%s12 + $0x18] sm:$0xf]
        %v5706 = vld [vmem:[%s12 + $0x1c] sm:$0xf]
        %v5707 = vld [vmem:[%s12 + $0x20] sm:$0xf]
        %v5708 = vld [vmem:[%s12 + $0x24] sm:$0xf]
        %v5709 = vld [vmem:[%s12 + $0x28] sm:$0xf]
        %v5710 = vld [vmem:[%s12 + $0x2c] sm:$0xf]
        %v5711 = vld [vmem:[%s12 + $0x30] sm:$0xf]
        %v5712 = vld [vmem:[%s12 + $0x34] sm:$0xf]
        %v5713 = vld [vmem:[%s12 + $0x38] sm:$0xf]
        %v5714 = vld [vmem:[%s12 + $0x3c] sm:$0xf]
        %v5715 = vld [vmem:[%s12 + $0x40] sm:$0xf]
        %v5716 = vld [vmem:[%s12 + $0x44] sm:$0xf]
        %v5717 = vld [vmem:[%s12 + $0x48] sm:$0xf]
        %v5718 = vld [vmem:[%s12 + $0x4c] sm:$0xf]
        %v5719 = vld [vmem:[%s12 + $0x50] sm:$0xf]
        %v5720 = vld [vmem:[%s12 + $0x54] sm:$0xf]
        %v5721 = vld [vmem:[%s12 + $0x58] sm:$0xf]
        %v5722 = vld [vmem:[%s12 + $0x5c] sm:$0xf]
        %v5723 = vld [vmem:[%s12 + $0x60] sm:$0xf]
        %v5724 = vld [vmem:[%s12 + $0x64] sm:$0xf]
        %v5725 = vld [vmem:[%s12 + $0x68] sm:$0xf]
        %v5726 = vld [vmem:[%s12 + $0x6c] sm:$0xf]
        %v5727 = vld [vmem:[%s12 + $0x70] sm:$0xf]
        %v5728 = vld [vmem:[%s12 + $0x74] sm:$0xf]
        %v5729 = vld [vmem:[%s12 + $0x78] sm:$0xf]
        %v5730 = vld [vmem:[%s12 + $0x7c] sm:$0xf]
        %v5731 = vld [vmem:[%s13] sm:$0x1]
        %v5733 = vperm.slane %v5731, 0
        %v5767 = vunpack.c.l.b16 %v5699
        %v5768 = vunpack.c.l.b16 %v5700
        %v5769 = vunpack.c.l.b16 %v5701
        %v5770 = vunpack.c.l.b16 %v5702
        %v5771 = vunpack.c.l.b16 %v5703
        %v5772 = vunpack.c.l.b16 %v5704
        %v5773 = vunpack.c.l.b16 %v5705
        %v5774 = vunpack.c.l.b16 %v5706
        %v5775 = vunpack.c.l.b16 %v5707
        %v5776 = vunpack.c.l.b16 %v5708
        %v5777 = vunpack.c.l.b16 %v5709
        %v5778 = vunpack.c.l.b16 %v5710
        %v5779 = vunpack.c.l.b16 %v5711
        %v5780 = vunpack.c.l.b16 %v5712
        %v5781 = vunpack.c.l.b16 %v5713
        %v5782 = vunpack.c.l.b16 %v5714
        %v5783 = vunpack.c.l.b16 %v5715
        %v5784 = vunpack.c.l.b16 %v5716
        %v5785 = vunpack.c.l.b16 %v5717
        %v5786 = vunpack.c.l.b16 %v5718
        %v5787 = vunpack.c.l.b16 %v5719
        %v5788 = vunpack.c.l.b16 %v5720
        %v5789 = vunpack.c.l.b16 %v5721
        %v5790 = vunpack.c.l.b16 %v5722
        %v5791 = vunpack.c.l.b16 %v5723
        %v5792 = vunpack.c.l.b16 %v5724
        %v5793 = vunpack.c.l.b16 %v5725
        %v5794 = vunpack.c.l.b16 %v5726
        %v5795 = vunpack.c.l.b16 %v5727
        %v5796 = vunpack.c.l.b16 %v5728
        %v5797 = vunpack.c.l.b16 %v5729
        %v5798 = vunpack.c.l.b16 %v5730
        %v5799 = vpack.c.b16 %v5768, %v5767
        %v5800 = vpack.c.b16 %v5770, %v5769
        %v5801 = vpack.c.b16 %v5772, %v5771
        %v5802 = vpack.c.b16 %v5774, %v5773
        %v5803 = vpack.c.b16 %v5776, %v5775
        %v5804 = vpack.c.b16 %v5778, %v5777
        %v5805 = vpack.c.b16 %v5780, %v5779
        %v5806 = vpack.c.b16 %v5782, %v5781
        %v5807 = vpack.c.b16 %v5784, %v5783
        %v5808 = vpack.c.b16 %v5786, %v5785
        %v5809 = vpack.c.b16 %v5788, %v5787
        %v5810 = vpack.c.b16 %v5790, %v5789
        %v5811 = vpack.c.b16 %v5792, %v5791
        %v5812 = vpack.c.b16 %v5794, %v5793
        %v5813 = vpack.c.b16 %v5796, %v5795
        %v5814 = vpack.c.b16 %v5798, %v5797
        %5831 = vmatpush.bf16.msra.mxu0 %v5806
        %5832 = vmatpush.bf16.msra.mxu0 %v5805
        %5833 = vmatpush.bf16.msra.mxu0 %v5804
        %5834 = vmatpush.bf16.msra.mxu0 %v5803
        %5835 = vmatpush.bf16.msra.mxu0 %v5802
        %5836 = vmatpush.bf16.msra.mxu0 %v5801
        %5837 = vmatpush.bf16.msra.mxu0 %v5800
        %5838 = vmatpush.bf16.msra.mxu0 %v5799
        %5839 = vmatmul.bf16.gmra.mxu0 %v5683
        %v5840 = vpop.f32.mrf.mxu0
        %v5841 = vadd.f32 %v5733, %v5840
        %v5842 = vpop.f32.mrf.mxu0
        %v5843 = vadd.f32 %v5733, %v5842
        %5844 = vmatmul.bf16.gmra.mxu0 %v5685
        %v5845 = vpop.f32.mrf.mxu0
        %v5846 = vadd.f32 %v5733, %v5845
        %v5847 = vpop.f32.mrf.mxu0
        %v5848 = vadd.f32 %v5733, %v5847
        %5849 = vmatmul.bf16.gmra.mxu0 %v5687
        %v5850 = vpop.f32.mrf.mxu0
        %v5851 = vadd.f32 %v5733, %v5850
        %v5852 = vpop.f32.mrf.mxu0
        %v5853 = vadd.f32 %v5733, %v5852
        %5854 = vmatmul.bf16.gmra.mxu0 %v5689
        %v5855 = vpop.f32.mrf.mxu0
        %v5856 = vadd.f32 %v5733, %v5855
        %v5857 = vpop.f32.mrf.mxu0
        %v5858 = vadd.f32 %v5733, %v5857
        %5859 = vmatmul.bf16.gmra.mxu0 %v5691
        %v5860 = vpop.f32.mrf.mxu0
        %v5861 = vadd.f32 %v5733, %v5860
        %v5862 = vpop.f32.mrf.mxu0
        %v5863 = vadd.f32 %v5733, %v5862
        %5864 = vmatmul.bf16.gmra.mxu0 %v5693
        %v5865 = vpop.f32.mrf.mxu0
        %v5866 = vadd.f32 %v5733, %v5865
        %v5867 = vpop.f32.mrf.mxu0
        %v5868 = vadd.f32 %v5733, %v5867
        %5869 = vmatmul.bf16.gmra.mxu0 %v5695
        %v5870 = vpop.f32.mrf.mxu0
        %v5871 = vadd.f32 %v5733, %v5870
        %v5872 = vpop.f32.mrf.mxu0
        %v5873 = vadd.f32 %v5733, %v5872
        %5874 = vmatmul.bf16.gmra.mxu0 %v5697
        %v5875 = vpop.f32.mrf.mxu0
        %v5876 = vadd.f32 %v5733, %v5875
        %v5877 = vpop.f32.mrf.mxu0
        %v5878 = vadd.f32 %v5733, %v5877
        %5879 = vdwg.mxu0
        %5880 = vmatpush.bf16.msra.mxu0 %v5814
        %5881 = vmatpush.bf16.msra.mxu0 %v5813
        %5882 = vmatpush.bf16.msra.mxu0 %v5812
        %5883 = vmatpush.bf16.msra.mxu0 %v5811
        %5884 = vmatpush.bf16.msra.mxu0 %v5810
        %5885 = vmatpush.bf16.msra.mxu0 %v5809
        %5886 = vmatpush.bf16.msra.mxu0 %v5808
        %5887 = vmatpush.bf16.msra.mxu0 %v5807
        %5888 = vmatmul.bf16.gmra.mxu0 %v5684
        %v5889 = vpop.f32.mrf.mxu0
        %v5890 = vadd.f32 %v5841, %v5889
        %v5891 = vpop.f32.mrf.mxu0
        %v5892 = vadd.f32 %v5843, %v5891
        %5893 = vmatmul.bf16.gmra.mxu0 %v5686
        %v5894 = vpop.f32.mrf.mxu0
        %v5895 = vadd.f32 %v5846, %v5894
        %v5896 = vpop.f32.mrf.mxu0
        %v5897 = vadd.f32 %v5848, %v5896
        %5898 = vmatmul.bf16.gmra.mxu0 %v5688
        %v5899 = vpop.f32.mrf.mxu0
        %v5900 = vadd.f32 %v5851, %v5899
        %v5901 = vpop.f32.mrf.mxu0
        %v5902 = vadd.f32 %v5853, %v5901
        %5903 = vmatmul.bf16.gmra.mxu0 %v5690
        %v5904 = vpop.f32.mrf.mxu0
        %v5905 = vadd.f32 %v5856, %v5904
        %v5906 = vpop.f32.mrf.mxu0
        %v5907 = vadd.f32 %v5858, %v5906
        %5908 = vmatmul.bf16.gmra.mxu0 %v5692
        %v5909 = vpop.f32.mrf.mxu0
        %v5910 = vadd.f32 %v5861, %v5909
        %v5911 = vpop.f32.mrf.mxu0
        %v5912 = vadd.f32 %v5863, %v5911
        %5913 = vmatmul.bf16.gmra.mxu0 %v5694
        %v5914 = vpop.f32.mrf.mxu0
        %v5915 = vadd.f32 %v5866, %v5914
        %v5916 = vpop.f32.mrf.mxu0
        %v5917 = vadd.f32 %v5868, %v5916
        %5918 = vmatmul.bf16.gmra.mxu0 %v5696
        %v5919 = vpop.f32.mrf.mxu0
        %v5920 = vadd.f32 %v5871, %v5919
        %v5921 = vpop.f32.mrf.mxu0
        %v5922 = vadd.f32 %v5873, %v5921
        %5923 = vmatmul.bf16.gmra.mxu0 %v5698
        %v5924 = vpop.f32.mrf.mxu0
        %v5925 = vadd.f32 %v5876, %v5924
        %v5926 = vpop.f32.mrf.mxu0
        %v5927 = vadd.f32 %v5878, %v5926
        %5928 = vdwg.mxu0
        %v5929 = vadd.f32 %v4811, %v5890
        %v5930 = vadd.f32 %v4812, %v5892
        %v5931 = vadd.f32 %v4813, %v5895
        %v5932 = vadd.f32 %v4814, %v5897
        %v5933 = vadd.f32 %v4815, %v5900
        %v5934 = vadd.f32 %v4816, %v5902
        %v5935 = vadd.f32 %v4817, %v5905
        %v5936 = vadd.f32 %v4818, %v5907
        %v5937 = vadd.f32 %v4819, %v5910
        %v5938 = vadd.f32 %v4820, %v5912
        %v5939 = vadd.f32 %v4821, %v5915
        %v5940 = vadd.f32 %v4822, %v5917
        %v5941 = vadd.f32 %v4823, %v5920
        %v5942 = vadd.f32 %v4824, %v5922
        %v5943 = vadd.f32 %v4825, %v5925
        %v5944 = vadd.f32 %v4826, %v5927
        %v5945 = vld [vmem:[%s14] sm:$0x1]
        %v5946 = vld [vmem:[%s15] sm:$0x1]
        %5947 = vadd.xlane.f32.xlu0 %v5929
        %v5948 = vpop.xlane.xlu0 %5947
        %5949 = vadd.xlane.f32.xlu0 %v5930
        %v5950 = vpop.xlane.xlu0 %5949
        %5951 = vadd.xlane.f32.xlu0 %v5931
        %v5952 = vpop.xlane.xlu0 %5951
        %5953 = vadd.xlane.f32.xlu0 %v5932
        %v5954 = vpop.xlane.xlu0 %5953
        %5955 = vadd.xlane.f32.xlu0 %v5933
        %v5956 = vpop.xlane.xlu0 %5955
        %5957 = vadd.xlane.f32.xlu0 %v5934
        %v5958 = vpop.xlane.xlu0 %5957
        %5959 = vadd.xlane.f32.xlu0 %v5935
        %v5960 = vpop.xlane.xlu0 %5959
        %5961 = vadd.xlane.f32.xlu0 %v5936
        %v5962 = vpop.xlane.xlu0 %5961
        %5963 = vadd.xlane.f32.xlu0 %v5937
        %v5964 = vpop.xlane.xlu0 %5963
        %5965 = vadd.xlane.f32.xlu0 %v5938
        %v5966 = vpop.xlane.xlu0 %5965
        %5967 = vadd.xlane.f32.xlu0 %v5939
        %v5968 = vpop.xlane.xlu0 %5967
        %5969 = vadd.xlane.f32.xlu0 %v5940
        %v5970 = vpop.xlane.xlu0 %5969
        %5971 = vadd.xlane.f32.xlu0 %v5941
        %v5972 = vpop.xlane.xlu0 %5971
        %5973 = vadd.xlane.f32.xlu0 %v5942
        %v5974 = vpop.xlane.xlu0 %5973
        %5975 = vadd.xlane.f32.xlu0 %v5943
        %v5976 = vpop.xlane.xlu0 %5975
        %5977 = vadd.xlane.f32.xlu0 %v5944
        %v5978 = vpop.xlane.xlu0 %5977
        %v5979 = vmul.f32 %v5948, %v757
        %v5980 = vmul.f32 %v5950, %v757
        %v5981 = vmul.f32 %v5952, %v757
        %v5982 = vmul.f32 %v5954, %v757
        %v5983 = vmul.f32 %v5956, %v757
        %v5984 = vmul.f32 %v5958, %v757
        %v5985 = vmul.f32 %v5960, %v757
        %v5986 = vmul.f32 %v5962, %v757
        %v5987 = vmul.f32 %v5964, %v757
        %v5988 = vmul.f32 %v5966, %v757
        %v5989 = vmul.f32 %v5968, %v757
        %v5990 = vmul.f32 %v5970, %v757
        %v5991 = vmul.f32 %v5972, %v757
        %v5992 = vmul.f32 %v5974, %v757
        %v5993 = vmul.f32 %v5976, %v757
        %v5994 = vmul.f32 %v5978, %v757
        %v5995 = vsub.f32 %v5929, %v5979
        %v5996 = vsub.f32 %v5930, %v5980
        %v5997 = vsub.f32 %v5931, %v5981
        %v5998 = vsub.f32 %v5932, %v5982
        %v5999 = vsub.f32 %v5933, %v5983
        %v6000 = vsub.f32 %v5934, %v5984
        %v6001 = vsub.f32 %v5935, %v5985
        %v6002 = vsub.f32 %v5936, %v5986
        %v6003 = vsub.f32 %v5937, %v5987
        %v6004 = vsub.f32 %v5938, %v5988
        %v6005 = vsub.f32 %v5939, %v5989
        %v6006 = vsub.f32 %v5940, %v5990
        %v6007 = vsub.f32 %v5941, %v5991
        %v6008 = vsub.f32 %v5942, %v5992
        %v6009 = vsub.f32 %v5943, %v5993
        %v6010 = vsub.f32 %v5944, %v5994
        %v6011 = vmul.f32 %v5995, %v5995
        %v6012 = vmul.f32 %v5996, %v5996
        %v6013 = vmul.f32 %v5997, %v5997
        %v6014 = vmul.f32 %v5998, %v5998
        %v6015 = vmul.f32 %v5999, %v5999
        %v6016 = vmul.f32 %v6000, %v6000
        %v6017 = vmul.f32 %v6001, %v6001
        %v6018 = vmul.f32 %v6002, %v6002
        %v6019 = vmul.f32 %v6003, %v6003
        %v6020 = vmul.f32 %v6004, %v6004
        %v6021 = vmul.f32 %v6005, %v6005
        %v6022 = vmul.f32 %v6006, %v6006
        %v6023 = vmul.f32 %v6007, %v6007
        %v6024 = vmul.f32 %v6008, %v6008
        %v6025 = vmul.f32 %v6009, %v6009
        %v6026 = vmul.f32 %v6010, %v6010
        %6027 = vadd.xlane.f32.xlu0 %v6011
        %v6028 = vpop.xlane.xlu0 %6027
        %6029 = vadd.xlane.f32.xlu0 %v6012
        %v6030 = vpop.xlane.xlu0 %6029
        %6031 = vadd.xlane.f32.xlu0 %v6013
        %v6032 = vpop.xlane.xlu0 %6031
        %6033 = vadd.xlane.f32.xlu0 %v6014
        %v6034 = vpop.xlane.xlu0 %6033
        %6035 = vadd.xlane.f32.xlu0 %v6015
        %v6036 = vpop.xlane.xlu0 %6035
        %6037 = vadd.xlane.f32.xlu0 %v6016
        %v6038 = vpop.xlane.xlu0 %6037
        %6039 = vadd.xlane.f32.xlu0 %v6017
        %v6040 = vpop.xlane.xlu0 %6039
        %6041 = vadd.xlane.f32.xlu0 %v6018
        %v6042 = vpop.xlane.xlu0 %6041
        %6043 = vadd.xlane.f32.xlu0 %v6019
        %v6044 = vpop.xlane.xlu0 %6043
        %6045 = vadd.xlane.f32.xlu0 %v6020
        %v6046 = vpop.xlane.xlu0 %6045
        %6047 = vadd.xlane.f32.xlu0 %v6021
        %v6048 = vpop.xlane.xlu0 %6047
        %6049 = vadd.xlane.f32.xlu0 %v6022
        %v6050 = vpop.xlane.xlu0 %6049
        %6051 = vadd.xlane.f32.xlu0 %v6023
        %v6052 = vpop.xlane.xlu0 %6051
        %6053 = vadd.xlane.f32.xlu0 %v6024
        %v6054 = vpop.xlane.xlu0 %6053
        %6055 = vadd.xlane.f32.xlu0 %v6025
        %v6056 = vpop.xlane.xlu0 %6055
        %6057 = vadd.xlane.f32.xlu0 %v6026
        %v6058 = vpop.xlane.xlu0 %6057
        %v6059 = vmul.f32 %v6028, %v757
        %v6060 = vmul.f32 %v6030, %v757
        %v6061 = vmul.f32 %v6032, %v757
        %v6062 = vmul.f32 %v6034, %v757
        %v6063 = vmul.f32 %v6036, %v757
        %v6064 = vmul.f32 %v6038, %v757
        %v6065 = vmul.f32 %v6040, %v757
        %v6066 = vmul.f32 %v6042, %v757
        %v6067 = vmul.f32 %v6044, %v757
        %v6068 = vmul.f32 %v6046, %v757
        %v6069 = vmul.f32 %v6048, %v757
        %v6070 = vmul.f32 %v6050, %v757
        %v6071 = vmul.f32 %v6052, %v757
        %v6072 = vmul.f32 %v6054, %v757
        %v6073 = vmul.f32 %v6056, %v757
        %v6074 = vmul.f32 %v6058, %v757
        %v6075 = vadd.f32 %v6059, 1e-05
        %v6076 = vadd.f32 %v6060, 1e-05
        %v6077 = vadd.f32 %v6061, 1e-05
        %v6078 = vadd.f32 %v6062, 1e-05
        %v6079 = vadd.f32 %v6063, 1e-05
        %v6080 = vadd.f32 %v6064, 1e-05
        %v6081 = vadd.f32 %v6065, 1e-05
        %v6082 = vadd.f32 %v6066, 1e-05
        %v6083 = vadd.f32 %v6067, 1e-05
        %v6084 = vadd.f32 %v6068, 1e-05
        %v6085 = vadd.f32 %v6069, 1e-05
        %v6086 = vadd.f32 %v6070, 1e-05
        %v6087 = vadd.f32 %v6071, 1e-05
        %v6088 = vadd.f32 %v6072, 1e-05
        %v6089 = vadd.f32 %v6073, 1e-05
        %v6090 = vadd.f32 %v6074, 1e-05
        %v6091 = vrsqrt.pop %v6075
        %v6092 = vmul.f32 %v6091, %v6075
        %v6093 = vmul.f32 %v6092, %v6091
        %v6094 = vmul.f32 0.5, %v6093
        %v6095 = vsub.f32 1.5, %v6094
        %v6096 = vmul.f32 %v6091, %v6095
        %vm6097 = vweird.f32 %v6075
        %vm6098 = vweird.f32 %v6091
        %vm6099 = vmor %vm6097, %vm6098
        %v6100 = vsel %vm6099, %v6091, %v6096
        %v6101 = vrsqrt.pop %v6076
        %v6102 = vmul.f32 %v6101, %v6076
        %v6103 = vmul.f32 %v6102, %v6101
        %v6104 = vmul.f32 0.5, %v6103
        %v6105 = vsub.f32 1.5, %v6104
        %v6106 = vmul.f32 %v6101, %v6105
        %vm6107 = vweird.f32 %v6076
        %vm6108 = vweird.f32 %v6101
        %vm6109 = vmor %vm6107, %vm6108
        %v6110 = vsel %vm6109, %v6101, %v6106
        %v6111 = vrsqrt.pop %v6077
        %v6112 = vmul.f32 %v6111, %v6077
        %v6113 = vmul.f32 %v6112, %v6111
        %v6114 = vmul.f32 0.5, %v6113
        %v6115 = vsub.f32 1.5, %v6114
        %v6116 = vmul.f32 %v6111, %v6115
        %vm6117 = vweird.f32 %v6077
        %vm6118 = vweird.f32 %v6111
        %vm6119 = vmor %vm6117, %vm6118
        %v6120 = vsel %vm6119, %v6111, %v6116
        %v6121 = vrsqrt.pop %v6078
        %v6122 = vmul.f32 %v6121, %v6078
        %v6123 = vmul.f32 %v6122, %v6121
        %v6124 = vmul.f32 0.5, %v6123
        %v6125 = vsub.f32 1.5, %v6124
        %v6126 = vmul.f32 %v6121, %v6125
        %vm6127 = vweird.f32 %v6078
        %vm6128 = vweird.f32 %v6121
        %vm6129 = vmor %vm6127, %vm6128
        %v6130 = vsel %vm6129, %v6121, %v6126
        %v6131 = vrsqrt.pop %v6079
        %v6132 = vmul.f32 %v6131, %v6079
        %v6133 = vmul.f32 %v6132, %v6131
        %v6134 = vmul.f32 0.5, %v6133
        %v6135 = vsub.f32 1.5, %v6134
        %v6136 = vmul.f32 %v6131, %v6135
        %vm6137 = vweird.f32 %v6079
        %vm6138 = vweird.f32 %v6131
        %vm6139 = vmor %vm6137, %vm6138
        %v6140 = vsel %vm6139, %v6131, %v6136
        %v6141 = vrsqrt.pop %v6080
        %v6142 = vmul.f32 %v6141, %v6080
        %v6143 = vmul.f32 %v6142, %v6141
        %v6144 = vmul.f32 0.5, %v6143
        %v6145 = vsub.f32 1.5, %v6144
        %v6146 = vmul.f32 %v6141, %v6145
        %vm6147 = vweird.f32 %v6080
        %vm6148 = vweird.f32 %v6141
        %vm6149 = vmor %vm6147, %vm6148
        %v6150 = vsel %vm6149, %v6141, %v6146
        %v6151 = vrsqrt.pop %v6081
        %v6152 = vmul.f32 %v6151, %v6081
        %v6153 = vmul.f32 %v6152, %v6151
        %v6154 = vmul.f32 0.5, %v6153
        %v6155 = vsub.f32 1.5, %v6154
        %v6156 = vmul.f32 %v6151, %v6155
        %vm6157 = vweird.f32 %v6081
        %vm6158 = vweird.f32 %v6151
        %vm6159 = vmor %vm6157, %vm6158
        %v6160 = vsel %vm6159, %v6151, %v6156
        %v6161 = vrsqrt.pop %v6082
        %v6162 = vmul.f32 %v6161, %v6082
        %v6163 = vmul.f32 %v6162, %v6161
        %v6164 = vmul.f32 0.5, %v6163
        %v6165 = vsub.f32 1.5, %v6164
        %v6166 = vmul.f32 %v6161, %v6165
        %vm6167 = vweird.f32 %v6082
        %vm6168 = vweird.f32 %v6161
        %vm6169 = vmor %vm6167, %vm6168
        %v6170 = vsel %vm6169, %v6161, %v6166
        %v6171 = vrsqrt.pop %v6083
        %v6172 = vmul.f32 %v6171, %v6083
        %v6173 = vmul.f32 %v6172, %v6171
        %v6174 = vmul.f32 0.5, %v6173
        %v6175 = vsub.f32 1.5, %v6174
        %v6176 = vmul.f32 %v6171, %v6175
        %vm6177 = vweird.f32 %v6083
        %vm6178 = vweird.f32 %v6171
        %vm6179 = vmor %vm6177, %vm6178
        %v6180 = vsel %vm6179, %v6171, %v6176
        %v6181 = vrsqrt.pop %v6084
        %v6182 = vmul.f32 %v6181, %v6084
        %v6183 = vmul.f32 %v6182, %v6181
        %v6184 = vmul.f32 0.5, %v6183
        %v6185 = vsub.f32 1.5, %v6184
        %v6186 = vmul.f32 %v6181, %v6185
        %vm6187 = vweird.f32 %v6084
        %vm6188 = vweird.f32 %v6181
        %vm6189 = vmor %vm6187, %vm6188
        %v6190 = vsel %vm6189, %v6181, %v6186
        %v6191 = vrsqrt.pop %v6085
        %v6192 = vmul.f32 %v6191, %v6085
        %v6193 = vmul.f32 %v6192, %v6191
        %v6194 = vmul.f32 0.5, %v6193
        %v6195 = vsub.f32 1.5, %v6194
        %v6196 = vmul.f32 %v6191, %v6195
        %vm6197 = vweird.f32 %v6085
        %vm6198 = vweird.f32 %v6191
        %vm6199 = vmor %vm6197, %vm6198
        %v6200 = vsel %vm6199, %v6191, %v6196
        %v6201 = vrsqrt.pop %v6086
        %v6202 = vmul.f32 %v6201, %v6086
        %v6203 = vmul.f32 %v6202, %v6201
        %v6204 = vmul.f32 0.5, %v6203
        %v6205 = vsub.f32 1.5, %v6204
        %v6206 = vmul.f32 %v6201, %v6205
        %vm6207 = vweird.f32 %v6086
        %vm6208 = vweird.f32 %v6201
        %vm6209 = vmor %vm6207, %vm6208
        %v6210 = vsel %vm6209, %v6201, %v6206
        %v6211 = vrsqrt.pop %v6087
        %v6212 = vmul.f32 %v6211, %v6087
        %v6213 = vmul.f32 %v6212, %v6211
        %v6214 = vmul.f32 0.5, %v6213
        %v6215 = vsub.f32 1.5, %v6214
        %v6216 = vmul.f32 %v6211, %v6215
        %vm6217 = vweird.f32 %v6087
        %vm6218 = vweird.f32 %v6211
        %vm6219 = vmor %vm6217, %vm6218
        %v6220 = vsel %vm6219, %v6211, %v6216
        %v6221 = vrsqrt.pop %v6088
        %v6222 = vmul.f32 %v6221, %v6088
        %v6223 = vmul.f32 %v6222, %v6221
        %v6224 = vmul.f32 0.5, %v6223
        %v6225 = vsub.f32 1.5, %v6224
        %v6226 = vmul.f32 %v6221, %v6225
        %vm6227 = vweird.f32 %v6088
        %vm6228 = vweird.f32 %v6221
        %vm6229 = vmor %vm6227, %vm6228
        %v6230 = vsel %vm6229, %v6221, %v6226
        %v6231 = vrsqrt.pop %v6089
        %v6232 = vmul.f32 %v6231, %v6089
        %v6233 = vmul.f32 %v6232, %v6231
        %v6234 = vmul.f32 0.5, %v6233
        %v6235 = vsub.f32 1.5, %v6234
        %v6236 = vmul.f32 %v6231, %v6235
        %vm6237 = vweird.f32 %v6089
        %vm6238 = vweird.f32 %v6231
        %vm6239 = vmor %vm6237, %vm6238
        %v6240 = vsel %vm6239, %v6231, %v6236
        %v6241 = vrsqrt.pop %v6090
        %v6242 = vmul.f32 %v6241, %v6090
        %v6243 = vmul.f32 %v6242, %v6241
        %v6244 = vmul.f32 0.5, %v6243
        %v6245 = vsub.f32 1.5, %v6244
        %v6246 = vmul.f32 %v6241, %v6245
        %vm6247 = vweird.f32 %v6090
        %vm6248 = vweird.f32 %v6241
        %vm6249 = vmor %vm6247, %vm6248
        %v6250 = vsel %vm6249, %v6241, %v6246
        %v6251 = vmul.f32 %v5995, %v6100
        %v6252 = vmul.f32 %v5996, %v6110
        %v6253 = vmul.f32 %v5997, %v6120
        %v6254 = vmul.f32 %v5998, %v6130
        %v6255 = vmul.f32 %v5999, %v6140
        %v6256 = vmul.f32 %v6000, %v6150
        %v6257 = vmul.f32 %v6001, %v6160
        %v6258 = vmul.f32 %v6002, %v6170
        %v6259 = vmul.f32 %v6003, %v6180
        %v6260 = vmul.f32 %v6004, %v6190
        %v6261 = vmul.f32 %v6005, %v6200
        %v6262 = vmul.f32 %v6006, %v6210
        %v6263 = vmul.f32 %v6007, %v6220
        %v6264 = vmul.f32 %v6008, %v6230
        %v6265 = vmul.f32 %v6009, %v6240
        %v6266 = vmul.f32 %v6010, %v6250
        %v6268 = vperm.slane %v5945, 0
        %v6270 = vmul.f32 %v6251, %v6268
        %v6271 = vmul.f32 %v6252, %v6268
        %v6272 = vmul.f32 %v6253, %v6268
        %v6273 = vmul.f32 %v6254, %v6268
        %v6274 = vmul.f32 %v6255, %v6268
        %v6275 = vmul.f32 %v6256, %v6268
        %v6276 = vmul.f32 %v6257, %v6268
        %v6277 = vmul.f32 %v6258, %v6268
        %v6278 = vmul.f32 %v6259, %v6268
        %v6279 = vmul.f32 %v6260, %v6268
        %v6280 = vmul.f32 %v6261, %v6268
        %v6281 = vmul.f32 %v6262, %v6268
        %v6282 = vmul.f32 %v6263, %v6268
        %v6283 = vmul.f32 %v6264, %v6268
        %v6284 = vmul.f32 %v6265, %v6268
        %v6285 = vmul.f32 %v6266, %v6268
        %v6287 = vperm.slane %v5946, 0
        %v6289 = vadd.f32 %v6270, %v6287
        %v6290 = vadd.f32 %v6271, %v6287
        %v6291 = vadd.f32 %v6272, %v6287
        %v6292 = vadd.f32 %v6273, %v6287
        %v6293 = vadd.f32 %v6274, %v6287
        %v6294 = vadd.f32 %v6275, %v6287
        %v6295 = vadd.f32 %v6276, %v6287
        %v6296 = vadd.f32 %v6277, %v6287
        %v6297 = vadd.f32 %v6278, %v6287
        %v6298 = vadd.f32 %v6279, %v6287
        %v6299 = vadd.f32 %v6280, %v6287
        %v6300 = vadd.f32 %v6281, %v6287
        %v6301 = vadd.f32 %v6282, %v6287
        %v6302 = vadd.f32 %v6283, %v6287
        %v6303 = vadd.f32 %v6284, %v6287
        %v6304 = vadd.f32 %v6285, %v6287
        %v6305 = vadd.f32 %v6289, %v6290
        %v6306 = vrot.slane %v6305, 4
        %v6307 = vadd.f32 %v6305, %v6306
        %v6308 = vrot.slane %v6307, 2
        %v6309 = vadd.f32 %v6307, %v6308
        %v6310 = vrot.slane %v6309, 1
        %v6311 = vadd.f32 %v6309, %v6310
        %v6312 = vadd.f32 %v6291, %v6292
        %v6313 = vrot.slane %v6312, 4
        %v6314 = vadd.f32 %v6312, %v6313
        %v6315 = vrot.slane %v6314, 2
        %v6316 = vadd.f32 %v6314, %v6315
        %v6317 = vrot.slane %v6316, 1
        %v6318 = vadd.f32 %v6316, %v6317
        %v6319 = vadd.f32 %v6293, %v6294
        %v6320 = vrot.slane %v6319, 4
        %v6321 = vadd.f32 %v6319, %v6320
        %v6322 = vrot.slane %v6321, 2
        %v6323 = vadd.f32 %v6321, %v6322
        %v6324 = vrot.slane %v6323, 1
        %v6325 = vadd.f32 %v6323, %v6324
        %v6326 = vadd.f32 %v6295, %v6296
        %v6327 = vrot.slane %v6326, 4
        %v6328 = vadd.f32 %v6326, %v6327
        %v6329 = vrot.slane %v6328, 2
        %v6330 = vadd.f32 %v6328, %v6329
        %v6331 = vrot.slane %v6330, 1
        %v6332 = vadd.f32 %v6330, %v6331
        %v6333 = vadd.f32 %v6297, %v6298
        %v6334 = vrot.slane %v6333, 4
        %v6335 = vadd.f32 %v6333, %v6334
        %v6336 = vrot.slane %v6335, 2
        %v6337 = vadd.f32 %v6335, %v6336
        %v6338 = vrot.slane %v6337, 1
        %v6339 = vadd.f32 %v6337, %v6338
        %v6340 = vadd.f32 %v6299, %v6300
        %v6341 = vrot.slane %v6340, 4
        %v6342 = vadd.f32 %v6340, %v6341
        %v6343 = vrot.slane %v6342, 2
        %v6344 = vadd.f32 %v6342, %v6343
        %v6345 = vrot.slane %v6344, 1
        %v6346 = vadd.f32 %v6344, %v6345
        %v6347 = vadd.f32 %v6301, %v6302
        %v6348 = vrot.slane %v6347, 4
        %v6349 = vadd.f32 %v6347, %v6348
        %v6350 = vrot.slane %v6349, 2
        %v6351 = vadd.f32 %v6349, %v6350
        %v6352 = vrot.slane %v6351, 1
        %v6353 = vadd.f32 %v6351, %v6352
        %v6354 = vadd.f32 %v6303, %v6304
        %v6355 = vrot.slane %v6354, 4
        %v6356 = vadd.f32 %v6354, %v6355
        %v6357 = vrot.slane %v6356, 2
        %v6358 = vadd.f32 %v6356, %v6357
        %v6359 = vrot.slane %v6358, 1
        %v6360 = vadd.f32 %v6358, %v6359
        %v6361 = vrcp.pop 16.0
        %v6362 = vmul.f32 16.0, %v6361
        %v6363 = vsub.f32 1.0, %v6362
        %v6364 = vmul.f32 %v6361, %v6363
        %v6365 = vadd.f32 %v6361, %v6364
        %vm6366 = vweird.f32 %v6361
        %v6367 = vsel %vm6366, %v6361, %v6365
        %v6368 = vmul.f32 %v6311, %v6367
        %v6369 = vmul.f32 %v6318, %v6367
        %v6370 = vmul.f32 %v6325, %v6367
        %v6371 = vmul.f32 %v6332, %v6367
        %v6372 = vmul.f32 %v6339, %v6367
        %v6373 = vmul.f32 %v6346, %v6367
        %v6374 = vmul.f32 %v6353, %v6367
        %v6375 = vmul.f32 %v6360, %v6367
        %v6376 = vpack.c.bf16 %v6368, %v6368
        %v6377 = vpack.c.bf16 %v6369, %v6369
        %v6378 = vpack.c.bf16 %v6370, %v6370
        %v6379 = vpack.c.bf16 %v6371, %v6371
        %v6380 = vpack.c.bf16 %v6372, %v6372
        %v6381 = vpack.c.bf16 %v6373, %v6373
        %v6382 = vpack.c.bf16 %v6374, %v6374
        %v6383 = vpack.c.bf16 %v6375, %v6375
        %v6384 = vld [vmem:[%s16] sm:$0xf]
        %v6385 = vld [vmem:[%s16 + $0x4] sm:$0xf]
        %v6386 = vld [vmem:[%s16 + $0x8] sm:$0xf]
        %v6387 = vld [vmem:[%s16 + $0xc] sm:$0xf]
        %v6388 = vld [vmem:[%s16 + $0x10] sm:$0xf]
        %v6389 = vld [vmem:[%s16 + $0x14] sm:$0xf]
        %v6390 = vld [vmem:[%s16 + $0x18] sm:$0xf]
        %v6391 = vld [vmem:[%s16 + $0x1c] sm:$0xf]
        %v6392 = vld [vmem:[%s16 + $0x20] sm:$0xf]
        %v6393 = vld [vmem:[%s16 + $0x24] sm:$0xf]
        %v6394 = vld [vmem:[%s16 + $0x28] sm:$0xf]
        %v6395 = vld [vmem:[%s16 + $0x2c] sm:$0xf]
        %v6396 = vld [vmem:[%s16 + $0x30] sm:$0xf]
        %v6397 = vld [vmem:[%s16 + $0x34] sm:$0xf]
        %v6398 = vld [vmem:[%s16 + $0x38] sm:$0xf]
        %v6399 = vld [vmem:[%s16 + $0x3c] sm:$0xf]
        %v6400 = vld [vmem:[%s17] sm:$0x1]
        %v6402 = vperm.slane %v6400, 0
        %v6412 = vunpack.c.l.b16 %v6376
        %v6413 = vunpack.c.l.b16 %v6377
        %v6414 = vunpack.c.l.b16 %v6378
        %v6415 = vunpack.c.l.b16 %v6379
        %v6416 = vunpack.c.l.b16 %v6380
        %v6417 = vunpack.c.l.b16 %v6381
        %v6418 = vunpack.c.l.b16 %v6382
        %v6419 = vunpack.c.l.b16 %v6383
        %vm6420 = vcmask 1041409
        %v6421 = vsel %vm6420, %v6413, %v6412
        %vm6422 = vcmask 1042434
        %v6423 = vsel %vm6422, %v6414, %v6421
        %vm6424 = vcmask 1043459
        %v6425 = vsel %vm6424, %v6415, %v6423
        %vm6426 = vcmask 1044484
        %v6427 = vsel %vm6426, %v6416, %v6425
        %vm6428 = vcmask 1045509
        %v6429 = vsel %vm6428, %v6417, %v6427
        %vm6430 = vcmask 1046534
        %v6431 = vsel %vm6430, %v6418, %v6429
        %vm6432 = vcmask 1047559
        %v6433 = vsel %vm6432, %v6419, %v6431
        %v6434 = vpack.c.b16 %v6433, %v6433
        %v6452 = vunpack.c.l.b16 %v6384
        %v6453 = vunpack.c.l.b16 %v6385
        %v6454 = vunpack.c.l.b16 %v6386
        %v6455 = vunpack.c.l.b16 %v6387
        %v6456 = vunpack.c.l.b16 %v6388
        %v6457 = vunpack.c.l.b16 %v6389
        %v6458 = vunpack.c.l.b16 %v6390
        %v6459 = vunpack.c.l.b16 %v6391
        %v6460 = vunpack.c.l.b16 %v6392
        %v6461 = vunpack.c.l.b16 %v6393
        %v6462 = vunpack.c.l.b16 %v6394
        %v6463 = vunpack.c.l.b16 %v6395
        %v6464 = vunpack.c.l.b16 %v6396
        %v6465 = vunpack.c.l.b16 %v6397
        %v6466 = vunpack.c.l.b16 %v6398
        %v6467 = vunpack.c.l.b16 %v6399
        %v6468 = vpack.c.b16 %v6453, %v6452
        %v6469 = vpack.c.b16 %v6455, %v6454
        %v6470 = vpack.c.b16 %v6457, %v6456
        %v6471 = vpack.c.b16 %v6459, %v6458
        %v6472 = vpack.c.b16 %v6461, %v6460
        %v6473 = vpack.c.b16 %v6463, %v6462
        %v6474 = vpack.c.b16 %v6465, %v6464
        %v6475 = vpack.c.b16 %v6467, %v6466
        %6484 = vmatpush.bf16.msra.mxu0 %v6475
        %6485 = vmatpush.bf16.msra.mxu0 %v6474
        %6486 = vmatpush.bf16.msra.mxu0 %v6473
        %6487 = vmatpush.bf16.msra.mxu0 %v6472
        %6488 = vmatpush.bf16.msra.mxu0 %v6471
        %6489 = vmatpush.bf16.msra.mxu0 %v6470
        %6490 = vmatpush.bf16.msra.mxu0 %v6469
        %6491 = vmatpush.bf16.msra.mxu0 %v6468
        %6492 = vmatmul.bf16.gmra.mxu0 %v6434
        %v6493 = vpop.f32.mrf.mxu0
        %v6494 = vadd.f32 %v6402, %v6493
        %v6495 = vpop.f32.mrf.mxu0
        %6496 = vdwg.mxu0
        %6497 = vst [vmem:[%s569] sm:$0xff] %v6494
        %s6498 = sand.u32 %s423, 1
        %s6499 = scalar_lea.sflag [#allocation3], %s6498
        %s6500 = sand.u32 %s423, 1
        %s6501 = smul.addr %s6500, 8
        %s6502 = scalar_lea.vmem [#allocation2], %s6501
        // Predicated region
        $region93: #{lkca_forward.1} parent=91 // pred_check
          %p6503 = pneg %p433
        $region94: #{lkca_forward.1} parent=91 // pred_check_branch
          %6505 = sbr.rel (%p6503) target = $region96
        $region95: #{lkca_forward.1} parent=91 // pred_region
          %6507 = vsyncadd %s6499, 0
          %s6508 = smul.addr %s32, 8
          %s6509 = scalar_lea.hbm %s18, %s6508
          %s6511 = sshll.u32 %s6502, 4
          %s6512 = int_to_ptr.vmem [resolvable:$true] %s6511
          %s6513 = sshll.u32 %s6509, 4
          %s6514 = int_to_ptr.hbm [resolvable:$true] %s6513
          %6516 = dma.vmem_to_hbm [thread:$0]  %s6512, 128, %s6514, %s6499
        $region96: #{lkca_forward.1} parent=91 // pred_fallthru
          _
      $region92: #{lkca_forward.1} parent=5 // pred_fallthru
        _
      %p6517 = scmp.le.s32.totalorder 2, %s27
      // Predicated region
      $region97: #{lkca_forward.1} parent=5 // pred_check
        %p6518 = pneg %p6517
      $region98: #{lkca_forward.1} parent=5 // pred_check_branch
        %6520 = sbr.rel (%p6518) target = $region100
      $region99: #{lkca_forward.1} parent=5 // pred_region
        %s6521 = ssub.s32 %s27, 2
        // Predicated region
        $region101: #{lkca_forward.1} parent=99 // pred_check
          %p6522 = pneg %p439
        $region102: #{lkca_forward.1} parent=99 // pred_check_branch
          %6524 = sbr.rel (%p6522) target = $region104
        $region103: #{lkca_forward.1} parent=99 // pred_region
          %s6525 = sand.u32 %s424, 1
          %s6526 = scalar_lea.sflag [#allocation3], %s6525
          %s6527 = sand.u32 %s424, 1
          %s6528 = smul.addr %s6527, 8
          %s6529 = scalar_lea.vmem [#allocation2], %s6528
          %6531 = dma.done %s6526, 128
        $region104: #{lkca_forward.1} parent=99 // pred_fallthru
          _
      $region100: #{lkca_forward.1} parent=5 // pred_fallthru
        _
    $region6: #{lkca_forward.1} parent=1 // loop_footer
      %s31 = sadd.s32 1, %s27
    $region7: #{lkca_forward.1} parent=1 // loop_footer_branch
      %26 = sbr.rel target = $region3
    $region8: #{lkca_forward.1} parent=1 // loop_exit
      _
    %6532 = vsyncpa [#allocation3], 1
    %s6533 = scalar_lea.sflag [#allocation3], 1
    %6534 = vsyncpa %s6533, 1

</llo_original>
